<compile_context>
chip_gen: v5e
topology: v5e:2x2
jax: 0.10.0
libtpu: 0.0.40
codegen_flags: <defaults>
</compile_context>

<pallas_src>
import math
import functools

import jax
import jax.numpy as jnp
import numpy as np
from jax import lax
from jax.experimental import pallas as pl
from jax.experimental.pallas import tpu as pltpu

C = 64              # fixed by the module (Conv2d(64, 64, 3, padding=1, bias=False))
EPS = 1e-5          # nn.InstanceNorm2d default eps
NEG_SLOPE = 0.2     # LeakyReLU slope
MM_DTYPE = jnp.bfloat16   # MXU operand dtype (f32 accumulation). bf16 is native on
                          # v5e/v6e/v7x MXUs; flip to jnp.float32 for bit-tight numerics.


def _conv3x3_in(xp_ref, col_ref, w_ref, g_ref, b_ref, inp4, *, nb, h, w):
    """conv3x3(pad=1) -> InstanceNorm(affine) for an (nb, h, w, C) activation.

    xp_ref : (nb, h+2, w+2, C) f32 padded scratch (border strips already zero)
    col_ref: (nb*h*w, 9*C) MM_DTYPE im2col scratch
    w_ref  : (9*C, C) MM_DTYPE weights, K ordered as (ky, kx, cin)
    g_ref/b_ref: (1, C) f32 affine params
    inp4   : (nb, h, w, C) f32 conv input
    returns: (nb*h*w, C) f32 normalized output
    """
    c = inp4.shape[-1]
    hw = h * w

    # Fill the padded interior; borders stay zero (cleared once per grid step).
    xp_ref[:, 1:h + 1, 1:w + 1, :] = inp4

    # im2col: pack the 9 taps along the contraction dim so the whole conv is a
    # single MXU GEMM (M = nb*h*w, K = 9*C = 576, N = C) instead of 9 K=64 dots.
    for ky in range(3):
        for kx in range(3):
            t = ky * 3 + kx
            win = xp_ref[:, pl.ds(ky, h), pl.ds(kx, w), :]          # (nb,h,w,C)
            col_ref[:, t * c:(t + 1) * c] = (
                win.reshape(nb * hw, c).astype(col_ref.dtype))

    y = jnp.dot(col_ref[...], w_ref[...],
                preferred_element_type=jnp.float32)                 # (nb*hw, C) f32

    # Fused InstanceNorm: sums * 1/HW (no jnp.mean), two-pass variance for
    # numerical safety, and a single scale/shift application per element.
    inv_hw = 1.0 / float(hw)
    y3 = y.reshape(nb, hw, c)                                       # per-image view
    mean = jnp.sum(y3, axis=1, keepdims=True) * inv_hw              # (nb,1,C)
    d = y3 - mean
    var = jnp.sum(d * d, axis=1, keepdims=True) * inv_hw            # biased, as torch
    scale = g_ref[...] * lax.rsqrt(var + EPS)                       # (nb,1,C)
    return (d * scale + b_ref[...]).reshape(nb * hw, c)


def _resblock_kernel(x_ref, w1_ref, g1_ref, b1_ref, w2_ref, g2_ref, b2_ref,
                     o_ref, xp_ref, col_ref, *, nb, h, w):
    c = x_ref.shape[-1]

    # Clear ONLY the four border strips of the padded scratch — the interior is
    # fully overwritten before each conv, so no full re-zero per step.
    # (Not guarded by program_id(0) == 0: on multi-TensorCore parts the
    # "parallel" batch axis is split across cores and a core may never execute
    # step 0 while owning its own scratch instance; the strips are tiny.)
    xp_ref[:, 0:1, :, :] = jnp.zeros((nb, 1, w + 2, c), xp_ref.dtype)
    xp_ref[:, h + 1:h + 2, :, :] = jnp.zeros((nb, 1, w + 2, c), xp_ref.dtype)
    xp_ref[:, 1:h + 1, 0:1, :] = jnp.zeros((nb, h, 1, c), xp_ref.dtype)
    xp_ref[:, 1:h + 1, w + 1:w + 2, :] = jnp.zeros((nb, h, 1, c), xp_ref.dtype)

    x = x_ref[...].astype(jnp.float32)              # (nb*h*w, C), lane dim = C
    x4 = x.reshape(nb, h, w, c)                     # tile-aligned (free) split

    # conv1 -> InstanceNorm1(affine) -> LeakyReLU(0.2)   (elementwise kept f32)
    y = _conv3x3_in(xp_ref, col_ref, w1_ref, g1_ref, b1_ref, x4, nb=nb, h=h, w=w)
    y = jnp.where(y > 0, y, NEG_SLOPE * y)

    # conv2 -> InstanceNorm2(affine)
    y = _conv3x3_in(xp_ref, col_ref, w2_ref, g2_ref, b2_ref,
                    y.reshape(nb, h, w, c), nb=nb, h=h, w=w)

    # residual add; store matches the out block layout exactly (no reshape)
    o_ref[...] = (y + x).astype(o_ref.dtype)


def _pick_nb(n):
    """Images per grid step: amortize per-step overhead (small H/W) while
    keeping >= 2 grid steps so megacore / v7x's two TensorCores split the batch."""
    for cand in (8, 4, 2):
        if n % cand == 0 and n // cand >= 2:
            return cand
    return 1


def _residual_block_p(x2d, w1, g1, b1, w2, g2, b2, *, nb, h, w):
    nhw, c = x2d.shape
    blk = nb * h * w
    grid = (nhw // blk,)
    kernel = functools.partial(_resblock_kernel, nb=nb, h=h, w=w)
    # NOTE: whole-image blocks fit easily at these sizes; for large H*W on v7x
    # (64 MiB VMEM) this should be re-tiled along H with a 1-row halo.
    return pl.pallas_call(
        kernel,
        out_shape=jax.ShapeDtypeStruct((nhw, c), x2d.dtype),
        grid_spec=pltpu.PrefetchScalarGridSpec(
            num_scalar_prefetch=0,
            grid=grid,
            in_specs=[
                pl.BlockSpec((blk, c), lambda n: (n, 0)),       # activations
                pl.BlockSpec((9 * c, c), lambda n: (0, 0)),     # w1 (VMEM-resident)
                pl.BlockSpec((1, c), lambda n: (0, 0)),         # gamma1
                pl.BlockSpec((1, c), lambda n: (0, 0)),         # beta1
                pl.BlockSpec((9 * c, c), lambda n: (0, 0)),     # w2 (VMEM-resident)
                pl.BlockSpec((1, c), lambda n: (0, 0)),         # gamma2
                pl.BlockSpec((1, c), lambda n: (0, 0)),         # beta2
            ],
            out_specs=pl.BlockSpec((blk, c), lambda n: (n, 0)),
            scratch_shapes=[
                pltpu.VMEM((nb, h + 2, w + 2, c), jnp.float32),  # padded input
                pltpu.VMEM((nb * h * w, 9 * c), MM_DTYPE),       # im2col patches
            ],
        ),
        compiler_params=pltpu.CompilerParams(
            dimension_semantics=("parallel",)),
    )(x2d, w1, g1, b1, w2, g2, b2)


def residual_block(x_nchw, w1_oihw, g1, b1, w2_oihw, g2, b2):
    """PyTorch-compatible entry point: NCHW in/out, OIHW conv weights."""
    n, c, h, w = x_nchw.shape
    assert c == C
    # NCHW -> pixel-major (N*H*W, C): channel-minor slab matching the kernel's
    # internal (HW, C) GEMM layout, so no layout-changing reshapes in-kernel.
    x2d = jnp.transpose(x_nchw, (0, 2, 3, 1)).reshape(n * h * w, c)

    def to_gemm(wt):  # OIHW -> (ky*3*C + kx*C + cin, cout), MXU operand dtype
        return jnp.transpose(wt, (2, 3, 1, 0)).reshape(9 * c, c).astype(MM_DTYPE)

    nb = _pick_nb(n)
    out2d = _residual_block_p(
        x2d, to_gemm(w1_oihw),
        g1.reshape(1, c).astype(jnp.float32), b1.reshape(1, c).astype(jnp.float32),
        to_gemm(w2_oihw),
        g2.reshape(1, c).astype(jnp.float32), b2.reshape(1, c).astype(jnp.float32),
        nb=nb, h=h, w=w)
    return jnp.transpose(out2d.reshape(n, h, w, c), (0, 3, 1, 2))


def ref_forward(x, w1, g1, b1, w2, g2, b2):
    """Pure-JAX f32 NCHW reference mirroring the PyTorch forward."""
    def conv(t, wt):
        return lax.conv_general_dilated(
            t, wt, (1, 1), ((1, 1), (1, 1)),
            dimension_numbers=("NCHW", "OIHW", "NCHW"))

    def inorm(t, g, b):
        mean = t.mean(axis=(2, 3), keepdims=True)
        var = ((t - mean) ** 2).mean(axis=(2, 3), keepdims=True)
        tn = (t - mean) * lax.rsqrt(var + EPS)
        return tn * g[None, :, None, None] + b[None, :, None, None]

    y = conv(x, w1)
    y = inorm(y, g1, b1)
    y = jnp.where(y > 0, y, NEG_SLOPE * y)
    y = conv(y, w2)
    y = inorm(y, g2, b2)
    return y + x


if __name__ == "__main__":
    key = jax.random.PRNGKey(0)
    ks = jax.random.split(key, 7)
    N, H, W = 2, 16, 16

    x_nchw = jax.random.normal(ks[0], (N, C, H, W), jnp.float32)
    fan_in = C * 9
    w1 = jax.random.normal(ks[1], (C, C, 3, 3), jnp.float32) / math.sqrt(fan_in)
    w2 = jax.random.normal(ks[2], (C, C, 3, 3), jnp.float32) / math.sqrt(fan_in)
    g1 = 1.0 + 0.1 * jax.random.normal(ks[3], (C,), jnp.float32)
    b1 = 0.1 * jax.random.normal(ks[4], (C,), jnp.float32)
    g2 = 1.0 + 0.1 * jax.random.normal(ks[5], (C,), jnp.float32)
    b2 = 0.1 * jax.random.normal(ks[6], (C,), jnp.float32)

    out = residual_block(x_nchw, w1, g1, b1, w2, g2, b2)
    out = jax.block_until_ready(out)

    ref = ref_forward(x_nchw, w1, g1, b1, w2, g2, b2)
    # Tolerance reflects bf16 MXU operands (f32 accumulation) vs. the pure-f32
    # reference across two stacked convs; set MM_DTYPE=jnp.float32 for ~2e-3.
    np.testing.assert_allclose(np.asarray(out), np.asarray(ref),
                               rtol=3e-2, atol=3e-2)
    print("KERNEL_OK")
</pallas_src>

<mosaic_0001>
module attributes {stable_mosaic.version = 11 : i64} {
  func.func @_resblock_kernel(%arg0: i32, %arg1: memref<256x64xf32, #tpu.memory_space<vmem>>, %arg2: memref<576x64xbf16, #tpu.memory_space<vmem>>, %arg3: memref<1x64xf32, #tpu.memory_space<vmem>>, %arg4: memref<1x64xf32, #tpu.memory_space<vmem>>, %arg5: memref<576x64xbf16, #tpu.memory_space<vmem>>, %arg6: memref<1x64xf32, #tpu.memory_space<vmem>>, %arg7: memref<1x64xf32, #tpu.memory_space<vmem>>, %arg8: memref<256x64xf32, #tpu.memory_space<vmem>>, %arg9: memref<1x18x18x64xf32, #tpu.memory_space<vmem>>, %arg10: memref<256x576xbf16, #tpu.memory_space<vmem>>) attributes {dimension_semantics = [#tpu.dimension_semantics<parallel>], iteration_bounds = array<i64: 2>, scalar_prefetch = 0 : i64, scratch_operands = 2 : i64, tpu.core_type = #tpu.core_type<tc>, window_params = [{transform_indices = @transform_0, window_bounds = array<i64: 256, 64>}, {pipeline_mode = #tpu.pipeline_mode<synchronous>, transform_indices = @transform_1, window_bounds = array<i64: 576, 64>}, {pipeline_mode = #tpu.pipeline_mode<synchronous>, transform_indices = @transform_2, window_bounds = array<i64: 1, 64>}, {pipeline_mode = #tpu.pipeline_mode<synchronous>, transform_indices = @transform_3, window_bounds = array<i64: 1, 64>}, {pipeline_mode = #tpu.pipeline_mode<synchronous>, transform_indices = @transform_4, window_bounds = array<i64: 576, 64>}, {pipeline_mode = #tpu.pipeline_mode<synchronous>, transform_indices = @transform_5, window_bounds = array<i64: 1, 64>}, {pipeline_mode = #tpu.pipeline_mode<synchronous>, transform_indices = @transform_6, window_bounds = array<i64: 1, 64>}, {transform_indices = @transform_7, window_bounds = array<i64: 256, 64>}]} {
    %cst = arith.constant 0.000000e+00 : f32
    %0 = vector.broadcast %cst : f32 to vector<1x1x18x64xf32>
    %c0 = arith.constant 0 : index
    %c0_0 = arith.constant 0 : index
    %c0_1 = arith.constant 0 : index
    %c0_2 = arith.constant 0 : index
    %1 = vector.load %arg9[%c0, %c0_0, %c0_1, %c0_2] : memref<1x18x18x64xf32, #tpu.memory_space<vmem>>, vector<1x1x18x64xf32>
    tpu.vector_store %arg9[%c0, %c0_0, %c0_1, %c0_2], %0 {strides = array<i32>} : memref<1x18x18x64xf32, #tpu.memory_space<vmem>>, vector<1x1x18x64xf32>,
    %cst_3 = arith.constant 0.000000e+00 : f32
    %2 = vector.broadcast %cst_3 : f32 to vector<1x1x18x64xf32>
    %c0_4 = arith.constant 0 : index
    %c17 = arith.constant 17 : index
    %c0_5 = arith.constant 0 : index
    %c0_6 = arith.constant 0 : index
    %3 = vector.load %arg9[%c0_4, %c17, %c0_5, %c0_6] : memref<1x18x18x64xf32, #tpu.memory_space<vmem>>, vector<1x1x18x64xf32>
    tpu.vector_store %arg9[%c0_4, %c17, %c0_5, %c0_6], %2 {strides = array<i32>} : memref<1x18x18x64xf32, #tpu.memory_space<vmem>>, vector<1x1x18x64xf32>,
    %cst_7 = arith.constant 0.000000e+00 : f32
    %4 = vector.broadcast %cst_7 : f32 to vector<1x16x1x64xf32>
    %c0_8 = arith.constant 0 : index
    %c1 = arith.constant 1 : index
    %c0_9 = arith.constant 0 : index
    %c0_10 = arith.constant 0 : index
    %5 = vector.load %arg9[%c0_8, %c1, %c0_9, %c0_10] : memref<1x18x18x64xf32, #tpu.memory_space<vmem>>, vector<1x16x1x64xf32>
    tpu.vector_store %arg9[%c0_8, %c1, %c0_9, %c0_10], %4 {strides = array<i32>} : memref<1x18x18x64xf32, #tpu.memory_space<vmem>>, vector<1x16x1x64xf32>,
    %cst_11 = arith.constant 0.000000e+00 : f32
    %6 = vector.broadcast %cst_11 : f32 to vector<1x16x1x64xf32>
    %c0_12 = arith.constant 0 : index
    %c1_13 = arith.constant 1 : index
    %c17_14 = arith.constant 17 : index
    %c0_15 = arith.constant 0 : index
    %7 = vector.load %arg9[%c0_12, %c1_13, %c17_14, %c0_15] : memref<1x18x18x64xf32, #tpu.memory_space<vmem>>, vector<1x16x1x64xf32>
    tpu.vector_store %arg9[%c0_12, %c1_13, %c17_14, %c0_15], %6 {strides = array<i32>} : memref<1x18x18x64xf32, #tpu.memory_space<vmem>>, vector<1x16x1x64xf32>,
    %c0_16 = arith.constant 0 : index
    %c0_17 = arith.constant 0 : index
    %8 = vector.load %arg1[%c0_16, %c0_17] : memref<256x64xf32, #tpu.memory_space<vmem>>, vector<256x64xf32>
    %9 = vector.shape_cast %8 : vector<256x64xf32> to vector<1x16x16x64xf32>
    %c0_18 = arith.constant 0 : index
    %c1_19 = arith.constant 1 : index
    %c1_20 = arith.constant 1 : index
    %c0_21 = arith.constant 0 : index
    %10 = vector.load %arg9[%c0_18, %c1_19, %c1_20, %c0_21] : memref<1x18x18x64xf32, #tpu.memory_space<vmem>>, vector<1x16x16x64xf32>
    tpu.vector_store %arg9[%c0_18, %c1_19, %c1_20, %c0_21], %9 {strides = array<i32>} : memref<1x18x18x64xf32, #tpu.memory_space<vmem>>, vector<1x16x16x64xf32>,
    %c0_22 = arith.constant 0 : index
    %c0_23 = arith.constant 0 : index
    %c0_24 = arith.constant 0 : index
    %c0_25 = arith.constant 0 : index
    %11 = vector.load %arg9[%c0_22, %c0_23, %c0_24, %c0_25] : memref<1x18x18x64xf32, #tpu.memory_space<vmem>>, vector<1x16x16x64xf32>
    %12 = vector.shape_cast %11 : vector<1x16x16x64xf32> to vector<256x64xf32>
    %13 = arith.truncf %12 : vector<256x64xf32> to vector<256x64xbf16>
    %c0_26 = arith.constant 0 : index
    %c0_27 = arith.constant 0 : index
    %14 = vector.load %arg10[%c0_26, %c0_27] : memref<256x576xbf16, #tpu.memory_space<vmem>>, vector<256x64xbf16>
    tpu.vector_store %arg10[%c0_26, %c0_27], %13 {strides = array<i32>} : memref<256x576xbf16, #tpu.memory_space<vmem>>, vector<256x64xbf16>,
    %c0_28 = arith.constant 0 : index
    %c0_29 = arith.constant 0 : index
    %c1_30 = arith.constant 1 : index
    %c0_31 = arith.constant 0 : index
    %15 = vector.load %arg9[%c0_28, %c0_29, %c1_30, %c0_31] : memref<1x18x18x64xf32, #tpu.memory_space<vmem>>, vector<1x16x16x64xf32>
    %16 = vector.shape_cast %15 : vector<1x16x16x64xf32> to vector<256x64xf32>
    %17 = arith.truncf %16 : vector<256x64xf32> to vector<256x64xbf16>
    %c0_32 = arith.constant 0 : index
    %c64 = arith.constant 64 : index
    %18 = vector.load %arg10[%c0_32, %c64] : memref<256x576xbf16, #tpu.memory_space<vmem>>, vector<256x64xbf16>
    tpu.vector_store %arg10[%c0_32, %c64], %17 {strides = array<i32>} : memref<256x576xbf16, #tpu.memory_space<vmem>>, vector<256x64xbf16>,
    %c0_33 = arith.constant 0 : index
    %c0_34 = arith.constant 0 : index
    %c2 = arith.constant 2 : index
    %c0_35 = arith.constant 0 : index
    %19 = vector.load %arg9[%c0_33, %c0_34, %c2, %c0_35] : memref<1x18x18x64xf32, #tpu.memory_space<vmem>>, vector<1x16x16x64xf32>
    %20 = vector.shape_cast %19 : vector<1x16x16x64xf32> to vector<256x64xf32>
    %21 = arith.truncf %20 : vector<256x64xf32> to vector<256x64xbf16>
    %c0_36 = arith.constant 0 : index
    %c128 = arith.constant 128 : index
    %22 = vector.load %arg10[%c0_36, %c128] : memref<256x576xbf16, #tpu.memory_space<vmem>>, vector<256x64xbf16>
    tpu.vector_store %arg10[%c0_36, %c128], %21 {strides = array<i32>} : memref<256x576xbf16, #tpu.memory_space<vmem>>, vector<256x64xbf16>,
    %c0_37 = arith.constant 0 : index
    %c1_38 = arith.constant 1 : index
    %c0_39 = arith.constant 0 : index
    %c0_40 = arith.constant 0 : index
    %23 = vector.load %arg9[%c0_37, %c1_38, %c0_39, %c0_40] : memref<1x18x18x64xf32, #tpu.memory_space<vmem>>, vector<1x16x16x64xf32>
    %24 = vector.shape_cast %23 : vector<1x16x16x64xf32> to vector<256x64xf32>
    %25 = arith.truncf %24 : vector<256x64xf32> to vector<256x64xbf16>
    %c0_41 = arith.constant 0 : index
    %c192 = arith.constant 192 : index
    %26 = vector.load %arg10[%c0_41, %c192] : memref<256x576xbf16, #tpu.memory_space<vmem>>, vector<256x64xbf16>
    tpu.vector_store %arg10[%c0_41, %c192], %25 {strides = array<i32>} : memref<256x576xbf16, #tpu.memory_space<vmem>>, vector<256x64xbf16>,
    %c0_42 = arith.constant 0 : index
    %c1_43 = arith.constant 1 : index
    %c1_44 = arith.constant 1 : index
    %c0_45 = arith.constant 0 : index
    %27 = vector.load %arg9[%c0_42, %c1_43, %c1_44, %c0_45] : memref<1x18x18x64xf32, #tpu.memory_space<vmem>>, vector<1x16x16x64xf32>
    %28 = vector.shape_cast %27 : vector<1x16x16x64xf32> to vector<256x64xf32>
    %29 = arith.truncf %28 : vector<256x64xf32> to vector<256x64xbf16>
    %c0_46 = arith.constant 0 : index
    %c256 = arith.constant 256 : index
    %30 = vector.load %arg10[%c0_46, %c256] : memref<256x576xbf16, #tpu.memory_space<vmem>>, vector<256x64xbf16>
    tpu.vector_store %arg10[%c0_46, %c256], %29 {strides = array<i32>} : memref<256x576xbf16, #tpu.memory_space<vmem>>, vector<256x64xbf16>,
    %c0_47 = arith.constant 0 : index
    %c1_48 = arith.constant 1 : index
    %c2_49 = arith.constant 2 : index
    %c0_50 = arith.constant 0 : index
    %31 = vector.load %arg9[%c0_47, %c1_48, %c2_49, %c0_50] : memref<1x18x18x64xf32, #tpu.memory_space<vmem>>, vector<1x16x16x64xf32>
    %32 = vector.shape_cast %31 : vector<1x16x16x64xf32> to vector<256x64xf32>
    %33 = arith.truncf %32 : vector<256x64xf32> to vector<256x64xbf16>
    %c0_51 = arith.constant 0 : index
    %c320 = arith.constant 320 : index
    %34 = vector.load %arg10[%c0_51, %c320] : memref<256x576xbf16, #tpu.memory_space<vmem>>, vector<256x64xbf16>
    tpu.vector_store %arg10[%c0_51, %c320], %33 {strides = array<i32>} : memref<256x576xbf16, #tpu.memory_space<vmem>>, vector<256x64xbf16>,
    %c0_52 = arith.constant 0 : index
    %c2_53 = arith.constant 2 : index
    %c0_54 = arith.constant 0 : index
    %c0_55 = arith.constant 0 : index
    %35 = vector.load %arg9[%c0_52, %c2_53, %c0_54, %c0_55] : memref<1x18x18x64xf32, #tpu.memory_space<vmem>>, vector<1x16x16x64xf32>
    %36 = vector.shape_cast %35 : vector<1x16x16x64xf32> to vector<256x64xf32>
    %37 = arith.truncf %36 : vector<256x64xf32> to vector<256x64xbf16>
    %c0_56 = arith.constant 0 : index
    %c384 = arith.constant 384 : index
    %38 = vector.load %arg10[%c0_56, %c384] : memref<256x576xbf16, #tpu.memory_space<vmem>>, vector<256x64xbf16>
    tpu.vector_store %arg10[%c0_56, %c384], %37 {strides = array<i32>} : memref<256x576xbf16, #tpu.memory_space<vmem>>, vector<256x64xbf16>,
    %c0_57 = arith.constant 0 : index
    %c2_58 = arith.constant 2 : index
    %c1_59 = arith.constant 1 : index
    %c0_60 = arith.constant 0 : index
    %39 = vector.load %arg9[%c0_57, %c2_58, %c1_59, %c0_60] : memref<1x18x18x64xf32, #tpu.memory_space<vmem>>, vector<1x16x16x64xf32>
    %40 = vector.shape_cast %39 : vector<1x16x16x64xf32> to vector<256x64xf32>
    %41 = arith.truncf %40 : vector<256x64xf32> to vector<256x64xbf16>
    %c0_61 = arith.constant 0 : index
    %c448 = arith.constant 448 : index
    %42 = vector.load %arg10[%c0_61, %c448] : memref<256x576xbf16, #tpu.memory_space<vmem>>, vector<256x64xbf16>
    tpu.vector_store %arg10[%c0_61, %c448], %41 {strides = array<i32>} : memref<256x576xbf16, #tpu.memory_space<vmem>>, vector<256x64xbf16>,
    %c0_62 = arith.constant 0 : index
    %c2_63 = arith.constant 2 : index
    %c2_64 = arith.constant 2 : index
    %c0_65 = arith.constant 0 : index
    %43 = vector.load %arg9[%c0_62, %c2_63, %c2_64, %c0_65] : memref<1x18x18x64xf32, #tpu.memory_space<vmem>>, vector<1x16x16x64xf32>
    %44 = vector.shape_cast %43 : vector<1x16x16x64xf32> to vector<256x64xf32>
    %45 = arith.truncf %44 : vector<256x64xf32> to vector<256x64xbf16>
    %c0_66 = arith.constant 0 : index
    %c512 = arith.constant 512 : index
    %46 = vector.load %arg10[%c0_66, %c512] : memref<256x576xbf16, #tpu.memory_space<vmem>>, vector<256x64xbf16>
    tpu.vector_store %arg10[%c0_66, %c512], %45 {strides = array<i32>} : memref<256x576xbf16, #tpu.memory_space<vmem>>, vector<256x64xbf16>,
    %c0_67 = arith.constant 0 : index
    %c0_68 = arith.constant 0 : index
    %47 = vector.load %arg10[%c0_67, %c0_68] : memref<256x576xbf16, #tpu.memory_space<vmem>>, vector<256x576xbf16>
    %c0_69 = arith.constant 0 : index
    %c0_70 = arith.constant 0 : index
    %48 = vector.load %arg2[%c0_69, %c0_70] : memref<576x64xbf16, #tpu.memory_space<vmem>>, vector<576x64xbf16>
    %cst_71 = arith.constant dense<0.000000e+00> : vector<256x64xf32>
    %49 = tpu.matmul %47, %48, %cst_71 {dimension_numbers = #tpu.dot_dimension_numbers<[1], [0], [0], [1], [0, 0, 1, 1], [], []>} : vector<256x576xbf16>, vector<576x64xbf16>, vector<256x64xf32> -> vector<256x64xf32>
    %50 = vector.shape_cast %49 : vector<256x64xf32> to vector<1x256x64xf32>
    %cst_72 = arith.constant dense<0.000000e+00> : vector<1x64xf32>
    %51 = vector.multi_reduction <add>, %50, %cst_72 [1] : vector<1x256x64xf32> to vector<1x64xf32>
    %52 = vector.shape_cast %51 : vector<1x64xf32> to vector<1x1x64xf32>
    %cst_73 = arith.constant 3.906250e-03 : f32
    %53 = vector.broadcast %cst_73 : f32 to vector<1x1x64xf32>
    %54 = arith.mulf %52, %53 : vector<1x1x64xf32>
    %55 = vector.broadcast %54 : vector<1x1x64xf32> to vector<1x256x64xf32>
    %56 = arith.subf %50, %55 : vector<1x256x64xf32>
    %57 = arith.mulf %56, %56 : vector<1x256x64xf32>
    %cst_74 = arith.constant dense<0.000000e+00> : vector<1x64xf32>
    %58 = vector.multi_reduction <add>, %57, %cst_74 [1] : vector<1x256x64xf32> to vector<1x64xf32>
    %59 = vector.shape_cast %58 : vector<1x64xf32> to vector<1x1x64xf32>
    %cst_75 = arith.constant 3.906250e-03 : f32
    %60 = vector.broadcast %cst_75 : f32 to vector<1x1x64xf32>
    %61 = arith.mulf %59, %60 : vector<1x1x64xf32>
    %c0_76 = arith.constant 0 : index
    %c0_77 = arith.constant 0 : index
    %62 = vector.load %arg3[%c0_76, %c0_77] : memref<1x64xf32, #tpu.memory_space<vmem>>, vector<1x64xf32>
    %cst_78 = arith.constant 9.99999974E-6 : f32
    %63 = vector.broadcast %cst_78 : f32 to vector<1x1x64xf32>
    %64 = arith.addf %61, %63 : vector<1x1x64xf32>
    %65 = math.rsqrt %64 : vector<1x1x64xf32>
    %66 = vector.shape_cast %62 : vector<1x64xf32> to vector<1x1x64xf32>
    %67 = arith.mulf %66, %65 : vector<1x1x64xf32>
    %68 = vector.broadcast %67 : vector<1x1x64xf32> to vector<1x256x64xf32>
    %69 = arith.mulf %56, %68 : vector<1x256x64xf32>
    %c0_79 = arith.constant 0 : index
    %c0_80 = arith.constant 0 : index
    %70 = vector.load %arg4[%c0_79, %c0_80] : memref<1x64xf32, #tpu.memory_space<vmem>>, vector<1x64xf32>
    %71 = vector.shape_cast %70 : vector<1x64xf32> to vector<1x1x64xf32>
    %72 = vector.broadcast %71 : vector<1x1x64xf32> to vector<1x256x64xf32>
    %73 = arith.addf %69, %72 : vector<1x256x64xf32>
    %74 = vector.shape_cast %73 : vector<1x256x64xf32> to vector<256x64xf32>
    %cst_81 = arith.constant 0.000000e+00 : f32
    %75 = vector.broadcast %cst_81 : f32 to vector<256x64xf32>
    %76 = arith.cmpf ogt, %74, %75 : vector<256x64xf32>
    %cst_82 = arith.constant 2.000000e-01 : f32
    %77 = vector.broadcast %cst_82 : f32 to vector<256x64xf32>
    %78 = arith.mulf %77, %74 : vector<256x64xf32>
    %79 = arith.select %76, %74, %78 : vector<256x64xi1>, vector<256x64xf32>
    %80 = vector.shape_cast %79 : vector<256x64xf32> to vector<1x16x16x64xf32>
    %c0_83 = arith.constant 0 : index
    %c1_84 = arith.constant 1 : index
    %c1_85 = arith.constant 1 : index
    %c0_86 = arith.constant 0 : index
    %81 = vector.load %arg9[%c0_83, %c1_84, %c1_85, %c0_86] : memref<1x18x18x64xf32, #tpu.memory_space<vmem>>, vector<1x16x16x64xf32>
    tpu.vector_store %arg9[%c0_83, %c1_84, %c1_85, %c0_86], %80 {strides = array<i32>} : memref<1x18x18x64xf32, #tpu.memory_space<vmem>>, vector<1x16x16x64xf32>,
    %c0_87 = arith.constant 0 : index
    %c0_88 = arith.constant 0 : index
    %c0_89 = arith.constant 0 : index
    %c0_90 = arith.constant 0 : index
    %82 = vector.load %arg9[%c0_87, %c0_88, %c0_89, %c0_90] : memref<1x18x18x64xf32, #tpu.memory_space<vmem>>, vector<1x16x16x64xf32>
    %83 = vector.shape_cast %82 : vector<1x16x16x64xf32> to vector<256x64xf32>
    %84 = arith.truncf %83 : vector<256x64xf32> to vector<256x64xbf16>
    %c0_91 = arith.constant 0 : index
    %c0_92 = arith.constant 0 : index
    %85 = vector.load %arg10[%c0_91, %c0_92] : memref<256x576xbf16, #tpu.memory_space<vmem>>, vector<256x64xbf16>
    tpu.vector_store %arg10[%c0_91, %c0_92], %84 {strides = array<i32>} : memref<256x576xbf16, #tpu.memory_space<vmem>>, vector<256x64xbf16>,
    %c0_93 = arith.constant 0 : index
    %c0_94 = arith.constant 0 : index
    %c1_95 = arith.constant 1 : index
    %c0_96 = arith.constant 0 : index
    %86 = vector.load %arg9[%c0_93, %c0_94, %c1_95, %c0_96] : memref<1x18x18x64xf32, #tpu.memory_space<vmem>>, vector<1x16x16x64xf32>
    %87 = vector.shape_cast %86 : vector<1x16x16x64xf32> to vector<256x64xf32>
    %88 = arith.truncf %87 : vector<256x64xf32> to vector<256x64xbf16>
    %c0_97 = arith.constant 0 : index
    %c64_98 = arith.constant 64 : index
    %89 = vector.load %arg10[%c0_97, %c64_98] : memref<256x576xbf16, #tpu.memory_space<vmem>>, vector<256x64xbf16>
    tpu.vector_store %arg10[%c0_97, %c64_98], %88 {strides = array<i32>} : memref<256x576xbf16, #tpu.memory_space<vmem>>, vector<256x64xbf16>,
    %c0_99 = arith.constant 0 : index
    %c0_100 = arith.constant 0 : index
    %c2_101 = arith.constant 2 : index
    %c0_102 = arith.constant 0 : index
    %90 = vector.load %arg9[%c0_99, %c0_100, %c2_101, %c0_102] : memref<1x18x18x64xf32, #tpu.memory_space<vmem>>, vector<1x16x16x64xf32>
    %91 = vector.shape_cast %90 : vector<1x16x16x64xf32> to vector<256x64xf32>
    %92 = arith.truncf %91 : vector<256x64xf32> to vector<256x64xbf16>
    %c0_103 = arith.constant 0 : index
    %c128_104 = arith.constant 128 : index
    %93 = vector.load %arg10[%c0_103, %c128_104] : memref<256x576xbf16, #tpu.memory_space<vmem>>, vector<256x64xbf16>
    tpu.vector_store %arg10[%c0_103, %c128_104], %92 {strides = array<i32>} : memref<256x576xbf16, #tpu.memory_space<vmem>>, vector<256x64xbf16>,
    %c0_105 = arith.constant 0 : index
    %c1_106 = arith.constant 1 : index
    %c0_107 = arith.constant 0 : index
    %c0_108 = arith.constant 0 : index
    %94 = vector.load %arg9[%c0_105, %c1_106, %c0_107, %c0_108] : memref<1x18x18x64xf32, #tpu.memory_space<vmem>>, vector<1x16x16x64xf32>
    %95 = vector.shape_cast %94 : vector<1x16x16x64xf32> to vector<256x64xf32>
    %96 = arith.truncf %95 : vector<256x64xf32> to vector<256x64xbf16>
    %c0_109 = arith.constant 0 : index
    %c192_110 = arith.constant 192 : index
    %97 = vector.load %arg10[%c0_109, %c192_110] : memref<256x576xbf16, #tpu.memory_space<vmem>>, vector<256x64xbf16>
    tpu.vector_store %arg10[%c0_109, %c192_110], %96 {strides = array<i32>} : memref<256x576xbf16, #tpu.memory_space<vmem>>, vector<256x64xbf16>,
    %c0_111 = arith.constant 0 : index
    %c1_112 = arith.constant 1 : index
    %c1_113 = arith.constant 1 : index
    %c0_114 = arith.constant 0 : index
    %98 = vector.load %arg9[%c0_111, %c1_112, %c1_113, %c0_114] : memref<1x18x18x64xf32, #tpu.memory_space<vmem>>, vector<1x16x16x64xf32>
    %99 = vector.shape_cast %98 : vector<1x16x16x64xf32> to vector<256x64xf32>
    %100 = arith.truncf %99 : vector<256x64xf32> to vector<256x64xbf16>
    %c0_115 = arith.constant 0 : index
    %c256_116 = arith.constant 256 : index
    %101 = vector.load %arg10[%c0_115, %c256_116] : memref<256x576xbf16, #tpu.memory_space<vmem>>, vector<256x64xbf16>
    tpu.vector_store %arg10[%c0_115, %c256_116], %100 {strides = array<i32>} : memref<256x576xbf16, #tpu.memory_space<vmem>>, vector<256x64xbf16>,
    %c0_117 = arith.constant 0 : index
    %c1_118 = arith.constant 1 : index
    %c2_119 = arith.constant 2 : index
    %c0_120 = arith.constant 0 : index
    %102 = vector.load %arg9[%c0_117, %c1_118, %c2_119, %c0_120] : memref<1x18x18x64xf32, #tpu.memory_space<vmem>>, vector<1x16x16x64xf32>
    %103 = vector.shape_cast %102 : vector<1x16x16x64xf32> to vector<256x64xf32>
    %104 = arith.truncf %103 : vector<256x64xf32> to vector<256x64xbf16>
    %c0_121 = arith.constant 0 : index
    %c320_122 = arith.constant 320 : index
    %105 = vector.load %arg10[%c0_121, %c320_122] : memref<256x576xbf16, #tpu.memory_space<vmem>>, vector<256x64xbf16>
    tpu.vector_store %arg10[%c0_121, %c320_122], %104 {strides = array<i32>} : memref<256x576xbf16, #tpu.memory_space<vmem>>, vector<256x64xbf16>,
    %c0_123 = arith.constant 0 : index
    %c2_124 = arith.constant 2 : index
    %c0_125 = arith.constant 0 : index
    %c0_126 = arith.constant 0 : index
    %106 = vector.load %arg9[%c0_123, %c2_124, %c0_125, %c0_126] : memref<1x18x18x64xf32, #tpu.memory_space<vmem>>, vector<1x16x16x64xf32>
    %107 = vector.shape_cast %106 : vector<1x16x16x64xf32> to vector<256x64xf32>
    %108 = arith.truncf %107 : vector<256x64xf32> to vector<256x64xbf16>
    %c0_127 = arith.constant 0 : index
    %c384_128 = arith.constant 384 : index
    %109 = vector.load %arg10[%c0_127, %c384_128] : memref<256x576xbf16, #tpu.memory_space<vmem>>, vector<256x64xbf16>
    tpu.vector_store %arg10[%c0_127, %c384_128], %108 {strides = array<i32>} : memref<256x576xbf16, #tpu.memory_space<vmem>>, vector<256x64xbf16>,
    %c0_129 = arith.constant 0 : index
    %c2_130 = arith.constant 2 : index
    %c1_131 = arith.constant 1 : index
    %c0_132 = arith.constant 0 : index
    %110 = vector.load %arg9[%c0_129, %c2_130, %c1_131, %c0_132] : memref<1x18x18x64xf32, #tpu.memory_space<vmem>>, vector<1x16x16x64xf32>
    %111 = vector.shape_cast %110 : vector<1x16x16x64xf32> to vector<256x64xf32>
    %112 = arith.truncf %111 : vector<256x64xf32> to vector<256x64xbf16>
    %c0_133 = arith.constant 0 : index
    %c448_134 = arith.constant 448 : index
    %113 = vector.load %arg10[%c0_133, %c448_134] : memref<256x576xbf16, #tpu.memory_space<vmem>>, vector<256x64xbf16>
    tpu.vector_store %arg10[%c0_133, %c448_134], %112 {strides = array<i32>} : memref<256x576xbf16, #tpu.memory_space<vmem>>, vector<256x64xbf16>,
    %c0_135 = arith.constant 0 : index
    %c2_136 = arith.constant 2 : index
    %c2_137 = arith.constant 2 : index
    %c0_138 = arith.constant 0 : index
    %114 = vector.load %arg9[%c0_135, %c2_136, %c2_137, %c0_138] : memref<1x18x18x64xf32, #tpu.memory_space<vmem>>, vector<1x16x16x64xf32>
    %115 = vector.shape_cast %114 : vector<1x16x16x64xf32> to vector<256x64xf32>
    %116 = arith.truncf %115 : vector<256x64xf32> to vector<256x64xbf16>
    %c0_139 = arith.constant 0 : index
    %c512_140 = arith.constant 512 : index
    %117 = vector.load %arg10[%c0_139, %c512_140] : memref<256x576xbf16, #tpu.memory_space<vmem>>, vector<256x64xbf16>
    tpu.vector_store %arg10[%c0_139, %c512_140], %116 {strides = array<i32>} : memref<256x576xbf16, #tpu.memory_space<vmem>>, vector<256x64xbf16>,
    %c0_141 = arith.constant 0 : index
    %c0_142 = arith.constant 0 : index
    %118 = vector.load %arg10[%c0_141, %c0_142] : memref<256x576xbf16, #tpu.memory_space<vmem>>, vector<256x576xbf16>
    %c0_143 = arith.constant 0 : index
    %c0_144 = arith.constant 0 : index
    %119 = vector.load %arg5[%c0_143, %c0_144] : memref<576x64xbf16, #tpu.memory_space<vmem>>, vector<576x64xbf16>
    %cst_145 = arith.constant dense<0.000000e+00> : vector<256x64xf32>
    %120 = tpu.matmul %118, %119, %cst_145 {dimension_numbers = #tpu.dot_dimension_numbers<[1], [0], [0], [1], [0, 0, 1, 1], [], []>} : vector<256x576xbf16>, vector<576x64xbf16>, vector<256x64xf32> -> vector<256x64xf32>
    %121 = vector.shape_cast %120 : vector<256x64xf32> to vector<1x256x64xf32>
    %cst_146 = arith.constant dense<0.000000e+00> : vector<1x64xf32>
    %122 = vector.multi_reduction <add>, %121, %cst_146 [1] : vector<1x256x64xf32> to vector<1x64xf32>
    %123 = vector.shape_cast %122 : vector<1x64xf32> to vector<1x1x64xf32>
    %cst_147 = arith.constant 3.906250e-03 : f32
    %124 = vector.broadcast %cst_147 : f32 to vector<1x1x64xf32>
    %125 = arith.mulf %123, %124 : vector<1x1x64xf32>
    %126 = vector.broadcast %125 : vector<1x1x64xf32> to vector<1x256x64xf32>
    %127 = arith.subf %121, %126 : vector<1x256x64xf32>
    %128 = arith.mulf %127, %127 : vector<1x256x64xf32>
    %cst_148 = arith.constant dense<0.000000e+00> : vector<1x64xf32>
    %129 = vector.multi_reduction <add>, %128, %cst_148 [1] : vector<1x256x64xf32> to vector<1x64xf32>
    %130 = vector.shape_cast %129 : vector<1x64xf32> to vector<1x1x64xf32>
    %cst_149 = arith.constant 3.906250e-03 : f32
    %131 = vector.broadcast %cst_149 : f32 to vector<1x1x64xf32>
    %132 = arith.mulf %130, %131 : vector<1x1x64xf32>
    %c0_150 = arith.constant 0 : index
    %c0_151 = arith.constant 0 : index
    %133 = vector.load %arg6[%c0_150, %c0_151] : memref<1x64xf32, #tpu.memory_space<vmem>>, vector<1x64xf32>
    %cst_152 = arith.constant 9.99999974E-6 : f32
    %134 = vector.broadcast %cst_152 : f32 to vector<1x1x64xf32>
    %135 = arith.addf %132, %134 : vector<1x1x64xf32>
    %136 = math.rsqrt %135 : vector<1x1x64xf32>
    %137 = vector.shape_cast %133 : vector<1x64xf32> to vector<1x1x64xf32>
    %138 = arith.mulf %137, %136 : vector<1x1x64xf32>
    %139 = vector.broadcast %138 : vector<1x1x64xf32> to vector<1x256x64xf32>
    %140 = arith.mulf %127, %139 : vector<1x256x64xf32>
    %c0_153 = arith.constant 0 : index
    %c0_154 = arith.constant 0 : index
    %141 = vector.load %arg7[%c0_153, %c0_154] : memref<1x64xf32, #tpu.memory_space<vmem>>, vector<1x64xf32>
    %142 = vector.shape_cast %141 : vector<1x64xf32> to vector<1x1x64xf32>
    %143 = vector.broadcast %142 : vector<1x1x64xf32> to vector<1x256x64xf32>
    %144 = arith.addf %140, %143 : vector<1x256x64xf32>
    %145 = vector.shape_cast %144 : vector<1x256x64xf32> to vector<256x64xf32>
    %146 = arith.addf %145, %8 : vector<256x64xf32>
    %c0_155 = arith.constant 0 : index
    %c0_156 = arith.constant 0 : index
    %147 = vector.load %arg8[%c0_155, %c0_156] : memref<256x64xf32, #tpu.memory_space<vmem>>, vector<256x64xf32>
    tpu.vector_store %arg8[%c0_155, %c0_156], %146 {strides = array<i32>} : memref<256x64xf32, #tpu.memory_space<vmem>>, vector<256x64xf32>,
    return
  }
  func.func @transform_0(%arg0: i32) -> (i32, i32) {
    %c0_i32 = arith.constant 0 : i32
    %c0_i32_0 = arith.constant 0 : i32
    return %arg0, %c0_i32 : i32, i32
  }
  func.func @transform_1(%arg0: i32) -> (i32, i32) {
    %c0_i32 = arith.constant 0 : i32
    %c0_i32_0 = arith.constant 0 : i32
    %c0_i32_1 = arith.constant 0 : i32
    return %c0_i32, %c0_i32_0 : i32, i32
  }
  func.func @transform_2(%arg0: i32) -> (i32, i32) {
    %c0_i32 = arith.constant 0 : i32
    %c0_i32_0 = arith.constant 0 : i32
    %c0_i32_1 = arith.constant 0 : i32
    return %c0_i32, %c0_i32_0 : i32, i32
  }
  func.func @transform_3(%arg0: i32) -> (i32, i32) {
    %c0_i32 = arith.constant 0 : i32
    %c0_i32_0 = arith.constant 0 : i32
    %c0_i32_1 = arith.constant 0 : i32
    return %c0_i32, %c0_i32_0 : i32, i32
  }
  func.func @transform_4(%arg0: i32) -> (i32, i32) {
    %c0_i32 = arith.constant 0 : i32
    %c0_i32_0 = arith.constant 0 : i32
    %c0_i32_1 = arith.constant 0 : i32
    return %c0_i32, %c0_i32_0 : i32, i32
  }
  func.func @transform_5(%arg0: i32) -> (i32, i32) {
    %c0_i32 = arith.constant 0 : i32
    %c0_i32_0 = arith.constant 0 : i32
    %c0_i32_1 = arith.constant 0 : i32
    return %c0_i32, %c0_i32_0 : i32, i32
  }
  func.func @transform_6(%arg0: i32) -> (i32, i32) {
    %c0_i32 = arith.constant 0 : i32
    %c0_i32_0 = arith.constant 0 : i32
    %c0_i32_1 = arith.constant 0 : i32
    return %c0_i32, %c0_i32_0 : i32, i32
  }
  func.func @transform_7(%arg0: i32) -> (i32, i32) {
    %c0_i32 = arith.constant 0 : i32
    %c0_i32_0 = arith.constant 0 : i32
    return %arg0, %c0_i32 : i32, i32
  }
}

</mosaic_0001>

<llo_original>
// kernel: tpu_custom_call.1
$region0: #{tpu_custom_call.1}
  #allocation0 [shape = 'u32[]', space=smem, size = 0x4, offset = 0x4, fixed_abs, tag = 'smem constant byte address 0x4 - core index']
  #allocation1 [shape = 'u32[72,128]{1,0:T(1,128)}', space=vmem, size = 0x9000, scoped, tag = 'internal scratch']
  #allocation2 [shape = 'f32[1,18,18,64]{3,2,1,0:T(8,128)}', space=vmem, size = 0x36000, scoped, tag = 'scratch operand']
  #allocation3 [shape = 'bf16[256,576]{1,0:T(8,128)(2,1)}', space=vmem, size = 0x50000, scoped, tag = 'scratch operand']
  %s0 = inlined_call_operand.vmem [shape: f32[512,64], index: 0, kind: input, shape index: {}]
  %s1 = inlined_call_operand.vmem [shape: bf16[576,64], index: 1, kind: input, shape index: {}]
  %s2 = inlined_call_operand.vmem [shape: f32[1,64], index: 2, kind: input, shape index: {}]
  %s3 = inlined_call_operand.vmem [shape: f32[1,64], index: 3, kind: input, shape index: {}]
  %s4 = inlined_call_operand.vmem [shape: bf16[576,64], index: 4, kind: input, shape index: {}]
  %s5 = inlined_call_operand.vmem [shape: f32[1,64], index: 5, kind: input, shape index: {}]
  %s6 = inlined_call_operand.vmem [shape: f32[1,64], index: 6, kind: input, shape index: {}]
  %s7 = inlined_call_operand.vmem [shape: f32[512,64], index: 7, kind: output, shape index: {}]
  %s8 = sld [smem:[#allocation0]]
  $region61: #{tpu_custom_call.1} parent=0
    _
  %s10 = ssub.s32 1, %s8
  %s11 = scalar_select 0, %s10, %s8
  loop: start=0, step=1, limit=4
  $region2: #{tpu_custom_call.1} parent=0 // loop_pre_header
    _
  $region3: #{tpu_custom_call.1} parent=0 // loop_header
    %s13 = sphi 0, %s17
    %p14 = scmp.ge.s32.totalorder %s13, 4
    %s23 = sphi 0, %s25
    %s26 = sphi 0, %s23
    %s27 = sphi 0, %s26
    %s43 = sphi 0, %s27
    %s47 = sphi 0, %s47
    %s49 = sphi 0, %s47
    %s50 = sphi 0, %s49
    %s64 = sphi 0, %s50
    %s68 = sphi 0, %s68
    %s70 = sphi 0, %s68
    %s71 = sphi 0, %s70
    %s85 = sphi 0, %s71
    %s89 = sphi 0, %s89
    %s91 = sphi 0, %s89
    %s92 = sphi 0, %s91
    %s106 = sphi 0, %s92
    %s110 = sphi 0, %s110
    %s112 = sphi 0, %s110
    %s113 = sphi 0, %s112
    %s127 = sphi 0, %s113
    %s131 = sphi 0, %s131
    %s133 = sphi 0, %s131
    %s134 = sphi 0, %s133
    %s148 = sphi 0, %s134
    %s152 = sphi 0, %s152
    %s154 = sphi 0, %s152
    %s155 = sphi 0, %s154
    %s169 = sphi 0, %s155
    %s175 = sphi 0, %s177
    %s178 = sphi 0, %s175
    %s179 = sphi 0, %s178
    %s195 = sphi 0, %s179
  $region4: #{tpu_custom_call.1} parent=0 // loop_header_branch
    %16 = sbr.rel (%p14) target = $region8
  $region5: #{tpu_custom_call.1} parent=0 // loop_body
    %s18 = ssub.s32 %s13, 1
    %s19 = ssub.s32 %s13, 2
    %s20 = sadd.s32 %s13, 1
    %s21 = ssub.s32 %s13, %s20
    %p22 = scmp.eq.s32.totalorder %s21, 0
    %s24 = sadd.s32 %s23, 1
    %s25 = scalar_select %p22, %s23, %s24
    %p28 = pneg %p22
    %p29 = scmp.eq.s32.totalorder %s13, 1
    %p30 = por %p28, %p29
    %p31 = scmp.ne.s32.totalorder %s23, %s26
    %p32 = scmp.eq.s32.totalorder %s13, 0
    %p33 = por %p31, %p32
    %p34 = scmp.ne.s32.totalorder %s23, %s26
    %p35 = scmp.eq.s32.totalorder %s18, 1
    %p36 = por %p34, %p35
    %p37 = scmp.ne.s32.totalorder %s26, %s27
    %p38 = scmp.eq.s32.totalorder %s18, 0
    %p39 = por %p37, %p38
    %p40 = scmp.ne.s32.totalorder %s26, %s27
    %p41 = scmp.eq.s32.totalorder %s19, 1
    %p42 = por %p40, %p41
    %p44 = scmp.ne.s32.totalorder %s27, %s43
    %p45 = scmp.eq.s32.totalorder %s19, 0
    %p46 = por %p44, %p45
    %s48 = sadd.s32 %s47, 1
    %p51 = scmp.eq.s32.totalorder %s13, 1
    %p52 = scmp.ne.s32.totalorder %s47, %s49
    %p53 = scmp.eq.s32.totalorder %s13, 0
    %p54 = por %p52, %p53
    %p55 = scmp.ne.s32.totalorder %s47, %s49
    %p56 = scmp.eq.s32.totalorder %s18, 1
    %p57 = por %p55, %p56
    %p58 = scmp.ne.s32.totalorder %s49, %s50
    %p59 = scmp.eq.s32.totalorder %s18, 0
    %p60 = por %p58, %p59
    %p61 = scmp.ne.s32.totalorder %s49, %s50
    %p62 = scmp.eq.s32.totalorder %s19, 1
    %p63 = por %p61, %p62
    %p65 = scmp.ne.s32.totalorder %s50, %s64
    %p66 = scmp.eq.s32.totalorder %s19, 0
    %p67 = por %p65, %p66
    %s69 = sadd.s32 %s68, 1
    %p72 = scmp.eq.s32.totalorder %s13, 1
    %p73 = scmp.ne.s32.totalorder %s68, %s70
    %p74 = scmp.eq.s32.totalorder %s13, 0
    %p75 = por %p73, %p74
    %p76 = scmp.ne.s32.totalorder %s68, %s70
    %p77 = scmp.eq.s32.totalorder %s18, 1
    %p78 = por %p76, %p77
    %p79 = scmp.ne.s32.totalorder %s70, %s71
    %p80 = scmp.eq.s32.totalorder %s18, 0
    %p81 = por %p79, %p80
    %p82 = scmp.ne.s32.totalorder %s70, %s71
    %p83 = scmp.eq.s32.totalorder %s19, 1
    %p84 = por %p82, %p83
    %p86 = scmp.ne.s32.totalorder %s71, %s85
    %p87 = scmp.eq.s32.totalorder %s19, 0
    %p88 = por %p86, %p87
    %s90 = sadd.s32 %s89, 1
    %p93 = scmp.eq.s32.totalorder %s13, 1
    %p94 = scmp.ne.s32.totalorder %s89, %s91
    %p95 = scmp.eq.s32.totalorder %s13, 0
    %p96 = por %p94, %p95
    %p97 = scmp.ne.s32.totalorder %s89, %s91
    %p98 = scmp.eq.s32.totalorder %s18, 1
    %p99 = por %p97, %p98
    %p100 = scmp.ne.s32.totalorder %s91, %s92
    %p101 = scmp.eq.s32.totalorder %s18, 0
    %p102 = por %p100, %p101
    %p103 = scmp.ne.s32.totalorder %s91, %s92
    %p104 = scmp.eq.s32.totalorder %s19, 1
    %p105 = por %p103, %p104
    %p107 = scmp.ne.s32.totalorder %s92, %s106
    %p108 = scmp.eq.s32.totalorder %s19, 0
    %p109 = por %p107, %p108
    %s111 = sadd.s32 %s110, 1
    %p114 = scmp.eq.s32.totalorder %s13, 1
    %p115 = scmp.ne.s32.totalorder %s110, %s112
    %p116 = scmp.eq.s32.totalorder %s13, 0
    %p117 = por %p115, %p116
    %p118 = scmp.ne.s32.totalorder %s110, %s112
    %p119 = scmp.eq.s32.totalorder %s18, 1
    %p120 = por %p118, %p119
    %p121 = scmp.ne.s32.totalorder %s112, %s113
    %p122 = scmp.eq.s32.totalorder %s18, 0
    %p123 = por %p121, %p122
    %p124 = scmp.ne.s32.totalorder %s112, %s113
    %p125 = scmp.eq.s32.totalorder %s19, 1
    %p126 = por %p124, %p125
    %p128 = scmp.ne.s32.totalorder %s113, %s127
    %p129 = scmp.eq.s32.totalorder %s19, 0
    %p130 = por %p128, %p129
    %s132 = sadd.s32 %s131, 1
    %p135 = scmp.eq.s32.totalorder %s13, 1
    %p136 = scmp.ne.s32.totalorder %s131, %s133
    %p137 = scmp.eq.s32.totalorder %s13, 0
    %p138 = por %p136, %p137
    %p139 = scmp.ne.s32.totalorder %s131, %s133
    %p140 = scmp.eq.s32.totalorder %s18, 1
    %p141 = por %p139, %p140
    %p142 = scmp.ne.s32.totalorder %s133, %s134
    %p143 = scmp.eq.s32.totalorder %s18, 0
    %p144 = por %p142, %p143
    %p145 = scmp.ne.s32.totalorder %s133, %s134
    %p146 = scmp.eq.s32.totalorder %s19, 1
    %p147 = por %p145, %p146
    %p149 = scmp.ne.s32.totalorder %s134, %s148
    %p150 = scmp.eq.s32.totalorder %s19, 0
    %p151 = por %p149, %p150
    %s153 = sadd.s32 %s152, 1
    %p156 = scmp.eq.s32.totalorder %s13, 1
    %p157 = scmp.ne.s32.totalorder %s152, %s154
    %p158 = scmp.eq.s32.totalorder %s13, 0
    %p159 = por %p157, %p158
    %p160 = scmp.ne.s32.totalorder %s152, %s154
    %p161 = scmp.eq.s32.totalorder %s18, 1
    %p162 = por %p160, %p161
    %p163 = scmp.ne.s32.totalorder %s154, %s155
    %p164 = scmp.eq.s32.totalorder %s18, 0
    %p165 = por %p163, %p164
    %p166 = scmp.ne.s32.totalorder %s154, %s155
    %p167 = scmp.eq.s32.totalorder %s19, 1
    %p168 = por %p166, %p167
    %p170 = scmp.ne.s32.totalorder %s155, %s169
    %p171 = scmp.eq.s32.totalorder %s19, 0
    %p172 = por %p170, %p171
    %s173 = ssub.s32 %s13, %s20
    %p174 = scmp.eq.s32.totalorder %s173, 0
    %s176 = sadd.s32 %s175, 1
    %s177 = scalar_select %p174, %s175, %s176
    %p180 = pneg %p174
    %p181 = scmp.eq.s32.totalorder %s13, 1
    %p182 = por %p180, %p181
    %p183 = scmp.ne.s32.totalorder %s175, %s178
    %p184 = scmp.eq.s32.totalorder %s13, 0
    %p185 = por %p183, %p184
    %p186 = scmp.ne.s32.totalorder %s175, %s178
    %p187 = scmp.eq.s32.totalorder %s18, 1
    %p188 = por %p186, %p187
    %p189 = scmp.ne.s32.totalorder %s178, %s179
    %p190 = scmp.eq.s32.totalorder %s18, 0
    %p191 = por %p189, %p190
    %p192 = scmp.ne.s32.totalorder %s178, %s179
    %p193 = scmp.eq.s32.totalorder %s19, 1
    %p194 = por %p192, %p193
    %p196 = scmp.ne.s32.totalorder %s179, %s195
    %p197 = scmp.eq.s32.totalorder %s19, 0
    %p198 = por %p196, %p197
    %p199 = scmp.le.s32.totalorder 1, %s13
    %p200 = scmp.lt.s32.totalorder %s13, 3
    %p201 = pnand %p199, %p200
    %p202 = pneg %p201
    // Predicated region
    $region9: #{tpu_custom_call.1} parent=5 // pred_check
      _
    $region10: #{tpu_custom_call.1} parent=5 // pred_check_branch
      %204 = sbr.rel (%p201) target = $region12
    $region11: #{tpu_custom_call.1} parent=5 // pred_region
      %s205 = ssub.s32 %s13, 1
      // Predicated region
      $region13: #{tpu_custom_call.1} parent=11 // pred_check
        %p206 = pneg %p60
      $region14: #{tpu_custom_call.1} parent=11 // pred_check_branch
        %208 = sbr.rel (%p206) target = $region16
      $region15: #{tpu_custom_call.1} parent=11 // pred_region
        _
      $region16: #{tpu_custom_call.1} parent=11 // pred_fallthru
        _
      // Predicated region
      $region17: #{tpu_custom_call.1} parent=11 // pred_check
        %p209 = pneg %p81
      $region18: #{tpu_custom_call.1} parent=11 // pred_check_branch
        %211 = sbr.rel (%p209) target = $region20
      $region19: #{tpu_custom_call.1} parent=11 // pred_region
        _
      $region20: #{tpu_custom_call.1} parent=11 // pred_fallthru
        _
      // Predicated region
      $region21: #{tpu_custom_call.1} parent=11 // pred_check
        %p212 = pneg %p102
      $region22: #{tpu_custom_call.1} parent=11 // pred_check_branch
        %214 = sbr.rel (%p212) target = $region24
      $region23: #{tpu_custom_call.1} parent=11 // pred_region
        _
      $region24: #{tpu_custom_call.1} parent=11 // pred_fallthru
        _
      // Predicated region
      $region25: #{tpu_custom_call.1} parent=11 // pred_check
        %p215 = pneg %p123
      $region26: #{tpu_custom_call.1} parent=11 // pred_check_branch
        %217 = sbr.rel (%p215) target = $region28
      $region27: #{tpu_custom_call.1} parent=11 // pred_region
        _
      $region28: #{tpu_custom_call.1} parent=11 // pred_fallthru
        _
      // Predicated region
      $region29: #{tpu_custom_call.1} parent=11 // pred_check
        %p218 = pneg %p144
      $region30: #{tpu_custom_call.1} parent=11 // pred_check_branch
        %220 = sbr.rel (%p218) target = $region32
      $region31: #{tpu_custom_call.1} parent=11 // pred_region
        _
      $region32: #{tpu_custom_call.1} parent=11 // pred_fallthru
        _
      // Predicated region
      $region33: #{tpu_custom_call.1} parent=11 // pred_check
        %p221 = pneg %p165
      $region34: #{tpu_custom_call.1} parent=11 // pred_check_branch
        %223 = sbr.rel (%p221) target = $region36
      $region35: #{tpu_custom_call.1} parent=11 // pred_region
        _
      $region36: #{tpu_custom_call.1} parent=11 // pred_fallthru
        _
    $region12: #{tpu_custom_call.1} parent=5 // pred_fallthru
      _
    %p224 = scmp.lt.s32.totalorder %s13, 2
    // Predicated region
    $region37: #{tpu_custom_call.1} parent=5 // pred_check
      %p225 = pneg %p224
    $region38: #{tpu_custom_call.1} parent=5 // pred_check_branch
      %227 = sbr.rel (%p225) target = $region40
    $region39: #{tpu_custom_call.1} parent=5 // pred_region
      // Predicated region
      $region41: #{tpu_custom_call.1} parent=39 // pred_check
        %p228 = pneg %p33
      $region42: #{tpu_custom_call.1} parent=39 // pred_check_branch
        %230 = sbr.rel (%p228) target = $region44
      $region43: #{tpu_custom_call.1} parent=39 // pred_region
        %s231 = smul.u32 32, %s13
        %p232 = scmp.lt.s32.totalorder %s231, 63
        %s233 = scalar_select %p232, %s231, 63
        %s234 = smul.addr %s233, 8
        %s235 = scalar_lea.vmem %s0, %s234
        %s236 = smul.u32 32, %s13
      $region44: #{tpu_custom_call.1} parent=39 // pred_fallthru
        _
    $region40: #{tpu_custom_call.1} parent=5 // pred_fallthru
      _
    %p237 = scmp.le.s32.totalorder 1, %s13
    %p238 = scmp.lt.s32.totalorder %s13, 3
    %p239 = pnand %p237, %p238
    %p240 = pneg %p239
    // Predicated region
    $region45: #{tpu_custom_call.1} parent=5 // pred_check
      _
    $region46: #{tpu_custom_call.1} parent=5 // pred_check_branch
      %242 = sbr.rel (%p239) target = $region48
    $region47: #{tpu_custom_call.1} parent=5 // pred_region
      %s243 = ssub.s32 %s13, 1
      %s244 = smul.u32 32, %s18
      %p245 = scmp.lt.s32.totalorder %s244, 63
      %s246 = scalar_select %p245, %s244, 63
      %s247 = smul.addr %s246, 8
      %s248 = scalar_lea.vmem %s0, %s247
      %p249 = pneg %p39
      %p250 = pneg %p36
      %p251 = pneg %p60
      %p252 = pneg %p57
      %p253 = pneg %p81
      %p254 = pneg %p78
      %p255 = pneg %p102
      %p256 = pneg %p99
      %p257 = pneg %p123
      %p258 = pneg %p120
      %p259 = pneg %p144
      %p260 = pneg %p141
      %p261 = pneg %p165
      %p262 = pneg %p162
      %p263 = pneg %p191
      %p264 = pneg %p188
      %s265 = smul.u32 32, %s18
      %p266 = scmp.lt.s32.totalorder %s265, 63
      %s267 = scalar_select %p266, %s265, 63
      %s268 = smul.addr %s267, 8
      %s269 = scalar_lea.vmem %s7, %s268
      %s270 = smul.u32 32, %s18
      %p271 = scmp.lt.s32.totalorder %s270, 63
      %s272 = scalar_select %p271, %s270, 63
      %s273 = smul.addr %s272, 8
      %s274 = scalar_lea.vmem %s0, %s273
      %s275 = smul.u32 32, %s18
      %s276 = smul.u32 32, %s18
      %p277 = scmp.lt.s32.totalorder %s276, 63
      %s278 = scalar_select %p277, %s276, 63
      %s279 = smul.addr %s278, 8
      %s280 = scalar_lea.vmem %s7, %s279
      %s281 = smul.u32 32, %s18
      %vm283 = vcmask 523264
      %284 = vst.msk [vmem:[#allocation2] sm:$0xff] %vm283, 0.0
      %285 = vst.msk [vmem:[#allocation2 + $0x8] sm:$0xff] %vm283, 0.0
      %vm286 = vcmask 517120
      %287 = vst.msk [vmem:[#allocation2 + $0x10] sm:$0x3] %vm286, 0.0
      %s288 = scalar_lea.vmem [#allocation2], 408
      %289 = vst.msk [vmem:[%s288] sm:$0xff] %vm283, 0.0
      %290 = vst.msk [vmem:[%s288 + $0x8] sm:$0xff] %vm283, 0.0
      %291 = vst.msk [vmem:[%s288 + $0x10] sm:$0x3] %vm286, 0.0
      %s292 = scalar_lea.vmem [#allocation2], 24
      %vm293 = vcmask 516096
      %294 = vst.msk [vmem:[%s292] sm:$0x1] %vm293, 0.0
      %295 = vst.msk [vmem:[%s292 + $0x18] sm:$0x1] %vm293, 0.0
      %296 = vst.msk [vmem:[%s292 + $0x30] sm:$0x1] %vm293, 0.0
      %297 = vst.msk [vmem:[%s292 + $0x48] sm:$0x1] %vm293, 0.0
      %298 = vst.msk [vmem:[%s292 + $0x60] sm:$0x1] %vm293, 0.0
      %299 = vst.msk [vmem:[%s292 + $0x78] sm:$0x1] %vm293, 0.0
      %300 = vst.msk [vmem:[%s292 + $0x90] sm:$0x1] %vm293, 0.0
      %301 = vst.msk [vmem:[%s292 + $0xa8] sm:$0x1] %vm293, 0.0
      %302 = vst.msk [vmem:[%s292 + $0xc0] sm:$0x1] %vm293, 0.0
      %303 = vst.msk [vmem:[%s292 + $0xd8] sm:$0x1] %vm293, 0.0
      %304 = vst.msk [vmem:[%s292 + $0xf0] sm:$0x1] %vm293, 0.0
      %305 = vst.msk [vmem:[%s292 + $0x108] sm:$0x1] %vm293, 0.0
      %306 = vst.msk [vmem:[%s292 + $0x120] sm:$0x1] %vm293, 0.0
      %307 = vst.msk [vmem:[%s292 + $0x138] sm:$0x1] %vm293, 0.0
      %308 = vst.msk [vmem:[%s292 + $0x150] sm:$0x1] %vm293, 0.0
      %309 = vst.msk [vmem:[%s292 + $0x168] sm:$0x1] %vm293, 0.0
      %310 = vst.msk [vmem:[%s292 + $0x11] sm:$0x1] %vm293, 0.0
      %311 = vst.msk [vmem:[%s292 + $0x29] sm:$0x1] %vm293, 0.0
      %312 = vst.msk [vmem:[%s292 + $0x41] sm:$0x1] %vm293, 0.0
      %313 = vst.msk [vmem:[%s292 + $0x59] sm:$0x1] %vm293, 0.0
      %314 = vst.msk [vmem:[%s292 + $0x71] sm:$0x1] %vm293, 0.0
      %315 = vst.msk [vmem:[%s292 + $0x89] sm:$0x1] %vm293, 0.0
      %316 = vst.msk [vmem:[%s292 + $0xa1] sm:$0x1] %vm293, 0.0
      %317 = vst.msk [vmem:[%s292 + $0xb9] sm:$0x1] %vm293, 0.0
      %318 = vst.msk [vmem:[%s292 + $0xd1] sm:$0x1] %vm293, 0.0
      %319 = vst.msk [vmem:[%s292 + $0xe9] sm:$0x1] %vm293, 0.0
      %320 = vst.msk [vmem:[%s292 + $0x101] sm:$0x1] %vm293, 0.0
      %321 = vst.msk [vmem:[%s292 + $0x119] sm:$0x1] %vm293, 0.0
      %322 = vst.msk [vmem:[%s292 + $0x131] sm:$0x1] %vm293, 0.0
      %323 = vst.msk [vmem:[%s292 + $0x149] sm:$0x1] %vm293, 0.0
      %324 = vst.msk [vmem:[%s292 + $0x161] sm:$0x1] %vm293, 0.0
      %325 = vst.msk [vmem:[%s292 + $0x179] sm:$0x1] %vm293, 0.0
      %v326 = vld [vmem:[%s274] sm:$0xff]
      %v327 = vld [vmem:[%s274 + $0x8] sm:$0xff]
      %v328 = vld [vmem:[%s274 + $0x10] sm:$0xff]
      %v329 = vld [vmem:[%s274 + $0x18] sm:$0xff]
      %v330 = vld [vmem:[%s274 + $0x20] sm:$0xff]
      %v331 = vld [vmem:[%s274 + $0x28] sm:$0xff]
      %v332 = vld [vmem:[%s274 + $0x30] sm:$0xff]
      %v333 = vld [vmem:[%s274 + $0x38] sm:$0xff]
      %v334 = vld [vmem:[%s274 + $0x40] sm:$0xff]
      %v335 = vld [vmem:[%s274 + $0x48] sm:$0xff]
      %v336 = vld [vmem:[%s274 + $0x50] sm:$0xff]
      %v337 = vld [vmem:[%s274 + $0x58] sm:$0xff]
      %v338 = vld [vmem:[%s274 + $0x60] sm:$0xff]
      %v339 = vld [vmem:[%s274 + $0x68] sm:$0xff]
      %v340 = vld [vmem:[%s274 + $0x70] sm:$0xff]
      %v341 = vld [vmem:[%s274 + $0x78] sm:$0xff]
      %v342 = vld [vmem:[%s274 + $0x80] sm:$0xff]
      %v343 = vld [vmem:[%s274 + $0x88] sm:$0xff]
      %v344 = vld [vmem:[%s274 + $0x90] sm:$0xff]
      %v345 = vld [vmem:[%s274 + $0x98] sm:$0xff]
      %v346 = vld [vmem:[%s274 + $0xa0] sm:$0xff]
      %v347 = vld [vmem:[%s274 + $0xa8] sm:$0xff]
      %v348 = vld [vmem:[%s274 + $0xb0] sm:$0xff]
      %v349 = vld [vmem:[%s274 + $0xb8] sm:$0xff]
      %v350 = vld [vmem:[%s274 + $0xc0] sm:$0xff]
      %v351 = vld [vmem:[%s274 + $0xc8] sm:$0xff]
      %v352 = vld [vmem:[%s274 + $0xd0] sm:$0xff]
      %v353 = vld [vmem:[%s274 + $0xd8] sm:$0xff]
      %v354 = vld [vmem:[%s274 + $0xe0] sm:$0xff]
      %v355 = vld [vmem:[%s274 + $0xe8] sm:$0xff]
      %v356 = vld [vmem:[%s274 + $0xf0] sm:$0xff]
      %v357 = vld [vmem:[%s274 + $0xf8] sm:$0xff]
      %358 = vst.msk [vmem:[%s292 + $0x1] sm:$0xff] %vm283, %v326
      %359 = vst.msk [vmem:[%s292 + $0x9] sm:$0xff] %vm283, %v327
      %360 = vst.msk [vmem:[%s292 + $0x19] sm:$0xff] %vm283, %v328
      %361 = vst.msk [vmem:[%s292 + $0x21] sm:$0xff] %vm283, %v329
      %362 = vst.msk [vmem:[%s292 + $0x31] sm:$0xff] %vm283, %v330
      %363 = vst.msk [vmem:[%s292 + $0x39] sm:$0xff] %vm283, %v331
      %364 = vst.msk [vmem:[%s292 + $0x49] sm:$0xff] %vm283, %v332
      %365 = vst.msk [vmem:[%s292 + $0x51] sm:$0xff] %vm283, %v333
      %366 = vst.msk [vmem:[%s292 + $0x61] sm:$0xff] %vm283, %v334
      %367 = vst.msk [vmem:[%s292 + $0x69] sm:$0xff] %vm283, %v335
      %368 = vst.msk [vmem:[%s292 + $0x79] sm:$0xff] %vm283, %v336
      %369 = vst.msk [vmem:[%s292 + $0x81] sm:$0xff] %vm283, %v337
      %370 = vst.msk [vmem:[%s292 + $0x91] sm:$0xff] %vm283, %v338
      %371 = vst.msk [vmem:[%s292 + $0x99] sm:$0xff] %vm283, %v339
      %372 = vst.msk [vmem:[%s292 + $0xa9] sm:$0xff] %vm283, %v340
      %373 = vst.msk [vmem:[%s292 + $0xb1] sm:$0xff] %vm283, %v341
      %374 = vst.msk [vmem:[%s292 + $0xc1] sm:$0xff] %vm283, %v342
      %375 = vst.msk [vmem:[%s292 + $0xc9] sm:$0xff] %vm283, %v343
      %376 = vst.msk [vmem:[%s292 + $0xd9] sm:$0xff] %vm283, %v344
      %377 = vst.msk [vmem:[%s292 + $0xe1] sm:$0xff] %vm283, %v345
      %378 = vst.msk [vmem:[%s292 + $0xf1] sm:$0xff] %vm283, %v346
      %379 = vst.msk [vmem:[%s292 + $0xf9] sm:$0xff] %vm283, %v347
      %380 = vst.msk [vmem:[%s292 + $0x109] sm:$0xff] %vm283, %v348
      %381 = vst.msk [vmem:[%s292 + $0x111] sm:$0xff] %vm283, %v349
      %382 = vst.msk [vmem:[%s292 + $0x121] sm:$0xff] %vm283, %v350
      %383 = vst.msk [vmem:[%s292 + $0x129] sm:$0xff] %vm283, %v351
      %384 = vst.msk [vmem:[%s292 + $0x139] sm:$0xff] %vm283, %v352
      %385 = vst.msk [vmem:[%s292 + $0x141] sm:$0xff] %vm283, %v353
      %386 = vst.msk [vmem:[%s292 + $0x151] sm:$0xff] %vm283, %v354
      %387 = vst.msk [vmem:[%s292 + $0x159] sm:$0xff] %vm283, %v355
      %388 = vst.msk [vmem:[%s292 + $0x169] sm:$0xff] %vm283, %v356
      %389 = vst.msk [vmem:[%s292 + $0x171] sm:$0xff] %vm283, %v357
      %v390 = vld [vmem:[#allocation2] sm:$0xff]
      %v391 = vld [vmem:[#allocation2 + $0x8] sm:$0xff]
      %v392 = vld [vmem:[#allocation2 + $0x18] sm:$0xff]
      %v393 = vld [vmem:[#allocation2 + $0x20] sm:$0xff]
      %v394 = vld [vmem:[#allocation2 + $0x30] sm:$0xff]
      %v395 = vld [vmem:[#allocation2 + $0x38] sm:$0xff]
      %v396 = vld [vmem:[#allocation2 + $0x48] sm:$0xff]
      %v397 = vld [vmem:[#allocation2 + $0x50] sm:$0xff]
      %v398 = vld [vmem:[#allocation2 + $0x60] sm:$0xff]
      %v399 = vld [vmem:[#allocation2 + $0x68] sm:$0xff]
      %v400 = vld [vmem:[#allocation2 + $0x78] sm:$0xff]
      %v401 = vld [vmem:[#allocation2 + $0x80] sm:$0xff]
      %v402 = vld [vmem:[#allocation2 + $0x90] sm:$0xff]
      %v403 = vld [vmem:[#allocation2 + $0x98] sm:$0xff]
      %v404 = vld [vmem:[#allocation2 + $0xa8] sm:$0xff]
      %v405 = vld [vmem:[#allocation2 + $0xb0] sm:$0xff]
      %v406 = vld [vmem:[#allocation2 + $0xc0] sm:$0xff]
      %v407 = vld [vmem:[#allocation2 + $0xc8] sm:$0xff]
      %v408 = vld [vmem:[#allocation2 + $0xd8] sm:$0xff]
      %v409 = vld [vmem:[#allocation2 + $0xe0] sm:$0xff]
      %v410 = vld [vmem:[#allocation2 + $0xf0] sm:$0xff]
      %v411 = vld [vmem:[#allocation2 + $0xf8] sm:$0xff]
      %v412 = vld [vmem:[#allocation2 + $0x108] sm:$0xff]
      %v413 = vld [vmem:[#allocation2 + $0x110] sm:$0xff]
      %v414 = vld [vmem:[#allocation2 + $0x120] sm:$0xff]
      %v415 = vld [vmem:[#allocation2 + $0x128] sm:$0xff]
      %v416 = vld [vmem:[#allocation2 + $0x138] sm:$0xff]
      %v417 = vld [vmem:[#allocation2 + $0x140] sm:$0xff]
      %v418 = vld [vmem:[#allocation2 + $0x150] sm:$0xff]
      %v419 = vld [vmem:[#allocation2 + $0x158] sm:$0xff]
      %v420 = vld [vmem:[#allocation2 + $0x168] sm:$0xff]
      %v421 = vld [vmem:[#allocation2 + $0x170] sm:$0xff]
      %v422 = vpack.c.bf16 %v390, %v390
      %v423 = vpack.c.bf16 %v391, %v391
      %v424 = vpack.c.bf16 %v392, %v392
      %v425 = vpack.c.bf16 %v393, %v393
      %v426 = vpack.c.bf16 %v394, %v394
      %v427 = vpack.c.bf16 %v395, %v395
      %v428 = vpack.c.bf16 %v396, %v396
      %v429 = vpack.c.bf16 %v397, %v397
      %v430 = vpack.c.bf16 %v398, %v398
      %v431 = vpack.c.bf16 %v399, %v399
      %v432 = vpack.c.bf16 %v400, %v400
      %v433 = vpack.c.bf16 %v401, %v401
      %v434 = vpack.c.bf16 %v402, %v402
      %v435 = vpack.c.bf16 %v403, %v403
      %v436 = vpack.c.bf16 %v404, %v404
      %v437 = vpack.c.bf16 %v405, %v405
      %v438 = vpack.c.bf16 %v406, %v406
      %v439 = vpack.c.bf16 %v407, %v407
      %v440 = vpack.c.bf16 %v408, %v408
      %v441 = vpack.c.bf16 %v409, %v409
      %v442 = vpack.c.bf16 %v410, %v410
      %v443 = vpack.c.bf16 %v411, %v411
      %v444 = vpack.c.bf16 %v412, %v412
      %v445 = vpack.c.bf16 %v413, %v413
      %v446 = vpack.c.bf16 %v414, %v414
      %v447 = vpack.c.bf16 %v415, %v415
      %v448 = vpack.c.bf16 %v416, %v416
      %v449 = vpack.c.bf16 %v417, %v417
      %v450 = vpack.c.bf16 %v418, %v418
      %v451 = vpack.c.bf16 %v419, %v419
      %v452 = vpack.c.bf16 %v420, %v420
      %v453 = vpack.c.bf16 %v421, %v421
      %vm454 = vcmask 519168
      %455 = vst.msk [vmem:[#allocation3] sm:$0xf] %vm454, %v422
      %456 = vst.msk [vmem:[#allocation3 + $0x14] sm:$0xf] %vm454, %v423
      %457 = vst.msk [vmem:[#allocation3 + $0x28] sm:$0xf] %vm454, %v424
      %458 = vst.msk [vmem:[#allocation3 + $0x3c] sm:$0xf] %vm454, %v425
      %459 = vst.msk [vmem:[#allocation3 + $0x50] sm:$0xf] %vm454, %v426
      %460 = vst.msk [vmem:[#allocation3 + $0x64] sm:$0xf] %vm454, %v427
      %461 = vst.msk [vmem:[#allocation3 + $0x78] sm:$0xf] %vm454, %v428
      %462 = vst.msk [vmem:[#allocation3 + $0x8c] sm:$0xf] %vm454, %v429
      %463 = vst.msk [vmem:[#allocation3 + $0xa0] sm:$0xf] %vm454, %v430
      %464 = vst.msk [vmem:[#allocation3 + $0xb4] sm:$0xf] %vm454, %v431
      %465 = vst.msk [vmem:[#allocation3 + $0xc8] sm:$0xf] %vm454, %v432
      %466 = vst.msk [vmem:[#allocation3 + $0xdc] sm:$0xf] %vm454, %v433
      %467 = vst.msk [vmem:[#allocation3 + $0xf0] sm:$0xf] %vm454, %v434
      %468 = vst.msk [vmem:[#allocation3 + $0x104] sm:$0xf] %vm454, %v435
      %469 = vst.msk [vmem:[#allocation3 + $0x118] sm:$0xf] %vm454, %v436
      %470 = vst.msk [vmem:[#allocation3 + $0x12c] sm:$0xf] %vm454, %v437
      %471 = vst.msk [vmem:[#allocation3 + $0x140] sm:$0xf] %vm454, %v438
      %472 = vst.msk [vmem:[#allocation3 + $0x154] sm:$0xf] %vm454, %v439
      %473 = vst.msk [vmem:[#allocation3 + $0x168] sm:$0xf] %vm454, %v440
      %474 = vst.msk [vmem:[#allocation3 + $0x17c] sm:$0xf] %vm454, %v441
      %475 = vst.msk [vmem:[#allocation3 + $0x190] sm:$0xf] %vm454, %v442
      %476 = vst.msk [vmem:[#allocation3 + $0x1a4] sm:$0xf] %vm454, %v443
      %477 = vst.msk [vmem:[#allocation3 + $0x1b8] sm:$0xf] %vm454, %v444
      %478 = vst.msk [vmem:[#allocation3 + $0x1cc] sm:$0xf] %vm454, %v445
      %479 = vst.msk [vmem:[#allocation3 + $0x1e0] sm:$0xf] %vm454, %v446
      %480 = vst.msk [vmem:[#allocation3 + $0x1f4] sm:$0xf] %vm454, %v447
      %481 = vst.msk [vmem:[#allocation3 + $0x208] sm:$0xf] %vm454, %v448
      %482 = vst.msk [vmem:[#allocation3 + $0x21c] sm:$0xf] %vm454, %v449
      %483 = vst.msk [vmem:[#allocation3 + $0x230] sm:$0xf] %vm454, %v450
      %484 = vst.msk [vmem:[#allocation3 + $0x244] sm:$0xf] %vm454, %v451
      %485 = vst.msk [vmem:[#allocation3 + $0x258] sm:$0xf] %vm454, %v452
      %486 = vst.msk [vmem:[#allocation3 + $0x26c] sm:$0xf] %vm454, %v453
      %v487 = vld [vmem:[#allocation2 + $0x1] sm:$0xff]
      %v488 = vld [vmem:[#allocation2 + $0x9] sm:$0xff]
      %v489 = vld [vmem:[#allocation2 + $0x19] sm:$0xff]
      %v490 = vld [vmem:[#allocation2 + $0x21] sm:$0xff]
      %v491 = vld [vmem:[#allocation2 + $0x31] sm:$0xff]
      %v492 = vld [vmem:[#allocation2 + $0x39] sm:$0xff]
      %v493 = vld [vmem:[#allocation2 + $0x49] sm:$0xff]
      %v494 = vld [vmem:[#allocation2 + $0x51] sm:$0xff]
      %v495 = vld [vmem:[#allocation2 + $0x61] sm:$0xff]
      %v496 = vld [vmem:[#allocation2 + $0x69] sm:$0xff]
      %v497 = vld [vmem:[#allocation2 + $0x79] sm:$0xff]
      %v498 = vld [vmem:[#allocation2 + $0x81] sm:$0xff]
      %v499 = vld [vmem:[#allocation2 + $0x91] sm:$0xff]
      %v500 = vld [vmem:[#allocation2 + $0x99] sm:$0xff]
      %v501 = vld [vmem:[#allocation2 + $0xa9] sm:$0xff]
      %v502 = vld [vmem:[#allocation2 + $0xb1] sm:$0xff]
      %v503 = vld [vmem:[#allocation2 + $0xc1] sm:$0xff]
      %v504 = vld [vmem:[#allocation2 + $0xc9] sm:$0xff]
      %v505 = vld [vmem:[#allocation2 + $0xd9] sm:$0xff]
      %v506 = vld [vmem:[#allocation2 + $0xe1] sm:$0xff]
      %v507 = vld [vmem:[#allocation2 + $0xf1] sm:$0xff]
      %v508 = vld [vmem:[#allocation2 + $0xf9] sm:$0xff]
      %v509 = vld [vmem:[#allocation2 + $0x109] sm:$0xff]
      %v510 = vld [vmem:[#allocation2 + $0x111] sm:$0xff]
      %v511 = vld [vmem:[#allocation2 + $0x121] sm:$0xff]
      %v512 = vld [vmem:[#allocation2 + $0x129] sm:$0xff]
      %v513 = vld [vmem:[#allocation2 + $0x139] sm:$0xff]
      %v514 = vld [vmem:[#allocation2 + $0x141] sm:$0xff]
      %v515 = vld [vmem:[#allocation2 + $0x151] sm:$0xff]
      %v516 = vld [vmem:[#allocation2 + $0x159] sm:$0xff]
      %v517 = vld [vmem:[#allocation2 + $0x169] sm:$0xff]
      %v518 = vld [vmem:[#allocation2 + $0x171] sm:$0xff]
      %v519 = vpack.c.bf16 %v487, %v487
      %v520 = vpack.c.bf16 %v488, %v488
      %v521 = vpack.c.bf16 %v489, %v489
      %v522 = vpack.c.bf16 %v490, %v490
      %v523 = vpack.c.bf16 %v491, %v491
      %v524 = vpack.c.bf16 %v492, %v492
      %v525 = vpack.c.bf16 %v493, %v493
      %v526 = vpack.c.bf16 %v494, %v494
      %v527 = vpack.c.bf16 %v495, %v495
      %v528 = vpack.c.bf16 %v496, %v496
      %v529 = vpack.c.bf16 %v497, %v497
      %v530 = vpack.c.bf16 %v498, %v498
      %v531 = vpack.c.bf16 %v499, %v499
      %v532 = vpack.c.bf16 %v500, %v500
      %v533 = vpack.c.bf16 %v501, %v501
      %v534 = vpack.c.bf16 %v502, %v502
      %v535 = vpack.c.bf16 %v503, %v503
      %v536 = vpack.c.bf16 %v504, %v504
      %v537 = vpack.c.bf16 %v505, %v505
      %v538 = vpack.c.bf16 %v506, %v506
      %v539 = vpack.c.bf16 %v507, %v507
      %v540 = vpack.c.bf16 %v508, %v508
      %v541 = vpack.c.bf16 %v509, %v509
      %v542 = vpack.c.bf16 %v510, %v510
      %v543 = vpack.c.bf16 %v511, %v511
      %v544 = vpack.c.bf16 %v512, %v512
      %v545 = vpack.c.bf16 %v513, %v513
      %v546 = vpack.c.bf16 %v514, %v514
      %v547 = vpack.c.bf16 %v515, %v515
      %v548 = vpack.c.bf16 %v516, %v516
      %v549 = vpack.c.bf16 %v517, %v517
      %v550 = vpack.c.bf16 %v518, %v518
      %583 = vrot.lane.b32.xlu0 %v519, 64
      %v584 = vpop.permute.xlu0 %583
      %585 = vrot.lane.b32.xlu0 %v520, 64
      %v586 = vpop.permute.xlu0 %585
      %587 = vrot.lane.b32.xlu0 %v521, 64
      %v588 = vpop.permute.xlu0 %587
      %589 = vrot.lane.b32.xlu0 %v522, 64
      %v590 = vpop.permute.xlu0 %589
      %591 = vrot.lane.b32.xlu0 %v523, 64
      %v592 = vpop.permute.xlu0 %591
      %593 = vrot.lane.b32.xlu0 %v524, 64
      %v594 = vpop.permute.xlu0 %593
      %595 = vrot.lane.b32.xlu0 %v525, 64
      %v596 = vpop.permute.xlu0 %595
      %597 = vrot.lane.b32.xlu0 %v526, 64
      %v598 = vpop.permute.xlu0 %597
      %599 = vrot.lane.b32.xlu0 %v527, 64
      %v600 = vpop.permute.xlu0 %599
      %601 = vrot.lane.b32.xlu0 %v528, 64
      %v602 = vpop.permute.xlu0 %601
      %603 = vrot.lane.b32.xlu0 %v529, 64
      %v604 = vpop.permute.xlu0 %603
      %605 = vrot.lane.b32.xlu0 %v530, 64
      %v606 = vpop.permute.xlu0 %605
      %607 = vrot.lane.b32.xlu0 %v531, 64
      %v608 = vpop.permute.xlu0 %607
      %609 = vrot.lane.b32.xlu0 %v532, 64
      %v610 = vpop.permute.xlu0 %609
      %611 = vrot.lane.b32.xlu0 %v533, 64
      %v612 = vpop.permute.xlu0 %611
      %613 = vrot.lane.b32.xlu0 %v534, 64
      %v614 = vpop.permute.xlu0 %613
      %615 = vrot.lane.b32.xlu0 %v535, 64
      %v616 = vpop.permute.xlu0 %615
      %617 = vrot.lane.b32.xlu0 %v536, 64
      %v618 = vpop.permute.xlu0 %617
      %619 = vrot.lane.b32.xlu0 %v537, 64
      %v620 = vpop.permute.xlu0 %619
      %621 = vrot.lane.b32.xlu0 %v538, 64
      %v622 = vpop.permute.xlu0 %621
      %623 = vrot.lane.b32.xlu0 %v539, 64
      %v624 = vpop.permute.xlu0 %623
      %625 = vrot.lane.b32.xlu0 %v540, 64
      %v626 = vpop.permute.xlu0 %625
      %627 = vrot.lane.b32.xlu0 %v541, 64
      %v628 = vpop.permute.xlu0 %627
      %629 = vrot.lane.b32.xlu0 %v542, 64
      %v630 = vpop.permute.xlu0 %629
      %631 = vrot.lane.b32.xlu0 %v543, 64
      %v632 = vpop.permute.xlu0 %631
      %633 = vrot.lane.b32.xlu0 %v544, 64
      %v634 = vpop.permute.xlu0 %633
      %635 = vrot.lane.b32.xlu0 %v545, 64
      %v636 = vpop.permute.xlu0 %635
      %637 = vrot.lane.b32.xlu0 %v546, 64
      %v638 = vpop.permute.xlu0 %637
      %639 = vrot.lane.b32.xlu0 %v547, 64
      %v640 = vpop.permute.xlu0 %639
      %641 = vrot.lane.b32.xlu0 %v548, 64
      %v642 = vpop.permute.xlu0 %641
      %643 = vrot.lane.b32.xlu0 %v549, 64
      %v644 = vpop.permute.xlu0 %643
      %645 = vrot.lane.b32.xlu0 %v550, 64
      %v646 = vpop.permute.xlu0 %645
      %vm679 = vcmask 1043968
      %680 = vst.msk [vmem:[#allocation3] sm:$0xf] %vm679, %v584
      %681 = vst.msk [vmem:[#allocation3 + $0x14] sm:$0xf] %vm679, %v586
      %682 = vst.msk [vmem:[#allocation3 + $0x28] sm:$0xf] %vm679, %v588
      %683 = vst.msk [vmem:[#allocation3 + $0x3c] sm:$0xf] %vm679, %v590
      %684 = vst.msk [vmem:[#allocation3 + $0x50] sm:$0xf] %vm679, %v592
      %685 = vst.msk [vmem:[#allocation3 + $0x64] sm:$0xf] %vm679, %v594
      %686 = vst.msk [vmem:[#allocation3 + $0x78] sm:$0xf] %vm679, %v596
      %687 = vst.msk [vmem:[#allocation3 + $0x8c] sm:$0xf] %vm679, %v598
      %688 = vst.msk [vmem:[#allocation3 + $0xa0] sm:$0xf] %vm679, %v600
      %689 = vst.msk [vmem:[#allocation3 + $0xb4] sm:$0xf] %vm679, %v602
      %690 = vst.msk [vmem:[#allocation3 + $0xc8] sm:$0xf] %vm679, %v604
      %691 = vst.msk [vmem:[#allocation3 + $0xdc] sm:$0xf] %vm679, %v606
      %692 = vst.msk [vmem:[#allocation3 + $0xf0] sm:$0xf] %vm679, %v608
      %693 = vst.msk [vmem:[#allocation3 + $0x104] sm:$0xf] %vm679, %v610
      %694 = vst.msk [vmem:[#allocation3 + $0x118] sm:$0xf] %vm679, %v612
      %695 = vst.msk [vmem:[#allocation3 + $0x12c] sm:$0xf] %vm679, %v614
      %696 = vst.msk [vmem:[#allocation3 + $0x140] sm:$0xf] %vm679, %v616
      %697 = vst.msk [vmem:[#allocation3 + $0x154] sm:$0xf] %vm679, %v618
      %698 = vst.msk [vmem:[#allocation3 + $0x168] sm:$0xf] %vm679, %v620
      %699 = vst.msk [vmem:[#allocation3 + $0x17c] sm:$0xf] %vm679, %v622
      %700 = vst.msk [vmem:[#allocation3 + $0x190] sm:$0xf] %vm679, %v624
      %701 = vst.msk [vmem:[#allocation3 + $0x1a4] sm:$0xf] %vm679, %v626
      %702 = vst.msk [vmem:[#allocation3 + $0x1b8] sm:$0xf] %vm679, %v628
      %703 = vst.msk [vmem:[#allocation3 + $0x1cc] sm:$0xf] %vm679, %v630
      %704 = vst.msk [vmem:[#allocation3 + $0x1e0] sm:$0xf] %vm679, %v632
      %705 = vst.msk [vmem:[#allocation3 + $0x1f4] sm:$0xf] %vm679, %v634
      %706 = vst.msk [vmem:[#allocation3 + $0x208] sm:$0xf] %vm679, %v636
      %707 = vst.msk [vmem:[#allocation3 + $0x21c] sm:$0xf] %vm679, %v638
      %708 = vst.msk [vmem:[#allocation3 + $0x230] sm:$0xf] %vm679, %v640
      %709 = vst.msk [vmem:[#allocation3 + $0x244] sm:$0xf] %vm679, %v642
      %710 = vst.msk [vmem:[#allocation3 + $0x258] sm:$0xf] %vm679, %v644
      %711 = vst.msk [vmem:[#allocation3 + $0x26c] sm:$0xf] %vm679, %v646
      %v712 = vld [vmem:[#allocation2 + $0x2] sm:$0xff]
      %v713 = vld [vmem:[#allocation2 + $0xa] sm:$0xff]
      %v714 = vld [vmem:[#allocation2 + $0x1a] sm:$0xff]
      %v715 = vld [vmem:[#allocation2 + $0x22] sm:$0xff]
      %v716 = vld [vmem:[#allocation2 + $0x32] sm:$0xff]
      %v717 = vld [vmem:[#allocation2 + $0x3a] sm:$0xff]
      %v718 = vld [vmem:[#allocation2 + $0x4a] sm:$0xff]
      %v719 = vld [vmem:[#allocation2 + $0x52] sm:$0xff]
      %v720 = vld [vmem:[#allocation2 + $0x62] sm:$0xff]
      %v721 = vld [vmem:[#allocation2 + $0x6a] sm:$0xff]
      %v722 = vld [vmem:[#allocation2 + $0x7a] sm:$0xff]
      %v723 = vld [vmem:[#allocation2 + $0x82] sm:$0xff]
      %v724 = vld [vmem:[#allocation2 + $0x92] sm:$0xff]
      %v725 = vld [vmem:[#allocation2 + $0x9a] sm:$0xff]
      %v726 = vld [vmem:[#allocation2 + $0xaa] sm:$0xff]
      %v727 = vld [vmem:[#allocation2 + $0xb2] sm:$0xff]
      %v728 = vld [vmem:[#allocation2 + $0xc2] sm:$0xff]
      %v729 = vld [vmem:[#allocation2 + $0xca] sm:$0xff]
      %v730 = vld [vmem:[#allocation2 + $0xda] sm:$0xff]
      %v731 = vld [vmem:[#allocation2 + $0xe2] sm:$0xff]
      %v732 = vld [vmem:[#allocation2 + $0xf2] sm:$0xff]
      %v733 = vld [vmem:[#allocation2 + $0xfa] sm:$0xff]
      %v734 = vld [vmem:[#allocation2 + $0x10a] sm:$0xff]
      %v735 = vld [vmem:[#allocation2 + $0x112] sm:$0xff]
      %v736 = vld [vmem:[#allocation2 + $0x122] sm:$0xff]
      %v737 = vld [vmem:[#allocation2 + $0x12a] sm:$0xff]
      %v738 = vld [vmem:[#allocation2 + $0x13a] sm:$0xff]
      %v739 = vld [vmem:[#allocation2 + $0x142] sm:$0xff]
      %v740 = vld [vmem:[#allocation2 + $0x152] sm:$0xff]
      %v741 = vld [vmem:[#allocation2 + $0x15a] sm:$0xff]
      %v742 = vld [vmem:[#allocation2 + $0x16a] sm:$0xff]
      %v743 = vld [vmem:[#allocation2 + $0x172] sm:$0xff]
      %v744 = vpack.c.bf16 %v712, %v712
      %v745 = vpack.c.bf16 %v713, %v713
      %v746 = vpack.c.bf16 %v714, %v714
      %v747 = vpack.c.bf16 %v715, %v715
      %v748 = vpack.c.bf16 %v716, %v716
      %v749 = vpack.c.bf16 %v717, %v717
      %v750 = vpack.c.bf16 %v718, %v718
      %v751 = vpack.c.bf16 %v719, %v719
      %v752 = vpack.c.bf16 %v720, %v720
      %v753 = vpack.c.bf16 %v721, %v721
      %v754 = vpack.c.bf16 %v722, %v722
      %v755 = vpack.c.bf16 %v723, %v723
      %v756 = vpack.c.bf16 %v724, %v724
      %v757 = vpack.c.bf16 %v725, %v725
      %v758 = vpack.c.bf16 %v726, %v726
      %v759 = vpack.c.bf16 %v727, %v727
      %v760 = vpack.c.bf16 %v728, %v728
      %v761 = vpack.c.bf16 %v729, %v729
      %v762 = vpack.c.bf16 %v730, %v730
      %v763 = vpack.c.bf16 %v731, %v731
      %v764 = vpack.c.bf16 %v732, %v732
      %v765 = vpack.c.bf16 %v733, %v733
      %v766 = vpack.c.bf16 %v734, %v734
      %v767 = vpack.c.bf16 %v735, %v735
      %v768 = vpack.c.bf16 %v736, %v736
      %v769 = vpack.c.bf16 %v737, %v737
      %v770 = vpack.c.bf16 %v738, %v738
      %v771 = vpack.c.bf16 %v739, %v739
      %v772 = vpack.c.bf16 %v740, %v740
      %v773 = vpack.c.bf16 %v741, %v741
      %v774 = vpack.c.bf16 %v742, %v742
      %v775 = vpack.c.bf16 %v743, %v743
      %776 = vst.msk [vmem:[#allocation3 + $0x4] sm:$0xf] %vm454, %v744
      %777 = vst.msk [vmem:[#allocation3 + $0x18] sm:$0xf] %vm454, %v745
      %778 = vst.msk [vmem:[#allocation3 + $0x2c] sm:$0xf] %vm454, %v746
      %779 = vst.msk [vmem:[#allocation3 + $0x40] sm:$0xf] %vm454, %v747
      %780 = vst.msk [vmem:[#allocation3 + $0x54] sm:$0xf] %vm454, %v748
      %781 = vst.msk [vmem:[#allocation3 + $0x68] sm:$0xf] %vm454, %v749
      %782 = vst.msk [vmem:[#allocation3 + $0x7c] sm:$0xf] %vm454, %v750
      %783 = vst.msk [vmem:[#allocation3 + $0x90] sm:$0xf] %vm454, %v751
      %784 = vst.msk [vmem:[#allocation3 + $0xa4] sm:$0xf] %vm454, %v752
      %785 = vst.msk [vmem:[#allocation3 + $0xb8] sm:$0xf] %vm454, %v753
      %786 = vst.msk [vmem:[#allocation3 + $0xcc] sm:$0xf] %vm454, %v754
      %787 = vst.msk [vmem:[#allocation3 + $0xe0] sm:$0xf] %vm454, %v755
      %788 = vst.msk [vmem:[#allocation3 + $0xf4] sm:$0xf] %vm454, %v756
      %789 = vst.msk [vmem:[#allocation3 + $0x108] sm:$0xf] %vm454, %v757
      %790 = vst.msk [vmem:[#allocation3 + $0x11c] sm:$0xf] %vm454, %v758
      %791 = vst.msk [vmem:[#allocation3 + $0x130] sm:$0xf] %vm454, %v759
      %792 = vst.msk [vmem:[#allocation3 + $0x144] sm:$0xf] %vm454, %v760
      %793 = vst.msk [vmem:[#allocation3 + $0x158] sm:$0xf] %vm454, %v761
      %794 = vst.msk [vmem:[#allocation3 + $0x16c] sm:$0xf] %vm454, %v762
      %795 = vst.msk [vmem:[#allocation3 + $0x180] sm:$0xf] %vm454, %v763
      %796 = vst.msk [vmem:[#allocation3 + $0x194] sm:$0xf] %vm454, %v764
      %797 = vst.msk [vmem:[#allocation3 + $0x1a8] sm:$0xf] %vm454, %v765
      %798 = vst.msk [vmem:[#allocation3 + $0x1bc] sm:$0xf] %vm454, %v766
      %799 = vst.msk [vmem:[#allocation3 + $0x1d0] sm:$0xf] %vm454, %v767
      %800 = vst.msk [vmem:[#allocation3 + $0x1e4] sm:$0xf] %vm454, %v768
      %801 = vst.msk [vmem:[#allocation3 + $0x1f8] sm:$0xf] %vm454, %v769
      %802 = vst.msk [vmem:[#allocation3 + $0x20c] sm:$0xf] %vm454, %v770
      %803 = vst.msk [vmem:[#allocation3 + $0x220] sm:$0xf] %vm454, %v771
      %804 = vst.msk [vmem:[#allocation3 + $0x234] sm:$0xf] %vm454, %v772
      %805 = vst.msk [vmem:[#allocation3 + $0x248] sm:$0xf] %vm454, %v773
      %806 = vst.msk [vmem:[#allocation3 + $0x25c] sm:$0xf] %vm454, %v774
      %807 = vst.msk [vmem:[#allocation3 + $0x270] sm:$0xf] %vm454, %v775
      %v808 = vld [vmem:[%s292] sm:$0xff]
      %v809 = vld [vmem:[%s292 + $0x8] sm:$0xff]
      %v810 = vld [vmem:[%s292 + $0x18] sm:$0xff]
      %v811 = vld [vmem:[%s292 + $0x20] sm:$0xff]
      %v812 = vld [vmem:[%s292 + $0x30] sm:$0xff]
      %v813 = vld [vmem:[%s292 + $0x38] sm:$0xff]
      %v814 = vld [vmem:[%s292 + $0x48] sm:$0xff]
      %v815 = vld [vmem:[%s292 + $0x50] sm:$0xff]
      %v816 = vld [vmem:[%s292 + $0x60] sm:$0xff]
      %v817 = vld [vmem:[%s292 + $0x68] sm:$0xff]
      %v818 = vld [vmem:[%s292 + $0x78] sm:$0xff]
      %v819 = vld [vmem:[%s292 + $0x80] sm:$0xff]
      %v820 = vld [vmem:[%s292 + $0x90] sm:$0xff]
      %v821 = vld [vmem:[%s292 + $0x98] sm:$0xff]
      %v822 = vld [vmem:[%s292 + $0xa8] sm:$0xff]
      %v823 = vld [vmem:[%s292 + $0xb0] sm:$0xff]
      %v824 = vld [vmem:[%s292 + $0xc0] sm:$0xff]
      %v825 = vld [vmem:[%s292 + $0xc8] sm:$0xff]
      %v826 = vld [vmem:[%s292 + $0xd8] sm:$0xff]
      %v827 = vld [vmem:[%s292 + $0xe0] sm:$0xff]
      %v828 = vld [vmem:[%s292 + $0xf0] sm:$0xff]
      %v829 = vld [vmem:[%s292 + $0xf8] sm:$0xff]
      %v830 = vld [vmem:[%s292 + $0x108] sm:$0xff]
      %v831 = vld [vmem:[%s292 + $0x110] sm:$0xff]
      %v832 = vld [vmem:[%s292 + $0x120] sm:$0xff]
      %v833 = vld [vmem:[%s292 + $0x128] sm:$0xff]
      %v834 = vld [vmem:[%s292 + $0x138] sm:$0xff]
      %v835 = vld [vmem:[%s292 + $0x140] sm:$0xff]
      %v836 = vld [vmem:[%s292 + $0x150] sm:$0xff]
      %v837 = vld [vmem:[%s292 + $0x158] sm:$0xff]
      %v838 = vld [vmem:[%s292 + $0x168] sm:$0xff]
      %v839 = vld [vmem:[%s292 + $0x170] sm:$0xff]
      %v840 = vpack.c.bf16 %v808, %v808
      %v841 = vpack.c.bf16 %v809, %v809
      %v842 = vpack.c.bf16 %v810, %v810
      %v843 = vpack.c.bf16 %v811, %v811
      %v844 = vpack.c.bf16 %v812, %v812
      %v845 = vpack.c.bf16 %v813, %v813
      %v846 = vpack.c.bf16 %v814, %v814
      %v847 = vpack.c.bf16 %v815, %v815
      %v848 = vpack.c.bf16 %v816, %v816
      %v849 = vpack.c.bf16 %v817, %v817
      %v850 = vpack.c.bf16 %v818, %v818
      %v851 = vpack.c.bf16 %v819, %v819
      %v852 = vpack.c.bf16 %v820, %v820
      %v853 = vpack.c.bf16 %v821, %v821
      %v854 = vpack.c.bf16 %v822, %v822
      %v855 = vpack.c.bf16 %v823, %v823
      %v856 = vpack.c.bf16 %v824, %v824
      %v857 = vpack.c.bf16 %v825, %v825
      %v858 = vpack.c.bf16 %v826, %v826
      %v859 = vpack.c.bf16 %v827, %v827
      %v860 = vpack.c.bf16 %v828, %v828
      %v861 = vpack.c.bf16 %v829, %v829
      %v862 = vpack.c.bf16 %v830, %v830
      %v863 = vpack.c.bf16 %v831, %v831
      %v864 = vpack.c.bf16 %v832, %v832
      %v865 = vpack.c.bf16 %v833, %v833
      %v866 = vpack.c.bf16 %v834, %v834
      %v867 = vpack.c.bf16 %v835, %v835
      %v868 = vpack.c.bf16 %v836, %v836
      %v869 = vpack.c.bf16 %v837, %v837
      %v870 = vpack.c.bf16 %v838, %v838
      %v871 = vpack.c.bf16 %v839, %v839
      %904 = vrot.lane.b32.xlu0 %v840, 64
      %v905 = vpop.permute.xlu0 %904
      %906 = vrot.lane.b32.xlu0 %v841, 64
      %v907 = vpop.permute.xlu0 %906
      %908 = vrot.lane.b32.xlu0 %v842, 64
      %v909 = vpop.permute.xlu0 %908
      %910 = vrot.lane.b32.xlu0 %v843, 64
      %v911 = vpop.permute.xlu0 %910
      %912 = vrot.lane.b32.xlu0 %v844, 64
      %v913 = vpop.permute.xlu0 %912
      %914 = vrot.lane.b32.xlu0 %v845, 64
      %v915 = vpop.permute.xlu0 %914
      %916 = vrot.lane.b32.xlu0 %v846, 64
      %v917 = vpop.permute.xlu0 %916
      %918 = vrot.lane.b32.xlu0 %v847, 64
      %v919 = vpop.permute.xlu0 %918
      %920 = vrot.lane.b32.xlu0 %v848, 64
      %v921 = vpop.permute.xlu0 %920
      %922 = vrot.lane.b32.xlu0 %v849, 64
      %v923 = vpop.permute.xlu0 %922
      %924 = vrot.lane.b32.xlu0 %v850, 64
      %v925 = vpop.permute.xlu0 %924
      %926 = vrot.lane.b32.xlu0 %v851, 64
      %v927 = vpop.permute.xlu0 %926
      %928 = vrot.lane.b32.xlu0 %v852, 64
      %v929 = vpop.permute.xlu0 %928
      %930 = vrot.lane.b32.xlu0 %v853, 64
      %v931 = vpop.permute.xlu0 %930
      %932 = vrot.lane.b32.xlu0 %v854, 64
      %v933 = vpop.permute.xlu0 %932
      %934 = vrot.lane.b32.xlu0 %v855, 64
      %v935 = vpop.permute.xlu0 %934
      %936 = vrot.lane.b32.xlu0 %v856, 64
      %v937 = vpop.permute.xlu0 %936
      %938 = vrot.lane.b32.xlu0 %v857, 64
      %v939 = vpop.permute.xlu0 %938
      %940 = vrot.lane.b32.xlu0 %v858, 64
      %v941 = vpop.permute.xlu0 %940
      %942 = vrot.lane.b32.xlu0 %v859, 64
      %v943 = vpop.permute.xlu0 %942
      %944 = vrot.lane.b32.xlu0 %v860, 64
      %v945 = vpop.permute.xlu0 %944
      %946 = vrot.lane.b32.xlu0 %v861, 64
      %v947 = vpop.permute.xlu0 %946
      %948 = vrot.lane.b32.xlu0 %v862, 64
      %v949 = vpop.permute.xlu0 %948
      %950 = vrot.lane.b32.xlu0 %v863, 64
      %v951 = vpop.permute.xlu0 %950
      %952 = vrot.lane.b32.xlu0 %v864, 64
      %v953 = vpop.permute.xlu0 %952
      %954 = vrot.lane.b32.xlu0 %v865, 64
      %v955 = vpop.permute.xlu0 %954
      %956 = vrot.lane.b32.xlu0 %v866, 64
      %v957 = vpop.permute.xlu0 %956
      %958 = vrot.lane.b32.xlu0 %v867, 64
      %v959 = vpop.permute.xlu0 %958
      %960 = vrot.lane.b32.xlu0 %v868, 64
      %v961 = vpop.permute.xlu0 %960
      %962 = vrot.lane.b32.xlu0 %v869, 64
      %v963 = vpop.permute.xlu0 %962
      %964 = vrot.lane.b32.xlu0 %v870, 64
      %v965 = vpop.permute.xlu0 %964
      %966 = vrot.lane.b32.xlu0 %v871, 64
      %v967 = vpop.permute.xlu0 %966
      %1000 = vst.msk [vmem:[#allocation3 + $0x4] sm:$0xf] %vm679, %v905
      %1001 = vst.msk [vmem:[#allocation3 + $0x18] sm:$0xf] %vm679, %v907
      %1002 = vst.msk [vmem:[#allocation3 + $0x2c] sm:$0xf] %vm679, %v909
      %1003 = vst.msk [vmem:[#allocation3 + $0x40] sm:$0xf] %vm679, %v911
      %1004 = vst.msk [vmem:[#allocation3 + $0x54] sm:$0xf] %vm679, %v913
      %1005 = vst.msk [vmem:[#allocation3 + $0x68] sm:$0xf] %vm679, %v915
      %1006 = vst.msk [vmem:[#allocation3 + $0x7c] sm:$0xf] %vm679, %v917
      %1007 = vst.msk [vmem:[#allocation3 + $0x90] sm:$0xf] %vm679, %v919
      %1008 = vst.msk [vmem:[#allocation3 + $0xa4] sm:$0xf] %vm679, %v921
      %1009 = vst.msk [vmem:[#allocation3 + $0xb8] sm:$0xf] %vm679, %v923
      %1010 = vst.msk [vmem:[#allocation3 + $0xcc] sm:$0xf] %vm679, %v925
      %1011 = vst.msk [vmem:[#allocation3 + $0xe0] sm:$0xf] %vm679, %v927
      %1012 = vst.msk [vmem:[#allocation3 + $0xf4] sm:$0xf] %vm679, %v929
      %1013 = vst.msk [vmem:[#allocation3 + $0x108] sm:$0xf] %vm679, %v931
      %1014 = vst.msk [vmem:[#allocation3 + $0x11c] sm:$0xf] %vm679, %v933
      %1015 = vst.msk [vmem:[#allocation3 + $0x130] sm:$0xf] %vm679, %v935
      %1016 = vst.msk [vmem:[#allocation3 + $0x144] sm:$0xf] %vm679, %v937
      %1017 = vst.msk [vmem:[#allocation3 + $0x158] sm:$0xf] %vm679, %v939
      %1018 = vst.msk [vmem:[#allocation3 + $0x16c] sm:$0xf] %vm679, %v941
      %1019 = vst.msk [vmem:[#allocation3 + $0x180] sm:$0xf] %vm679, %v943
      %1020 = vst.msk [vmem:[#allocation3 + $0x194] sm:$0xf] %vm679, %v945
      %1021 = vst.msk [vmem:[#allocation3 + $0x1a8] sm:$0xf] %vm679, %v947
      %1022 = vst.msk [vmem:[#allocation3 + $0x1bc] sm:$0xf] %vm679, %v949
      %1023 = vst.msk [vmem:[#allocation3 + $0x1d0] sm:$0xf] %vm679, %v951
      %1024 = vst.msk [vmem:[#allocation3 + $0x1e4] sm:$0xf] %vm679, %v953
      %1025 = vst.msk [vmem:[#allocation3 + $0x1f8] sm:$0xf] %vm679, %v955
      %1026 = vst.msk [vmem:[#allocation3 + $0x20c] sm:$0xf] %vm679, %v957
      %1027 = vst.msk [vmem:[#allocation3 + $0x220] sm:$0xf] %vm679, %v959
      %1028 = vst.msk [vmem:[#allocation3 + $0x234] sm:$0xf] %vm679, %v961
      %1029 = vst.msk [vmem:[#allocation3 + $0x248] sm:$0xf] %vm679, %v963
      %1030 = vst.msk [vmem:[#allocation3 + $0x25c] sm:$0xf] %vm679, %v965
      %1031 = vst.msk [vmem:[#allocation3 + $0x270] sm:$0xf] %vm679, %v967
      %v1032 = vld [vmem:[%s292 + $0x1] sm:$0xff]
      %v1033 = vld [vmem:[%s292 + $0x9] sm:$0xff]
      %v1034 = vld [vmem:[%s292 + $0x19] sm:$0xff]
      %v1035 = vld [vmem:[%s292 + $0x21] sm:$0xff]
      %v1036 = vld [vmem:[%s292 + $0x31] sm:$0xff]
      %v1037 = vld [vmem:[%s292 + $0x39] sm:$0xff]
      %v1038 = vld [vmem:[%s292 + $0x49] sm:$0xff]
      %v1039 = vld [vmem:[%s292 + $0x51] sm:$0xff]
      %v1040 = vld [vmem:[%s292 + $0x61] sm:$0xff]
      %v1041 = vld [vmem:[%s292 + $0x69] sm:$0xff]
      %v1042 = vld [vmem:[%s292 + $0x79] sm:$0xff]
      %v1043 = vld [vmem:[%s292 + $0x81] sm:$0xff]
      %v1044 = vld [vmem:[%s292 + $0x91] sm:$0xff]
      %v1045 = vld [vmem:[%s292 + $0x99] sm:$0xff]
      %v1046 = vld [vmem:[%s292 + $0xa9] sm:$0xff]
      %v1047 = vld [vmem:[%s292 + $0xb1] sm:$0xff]
      %v1048 = vld [vmem:[%s292 + $0xc1] sm:$0xff]
      %v1049 = vld [vmem:[%s292 + $0xc9] sm:$0xff]
      %v1050 = vld [vmem:[%s292 + $0xd9] sm:$0xff]
      %v1051 = vld [vmem:[%s292 + $0xe1] sm:$0xff]
      %v1052 = vld [vmem:[%s292 + $0xf1] sm:$0xff]
      %v1053 = vld [vmem:[%s292 + $0xf9] sm:$0xff]
      %v1054 = vld [vmem:[%s292 + $0x109] sm:$0xff]
      %v1055 = vld [vmem:[%s292 + $0x111] sm:$0xff]
      %v1056 = vld [vmem:[%s292 + $0x121] sm:$0xff]
      %v1057 = vld [vmem:[%s292 + $0x129] sm:$0xff]
      %v1058 = vld [vmem:[%s292 + $0x139] sm:$0xff]
      %v1059 = vld [vmem:[%s292 + $0x141] sm:$0xff]
      %v1060 = vld [vmem:[%s292 + $0x151] sm:$0xff]
      %v1061 = vld [vmem:[%s292 + $0x159] sm:$0xff]
      %v1062 = vld [vmem:[%s292 + $0x169] sm:$0xff]
      %v1063 = vld [vmem:[%s292 + $0x171] sm:$0xff]
      %v1064 = vpack.c.bf16 %v1032, %v1032
      %v1065 = vpack.c.bf16 %v1033, %v1033
      %v1066 = vpack.c.bf16 %v1034, %v1034
      %v1067 = vpack.c.bf16 %v1035, %v1035
      %v1068 = vpack.c.bf16 %v1036, %v1036
      %v1069 = vpack.c.bf16 %v1037, %v1037
      %v1070 = vpack.c.bf16 %v1038, %v1038
      %v1071 = vpack.c.bf16 %v1039, %v1039
      %v1072 = vpack.c.bf16 %v1040, %v1040
      %v1073 = vpack.c.bf16 %v1041, %v1041
      %v1074 = vpack.c.bf16 %v1042, %v1042
      %v1075 = vpack.c.bf16 %v1043, %v1043
      %v1076 = vpack.c.bf16 %v1044, %v1044
      %v1077 = vpack.c.bf16 %v1045, %v1045
      %v1078 = vpack.c.bf16 %v1046, %v1046
      %v1079 = vpack.c.bf16 %v1047, %v1047
      %v1080 = vpack.c.bf16 %v1048, %v1048
      %v1081 = vpack.c.bf16 %v1049, %v1049
      %v1082 = vpack.c.bf16 %v1050, %v1050
      %v1083 = vpack.c.bf16 %v1051, %v1051
      %v1084 = vpack.c.bf16 %v1052, %v1052
      %v1085 = vpack.c.bf16 %v1053, %v1053
      %v1086 = vpack.c.bf16 %v1054, %v1054
      %v1087 = vpack.c.bf16 %v1055, %v1055
      %v1088 = vpack.c.bf16 %v1056, %v1056
      %v1089 = vpack.c.bf16 %v1057, %v1057
      %v1090 = vpack.c.bf16 %v1058, %v1058
      %v1091 = vpack.c.bf16 %v1059, %v1059
      %v1092 = vpack.c.bf16 %v1060, %v1060
      %v1093 = vpack.c.bf16 %v1061, %v1061
      %v1094 = vpack.c.bf16 %v1062, %v1062
      %v1095 = vpack.c.bf16 %v1063, %v1063
      %1096 = vst.msk [vmem:[#allocation3 + $0x8] sm:$0xf] %vm454, %v1064
      %1097 = vst.msk [vmem:[#allocation3 + $0x1c] sm:$0xf] %vm454, %v1065
      %1098 = vst.msk [vmem:[#allocation3 + $0x30] sm:$0xf] %vm454, %v1066
      %1099 = vst.msk [vmem:[#allocation3 + $0x44] sm:$0xf] %vm454, %v1067
      %1100 = vst.msk [vmem:[#allocation3 + $0x58] sm:$0xf] %vm454, %v1068
      %1101 = vst.msk [vmem:[#allocation3 + $0x6c] sm:$0xf] %vm454, %v1069
      %1102 = vst.msk [vmem:[#allocation3 + $0x80] sm:$0xf] %vm454, %v1070
      %1103 = vst.msk [vmem:[#allocation3 + $0x94] sm:$0xf] %vm454, %v1071
      %1104 = vst.msk [vmem:[#allocation3 + $0xa8] sm:$0xf] %vm454, %v1072
      %1105 = vst.msk [vmem:[#allocation3 + $0xbc] sm:$0xf] %vm454, %v1073
      %1106 = vst.msk [vmem:[#allocation3 + $0xd0] sm:$0xf] %vm454, %v1074
      %1107 = vst.msk [vmem:[#allocation3 + $0xe4] sm:$0xf] %vm454, %v1075
      %1108 = vst.msk [vmem:[#allocation3 + $0xf8] sm:$0xf] %vm454, %v1076
      %1109 = vst.msk [vmem:[#allocation3 + $0x10c] sm:$0xf] %vm454, %v1077
      %1110 = vst.msk [vmem:[#allocation3 + $0x120] sm:$0xf] %vm454, %v1078
      %1111 = vst.msk [vmem:[#allocation3 + $0x134] sm:$0xf] %vm454, %v1079
      %1112 = vst.msk [vmem:[#allocation3 + $0x148] sm:$0xf] %vm454, %v1080
      %1113 = vst.msk [vmem:[#allocation3 + $0x15c] sm:$0xf] %vm454, %v1081
      %1114 = vst.msk [vmem:[#allocation3 + $0x170] sm:$0xf] %vm454, %v1082
      %1115 = vst.msk [vmem:[#allocation3 + $0x184] sm:$0xf] %vm454, %v1083
      %1116 = vst.msk [vmem:[#allocation3 + $0x198] sm:$0xf] %vm454, %v1084
      %1117 = vst.msk [vmem:[#allocation3 + $0x1ac] sm:$0xf] %vm454, %v1085
      %1118 = vst.msk [vmem:[#allocation3 + $0x1c0] sm:$0xf] %vm454, %v1086
      %1119 = vst.msk [vmem:[#allocation3 + $0x1d4] sm:$0xf] %vm454, %v1087
      %1120 = vst.msk [vmem:[#allocation3 + $0x1e8] sm:$0xf] %vm454, %v1088
      %1121 = vst.msk [vmem:[#allocation3 + $0x1fc] sm:$0xf] %vm454, %v1089
      %1122 = vst.msk [vmem:[#allocation3 + $0x210] sm:$0xf] %vm454, %v1090
      %1123 = vst.msk [vmem:[#allocation3 + $0x224] sm:$0xf] %vm454, %v1091
      %1124 = vst.msk [vmem:[#allocation3 + $0x238] sm:$0xf] %vm454, %v1092
      %1125 = vst.msk [vmem:[#allocation3 + $0x24c] sm:$0xf] %vm454, %v1093
      %1126 = vst.msk [vmem:[#allocation3 + $0x260] sm:$0xf] %vm454, %v1094
      %1127 = vst.msk [vmem:[#allocation3 + $0x274] sm:$0xf] %vm454, %v1095
      %v1128 = vld [vmem:[%s292 + $0x2] sm:$0xff]
      %v1129 = vld [vmem:[%s292 + $0xa] sm:$0xff]
      %v1130 = vld [vmem:[%s292 + $0x1a] sm:$0xff]
      %v1131 = vld [vmem:[%s292 + $0x22] sm:$0xff]
      %v1132 = vld [vmem:[%s292 + $0x32] sm:$0xff]
      %v1133 = vld [vmem:[%s292 + $0x3a] sm:$0xff]
      %v1134 = vld [vmem:[%s292 + $0x4a] sm:$0xff]
      %v1135 = vld [vmem:[%s292 + $0x52] sm:$0xff]
      %v1136 = vld [vmem:[%s292 + $0x62] sm:$0xff]
      %v1137 = vld [vmem:[%s292 + $0x6a] sm:$0xff]
      %v1138 = vld [vmem:[%s292 + $0x7a] sm:$0xff]
      %v1139 = vld [vmem:[%s292 + $0x82] sm:$0xff]
      %v1140 = vld [vmem:[%s292 + $0x92] sm:$0xff]
      %v1141 = vld [vmem:[%s292 + $0x9a] sm:$0xff]
      %v1142 = vld [vmem:[%s292 + $0xaa] sm:$0xff]
      %v1143 = vld [vmem:[%s292 + $0xb2] sm:$0xff]
      %v1144 = vld [vmem:[%s292 + $0xc2] sm:$0xff]
      %v1145 = vld [vmem:[%s292 + $0xca] sm:$0xff]
      %v1146 = vld [vmem:[%s292 + $0xda] sm:$0xff]
      %v1147 = vld [vmem:[%s292 + $0xe2] sm:$0xff]
      %v1148 = vld [vmem:[%s292 + $0xf2] sm:$0xff]
      %v1149 = vld [vmem:[%s292 + $0xfa] sm:$0xff]
      %v1150 = vld [vmem:[%s292 + $0x10a] sm:$0xff]
      %v1151 = vld [vmem:[%s292 + $0x112] sm:$0xff]
      %v1152 = vld [vmem:[%s292 + $0x122] sm:$0xff]
      %v1153 = vld [vmem:[%s292 + $0x12a] sm:$0xff]
      %v1154 = vld [vmem:[%s292 + $0x13a] sm:$0xff]
      %v1155 = vld [vmem:[%s292 + $0x142] sm:$0xff]
      %v1156 = vld [vmem:[%s292 + $0x152] sm:$0xff]
      %v1157 = vld [vmem:[%s292 + $0x15a] sm:$0xff]
      %v1158 = vld [vmem:[%s292 + $0x16a] sm:$0xff]
      %v1159 = vld [vmem:[%s292 + $0x172] sm:$0xff]
      %v1160 = vpack.c.bf16 %v1128, %v1128
      %v1161 = vpack.c.bf16 %v1129, %v1129
      %v1162 = vpack.c.bf16 %v1130, %v1130
      %v1163 = vpack.c.bf16 %v1131, %v1131
      %v1164 = vpack.c.bf16 %v1132, %v1132
      %v1165 = vpack.c.bf16 %v1133, %v1133
      %v1166 = vpack.c.bf16 %v1134, %v1134
      %v1167 = vpack.c.bf16 %v1135, %v1135
      %v1168 = vpack.c.bf16 %v1136, %v1136
      %v1169 = vpack.c.bf16 %v1137, %v1137
      %v1170 = vpack.c.bf16 %v1138, %v1138
      %v1171 = vpack.c.bf16 %v1139, %v1139
      %v1172 = vpack.c.bf16 %v1140, %v1140
      %v1173 = vpack.c.bf16 %v1141, %v1141
      %v1174 = vpack.c.bf16 %v1142, %v1142
      %v1175 = vpack.c.bf16 %v1143, %v1143
      %v1176 = vpack.c.bf16 %v1144, %v1144
      %v1177 = vpack.c.bf16 %v1145, %v1145
      %v1178 = vpack.c.bf16 %v1146, %v1146
      %v1179 = vpack.c.bf16 %v1147, %v1147
      %v1180 = vpack.c.bf16 %v1148, %v1148
      %v1181 = vpack.c.bf16 %v1149, %v1149
      %v1182 = vpack.c.bf16 %v1150, %v1150
      %v1183 = vpack.c.bf16 %v1151, %v1151
      %v1184 = vpack.c.bf16 %v1152, %v1152
      %v1185 = vpack.c.bf16 %v1153, %v1153
      %v1186 = vpack.c.bf16 %v1154, %v1154
      %v1187 = vpack.c.bf16 %v1155, %v1155
      %v1188 = vpack.c.bf16 %v1156, %v1156
      %v1189 = vpack.c.bf16 %v1157, %v1157
      %v1190 = vpack.c.bf16 %v1158, %v1158
      %v1191 = vpack.c.bf16 %v1159, %v1159
      %1224 = vrot.lane.b32.xlu0 %v1160, 64
      %v1225 = vpop.permute.xlu0 %1224
      %1226 = vrot.lane.b32.xlu0 %v1161, 64
      %v1227 = vpop.permute.xlu0 %1226
      %1228 = vrot.lane.b32.xlu0 %v1162, 64
      %v1229 = vpop.permute.xlu0 %1228
      %1230 = vrot.lane.b32.xlu0 %v1163, 64
      %v1231 = vpop.permute.xlu0 %1230
      %1232 = vrot.lane.b32.xlu0 %v1164, 64
      %v1233 = vpop.permute.xlu0 %1232
      %1234 = vrot.lane.b32.xlu0 %v1165, 64
      %v1235 = vpop.permute.xlu0 %1234
      %1236 = vrot.lane.b32.xlu0 %v1166, 64
      %v1237 = vpop.permute.xlu0 %1236
      %1238 = vrot.lane.b32.xlu0 %v1167, 64
      %v1239 = vpop.permute.xlu0 %1238
      %1240 = vrot.lane.b32.xlu0 %v1168, 64
      %v1241 = vpop.permute.xlu0 %1240
      %1242 = vrot.lane.b32.xlu0 %v1169, 64
      %v1243 = vpop.permute.xlu0 %1242
      %1244 = vrot.lane.b32.xlu0 %v1170, 64
      %v1245 = vpop.permute.xlu0 %1244
      %1246 = vrot.lane.b32.xlu0 %v1171, 64
      %v1247 = vpop.permute.xlu0 %1246
      %1248 = vrot.lane.b32.xlu0 %v1172, 64
      %v1249 = vpop.permute.xlu0 %1248
      %1250 = vrot.lane.b32.xlu0 %v1173, 64
      %v1251 = vpop.permute.xlu0 %1250
      %1252 = vrot.lane.b32.xlu0 %v1174, 64
      %v1253 = vpop.permute.xlu0 %1252
      %1254 = vrot.lane.b32.xlu0 %v1175, 64
      %v1255 = vpop.permute.xlu0 %1254
      %1256 = vrot.lane.b32.xlu0 %v1176, 64
      %v1257 = vpop.permute.xlu0 %1256
      %1258 = vrot.lane.b32.xlu0 %v1177, 64
      %v1259 = vpop.permute.xlu0 %1258
      %1260 = vrot.lane.b32.xlu0 %v1178, 64
      %v1261 = vpop.permute.xlu0 %1260
      %1262 = vrot.lane.b32.xlu0 %v1179, 64
      %v1263 = vpop.permute.xlu0 %1262
      %1264 = vrot.lane.b32.xlu0 %v1180, 64
      %v1265 = vpop.permute.xlu0 %1264
      %1266 = vrot.lane.b32.xlu0 %v1181, 64
      %v1267 = vpop.permute.xlu0 %1266
      %1268 = vrot.lane.b32.xlu0 %v1182, 64
      %v1269 = vpop.permute.xlu0 %1268
      %1270 = vrot.lane.b32.xlu0 %v1183, 64
      %v1271 = vpop.permute.xlu0 %1270
      %1272 = vrot.lane.b32.xlu0 %v1184, 64
      %v1273 = vpop.permute.xlu0 %1272
      %1274 = vrot.lane.b32.xlu0 %v1185, 64
      %v1275 = vpop.permute.xlu0 %1274
      %1276 = vrot.lane.b32.xlu0 %v1186, 64
      %v1277 = vpop.permute.xlu0 %1276
      %1278 = vrot.lane.b32.xlu0 %v1187, 64
      %v1279 = vpop.permute.xlu0 %1278
      %1280 = vrot.lane.b32.xlu0 %v1188, 64
      %v1281 = vpop.permute.xlu0 %1280
      %1282 = vrot.lane.b32.xlu0 %v1189, 64
      %v1283 = vpop.permute.xlu0 %1282
      %1284 = vrot.lane.b32.xlu0 %v1190, 64
      %v1285 = vpop.permute.xlu0 %1284
      %1286 = vrot.lane.b32.xlu0 %v1191, 64
      %v1287 = vpop.permute.xlu0 %1286
      %1320 = vst.msk [vmem:[#allocation3 + $0x8] sm:$0xf] %vm679, %v1225
      %1321 = vst.msk [vmem:[#allocation3 + $0x1c] sm:$0xf] %vm679, %v1227
      %1322 = vst.msk [vmem:[#allocation3 + $0x30] sm:$0xf] %vm679, %v1229
      %1323 = vst.msk [vmem:[#allocation3 + $0x44] sm:$0xf] %vm679, %v1231
      %1324 = vst.msk [vmem:[#allocation3 + $0x58] sm:$0xf] %vm679, %v1233
      %1325 = vst.msk [vmem:[#allocation3 + $0x6c] sm:$0xf] %vm679, %v1235
      %1326 = vst.msk [vmem:[#allocation3 + $0x80] sm:$0xf] %vm679, %v1237
      %1327 = vst.msk [vmem:[#allocation3 + $0x94] sm:$0xf] %vm679, %v1239
      %1328 = vst.msk [vmem:[#allocation3 + $0xa8] sm:$0xf] %vm679, %v1241
      %1329 = vst.msk [vmem:[#allocation3 + $0xbc] sm:$0xf] %vm679, %v1243
      %1330 = vst.msk [vmem:[#allocation3 + $0xd0] sm:$0xf] %vm679, %v1245
      %1331 = vst.msk [vmem:[#allocation3 + $0xe4] sm:$0xf] %vm679, %v1247
      %1332 = vst.msk [vmem:[#allocation3 + $0xf8] sm:$0xf] %vm679, %v1249
      %1333 = vst.msk [vmem:[#allocation3 + $0x10c] sm:$0xf] %vm679, %v1251
      %1334 = vst.msk [vmem:[#allocation3 + $0x120] sm:$0xf] %vm679, %v1253
      %1335 = vst.msk [vmem:[#allocation3 + $0x134] sm:$0xf] %vm679, %v1255
      %1336 = vst.msk [vmem:[#allocation3 + $0x148] sm:$0xf] %vm679, %v1257
      %1337 = vst.msk [vmem:[#allocation3 + $0x15c] sm:$0xf] %vm679, %v1259
      %1338 = vst.msk [vmem:[#allocation3 + $0x170] sm:$0xf] %vm679, %v1261
      %1339 = vst.msk [vmem:[#allocation3 + $0x184] sm:$0xf] %vm679, %v1263
      %1340 = vst.msk [vmem:[#allocation3 + $0x198] sm:$0xf] %vm679, %v1265
      %1341 = vst.msk [vmem:[#allocation3 + $0x1ac] sm:$0xf] %vm679, %v1267
      %1342 = vst.msk [vmem:[#allocation3 + $0x1c0] sm:$0xf] %vm679, %v1269
      %1343 = vst.msk [vmem:[#allocation3 + $0x1d4] sm:$0xf] %vm679, %v1271
      %1344 = vst.msk [vmem:[#allocation3 + $0x1e8] sm:$0xf] %vm679, %v1273
      %1345 = vst.msk [vmem:[#allocation3 + $0x1fc] sm:$0xf] %vm679, %v1275
      %1346 = vst.msk [vmem:[#allocation3 + $0x210] sm:$0xf] %vm679, %v1277
      %1347 = vst.msk [vmem:[#allocation3 + $0x224] sm:$0xf] %vm679, %v1279
      %1348 = vst.msk [vmem:[#allocation3 + $0x238] sm:$0xf] %vm679, %v1281
      %1349 = vst.msk [vmem:[#allocation3 + $0x24c] sm:$0xf] %vm679, %v1283
      %1350 = vst.msk [vmem:[#allocation3 + $0x260] sm:$0xf] %vm679, %v1285
      %1351 = vst.msk [vmem:[#allocation3 + $0x274] sm:$0xf] %vm679, %v1287
      %s1352 = scalar_lea.vmem [#allocation2], 48
      %v1353 = vld [vmem:[%s1352] sm:$0xff]
      %v1354 = vld [vmem:[%s1352 + $0x8] sm:$0xff]
      %v1355 = vld [vmem:[%s1352 + $0x18] sm:$0xff]
      %v1356 = vld [vmem:[%s1352 + $0x20] sm:$0xff]
      %v1357 = vld [vmem:[%s1352 + $0x30] sm:$0xff]
      %v1358 = vld [vmem:[%s1352 + $0x38] sm:$0xff]
      %v1359 = vld [vmem:[%s1352 + $0x48] sm:$0xff]
      %v1360 = vld [vmem:[%s1352 + $0x50] sm:$0xff]
      %v1361 = vld [vmem:[%s1352 + $0x60] sm:$0xff]
      %v1362 = vld [vmem:[%s1352 + $0x68] sm:$0xff]
      %v1363 = vld [vmem:[%s1352 + $0x78] sm:$0xff]
      %v1364 = vld [vmem:[%s1352 + $0x80] sm:$0xff]
      %v1365 = vld [vmem:[%s1352 + $0x90] sm:$0xff]
      %v1366 = vld [vmem:[%s1352 + $0x98] sm:$0xff]
      %v1367 = vld [vmem:[%s1352 + $0xa8] sm:$0xff]
      %v1368 = vld [vmem:[%s1352 + $0xb0] sm:$0xff]
      %v1369 = vld [vmem:[%s1352 + $0xc0] sm:$0xff]
      %v1370 = vld [vmem:[%s1352 + $0xc8] sm:$0xff]
      %v1371 = vld [vmem:[%s1352 + $0xd8] sm:$0xff]
      %v1372 = vld [vmem:[%s1352 + $0xe0] sm:$0xff]
      %v1373 = vld [vmem:[%s1352 + $0xf0] sm:$0xff]
      %v1374 = vld [vmem:[%s1352 + $0xf8] sm:$0xff]
      %v1375 = vld [vmem:[%s1352 + $0x108] sm:$0xff]
      %v1376 = vld [vmem:[%s1352 + $0x110] sm:$0xff]
      %v1377 = vld [vmem:[%s1352 + $0x120] sm:$0xff]
      %v1378 = vld [vmem:[%s1352 + $0x128] sm:$0xff]
      %v1379 = vld [vmem:[%s1352 + $0x138] sm:$0xff]
      %v1380 = vld [vmem:[%s1352 + $0x140] sm:$0xff]
      %v1381 = vld [vmem:[%s1352 + $0x150] sm:$0xff]
      %v1382 = vld [vmem:[%s1352 + $0x158] sm:$0xff]
      %v1383 = vld [vmem:[%s1352 + $0x168] sm:$0xff]
      %v1384 = vld [vmem:[%s1352 + $0x170] sm:$0xff]
      %v1385 = vpack.c.bf16 %v1353, %v1353
      %v1386 = vpack.c.bf16 %v1354, %v1354
      %v1387 = vpack.c.bf16 %v1355, %v1355
      %v1388 = vpack.c.bf16 %v1356, %v1356
      %v1389 = vpack.c.bf16 %v1357, %v1357
      %v1390 = vpack.c.bf16 %v1358, %v1358
      %v1391 = vpack.c.bf16 %v1359, %v1359
      %v1392 = vpack.c.bf16 %v1360, %v1360
      %v1393 = vpack.c.bf16 %v1361, %v1361
      %v1394 = vpack.c.bf16 %v1362, %v1362
      %v1395 = vpack.c.bf16 %v1363, %v1363
      %v1396 = vpack.c.bf16 %v1364, %v1364
      %v1397 = vpack.c.bf16 %v1365, %v1365
      %v1398 = vpack.c.bf16 %v1366, %v1366
      %v1399 = vpack.c.bf16 %v1367, %v1367
      %v1400 = vpack.c.bf16 %v1368, %v1368
      %v1401 = vpack.c.bf16 %v1369, %v1369
      %v1402 = vpack.c.bf16 %v1370, %v1370
      %v1403 = vpack.c.bf16 %v1371, %v1371
      %v1404 = vpack.c.bf16 %v1372, %v1372
      %v1405 = vpack.c.bf16 %v1373, %v1373
      %v1406 = vpack.c.bf16 %v1374, %v1374
      %v1407 = vpack.c.bf16 %v1375, %v1375
      %v1408 = vpack.c.bf16 %v1376, %v1376
      %v1409 = vpack.c.bf16 %v1377, %v1377
      %v1410 = vpack.c.bf16 %v1378, %v1378
      %v1411 = vpack.c.bf16 %v1379, %v1379
      %v1412 = vpack.c.bf16 %v1380, %v1380
      %v1413 = vpack.c.bf16 %v1381, %v1381
      %v1414 = vpack.c.bf16 %v1382, %v1382
      %v1415 = vpack.c.bf16 %v1383, %v1383
      %v1416 = vpack.c.bf16 %v1384, %v1384
      %1417 = vst.msk [vmem:[#allocation3 + $0xc] sm:$0xf] %vm454, %v1385
      %1418 = vst.msk [vmem:[#allocation3 + $0x20] sm:$0xf] %vm454, %v1386
      %1419 = vst.msk [vmem:[#allocation3 + $0x34] sm:$0xf] %vm454, %v1387
      %1420 = vst.msk [vmem:[#allocation3 + $0x48] sm:$0xf] %vm454, %v1388
      %1421 = vst.msk [vmem:[#allocation3 + $0x5c] sm:$0xf] %vm454, %v1389
      %1422 = vst.msk [vmem:[#allocation3 + $0x70] sm:$0xf] %vm454, %v1390
      %1423 = vst.msk [vmem:[#allocation3 + $0x84] sm:$0xf] %vm454, %v1391
      %1424 = vst.msk [vmem:[#allocation3 + $0x98] sm:$0xf] %vm454, %v1392
      %1425 = vst.msk [vmem:[#allocation3 + $0xac] sm:$0xf] %vm454, %v1393
      %1426 = vst.msk [vmem:[#allocation3 + $0xc0] sm:$0xf] %vm454, %v1394
      %1427 = vst.msk [vmem:[#allocation3 + $0xd4] sm:$0xf] %vm454, %v1395
      %1428 = vst.msk [vmem:[#allocation3 + $0xe8] sm:$0xf] %vm454, %v1396
      %1429 = vst.msk [vmem:[#allocation3 + $0xfc] sm:$0xf] %vm454, %v1397
      %1430 = vst.msk [vmem:[#allocation3 + $0x110] sm:$0xf] %vm454, %v1398
      %1431 = vst.msk [vmem:[#allocation3 + $0x124] sm:$0xf] %vm454, %v1399
      %1432 = vst.msk [vmem:[#allocation3 + $0x138] sm:$0xf] %vm454, %v1400
      %1433 = vst.msk [vmem:[#allocation3 + $0x14c] sm:$0xf] %vm454, %v1401
      %1434 = vst.msk [vmem:[#allocation3 + $0x160] sm:$0xf] %vm454, %v1402
      %1435 = vst.msk [vmem:[#allocation3 + $0x174] sm:$0xf] %vm454, %v1403
      %1436 = vst.msk [vmem:[#allocation3 + $0x188] sm:$0xf] %vm454, %v1404
      %1437 = vst.msk [vmem:[#allocation3 + $0x19c] sm:$0xf] %vm454, %v1405
      %1438 = vst.msk [vmem:[#allocation3 + $0x1b0] sm:$0xf] %vm454, %v1406
      %1439 = vst.msk [vmem:[#allocation3 + $0x1c4] sm:$0xf] %vm454, %v1407
      %1440 = vst.msk [vmem:[#allocation3 + $0x1d8] sm:$0xf] %vm454, %v1408
      %1441 = vst.msk [vmem:[#allocation3 + $0x1ec] sm:$0xf] %vm454, %v1409
      %1442 = vst.msk [vmem:[#allocation3 + $0x200] sm:$0xf] %vm454, %v1410
      %1443 = vst.msk [vmem:[#allocation3 + $0x214] sm:$0xf] %vm454, %v1411
      %1444 = vst.msk [vmem:[#allocation3 + $0x228] sm:$0xf] %vm454, %v1412
      %1445 = vst.msk [vmem:[#allocation3 + $0x23c] sm:$0xf] %vm454, %v1413
      %1446 = vst.msk [vmem:[#allocation3 + $0x250] sm:$0xf] %vm454, %v1414
      %1447 = vst.msk [vmem:[#allocation3 + $0x264] sm:$0xf] %vm454, %v1415
      %1448 = vst.msk [vmem:[#allocation3 + $0x278] sm:$0xf] %vm454, %v1416
      %v1449 = vld [vmem:[%s1352 + $0x1] sm:$0xff]
      %v1450 = vld [vmem:[%s1352 + $0x9] sm:$0xff]
      %v1451 = vld [vmem:[%s1352 + $0x19] sm:$0xff]
      %v1452 = vld [vmem:[%s1352 + $0x21] sm:$0xff]
      %v1453 = vld [vmem:[%s1352 + $0x31] sm:$0xff]
      %v1454 = vld [vmem:[%s1352 + $0x39] sm:$0xff]
      %v1455 = vld [vmem:[%s1352 + $0x49] sm:$0xff]
      %v1456 = vld [vmem:[%s1352 + $0x51] sm:$0xff]
      %v1457 = vld [vmem:[%s1352 + $0x61] sm:$0xff]
      %v1458 = vld [vmem:[%s1352 + $0x69] sm:$0xff]
      %v1459 = vld [vmem:[%s1352 + $0x79] sm:$0xff]
      %v1460 = vld [vmem:[%s1352 + $0x81] sm:$0xff]
      %v1461 = vld [vmem:[%s1352 + $0x91] sm:$0xff]
      %v1462 = vld [vmem:[%s1352 + $0x99] sm:$0xff]
      %v1463 = vld [vmem:[%s1352 + $0xa9] sm:$0xff]
      %v1464 = vld [vmem:[%s1352 + $0xb1] sm:$0xff]
      %v1465 = vld [vmem:[%s1352 + $0xc1] sm:$0xff]
      %v1466 = vld [vmem:[%s1352 + $0xc9] sm:$0xff]
      %v1467 = vld [vmem:[%s1352 + $0xd9] sm:$0xff]
      %v1468 = vld [vmem:[%s1352 + $0xe1] sm:$0xff]
      %v1469 = vld [vmem:[%s1352 + $0xf1] sm:$0xff]
      %v1470 = vld [vmem:[%s1352 + $0xf9] sm:$0xff]
      %v1471 = vld [vmem:[%s1352 + $0x109] sm:$0xff]
      %v1472 = vld [vmem:[%s1352 + $0x111] sm:$0xff]
      %v1473 = vld [vmem:[%s1352 + $0x121] sm:$0xff]
      %v1474 = vld [vmem:[%s1352 + $0x129] sm:$0xff]
      %v1475 = vld [vmem:[%s1352 + $0x139] sm:$0xff]
      %v1476 = vld [vmem:[%s1352 + $0x141] sm:$0xff]
      %v1477 = vld [vmem:[%s1352 + $0x151] sm:$0xff]
      %v1478 = vld [vmem:[%s1352 + $0x159] sm:$0xff]
      %v1479 = vld [vmem:[%s1352 + $0x169] sm:$0xff]
      %v1480 = vld [vmem:[%s1352 + $0x171] sm:$0xff]
      %v1481 = vpack.c.bf16 %v1449, %v1449
      %v1482 = vpack.c.bf16 %v1450, %v1450
      %v1483 = vpack.c.bf16 %v1451, %v1451
      %v1484 = vpack.c.bf16 %v1452, %v1452
      %v1485 = vpack.c.bf16 %v1453, %v1453
      %v1486 = vpack.c.bf16 %v1454, %v1454
      %v1487 = vpack.c.bf16 %v1455, %v1455
      %v1488 = vpack.c.bf16 %v1456, %v1456
      %v1489 = vpack.c.bf16 %v1457, %v1457
      %v1490 = vpack.c.bf16 %v1458, %v1458
      %v1491 = vpack.c.bf16 %v1459, %v1459
      %v1492 = vpack.c.bf16 %v1460, %v1460
      %v1493 = vpack.c.bf16 %v1461, %v1461
      %v1494 = vpack.c.bf16 %v1462, %v1462
      %v1495 = vpack.c.bf16 %v1463, %v1463
      %v1496 = vpack.c.bf16 %v1464, %v1464
      %v1497 = vpack.c.bf16 %v1465, %v1465
      %v1498 = vpack.c.bf16 %v1466, %v1466
      %v1499 = vpack.c.bf16 %v1467, %v1467
      %v1500 = vpack.c.bf16 %v1468, %v1468
      %v1501 = vpack.c.bf16 %v1469, %v1469
      %v1502 = vpack.c.bf16 %v1470, %v1470
      %v1503 = vpack.c.bf16 %v1471, %v1471
      %v1504 = vpack.c.bf16 %v1472, %v1472
      %v1505 = vpack.c.bf16 %v1473, %v1473
      %v1506 = vpack.c.bf16 %v1474, %v1474
      %v1507 = vpack.c.bf16 %v1475, %v1475
      %v1508 = vpack.c.bf16 %v1476, %v1476
      %v1509 = vpack.c.bf16 %v1477, %v1477
      %v1510 = vpack.c.bf16 %v1478, %v1478
      %v1511 = vpack.c.bf16 %v1479, %v1479
      %v1512 = vpack.c.bf16 %v1480, %v1480
      %1545 = vrot.lane.b32.xlu0 %v1481, 64
      %v1546 = vpop.permute.xlu0 %1545
      %1547 = vrot.lane.b32.xlu0 %v1482, 64
      %v1548 = vpop.permute.xlu0 %1547
      %1549 = vrot.lane.b32.xlu0 %v1483, 64
      %v1550 = vpop.permute.xlu0 %1549
      %1551 = vrot.lane.b32.xlu0 %v1484, 64
      %v1552 = vpop.permute.xlu0 %1551
      %1553 = vrot.lane.b32.xlu0 %v1485, 64
      %v1554 = vpop.permute.xlu0 %1553
      %1555 = vrot.lane.b32.xlu0 %v1486, 64
      %v1556 = vpop.permute.xlu0 %1555
      %1557 = vrot.lane.b32.xlu0 %v1487, 64
      %v1558 = vpop.permute.xlu0 %1557
      %1559 = vrot.lane.b32.xlu0 %v1488, 64
      %v1560 = vpop.permute.xlu0 %1559
      %1561 = vrot.lane.b32.xlu0 %v1489, 64
      %v1562 = vpop.permute.xlu0 %1561
      %1563 = vrot.lane.b32.xlu0 %v1490, 64
      %v1564 = vpop.permute.xlu0 %1563
      %1565 = vrot.lane.b32.xlu0 %v1491, 64
      %v1566 = vpop.permute.xlu0 %1565
      %1567 = vrot.lane.b32.xlu0 %v1492, 64
      %v1568 = vpop.permute.xlu0 %1567
      %1569 = vrot.lane.b32.xlu0 %v1493, 64
      %v1570 = vpop.permute.xlu0 %1569
      %1571 = vrot.lane.b32.xlu0 %v1494, 64
      %v1572 = vpop.permute.xlu0 %1571
      %1573 = vrot.lane.b32.xlu0 %v1495, 64
      %v1574 = vpop.permute.xlu0 %1573
      %1575 = vrot.lane.b32.xlu0 %v1496, 64
      %v1576 = vpop.permute.xlu0 %1575
      %1577 = vrot.lane.b32.xlu0 %v1497, 64
      %v1578 = vpop.permute.xlu0 %1577
      %1579 = vrot.lane.b32.xlu0 %v1498, 64
      %v1580 = vpop.permute.xlu0 %1579
      %1581 = vrot.lane.b32.xlu0 %v1499, 64
      %v1582 = vpop.permute.xlu0 %1581
      %1583 = vrot.lane.b32.xlu0 %v1500, 64
      %v1584 = vpop.permute.xlu0 %1583
      %1585 = vrot.lane.b32.xlu0 %v1501, 64
      %v1586 = vpop.permute.xlu0 %1585
      %1587 = vrot.lane.b32.xlu0 %v1502, 64
      %v1588 = vpop.permute.xlu0 %1587
      %1589 = vrot.lane.b32.xlu0 %v1503, 64
      %v1590 = vpop.permute.xlu0 %1589
      %1591 = vrot.lane.b32.xlu0 %v1504, 64
      %v1592 = vpop.permute.xlu0 %1591
      %1593 = vrot.lane.b32.xlu0 %v1505, 64
      %v1594 = vpop.permute.xlu0 %1593
      %1595 = vrot.lane.b32.xlu0 %v1506, 64
      %v1596 = vpop.permute.xlu0 %1595
      %1597 = vrot.lane.b32.xlu0 %v1507, 64
      %v1598 = vpop.permute.xlu0 %1597
      %1599 = vrot.lane.b32.xlu0 %v1508, 64
      %v1600 = vpop.permute.xlu0 %1599
      %1601 = vrot.lane.b32.xlu0 %v1509, 64
      %v1602 = vpop.permute.xlu0 %1601
      %1603 = vrot.lane.b32.xlu0 %v1510, 64
      %v1604 = vpop.permute.xlu0 %1603
      %1605 = vrot.lane.b32.xlu0 %v1511, 64
      %v1606 = vpop.permute.xlu0 %1605
      %1607 = vrot.lane.b32.xlu0 %v1512, 64
      %v1608 = vpop.permute.xlu0 %1607
      %1641 = vst.msk [vmem:[#allocation3 + $0xc] sm:$0xf] %vm679, %v1546
      %1642 = vst.msk [vmem:[#allocation3 + $0x20] sm:$0xf] %vm679, %v1548
      %1643 = vst.msk [vmem:[#allocation3 + $0x34] sm:$0xf] %vm679, %v1550
      %1644 = vst.msk [vmem:[#allocation3 + $0x48] sm:$0xf] %vm679, %v1552
      %1645 = vst.msk [vmem:[#allocation3 + $0x5c] sm:$0xf] %vm679, %v1554
      %1646 = vst.msk [vmem:[#allocation3 + $0x70] sm:$0xf] %vm679, %v1556
      %1647 = vst.msk [vmem:[#allocation3 + $0x84] sm:$0xf] %vm679, %v1558
      %1648 = vst.msk [vmem:[#allocation3 + $0x98] sm:$0xf] %vm679, %v1560
      %1649 = vst.msk [vmem:[#allocation3 + $0xac] sm:$0xf] %vm679, %v1562
      %1650 = vst.msk [vmem:[#allocation3 + $0xc0] sm:$0xf] %vm679, %v1564
      %1651 = vst.msk [vmem:[#allocation3 + $0xd4] sm:$0xf] %vm679, %v1566
      %1652 = vst.msk [vmem:[#allocation3 + $0xe8] sm:$0xf] %vm679, %v1568
      %1653 = vst.msk [vmem:[#allocation3 + $0xfc] sm:$0xf] %vm679, %v1570
      %1654 = vst.msk [vmem:[#allocation3 + $0x110] sm:$0xf] %vm679, %v1572
      %1655 = vst.msk [vmem:[#allocation3 + $0x124] sm:$0xf] %vm679, %v1574
      %1656 = vst.msk [vmem:[#allocation3 + $0x138] sm:$0xf] %vm679, %v1576
      %1657 = vst.msk [vmem:[#allocation3 + $0x14c] sm:$0xf] %vm679, %v1578
      %1658 = vst.msk [vmem:[#allocation3 + $0x160] sm:$0xf] %vm679, %v1580
      %1659 = vst.msk [vmem:[#allocation3 + $0x174] sm:$0xf] %vm679, %v1582
      %1660 = vst.msk [vmem:[#allocation3 + $0x188] sm:$0xf] %vm679, %v1584
      %1661 = vst.msk [vmem:[#allocation3 + $0x19c] sm:$0xf] %vm679, %v1586
      %1662 = vst.msk [vmem:[#allocation3 + $0x1b0] sm:$0xf] %vm679, %v1588
      %1663 = vst.msk [vmem:[#allocation3 + $0x1c4] sm:$0xf] %vm679, %v1590
      %1664 = vst.msk [vmem:[#allocation3 + $0x1d8] sm:$0xf] %vm679, %v1592
      %1665 = vst.msk [vmem:[#allocation3 + $0x1ec] sm:$0xf] %vm679, %v1594
      %1666 = vst.msk [vmem:[#allocation3 + $0x200] sm:$0xf] %vm679, %v1596
      %1667 = vst.msk [vmem:[#allocation3 + $0x214] sm:$0xf] %vm679, %v1598
      %1668 = vst.msk [vmem:[#allocation3 + $0x228] sm:$0xf] %vm679, %v1600
      %1669 = vst.msk [vmem:[#allocation3 + $0x23c] sm:$0xf] %vm679, %v1602
      %1670 = vst.msk [vmem:[#allocation3 + $0x250] sm:$0xf] %vm679, %v1604
      %1671 = vst.msk [vmem:[#allocation3 + $0x264] sm:$0xf] %vm679, %v1606
      %1672 = vst.msk [vmem:[#allocation3 + $0x278] sm:$0xf] %vm679, %v1608
      %v1673 = vld [vmem:[%s1352 + $0x2] sm:$0xff]
      %v1674 = vld [vmem:[%s1352 + $0xa] sm:$0xff]
      %v1675 = vld [vmem:[%s1352 + $0x1a] sm:$0xff]
      %v1676 = vld [vmem:[%s1352 + $0x22] sm:$0xff]
      %v1677 = vld [vmem:[%s1352 + $0x32] sm:$0xff]
      %v1678 = vld [vmem:[%s1352 + $0x3a] sm:$0xff]
      %v1679 = vld [vmem:[%s1352 + $0x4a] sm:$0xff]
      %v1680 = vld [vmem:[%s1352 + $0x52] sm:$0xff]
      %v1681 = vld [vmem:[%s1352 + $0x62] sm:$0xff]
      %v1682 = vld [vmem:[%s1352 + $0x6a] sm:$0xff]
      %v1683 = vld [vmem:[%s1352 + $0x7a] sm:$0xff]
      %v1684 = vld [vmem:[%s1352 + $0x82] sm:$0xff]
      %v1685 = vld [vmem:[%s1352 + $0x92] sm:$0xff]
      %v1686 = vld [vmem:[%s1352 + $0x9a] sm:$0xff]
      %v1687 = vld [vmem:[%s1352 + $0xaa] sm:$0xff]
      %v1688 = vld [vmem:[%s1352 + $0xb2] sm:$0xff]
      %v1689 = vld [vmem:[%s1352 + $0xc2] sm:$0xff]
      %v1690 = vld [vmem:[%s1352 + $0xca] sm:$0xff]
      %v1691 = vld [vmem:[%s1352 + $0xda] sm:$0xff]
      %v1692 = vld [vmem:[%s1352 + $0xe2] sm:$0xff]
      %v1693 = vld [vmem:[%s1352 + $0xf2] sm:$0xff]
      %v1694 = vld [vmem:[%s1352 + $0xfa] sm:$0xff]
      %v1695 = vld [vmem:[%s1352 + $0x10a] sm:$0xff]
      %v1696 = vld [vmem:[%s1352 + $0x112] sm:$0xff]
      %v1697 = vld [vmem:[%s1352 + $0x122] sm:$0xff]
      %v1698 = vld [vmem:[%s1352 + $0x12a] sm:$0xff]
      %v1699 = vld [vmem:[%s1352 + $0x13a] sm:$0xff]
      %v1700 = vld [vmem:[%s1352 + $0x142] sm:$0xff]
      %v1701 = vld [vmem:[%s1352 + $0x152] sm:$0xff]
      %v1702 = vld [vmem:[%s1352 + $0x15a] sm:$0xff]
      %v1703 = vld [vmem:[%s1352 + $0x16a] sm:$0xff]
      %v1704 = vld [vmem:[%s1352 + $0x172] sm:$0xff]
      %v1705 = vpack.c.bf16 %v1673, %v1673
      %v1706 = vpack.c.bf16 %v1674, %v1674
      %v1707 = vpack.c.bf16 %v1675, %v1675
      %v1708 = vpack.c.bf16 %v1676, %v1676
      %v1709 = vpack.c.bf16 %v1677, %v1677
      %v1710 = vpack.c.bf16 %v1678, %v1678
      %v1711 = vpack.c.bf16 %v1679, %v1679
      %v1712 = vpack.c.bf16 %v1680, %v1680
      %v1713 = vpack.c.bf16 %v1681, %v1681
      %v1714 = vpack.c.bf16 %v1682, %v1682
      %v1715 = vpack.c.bf16 %v1683, %v1683
      %v1716 = vpack.c.bf16 %v1684, %v1684
      %v1717 = vpack.c.bf16 %v1685, %v1685
      %v1718 = vpack.c.bf16 %v1686, %v1686
      %v1719 = vpack.c.bf16 %v1687, %v1687
      %v1720 = vpack.c.bf16 %v1688, %v1688
      %v1721 = vpack.c.bf16 %v1689, %v1689
      %v1722 = vpack.c.bf16 %v1690, %v1690
      %v1723 = vpack.c.bf16 %v1691, %v1691
      %v1724 = vpack.c.bf16 %v1692, %v1692
      %v1725 = vpack.c.bf16 %v1693, %v1693
      %v1726 = vpack.c.bf16 %v1694, %v1694
      %v1727 = vpack.c.bf16 %v1695, %v1695
      %v1728 = vpack.c.bf16 %v1696, %v1696
      %v1729 = vpack.c.bf16 %v1697, %v1697
      %v1730 = vpack.c.bf16 %v1698, %v1698
      %v1731 = vpack.c.bf16 %v1699, %v1699
      %v1732 = vpack.c.bf16 %v1700, %v1700
      %v1733 = vpack.c.bf16 %v1701, %v1701
      %v1734 = vpack.c.bf16 %v1702, %v1702
      %v1735 = vpack.c.bf16 %v1703, %v1703
      %v1736 = vpack.c.bf16 %v1704, %v1704
      %1737 = vst.msk [vmem:[#allocation3 + $0x10] sm:$0xf] %vm454, %v1705
      %1738 = vst.msk [vmem:[#allocation3 + $0x24] sm:$0xf] %vm454, %v1706
      %1739 = vst.msk [vmem:[#allocation3 + $0x38] sm:$0xf] %vm454, %v1707
      %1740 = vst.msk [vmem:[#allocation3 + $0x4c] sm:$0xf] %vm454, %v1708
      %1741 = vst.msk [vmem:[#allocation3 + $0x60] sm:$0xf] %vm454, %v1709
      %1742 = vst.msk [vmem:[#allocation3 + $0x74] sm:$0xf] %vm454, %v1710
      %1743 = vst.msk [vmem:[#allocation3 + $0x88] sm:$0xf] %vm454, %v1711
      %1744 = vst.msk [vmem:[#allocation3 + $0x9c] sm:$0xf] %vm454, %v1712
      %1745 = vst.msk [vmem:[#allocation3 + $0xb0] sm:$0xf] %vm454, %v1713
      %1746 = vst.msk [vmem:[#allocation3 + $0xc4] sm:$0xf] %vm454, %v1714
      %1747 = vst.msk [vmem:[#allocation3 + $0xd8] sm:$0xf] %vm454, %v1715
      %1748 = vst.msk [vmem:[#allocation3 + $0xec] sm:$0xf] %vm454, %v1716
      %1749 = vst.msk [vmem:[#allocation3 + $0x100] sm:$0xf] %vm454, %v1717
      %1750 = vst.msk [vmem:[#allocation3 + $0x114] sm:$0xf] %vm454, %v1718
      %1751 = vst.msk [vmem:[#allocation3 + $0x128] sm:$0xf] %vm454, %v1719
      %1752 = vst.msk [vmem:[#allocation3 + $0x13c] sm:$0xf] %vm454, %v1720
      %1753 = vst.msk [vmem:[#allocation3 + $0x150] sm:$0xf] %vm454, %v1721
      %1754 = vst.msk [vmem:[#allocation3 + $0x164] sm:$0xf] %vm454, %v1722
      %1755 = vst.msk [vmem:[#allocation3 + $0x178] sm:$0xf] %vm454, %v1723
      %1756 = vst.msk [vmem:[#allocation3 + $0x18c] sm:$0xf] %vm454, %v1724
      %1757 = vst.msk [vmem:[#allocation3 + $0x1a0] sm:$0xf] %vm454, %v1725
      %1758 = vst.msk [vmem:[#allocation3 + $0x1b4] sm:$0xf] %vm454, %v1726
      %1759 = vst.msk [vmem:[#allocation3 + $0x1c8] sm:$0xf] %vm454, %v1727
      %1760 = vst.msk [vmem:[#allocation3 + $0x1dc] sm:$0xf] %vm454, %v1728
      %1761 = vst.msk [vmem:[#allocation3 + $0x1f0] sm:$0xf] %vm454, %v1729
      %1762 = vst.msk [vmem:[#allocation3 + $0x204] sm:$0xf] %vm454, %v1730
      %1763 = vst.msk [vmem:[#allocation3 + $0x218] sm:$0xf] %vm454, %v1731
      %1764 = vst.msk [vmem:[#allocation3 + $0x22c] sm:$0xf] %vm454, %v1732
      %1765 = vst.msk [vmem:[#allocation3 + $0x240] sm:$0xf] %vm454, %v1733
      %1766 = vst.msk [vmem:[#allocation3 + $0x254] sm:$0xf] %vm454, %v1734
      %1767 = vst.msk [vmem:[#allocation3 + $0x268] sm:$0xf] %vm454, %v1735
      %1768 = vst.msk [vmem:[#allocation3 + $0x27c] sm:$0xf] %vm454, %v1736
      %v1769 = vld [vmem:[#allocation3] sm:$0xff]
      %v1770 = vld [vmem:[#allocation3 + $0x8] sm:$0xff]
      %v1771 = vld [vmem:[#allocation3 + $0x10] sm:$0xf]
      %v1772 = vld [vmem:[#allocation3 + $0x14] sm:$0xff]
      %v1773 = vld [vmem:[#allocation3 + $0x1c] sm:$0xff]
      %v1774 = vld [vmem:[#allocation3 + $0x24] sm:$0xf]
      %v1775 = vld [vmem:[#allocation3 + $0x28] sm:$0xff]
      %v1776 = vld [vmem:[#allocation3 + $0x30] sm:$0xff]
      %v1777 = vld [vmem:[#allocation3 + $0x38] sm:$0xf]
      %v1778 = vld [vmem:[#allocation3 + $0x3c] sm:$0xff]
      %v1779 = vld [vmem:[#allocation3 + $0x44] sm:$0xff]
      %v1780 = vld [vmem:[#allocation3 + $0x4c] sm:$0xf]
      %v1781 = vld [vmem:[#allocation3 + $0x50] sm:$0xff]
      %v1782 = vld [vmem:[#allocation3 + $0x58] sm:$0xff]
      %v1783 = vld [vmem:[#allocation3 + $0x60] sm:$0xf]
      %v1784 = vld [vmem:[#allocation3 + $0x64] sm:$0xff]
      %v1785 = vld [vmem:[#allocation3 + $0x6c] sm:$0xff]
      %v1786 = vld [vmem:[#allocation3 + $0x74] sm:$0xf]
      %v1787 = vld [vmem:[#allocation3 + $0x78] sm:$0xff]
      %v1788 = vld [vmem:[#allocation3 + $0x80] sm:$0xff]
      %v1789 = vld [vmem:[#allocation3 + $0x88] sm:$0xf]
      %v1790 = vld [vmem:[#allocation3 + $0x8c] sm:$0xff]
      %v1791 = vld [vmem:[#allocation3 + $0x94] sm:$0xff]
      %v1792 = vld [vmem:[#allocation3 + $0x9c] sm:$0xf]
      %v1793 = vld [vmem:[#allocation3 + $0xa0] sm:$0xff]
      %v1794 = vld [vmem:[#allocation3 + $0xa8] sm:$0xff]
      %v1795 = vld [vmem:[#allocation3 + $0xb0] sm:$0xf]
      %v1796 = vld [vmem:[#allocation3 + $0xb4] sm:$0xff]
      %v1797 = vld [vmem:[#allocation3 + $0xbc] sm:$0xff]
      %v1798 = vld [vmem:[#allocation3 + $0xc4] sm:$0xf]
      %v1799 = vld [vmem:[#allocation3 + $0xc8] sm:$0xff]
      %v1800 = vld [vmem:[#allocation3 + $0xd0] sm:$0xff]
      %v1801 = vld [vmem:[#allocation3 + $0xd8] sm:$0xf]
      %v1802 = vld [vmem:[#allocation3 + $0xdc] sm:$0xff]
      %v1803 = vld [vmem:[#allocation3 + $0xe4] sm:$0xff]
      %v1804 = vld [vmem:[#allocation3 + $0xec] sm:$0xf]
      %v1805 = vld [vmem:[#allocation3 + $0xf0] sm:$0xff]
      %v1806 = vld [vmem:[#allocation3 + $0xf8] sm:$0xff]
      %v1807 = vld [vmem:[#allocation3 + $0x100] sm:$0xf]
      %v1808 = vld [vmem:[#allocation3 + $0x104] sm:$0xff]
      %v1809 = vld [vmem:[#allocation3 + $0x10c] sm:$0xff]
      %v1810 = vld [vmem:[#allocation3 + $0x114] sm:$0xf]
      %v1811 = vld [vmem:[#allocation3 + $0x118] sm:$0xff]
      %v1812 = vld [vmem:[#allocation3 + $0x120] sm:$0xff]
      %v1813 = vld [vmem:[#allocation3 + $0x128] sm:$0xf]
      %v1814 = vld [vmem:[#allocation3 + $0x12c] sm:$0xff]
      %v1815 = vld [vmem:[#allocation3 + $0x134] sm:$0xff]
      %v1816 = vld [vmem:[#allocation3 + $0x13c] sm:$0xf]
      %v1817 = vld [vmem:[#allocation3 + $0x140] sm:$0xff]
      %v1818 = vld [vmem:[#allocation3 + $0x148] sm:$0xff]
      %v1819 = vld [vmem:[#allocation3 + $0x150] sm:$0xf]
      %v1820 = vld [vmem:[#allocation3 + $0x154] sm:$0xff]
      %v1821 = vld [vmem:[#allocation3 + $0x15c] sm:$0xff]
      %v1822 = vld [vmem:[#allocation3 + $0x164] sm:$0xf]
      %v1823 = vld [vmem:[#allocation3 + $0x168] sm:$0xff]
      %v1824 = vld [vmem:[#allocation3 + $0x170] sm:$0xff]
      %v1825 = vld [vmem:[#allocation3 + $0x178] sm:$0xf]
      %v1826 = vld [vmem:[#allocation3 + $0x17c] sm:$0xff]
      %v1827 = vld [vmem:[#allocation3 + $0x184] sm:$0xff]
      %v1828 = vld [vmem:[#allocation3 + $0x18c] sm:$0xf]
      %v1829 = vld [vmem:[#allocation3 + $0x190] sm:$0xff]
      %v1830 = vld [vmem:[#allocation3 + $0x198] sm:$0xff]
      %v1831 = vld [vmem:[#allocation3 + $0x1a0] sm:$0xf]
      %v1832 = vld [vmem:[#allocation3 + $0x1a4] sm:$0xff]
      %v1833 = vld [vmem:[#allocation3 + $0x1ac] sm:$0xff]
      %v1834 = vld [vmem:[#allocation3 + $0x1b4] sm:$0xf]
      %v1835 = vld [vmem:[#allocation3 + $0x1b8] sm:$0xff]
      %v1836 = vld [vmem:[#allocation3 + $0x1c0] sm:$0xff]
      %v1837 = vld [vmem:[#allocation3 + $0x1c8] sm:$0xf]
      %v1838 = vld [vmem:[#allocation3 + $0x1cc] sm:$0xff]
      %v1839 = vld [vmem:[#allocation3 + $0x1d4] sm:$0xff]
      %v1840 = vld [vmem:[#allocation3 + $0x1dc] sm:$0xf]
      %v1841 = vld [vmem:[#allocation3 + $0x1e0] sm:$0xff]
      %v1842 = vld [vmem:[#allocation3 + $0x1e8] sm:$0xff]
      %v1843 = vld [vmem:[#allocation3 + $0x1f0] sm:$0xf]
      %v1844 = vld [vmem:[#allocation3 + $0x1f4] sm:$0xff]
      %v1845 = vld [vmem:[#allocation3 + $0x1fc] sm:$0xff]
      %v1846 = vld [vmem:[#allocation3 + $0x204] sm:$0xf]
      %v1847 = vld [vmem:[#allocation3 + $0x208] sm:$0xff]
      %v1848 = vld [vmem:[#allocation3 + $0x210] sm:$0xff]
      %v1849 = vld [vmem:[#allocation3 + $0x218] sm:$0xf]
      %v1850 = vld [vmem:[#allocation3 + $0x21c] sm:$0xff]
      %v1851 = vld [vmem:[#allocation3 + $0x224] sm:$0xff]
      %v1852 = vld [vmem:[#allocation3 + $0x22c] sm:$0xf]
      %v1853 = vld [vmem:[#allocation3 + $0x230] sm:$0xff]
      %v1854 = vld [vmem:[#allocation3 + $0x238] sm:$0xff]
      %v1855 = vld [vmem:[#allocation3 + $0x240] sm:$0xf]
      %v1856 = vld [vmem:[#allocation3 + $0x244] sm:$0xff]
      %v1857 = vld [vmem:[#allocation3 + $0x24c] sm:$0xff]
      %v1858 = vld [vmem:[#allocation3 + $0x254] sm:$0xf]
      %v1859 = vld [vmem:[#allocation3 + $0x258] sm:$0xff]
      %v1860 = vld [vmem:[#allocation3 + $0x260] sm:$0xff]
      %v1861 = vld [vmem:[#allocation3 + $0x268] sm:$0xf]
      %v1862 = vld [vmem:[#allocation3 + $0x26c] sm:$0xff]
      %v1863 = vld [vmem:[#allocation3 + $0x274] sm:$0xff]
      %v1864 = vld [vmem:[#allocation3 + $0x27c] sm:$0xf]
      %v1865 = vld [vmem:[%s1] sm:$0xf]
      %v1866 = vld [vmem:[%s1 + $0x4] sm:$0xf]
      %v1867 = vld [vmem:[%s1 + $0x8] sm:$0xf]
      %v1868 = vld [vmem:[%s1 + $0xc] sm:$0xf]
      %v1869 = vld [vmem:[%s1 + $0x10] sm:$0xf]
      %v1870 = vld [vmem:[%s1 + $0x14] sm:$0xf]
      %v1871 = vld [vmem:[%s1 + $0x18] sm:$0xf]
      %v1872 = vld [vmem:[%s1 + $0x1c] sm:$0xf]
      %v1873 = vld [vmem:[%s1 + $0x20] sm:$0xf]
      %v1874 = vld [vmem:[%s1 + $0x24] sm:$0xf]
      %v1875 = vld [vmem:[%s1 + $0x28] sm:$0xf]
      %v1876 = vld [vmem:[%s1 + $0x2c] sm:$0xf]
      %v1877 = vld [vmem:[%s1 + $0x30] sm:$0xf]
      %v1878 = vld [vmem:[%s1 + $0x34] sm:$0xf]
      %v1879 = vld [vmem:[%s1 + $0x38] sm:$0xf]
      %v1880 = vld [vmem:[%s1 + $0x3c] sm:$0xf]
      %v1881 = vld [vmem:[%s1 + $0x40] sm:$0xf]
      %v1882 = vld [vmem:[%s1 + $0x44] sm:$0xf]
      %v1883 = vld [vmem:[%s1 + $0x48] sm:$0xf]
      %v1884 = vld [vmem:[%s1 + $0x4c] sm:$0xf]
      %v1885 = vld [vmem:[%s1 + $0x50] sm:$0xf]
      %v1886 = vld [vmem:[%s1 + $0x54] sm:$0xf]
      %v1887 = vld [vmem:[%s1 + $0x58] sm:$0xf]
      %v1888 = vld [vmem:[%s1 + $0x5c] sm:$0xf]
      %v1889 = vld [vmem:[%s1 + $0x60] sm:$0xf]
      %v1890 = vld [vmem:[%s1 + $0x64] sm:$0xf]
      %v1891 = vld [vmem:[%s1 + $0x68] sm:$0xf]
      %v1892 = vld [vmem:[%s1 + $0x6c] sm:$0xf]
      %v1893 = vld [vmem:[%s1 + $0x70] sm:$0xf]
      %v1894 = vld [vmem:[%s1 + $0x74] sm:$0xf]
      %v1895 = vld [vmem:[%s1 + $0x78] sm:$0xf]
      %v1896 = vld [vmem:[%s1 + $0x7c] sm:$0xf]
      %v1897 = vld [vmem:[%s1 + $0x80] sm:$0xf]
      %v1898 = vld [vmem:[%s1 + $0x84] sm:$0xf]
      %v1899 = vld [vmem:[%s1 + $0x88] sm:$0xf]
      %v1900 = vld [vmem:[%s1 + $0x8c] sm:$0xf]
      %v1901 = vld [vmem:[%s1 + $0x90] sm:$0xf]
      %v1902 = vld [vmem:[%s1 + $0x94] sm:$0xf]
      %v1903 = vld [vmem:[%s1 + $0x98] sm:$0xf]
      %v1904 = vld [vmem:[%s1 + $0x9c] sm:$0xf]
      %v1905 = vld [vmem:[%s1 + $0xa0] sm:$0xf]
      %v1906 = vld [vmem:[%s1 + $0xa4] sm:$0xf]
      %v1907 = vld [vmem:[%s1 + $0xa8] sm:$0xf]
      %v1908 = vld [vmem:[%s1 + $0xac] sm:$0xf]
      %v1909 = vld [vmem:[%s1 + $0xb0] sm:$0xf]
      %v1910 = vld [vmem:[%s1 + $0xb4] sm:$0xf]
      %v1911 = vld [vmem:[%s1 + $0xb8] sm:$0xf]
      %v1912 = vld [vmem:[%s1 + $0xbc] sm:$0xf]
      %v1913 = vld [vmem:[%s1 + $0xc0] sm:$0xf]
      %v1914 = vld [vmem:[%s1 + $0xc4] sm:$0xf]
      %v1915 = vld [vmem:[%s1 + $0xc8] sm:$0xf]
      %v1916 = vld [vmem:[%s1 + $0xcc] sm:$0xf]
      %v1917 = vld [vmem:[%s1 + $0xd0] sm:$0xf]
      %v1918 = vld [vmem:[%s1 + $0xd4] sm:$0xf]
      %v1919 = vld [vmem:[%s1 + $0xd8] sm:$0xf]
      %v1920 = vld [vmem:[%s1 + $0xdc] sm:$0xf]
      %v1921 = vld [vmem:[%s1 + $0xe0] sm:$0xf]
      %v1922 = vld [vmem:[%s1 + $0xe4] sm:$0xf]
      %v1923 = vld [vmem:[%s1 + $0xe8] sm:$0xf]
      %v1924 = vld [vmem:[%s1 + $0xec] sm:$0xf]
      %v1925 = vld [vmem:[%s1 + $0xf0] sm:$0xf]
      %v1926 = vld [vmem:[%s1 + $0xf4] sm:$0xf]
      %v1927 = vld [vmem:[%s1 + $0xf8] sm:$0xf]
      %v1928 = vld [vmem:[%s1 + $0xfc] sm:$0xf]
      %v1929 = vld [vmem:[%s1 + $0x100] sm:$0xf]
      %v1930 = vld [vmem:[%s1 + $0x104] sm:$0xf]
      %v1931 = vld [vmem:[%s1 + $0x108] sm:$0xf]
      %v1932 = vld [vmem:[%s1 + $0x10c] sm:$0xf]
      %v1933 = vld [vmem:[%s1 + $0x110] sm:$0xf]
      %v1934 = vld [vmem:[%s1 + $0x114] sm:$0xf]
      %v1935 = vld [vmem:[%s1 + $0x118] sm:$0xf]
      %v1936 = vld [vmem:[%s1 + $0x11c] sm:$0xf]
      %v2033 = vunpack.c.l.b16 %v1769
      %v2034 = vunpack.c.h.b16 %v1769
      %v2035 = vunpack.c.l.b16 %v1770
      %v2036 = vunpack.c.h.b16 %v1770
      %v2037 = vunpack.c.l.b16 %v1771
      %v2038 = vunpack.c.l.b16 %v1772
      %v2039 = vunpack.c.h.b16 %v1772
      %v2040 = vunpack.c.l.b16 %v1773
      %v2041 = vunpack.c.h.b16 %v1773
      %v2042 = vunpack.c.l.b16 %v1774
      %v2043 = vunpack.c.l.b16 %v1775
      %v2044 = vunpack.c.h.b16 %v1775
      %v2045 = vunpack.c.l.b16 %v1776
      %v2046 = vunpack.c.h.b16 %v1776
      %v2047 = vunpack.c.l.b16 %v1777
      %v2048 = vunpack.c.l.b16 %v1778
      %v2049 = vunpack.c.h.b16 %v1778
      %v2050 = vunpack.c.l.b16 %v1779
      %v2051 = vunpack.c.h.b16 %v1779
      %v2052 = vunpack.c.l.b16 %v1780
      %v2053 = vunpack.c.l.b16 %v1781
      %v2054 = vunpack.c.h.b16 %v1781
      %v2055 = vunpack.c.l.b16 %v1782
      %v2056 = vunpack.c.h.b16 %v1782
      %v2057 = vunpack.c.l.b16 %v1783
      %v2058 = vunpack.c.l.b16 %v1784
      %v2059 = vunpack.c.h.b16 %v1784
      %v2060 = vunpack.c.l.b16 %v1785
      %v2061 = vunpack.c.h.b16 %v1785
      %v2062 = vunpack.c.l.b16 %v1786
      %v2063 = vunpack.c.l.b16 %v1787
      %v2064 = vunpack.c.h.b16 %v1787
      %v2065 = vunpack.c.l.b16 %v1788
      %v2066 = vunpack.c.h.b16 %v1788
      %v2067 = vunpack.c.l.b16 %v1789
      %v2068 = vunpack.c.l.b16 %v1790
      %v2069 = vunpack.c.h.b16 %v1790
      %v2070 = vunpack.c.l.b16 %v1791
      %v2071 = vunpack.c.h.b16 %v1791
      %v2072 = vunpack.c.l.b16 %v1792
      %v2073 = vunpack.c.l.b16 %v1793
      %v2074 = vunpack.c.h.b16 %v1793
      %v2075 = vunpack.c.l.b16 %v1794
      %v2076 = vunpack.c.h.b16 %v1794
      %v2077 = vunpack.c.l.b16 %v1795
      %v2078 = vunpack.c.l.b16 %v1796
      %v2079 = vunpack.c.h.b16 %v1796
      %v2080 = vunpack.c.l.b16 %v1797
      %v2081 = vunpack.c.h.b16 %v1797
      %v2082 = vunpack.c.l.b16 %v1798
      %v2083 = vunpack.c.l.b16 %v1799
      %v2084 = vunpack.c.h.b16 %v1799
      %v2085 = vunpack.c.l.b16 %v1800
      %v2086 = vunpack.c.h.b16 %v1800
      %v2087 = vunpack.c.l.b16 %v1801
      %v2088 = vunpack.c.l.b16 %v1802
      %v2089 = vunpack.c.h.b16 %v1802
      %v2090 = vunpack.c.l.b16 %v1803
      %v2091 = vunpack.c.h.b16 %v1803
      %v2092 = vunpack.c.l.b16 %v1804
      %v2093 = vunpack.c.l.b16 %v1805
      %v2094 = vunpack.c.h.b16 %v1805
      %v2095 = vunpack.c.l.b16 %v1806
      %v2096 = vunpack.c.h.b16 %v1806
      %v2097 = vunpack.c.l.b16 %v1807
      %v2098 = vunpack.c.l.b16 %v1808
      %v2099 = vunpack.c.h.b16 %v1808
      %v2100 = vunpack.c.l.b16 %v1809
      %v2101 = vunpack.c.h.b16 %v1809
      %v2102 = vunpack.c.l.b16 %v1810
      %v2103 = vunpack.c.l.b16 %v1811
      %v2104 = vunpack.c.h.b16 %v1811
      %v2105 = vunpack.c.l.b16 %v1812
      %v2106 = vunpack.c.h.b16 %v1812
      %v2107 = vunpack.c.l.b16 %v1813
      %v2108 = vunpack.c.l.b16 %v1814
      %v2109 = vunpack.c.h.b16 %v1814
      %v2110 = vunpack.c.l.b16 %v1815
      %v2111 = vunpack.c.h.b16 %v1815
      %v2112 = vunpack.c.l.b16 %v1816
      %v2113 = vunpack.c.l.b16 %v1817
      %v2114 = vunpack.c.h.b16 %v1817
      %v2115 = vunpack.c.l.b16 %v1818
      %v2116 = vunpack.c.h.b16 %v1818
      %v2117 = vunpack.c.l.b16 %v1819
      %v2118 = vunpack.c.l.b16 %v1820
      %v2119 = vunpack.c.h.b16 %v1820
      %v2120 = vunpack.c.l.b16 %v1821
      %v2121 = vunpack.c.h.b16 %v1821
      %v2122 = vunpack.c.l.b16 %v1822
      %v2123 = vunpack.c.l.b16 %v1823
      %v2124 = vunpack.c.h.b16 %v1823
      %v2125 = vunpack.c.l.b16 %v1824
      %v2126 = vunpack.c.h.b16 %v1824
      %v2127 = vunpack.c.l.b16 %v1825
      %v2128 = vunpack.c.l.b16 %v1826
      %v2129 = vunpack.c.h.b16 %v1826
      %v2130 = vunpack.c.l.b16 %v1827
      %v2131 = vunpack.c.h.b16 %v1827
      %v2132 = vunpack.c.l.b16 %v1828
      %v2133 = vunpack.c.l.b16 %v1829
      %v2134 = vunpack.c.h.b16 %v1829
      %v2135 = vunpack.c.l.b16 %v1830
      %v2136 = vunpack.c.h.b16 %v1830
      %v2137 = vunpack.c.l.b16 %v1831
      %v2138 = vunpack.c.l.b16 %v1832
      %v2139 = vunpack.c.h.b16 %v1832
      %v2140 = vunpack.c.l.b16 %v1833
      %v2141 = vunpack.c.h.b16 %v1833
      %v2142 = vunpack.c.l.b16 %v1834
      %v2143 = vunpack.c.l.b16 %v1835
      %v2144 = vunpack.c.h.b16 %v1835
      %v2145 = vunpack.c.l.b16 %v1836
      %v2146 = vunpack.c.h.b16 %v1836
      %v2147 = vunpack.c.l.b16 %v1837
      %v2148 = vunpack.c.l.b16 %v1838
      %v2149 = vunpack.c.h.b16 %v1838
      %v2150 = vunpack.c.l.b16 %v1839
      %v2151 = vunpack.c.h.b16 %v1839
      %v2152 = vunpack.c.l.b16 %v1840
      %v2153 = vunpack.c.l.b16 %v1841
      %v2154 = vunpack.c.h.b16 %v1841
      %v2155 = vunpack.c.l.b16 %v1842
      %v2156 = vunpack.c.h.b16 %v1842
      %v2157 = vunpack.c.l.b16 %v1843
      %v2158 = vunpack.c.l.b16 %v1844
      %v2159 = vunpack.c.h.b16 %v1844
      %v2160 = vunpack.c.l.b16 %v1845
      %v2161 = vunpack.c.h.b16 %v1845
      %v2162 = vunpack.c.l.b16 %v1846
      %v2163 = vunpack.c.l.b16 %v1847
      %v2164 = vunpack.c.h.b16 %v1847
      %v2165 = vunpack.c.l.b16 %v1848
      %v2166 = vunpack.c.h.b16 %v1848
      %v2167 = vunpack.c.l.b16 %v1849
      %v2168 = vunpack.c.l.b16 %v1850
      %v2169 = vunpack.c.h.b16 %v1850
      %v2170 = vunpack.c.l.b16 %v1851
      %v2171 = vunpack.c.h.b16 %v1851
      %v2172 = vunpack.c.l.b16 %v1852
      %v2173 = vunpack.c.l.b16 %v1853
      %v2174 = vunpack.c.h.b16 %v1853
      %v2175 = vunpack.c.l.b16 %v1854
      %v2176 = vunpack.c.h.b16 %v1854
      %v2177 = vunpack.c.l.b16 %v1855
      %v2178 = vunpack.c.l.b16 %v1856
      %v2179 = vunpack.c.h.b16 %v1856
      %v2180 = vunpack.c.l.b16 %v1857
      %v2181 = vunpack.c.h.b16 %v1857
      %v2182 = vunpack.c.l.b16 %v1858
      %v2183 = vunpack.c.l.b16 %v1859
      %v2184 = vunpack.c.h.b16 %v1859
      %v2185 = vunpack.c.l.b16 %v1860
      %v2186 = vunpack.c.h.b16 %v1860
      %v2187 = vunpack.c.l.b16 %v1861
      %v2188 = vunpack.c.l.b16 %v1862
      %v2189 = vunpack.c.h.b16 %v1862
      %v2190 = vunpack.c.l.b16 %v1863
      %v2191 = vunpack.c.h.b16 %v1863
      %v2192 = vunpack.c.l.b16 %v1864
      %v2193 = vpack.c.b16 %v2038, %v2033
      %v2194 = vpack.c.b16 %v2039, %v2034
      %v2195 = vpack.c.b16 %v2040, %v2035
      %v2196 = vpack.c.b16 %v2041, %v2036
      %v2197 = vpack.c.b16 %v2042, %v2037
      %v2198 = vpack.c.b16 %v2048, %v2043
      %v2199 = vpack.c.b16 %v2049, %v2044
      %v2200 = vpack.c.b16 %v2050, %v2045
      %v2201 = vpack.c.b16 %v2051, %v2046
      %v2202 = vpack.c.b16 %v2052, %v2047
      %v2203 = vpack.c.b16 %v2058, %v2053
      %v2204 = vpack.c.b16 %v2059, %v2054
      %v2205 = vpack.c.b16 %v2060, %v2055
      %v2206 = vpack.c.b16 %v2061, %v2056
      %v2207 = vpack.c.b16 %v2062, %v2057
      %v2208 = vpack.c.b16 %v2068, %v2063
      %v2209 = vpack.c.b16 %v2069, %v2064
      %v2210 = vpack.c.b16 %v2070, %v2065
      %v2211 = vpack.c.b16 %v2071, %v2066
      %v2212 = vpack.c.b16 %v2072, %v2067
      %v2213 = vpack.c.b16 %v2078, %v2073
      %v2214 = vpack.c.b16 %v2079, %v2074
      %v2215 = vpack.c.b16 %v2080, %v2075
      %v2216 = vpack.c.b16 %v2081, %v2076
      %v2217 = vpack.c.b16 %v2082, %v2077
      %v2218 = vpack.c.b16 %v2088, %v2083
      %v2219 = vpack.c.b16 %v2089, %v2084
      %v2220 = vpack.c.b16 %v2090, %v2085
      %v2221 = vpack.c.b16 %v2091, %v2086
      %v2222 = vpack.c.b16 %v2092, %v2087
      %v2223 = vpack.c.b16 %v2098, %v2093
      %v2224 = vpack.c.b16 %v2099, %v2094
      %v2225 = vpack.c.b16 %v2100, %v2095
      %v2226 = vpack.c.b16 %v2101, %v2096
      %v2227 = vpack.c.b16 %v2102, %v2097
      %v2228 = vpack.c.b16 %v2108, %v2103
      %v2229 = vpack.c.b16 %v2109, %v2104
      %v2230 = vpack.c.b16 %v2110, %v2105
      %v2231 = vpack.c.b16 %v2111, %v2106
      %v2232 = vpack.c.b16 %v2112, %v2107
      %v2233 = vpack.c.b16 %v2118, %v2113
      %v2234 = vpack.c.b16 %v2119, %v2114
      %v2235 = vpack.c.b16 %v2120, %v2115
      %v2236 = vpack.c.b16 %v2121, %v2116
      %v2237 = vpack.c.b16 %v2122, %v2117
      %v2238 = vpack.c.b16 %v2128, %v2123
      %v2239 = vpack.c.b16 %v2129, %v2124
      %v2240 = vpack.c.b16 %v2130, %v2125
      %v2241 = vpack.c.b16 %v2131, %v2126
      %v2242 = vpack.c.b16 %v2132, %v2127
      %v2243 = vpack.c.b16 %v2138, %v2133
      %v2244 = vpack.c.b16 %v2139, %v2134
      %v2245 = vpack.c.b16 %v2140, %v2135
      %v2246 = vpack.c.b16 %v2141, %v2136
      %v2247 = vpack.c.b16 %v2142, %v2137
      %v2248 = vpack.c.b16 %v2148, %v2143
      %v2249 = vpack.c.b16 %v2149, %v2144
      %v2250 = vpack.c.b16 %v2150, %v2145
      %v2251 = vpack.c.b16 %v2151, %v2146
      %v2252 = vpack.c.b16 %v2152, %v2147
      %v2253 = vpack.c.b16 %v2158, %v2153
      %v2254 = vpack.c.b16 %v2159, %v2154
      %v2255 = vpack.c.b16 %v2160, %v2155
      %v2256 = vpack.c.b16 %v2161, %v2156
      %v2257 = vpack.c.b16 %v2162, %v2157
      %v2258 = vpack.c.b16 %v2168, %v2163
      %v2259 = vpack.c.b16 %v2169, %v2164
      %v2260 = vpack.c.b16 %v2170, %v2165
      %v2261 = vpack.c.b16 %v2171, %v2166
      %v2262 = vpack.c.b16 %v2172, %v2167
      %v2263 = vpack.c.b16 %v2178, %v2173
      %v2264 = vpack.c.b16 %v2179, %v2174
      %v2265 = vpack.c.b16 %v2180, %v2175
      %v2266 = vpack.c.b16 %v2181, %v2176
      %v2267 = vpack.c.b16 %v2182, %v2177
      %v2268 = vpack.c.b16 %v2188, %v2183
      %v2269 = vpack.c.b16 %v2189, %v2184
      %v2270 = vpack.c.b16 %v2190, %v2185
      %v2271 = vpack.c.b16 %v2191, %v2186
      %v2272 = vpack.c.b16 %v2192, %v2187
      %v2409 = vunpack.c.l.b16 %v1865
      %v2410 = vunpack.c.l.b16 %v1866
      %v2411 = vunpack.c.l.b16 %v1867
      %v2412 = vunpack.c.l.b16 %v1868
      %v2413 = vunpack.c.l.b16 %v1869
      %v2414 = vunpack.c.l.b16 %v1870
      %v2415 = vunpack.c.l.b16 %v1871
      %v2416 = vunpack.c.l.b16 %v1872
      %v2417 = vunpack.c.l.b16 %v1873
      %v2418 = vunpack.c.l.b16 %v1874
      %v2419 = vunpack.c.l.b16 %v1875
      %v2420 = vunpack.c.l.b16 %v1876
      %v2421 = vunpack.c.l.b16 %v1877
      %v2422 = vunpack.c.l.b16 %v1878
      %v2423 = vunpack.c.l.b16 %v1879
      %v2424 = vunpack.c.l.b16 %v1880
      %v2425 = vunpack.c.l.b16 %v1881
      %v2426 = vunpack.c.l.b16 %v1882
      %v2427 = vunpack.c.l.b16 %v1883
      %v2428 = vunpack.c.l.b16 %v1884
      %v2429 = vunpack.c.l.b16 %v1885
      %v2430 = vunpack.c.l.b16 %v1886
      %v2431 = vunpack.c.l.b16 %v1887
      %v2432 = vunpack.c.l.b16 %v1888
      %v2433 = vunpack.c.l.b16 %v1889
      %v2434 = vunpack.c.l.b16 %v1890
      %v2435 = vunpack.c.l.b16 %v1891
      %v2436 = vunpack.c.l.b16 %v1892
      %v2437 = vunpack.c.l.b16 %v1893
      %v2438 = vunpack.c.l.b16 %v1894
      %v2439 = vunpack.c.l.b16 %v1895
      %v2440 = vunpack.c.l.b16 %v1896
      %v2441 = vunpack.c.l.b16 %v1897
      %v2442 = vunpack.c.l.b16 %v1898
      %v2443 = vunpack.c.l.b16 %v1899
      %v2444 = vunpack.c.l.b16 %v1900
      %v2445 = vunpack.c.l.b16 %v1901
      %v2446 = vunpack.c.l.b16 %v1902
      %v2447 = vunpack.c.l.b16 %v1903
      %v2448 = vunpack.c.l.b16 %v1904
      %v2449 = vunpack.c.l.b16 %v1905
      %v2450 = vunpack.c.l.b16 %v1906
      %v2451 = vunpack.c.l.b16 %v1907
      %v2452 = vunpack.c.l.b16 %v1908
      %v2453 = vunpack.c.l.b16 %v1909
      %v2454 = vunpack.c.l.b16 %v1910
      %v2455 = vunpack.c.l.b16 %v1911
      %v2456 = vunpack.c.l.b16 %v1912
      %v2457 = vunpack.c.l.b16 %v1913
      %v2458 = vunpack.c.l.b16 %v1914
      %v2459 = vunpack.c.l.b16 %v1915
      %v2460 = vunpack.c.l.b16 %v1916
      %v2461 = vunpack.c.l.b16 %v1917
      %v2462 = vunpack.c.l.b16 %v1918
      %v2463 = vunpack.c.l.b16 %v1919
      %v2464 = vunpack.c.l.b16 %v1920
      %v2465 = vunpack.c.l.b16 %v1921
      %v2466 = vunpack.c.l.b16 %v1922
      %v2467 = vunpack.c.l.b16 %v1923
      %v2468 = vunpack.c.l.b16 %v1924
      %v2469 = vunpack.c.l.b16 %v1925
      %v2470 = vunpack.c.l.b16 %v1926
      %v2471 = vunpack.c.l.b16 %v1927
      %v2472 = vunpack.c.l.b16 %v1928
      %v2473 = vunpack.c.l.b16 %v1929
      %v2474 = vunpack.c.l.b16 %v1930
      %v2475 = vunpack.c.l.b16 %v1931
      %v2476 = vunpack.c.l.b16 %v1932
      %v2477 = vunpack.c.l.b16 %v1933
      %v2478 = vunpack.c.l.b16 %v1934
      %v2479 = vunpack.c.l.b16 %v1935
      %v2480 = vunpack.c.l.b16 %v1936
      %v2481 = vpack.c.b16 %v2410, %v2409
      %v2482 = vpack.c.b16 %v2412, %v2411
      %v2483 = vpack.c.b16 %v2414, %v2413
      %v2484 = vpack.c.b16 %v2416, %v2415
      %v2485 = vpack.c.b16 %v2418, %v2417
      %v2486 = vpack.c.b16 %v2420, %v2419
      %v2487 = vpack.c.b16 %v2422, %v2421
      %v2488 = vpack.c.b16 %v2424, %v2423
      %v2489 = vpack.c.b16 %v2426, %v2425
      %v2490 = vpack.c.b16 %v2428, %v2427
      %v2491 = vpack.c.b16 %v2430, %v2429
      %v2492 = vpack.c.b16 %v2432, %v2431
      %v2493 = vpack.c.b16 %v2434, %v2433
      %v2494 = vpack.c.b16 %v2436, %v2435
      %v2495 = vpack.c.b16 %v2438, %v2437
      %v2496 = vpack.c.b16 %v2440, %v2439
      %v2497 = vpack.c.b16 %v2442, %v2441
      %v2498 = vpack.c.b16 %v2444, %v2443
      %v2499 = vpack.c.b16 %v2446, %v2445
      %v2500 = vpack.c.b16 %v2448, %v2447
      %v2501 = vpack.c.b16 %v2450, %v2449
      %v2502 = vpack.c.b16 %v2452, %v2451
      %v2503 = vpack.c.b16 %v2454, %v2453
      %v2504 = vpack.c.b16 %v2456, %v2455
      %v2505 = vpack.c.b16 %v2458, %v2457
      %v2506 = vpack.c.b16 %v2460, %v2459
      %v2507 = vpack.c.b16 %v2462, %v2461
      %v2508 = vpack.c.b16 %v2464, %v2463
      %v2509 = vpack.c.b16 %v2466, %v2465
      %v2510 = vpack.c.b16 %v2468, %v2467
      %v2511 = vpack.c.b16 %v2470, %v2469
      %v2512 = vpack.c.b16 %v2472, %v2471
      %v2513 = vpack.c.b16 %v2474, %v2473
      %v2514 = vpack.c.b16 %v2476, %v2475
      %v2515 = vpack.c.b16 %v2478, %v2477
      %v2516 = vpack.c.b16 %v2480, %v2479
      %v2554 = vsel %vm283, %v2197, 0
      %v2557 = vsel %vm283, %v2202, 0
      %v2560 = vsel %vm283, %v2207, 0
      %v2563 = vsel %vm283, %v2212, 0
      %v2566 = vsel %vm283, %v2217, 0
      %v2569 = vsel %vm283, %v2222, 0
      %v2572 = vsel %vm283, %v2227, 0
      %v2575 = vsel %vm283, %v2232, 0
      %v2578 = vsel %vm283, %v2237, 0
      %v2581 = vsel %vm283, %v2242, 0
      %v2584 = vsel %vm283, %v2247, 0
      %v2587 = vsel %vm283, %v2252, 0
      %v2590 = vsel %vm283, %v2257, 0
      %v2593 = vsel %vm283, %v2262, 0
      %v2596 = vsel %vm283, %v2267, 0
      %v2599 = vsel %vm283, %v2272, 0
      %2601 = vmatpush.bf16.msra.mxu0 %v2488
      %2602 = vmatpush.bf16.msra.mxu0 %v2487
      %2603 = vmatpush.bf16.msra.mxu0 %v2486
      %2604 = vmatpush.bf16.msra.mxu0 %v2485
      %2605 = vmatpush.bf16.msra.mxu0 %v2484
      %2606 = vmatpush.bf16.msra.mxu0 %v2483
      %2607 = vmatpush.bf16.msra.mxu0 %v2482
      %2608 = vmatpush.bf16.msra.mxu0 %v2481
      %2609 = vmatmul.bf16.gmra.mxu0 %v2193
      %v2610 = vpop.f32.mrf.mxu0
      %v2611 = vadd.f32 0.0, %v2610
      %v2612 = vpop.f32.mrf.mxu0
      %v2613 = vadd.f32 0.0, %v2612
      %2614 = vmatmul.bf16.gmra.mxu0 %v2198
      %v2615 = vpop.f32.mrf.mxu0
      %v2616 = vadd.f32 0.0, %v2615
      %v2617 = vpop.f32.mrf.mxu0
      %v2618 = vadd.f32 0.0, %v2617
      %2619 = vmatmul.bf16.gmra.mxu0 %v2203
      %v2620 = vpop.f32.mrf.mxu0
      %v2621 = vadd.f32 0.0, %v2620
      %v2622 = vpop.f32.mrf.mxu0
      %v2623 = vadd.f32 0.0, %v2622
      %2624 = vmatmul.bf16.gmra.mxu0 %v2208
      %v2625 = vpop.f32.mrf.mxu0
      %v2626 = vadd.f32 0.0, %v2625
      %v2627 = vpop.f32.mrf.mxu0
      %v2628 = vadd.f32 0.0, %v2627
      %2629 = vmatmul.bf16.gmra.mxu0 %v2213
      %v2630 = vpop.f32.mrf.mxu0
      %v2631 = vadd.f32 0.0, %v2630
      %v2632 = vpop.f32.mrf.mxu0
      %v2633 = vadd.f32 0.0, %v2632
      %2634 = vmatmul.bf16.gmra.mxu0 %v2218
      %v2635 = vpop.f32.mrf.mxu0
      %v2636 = vadd.f32 0.0, %v2635
      %v2637 = vpop.f32.mrf.mxu0
      %v2638 = vadd.f32 0.0, %v2637
      %2639 = vmatmul.bf16.gmra.mxu0 %v2223
      %v2640 = vpop.f32.mrf.mxu0
      %v2641 = vadd.f32 0.0, %v2640
      %v2642 = vpop.f32.mrf.mxu0
      %v2643 = vadd.f32 0.0, %v2642
      %2644 = vmatmul.bf16.gmra.mxu0 %v2228
      %v2645 = vpop.f32.mrf.mxu0
      %v2646 = vadd.f32 0.0, %v2645
      %v2647 = vpop.f32.mrf.mxu0
      %v2648 = vadd.f32 0.0, %v2647
      %2649 = vmatmul.bf16.gmra.mxu0 %v2233
      %v2650 = vpop.f32.mrf.mxu0
      %v2651 = vadd.f32 0.0, %v2650
      %v2652 = vpop.f32.mrf.mxu0
      %v2653 = vadd.f32 0.0, %v2652
      %2654 = vmatmul.bf16.gmra.mxu0 %v2238
      %v2655 = vpop.f32.mrf.mxu0
      %v2656 = vadd.f32 0.0, %v2655
      %v2657 = vpop.f32.mrf.mxu0
      %v2658 = vadd.f32 0.0, %v2657
      %2659 = vmatmul.bf16.gmra.mxu0 %v2243
      %v2660 = vpop.f32.mrf.mxu0
      %v2661 = vadd.f32 0.0, %v2660
      %v2662 = vpop.f32.mrf.mxu0
      %v2663 = vadd.f32 0.0, %v2662
      %2664 = vmatmul.bf16.gmra.mxu0 %v2248
      %v2665 = vpop.f32.mrf.mxu0
      %v2666 = vadd.f32 0.0, %v2665
      %v2667 = vpop.f32.mrf.mxu0
      %v2668 = vadd.f32 0.0, %v2667
      %2669 = vmatmul.bf16.gmra.mxu0 %v2253
      %v2670 = vpop.f32.mrf.mxu0
      %v2671 = vadd.f32 0.0, %v2670
      %v2672 = vpop.f32.mrf.mxu0
      %v2673 = vadd.f32 0.0, %v2672
      %2674 = vmatmul.bf16.gmra.mxu0 %v2258
      %v2675 = vpop.f32.mrf.mxu0
      %v2676 = vadd.f32 0.0, %v2675
      %v2677 = vpop.f32.mrf.mxu0
      %v2678 = vadd.f32 0.0, %v2677
      %2679 = vmatmul.bf16.gmra.mxu0 %v2263
      %v2680 = vpop.f32.mrf.mxu0
      %v2681 = vadd.f32 0.0, %v2680
      %v2682 = vpop.f32.mrf.mxu0
      %v2683 = vadd.f32 0.0, %v2682
      %2684 = vmatmul.bf16.gmra.mxu0 %v2268
      %v2685 = vpop.f32.mrf.mxu0
      %v2686 = vadd.f32 0.0, %v2685
      %v2687 = vpop.f32.mrf.mxu0
      %v2688 = vadd.f32 0.0, %v2687
      %2689 = vdwg.mxu0
      %2690 = vmatpush.bf16.msra.mxu0 %v2496
      %2691 = vmatpush.bf16.msra.mxu0 %v2495
      %2692 = vmatpush.bf16.msra.mxu0 %v2494
      %2693 = vmatpush.bf16.msra.mxu0 %v2493
      %2694 = vmatpush.bf16.msra.mxu0 %v2492
      %2695 = vmatpush.bf16.msra.mxu0 %v2491
      %2696 = vmatpush.bf16.msra.mxu0 %v2490
      %2697 = vmatpush.bf16.msra.mxu0 %v2489
      %2698 = vmatmul.bf16.gmra.mxu0 %v2194
      %v2699 = vpop.f32.mrf.mxu0
      %v2700 = vadd.f32 %v2611, %v2699
      %v2701 = vpop.f32.mrf.mxu0
      %v2702 = vadd.f32 %v2613, %v2701
      %2703 = vmatmul.bf16.gmra.mxu0 %v2199
      %v2704 = vpop.f32.mrf.mxu0
      %v2705 = vadd.f32 %v2616, %v2704
      %v2706 = vpop.f32.mrf.mxu0
      %v2707 = vadd.f32 %v2618, %v2706
      %2708 = vmatmul.bf16.gmra.mxu0 %v2204
      %v2709 = vpop.f32.mrf.mxu0
      %v2710 = vadd.f32 %v2621, %v2709
      %v2711 = vpop.f32.mrf.mxu0
      %v2712 = vadd.f32 %v2623, %v2711
      %2713 = vmatmul.bf16.gmra.mxu0 %v2209
      %v2714 = vpop.f32.mrf.mxu0
      %v2715 = vadd.f32 %v2626, %v2714
      %v2716 = vpop.f32.mrf.mxu0
      %v2717 = vadd.f32 %v2628, %v2716
      %2718 = vmatmul.bf16.gmra.mxu0 %v2214
      %v2719 = vpop.f32.mrf.mxu0
      %v2720 = vadd.f32 %v2631, %v2719
      %v2721 = vpop.f32.mrf.mxu0
      %v2722 = vadd.f32 %v2633, %v2721
      %2723 = vmatmul.bf16.gmra.mxu0 %v2219
      %v2724 = vpop.f32.mrf.mxu0
      %v2725 = vadd.f32 %v2636, %v2724
      %v2726 = vpop.f32.mrf.mxu0
      %v2727 = vadd.f32 %v2638, %v2726
      %2728 = vmatmul.bf16.gmra.mxu0 %v2224
      %v2729 = vpop.f32.mrf.mxu0
      %v2730 = vadd.f32 %v2641, %v2729
      %v2731 = vpop.f32.mrf.mxu0
      %v2732 = vadd.f32 %v2643, %v2731
      %2733 = vmatmul.bf16.gmra.mxu0 %v2229
      %v2734 = vpop.f32.mrf.mxu0
      %v2735 = vadd.f32 %v2646, %v2734
      %v2736 = vpop.f32.mrf.mxu0
      %v2737 = vadd.f32 %v2648, %v2736
      %2738 = vmatmul.bf16.gmra.mxu0 %v2234
      %v2739 = vpop.f32.mrf.mxu0
      %v2740 = vadd.f32 %v2651, %v2739
      %v2741 = vpop.f32.mrf.mxu0
      %v2742 = vadd.f32 %v2653, %v2741
      %2743 = vmatmul.bf16.gmra.mxu0 %v2239
      %v2744 = vpop.f32.mrf.mxu0
      %v2745 = vadd.f32 %v2656, %v2744
      %v2746 = vpop.f32.mrf.mxu0
      %v2747 = vadd.f32 %v2658, %v2746
      %2748 = vmatmul.bf16.gmra.mxu0 %v2244
      %v2749 = vpop.f32.mrf.mxu0
      %v2750 = vadd.f32 %v2661, %v2749
      %v2751 = vpop.f32.mrf.mxu0
      %v2752 = vadd.f32 %v2663, %v2751
      %2753 = vmatmul.bf16.gmra.mxu0 %v2249
      %v2754 = vpop.f32.mrf.mxu0
      %v2755 = vadd.f32 %v2666, %v2754
      %v2756 = vpop.f32.mrf.mxu0
      %v2757 = vadd.f32 %v2668, %v2756
      %2758 = vmatmul.bf16.gmra.mxu0 %v2254
      %v2759 = vpop.f32.mrf.mxu0
      %v2760 = vadd.f32 %v2671, %v2759
      %v2761 = vpop.f32.mrf.mxu0
      %v2762 = vadd.f32 %v2673, %v2761
      %2763 = vmatmul.bf16.gmra.mxu0 %v2259
      %v2764 = vpop.f32.mrf.mxu0
      %v2765 = vadd.f32 %v2676, %v2764
      %v2766 = vpop.f32.mrf.mxu0
      %v2767 = vadd.f32 %v2678, %v2766
      %2768 = vmatmul.bf16.gmra.mxu0 %v2264
      %v2769 = vpop.f32.mrf.mxu0
      %v2770 = vadd.f32 %v2681, %v2769
      %v2771 = vpop.f32.mrf.mxu0
      %v2772 = vadd.f32 %v2683, %v2771
      %2773 = vmatmul.bf16.gmra.mxu0 %v2269
      %v2774 = vpop.f32.mrf.mxu0
      %v2775 = vadd.f32 %v2686, %v2774
      %v2776 = vpop.f32.mrf.mxu0
      %v2777 = vadd.f32 %v2688, %v2776
      %2778 = vdwg.mxu0
      %2779 = vmatpush.bf16.msra.mxu0 %v2504
      %2780 = vmatpush.bf16.msra.mxu0 %v2503
      %2781 = vmatpush.bf16.msra.mxu0 %v2502
      %2782 = vmatpush.bf16.msra.mxu0 %v2501
      %2783 = vmatpush.bf16.msra.mxu0 %v2500
      %2784 = vmatpush.bf16.msra.mxu0 %v2499
      %2785 = vmatpush.bf16.msra.mxu0 %v2498
      %2786 = vmatpush.bf16.msra.mxu0 %v2497
      %2787 = vmatmul.bf16.gmra.mxu0 %v2195
      %v2788 = vpop.f32.mrf.mxu0
      %v2789 = vadd.f32 %v2700, %v2788
      %v2790 = vpop.f32.mrf.mxu0
      %v2791 = vadd.f32 %v2702, %v2790
      %2792 = vmatmul.bf16.gmra.mxu0 %v2200
      %v2793 = vpop.f32.mrf.mxu0
      %v2794 = vadd.f32 %v2705, %v2793
      %v2795 = vpop.f32.mrf.mxu0
      %v2796 = vadd.f32 %v2707, %v2795
      %2797 = vmatmul.bf16.gmra.mxu0 %v2205
      %v2798 = vpop.f32.mrf.mxu0
      %v2799 = vadd.f32 %v2710, %v2798
      %v2800 = vpop.f32.mrf.mxu0
      %v2801 = vadd.f32 %v2712, %v2800
      %2802 = vmatmul.bf16.gmra.mxu0 %v2210
      %v2803 = vpop.f32.mrf.mxu0
      %v2804 = vadd.f32 %v2715, %v2803
      %v2805 = vpop.f32.mrf.mxu0
      %v2806 = vadd.f32 %v2717, %v2805
      %2807 = vmatmul.bf16.gmra.mxu0 %v2215
      %v2808 = vpop.f32.mrf.mxu0
      %v2809 = vadd.f32 %v2720, %v2808
      %v2810 = vpop.f32.mrf.mxu0
      %v2811 = vadd.f32 %v2722, %v2810
      %2812 = vmatmul.bf16.gmra.mxu0 %v2220
      %v2813 = vpop.f32.mrf.mxu0
      %v2814 = vadd.f32 %v2725, %v2813
      %v2815 = vpop.f32.mrf.mxu0
      %v2816 = vadd.f32 %v2727, %v2815
      %2817 = vmatmul.bf16.gmra.mxu0 %v2225
      %v2818 = vpop.f32.mrf.mxu0
      %v2819 = vadd.f32 %v2730, %v2818
      %v2820 = vpop.f32.mrf.mxu0
      %v2821 = vadd.f32 %v2732, %v2820
      %2822 = vmatmul.bf16.gmra.mxu0 %v2230
      %v2823 = vpop.f32.mrf.mxu0
      %v2824 = vadd.f32 %v2735, %v2823
      %v2825 = vpop.f32.mrf.mxu0
      %v2826 = vadd.f32 %v2737, %v2825
      %2827 = vmatmul.bf16.gmra.mxu0 %v2235
      %v2828 = vpop.f32.mrf.mxu0
      %v2829 = vadd.f32 %v2740, %v2828
      %v2830 = vpop.f32.mrf.mxu0
      %v2831 = vadd.f32 %v2742, %v2830
      %2832 = vmatmul.bf16.gmra.mxu0 %v2240
      %v2833 = vpop.f32.mrf.mxu0
      %v2834 = vadd.f32 %v2745, %v2833
      %v2835 = vpop.f32.mrf.mxu0
      %v2836 = vadd.f32 %v2747, %v2835
      %2837 = vmatmul.bf16.gmra.mxu0 %v2245
      %v2838 = vpop.f32.mrf.mxu0
      %v2839 = vadd.f32 %v2750, %v2838
      %v2840 = vpop.f32.mrf.mxu0
      %v2841 = vadd.f32 %v2752, %v2840
      %2842 = vmatmul.bf16.gmra.mxu0 %v2250
      %v2843 = vpop.f32.mrf.mxu0
      %v2844 = vadd.f32 %v2755, %v2843
      %v2845 = vpop.f32.mrf.mxu0
      %v2846 = vadd.f32 %v2757, %v2845
      %2847 = vmatmul.bf16.gmra.mxu0 %v2255
      %v2848 = vpop.f32.mrf.mxu0
      %v2849 = vadd.f32 %v2760, %v2848
      %v2850 = vpop.f32.mrf.mxu0
      %v2851 = vadd.f32 %v2762, %v2850
      %2852 = vmatmul.bf16.gmra.mxu0 %v2260
      %v2853 = vpop.f32.mrf.mxu0
      %v2854 = vadd.f32 %v2765, %v2853
      %v2855 = vpop.f32.mrf.mxu0
      %v2856 = vadd.f32 %v2767, %v2855
      %2857 = vmatmul.bf16.gmra.mxu0 %v2265
      %v2858 = vpop.f32.mrf.mxu0
      %v2859 = vadd.f32 %v2770, %v2858
      %v2860 = vpop.f32.mrf.mxu0
      %v2861 = vadd.f32 %v2772, %v2860
      %2862 = vmatmul.bf16.gmra.mxu0 %v2270
      %v2863 = vpop.f32.mrf.mxu0
      %v2864 = vadd.f32 %v2775, %v2863
      %v2865 = vpop.f32.mrf.mxu0
      %v2866 = vadd.f32 %v2777, %v2865
      %2867 = vdwg.mxu0
      %2868 = vmatpush.bf16.msra.mxu0 %v2512
      %2869 = vmatpush.bf16.msra.mxu0 %v2511
      %2870 = vmatpush.bf16.msra.mxu0 %v2510
      %2871 = vmatpush.bf16.msra.mxu0 %v2509
      %2872 = vmatpush.bf16.msra.mxu0 %v2508
      %2873 = vmatpush.bf16.msra.mxu0 %v2507
      %2874 = vmatpush.bf16.msra.mxu0 %v2506
      %2875 = vmatpush.bf16.msra.mxu0 %v2505
      %2876 = vmatmul.bf16.gmra.mxu0 %v2196
      %v2877 = vpop.f32.mrf.mxu0
      %v2878 = vadd.f32 %v2789, %v2877
      %v2879 = vpop.f32.mrf.mxu0
      %v2880 = vadd.f32 %v2791, %v2879
      %2881 = vmatmul.bf16.gmra.mxu0 %v2201
      %v2882 = vpop.f32.mrf.mxu0
      %v2883 = vadd.f32 %v2794, %v2882
      %v2884 = vpop.f32.mrf.mxu0
      %v2885 = vadd.f32 %v2796, %v2884
      %2886 = vmatmul.bf16.gmra.mxu0 %v2206
      %v2887 = vpop.f32.mrf.mxu0
      %v2888 = vadd.f32 %v2799, %v2887
      %v2889 = vpop.f32.mrf.mxu0
      %v2890 = vadd.f32 %v2801, %v2889
      %2891 = vmatmul.bf16.gmra.mxu0 %v2211
      %v2892 = vpop.f32.mrf.mxu0
      %v2893 = vadd.f32 %v2804, %v2892
      %v2894 = vpop.f32.mrf.mxu0
      %v2895 = vadd.f32 %v2806, %v2894
      %2896 = vmatmul.bf16.gmra.mxu0 %v2216
      %v2897 = vpop.f32.mrf.mxu0
      %v2898 = vadd.f32 %v2809, %v2897
      %v2899 = vpop.f32.mrf.mxu0
      %v2900 = vadd.f32 %v2811, %v2899
      %2901 = vmatmul.bf16.gmra.mxu0 %v2221
      %v2902 = vpop.f32.mrf.mxu0
      %v2903 = vadd.f32 %v2814, %v2902
      %v2904 = vpop.f32.mrf.mxu0
      %v2905 = vadd.f32 %v2816, %v2904
      %2906 = vmatmul.bf16.gmra.mxu0 %v2226
      %v2907 = vpop.f32.mrf.mxu0
      %v2908 = vadd.f32 %v2819, %v2907
      %v2909 = vpop.f32.mrf.mxu0
      %v2910 = vadd.f32 %v2821, %v2909
      %2911 = vmatmul.bf16.gmra.mxu0 %v2231
      %v2912 = vpop.f32.mrf.mxu0
      %v2913 = vadd.f32 %v2824, %v2912
      %v2914 = vpop.f32.mrf.mxu0
      %v2915 = vadd.f32 %v2826, %v2914
      %2916 = vmatmul.bf16.gmra.mxu0 %v2236
      %v2917 = vpop.f32.mrf.mxu0
      %v2918 = vadd.f32 %v2829, %v2917
      %v2919 = vpop.f32.mrf.mxu0
      %v2920 = vadd.f32 %v2831, %v2919
      %2921 = vmatmul.bf16.gmra.mxu0 %v2241
      %v2922 = vpop.f32.mrf.mxu0
      %v2923 = vadd.f32 %v2834, %v2922
      %v2924 = vpop.f32.mrf.mxu0
      %v2925 = vadd.f32 %v2836, %v2924
      %2926 = vmatmul.bf16.gmra.mxu0 %v2246
      %v2927 = vpop.f32.mrf.mxu0
      %v2928 = vadd.f32 %v2839, %v2927
      %v2929 = vpop.f32.mrf.mxu0
      %v2930 = vadd.f32 %v2841, %v2929
      %2931 = vmatmul.bf16.gmra.mxu0 %v2251
      %v2932 = vpop.f32.mrf.mxu0
      %v2933 = vadd.f32 %v2844, %v2932
      %v2934 = vpop.f32.mrf.mxu0
      %v2935 = vadd.f32 %v2846, %v2934
      %2936 = vmatmul.bf16.gmra.mxu0 %v2256
      %v2937 = vpop.f32.mrf.mxu0
      %v2938 = vadd.f32 %v2849, %v2937
      %v2939 = vpop.f32.mrf.mxu0
      %v2940 = vadd.f32 %v2851, %v2939
      %2941 = vmatmul.bf16.gmra.mxu0 %v2261
      %v2942 = vpop.f32.mrf.mxu0
      %v2943 = vadd.f32 %v2854, %v2942
      %v2944 = vpop.f32.mrf.mxu0
      %v2945 = vadd.f32 %v2856, %v2944
      %2946 = vmatmul.bf16.gmra.mxu0 %v2266
      %v2947 = vpop.f32.mrf.mxu0
      %v2948 = vadd.f32 %v2859, %v2947
      %v2949 = vpop.f32.mrf.mxu0
      %v2950 = vadd.f32 %v2861, %v2949
      %2951 = vmatmul.bf16.gmra.mxu0 %v2271
      %v2952 = vpop.f32.mrf.mxu0
      %v2953 = vadd.f32 %v2864, %v2952
      %v2954 = vpop.f32.mrf.mxu0
      %v2955 = vadd.f32 %v2866, %v2954
      %2956 = vdwg.mxu0
      %2957 = vmatpush.bf16.msra.mxu0 0
      %2958 = vmatpush.bf16.msra.mxu0 0
      %2959 = vmatpush.bf16.msra.mxu0 0
      %2960 = vmatpush.bf16.msra.mxu0 0
      %2961 = vmatpush.bf16.msra.mxu0 %v2516
      %2962 = vmatpush.bf16.msra.mxu0 %v2515
      %2963 = vmatpush.bf16.msra.mxu0 %v2514
      %2964 = vmatpush.bf16.msra.mxu0 %v2513
      %2965 = vmatmul.bf16.gmra.mxu0 %v2554
      %v2966 = vpop.f32.mrf.mxu0
      %v2967 = vadd.f32 %v2878, %v2966
      %v2968 = vpop.f32.mrf.mxu0
      %v2969 = vadd.f32 %v2880, %v2968
      %2970 = vmatmul.bf16.gmra.mxu0 %v2557
      %v2971 = vpop.f32.mrf.mxu0
      %v2972 = vadd.f32 %v2883, %v2971
      %v2973 = vpop.f32.mrf.mxu0
      %v2974 = vadd.f32 %v2885, %v2973
      %2975 = vmatmul.bf16.gmra.mxu0 %v2560
      %v2976 = vpop.f32.mrf.mxu0
      %v2977 = vadd.f32 %v2888, %v2976
      %v2978 = vpop.f32.mrf.mxu0
      %v2979 = vadd.f32 %v2890, %v2978
      %2980 = vmatmul.bf16.gmra.mxu0 %v2563
      %v2981 = vpop.f32.mrf.mxu0
      %v2982 = vadd.f32 %v2893, %v2981
      %v2983 = vpop.f32.mrf.mxu0
      %v2984 = vadd.f32 %v2895, %v2983
      %2985 = vmatmul.bf16.gmra.mxu0 %v2566
      %v2986 = vpop.f32.mrf.mxu0
      %v2987 = vadd.f32 %v2898, %v2986
      %v2988 = vpop.f32.mrf.mxu0
      %v2989 = vadd.f32 %v2900, %v2988
      %2990 = vmatmul.bf16.gmra.mxu0 %v2569
      %v2991 = vpop.f32.mrf.mxu0
      %v2992 = vadd.f32 %v2903, %v2991
      %v2993 = vpop.f32.mrf.mxu0
      %v2994 = vadd.f32 %v2905, %v2993
      %2995 = vmatmul.bf16.gmra.mxu0 %v2572
      %v2996 = vpop.f32.mrf.mxu0
      %v2997 = vadd.f32 %v2908, %v2996
      %v2998 = vpop.f32.mrf.mxu0
      %v2999 = vadd.f32 %v2910, %v2998
      %3000 = vmatmul.bf16.gmra.mxu0 %v2575
      %v3001 = vpop.f32.mrf.mxu0
      %v3002 = vadd.f32 %v2913, %v3001
      %v3003 = vpop.f32.mrf.mxu0
      %v3004 = vadd.f32 %v2915, %v3003
      %3005 = vmatmul.bf16.gmra.mxu0 %v2578
      %v3006 = vpop.f32.mrf.mxu0
      %v3007 = vadd.f32 %v2918, %v3006
      %v3008 = vpop.f32.mrf.mxu0
      %v3009 = vadd.f32 %v2920, %v3008
      %3010 = vmatmul.bf16.gmra.mxu0 %v2581
      %v3011 = vpop.f32.mrf.mxu0
      %v3012 = vadd.f32 %v2923, %v3011
      %v3013 = vpop.f32.mrf.mxu0
      %v3014 = vadd.f32 %v2925, %v3013
      %3015 = vmatmul.bf16.gmra.mxu0 %v2584
      %v3016 = vpop.f32.mrf.mxu0
      %v3017 = vadd.f32 %v2928, %v3016
      %v3018 = vpop.f32.mrf.mxu0
      %v3019 = vadd.f32 %v2930, %v3018
      %3020 = vmatmul.bf16.gmra.mxu0 %v2587
      %v3021 = vpop.f32.mrf.mxu0
      %v3022 = vadd.f32 %v2933, %v3021
      %v3023 = vpop.f32.mrf.mxu0
      %v3024 = vadd.f32 %v2935, %v3023
      %3025 = vmatmul.bf16.gmra.mxu0 %v2590
      %v3026 = vpop.f32.mrf.mxu0
      %v3027 = vadd.f32 %v2938, %v3026
      %v3028 = vpop.f32.mrf.mxu0
      %v3029 = vadd.f32 %v2940, %v3028
      %3030 = vmatmul.bf16.gmra.mxu0 %v2593
      %v3031 = vpop.f32.mrf.mxu0
      %v3032 = vadd.f32 %v2943, %v3031
      %v3033 = vpop.f32.mrf.mxu0
      %v3034 = vadd.f32 %v2945, %v3033
      %3035 = vmatmul.bf16.gmra.mxu0 %v2596
      %v3036 = vpop.f32.mrf.mxu0
      %v3037 = vadd.f32 %v2948, %v3036
      %v3038 = vpop.f32.mrf.mxu0
      %v3039 = vadd.f32 %v2950, %v3038
      %3040 = vmatmul.bf16.gmra.mxu0 %v2599
      %v3041 = vpop.f32.mrf.mxu0
      %v3042 = vadd.f32 %v2953, %v3041
      %v3043 = vpop.f32.mrf.mxu0
      %v3044 = vadd.f32 %v2955, %v3043
      %3045 = vdwg.mxu0
      %v3046 = vsel %vm283, %v2967, 0.0
      %v3047 = vsel %vm283, %v2969, 0.0
      %v3048 = vadd.f32 %v3046, %v3047
      %v3049 = vsel %vm283, %v2972, 0.0
      %v3050 = vadd.f32 %v3048, %v3049
      %v3051 = vsel %vm283, %v2974, 0.0
      %v3052 = vadd.f32 %v3050, %v3051
      %v3053 = vsel %vm283, %v2977, 0.0
      %v3054 = vadd.f32 %v3052, %v3053
      %v3055 = vsel %vm283, %v2979, 0.0
      %v3056 = vadd.f32 %v3054, %v3055
      %v3057 = vsel %vm283, %v2982, 0.0
      %v3058 = vadd.f32 %v3056, %v3057
      %v3059 = vsel %vm283, %v2984, 0.0
      %v3060 = vadd.f32 %v3058, %v3059
      %v3061 = vsel %vm283, %v2987, 0.0
      %v3062 = vadd.f32 %v3060, %v3061
      %v3063 = vsel %vm283, %v2989, 0.0
      %v3064 = vadd.f32 %v3062, %v3063
      %v3065 = vsel %vm283, %v2992, 0.0
      %v3066 = vadd.f32 %v3064, %v3065
      %v3067 = vsel %vm283, %v2994, 0.0
      %v3068 = vadd.f32 %v3066, %v3067
      %v3069 = vsel %vm283, %v2997, 0.0
      %v3070 = vadd.f32 %v3068, %v3069
      %v3071 = vsel %vm283, %v2999, 0.0
      %v3072 = vadd.f32 %v3070, %v3071
      %v3073 = vsel %vm283, %v3002, 0.0
      %v3074 = vadd.f32 %v3072, %v3073
      %v3075 = vsel %vm283, %v3004, 0.0
      %v3076 = vadd.f32 %v3074, %v3075
      %v3077 = vsel %vm283, %v3007, 0.0
      %v3078 = vadd.f32 %v3076, %v3077
      %v3079 = vsel %vm283, %v3009, 0.0
      %v3080 = vadd.f32 %v3078, %v3079
      %v3081 = vsel %vm283, %v3012, 0.0
      %v3082 = vadd.f32 %v3080, %v3081
      %v3083 = vsel %vm283, %v3014, 0.0
      %v3084 = vadd.f32 %v3082, %v3083
      %v3085 = vsel %vm283, %v3017, 0.0
      %v3086 = vadd.f32 %v3084, %v3085
      %v3087 = vsel %vm283, %v3019, 0.0
      %v3088 = vadd.f32 %v3086, %v3087
      %v3089 = vsel %vm283, %v3022, 0.0
      %v3090 = vadd.f32 %v3088, %v3089
      %v3091 = vsel %vm283, %v3024, 0.0
      %v3092 = vadd.f32 %v3090, %v3091
      %v3093 = vsel %vm283, %v3027, 0.0
      %v3094 = vadd.f32 %v3092, %v3093
      %v3095 = vsel %vm283, %v3029, 0.0
      %v3096 = vadd.f32 %v3094, %v3095
      %v3097 = vsel %vm283, %v3032, 0.0
      %v3098 = vadd.f32 %v3096, %v3097
      %v3099 = vsel %vm283, %v3034, 0.0
      %v3100 = vadd.f32 %v3098, %v3099
      %v3101 = vsel %vm283, %v3037, 0.0
      %v3102 = vadd.f32 %v3100, %v3101
      %v3103 = vsel %vm283, %v3039, 0.0
      %v3104 = vadd.f32 %v3102, %v3103
      %v3105 = vsel %vm283, %v3042, 0.0
      %v3106 = vadd.f32 %v3104, %v3105
      %v3107 = vsel %vm283, %v3044, 0.0
      %v3108 = vadd.f32 %v3106, %v3107
      %v3109 = vrot.slane %v3108, 4
      %v3110 = vadd.f32 %v3108, %v3109
      %v3111 = vrot.slane %v3110, 2
      %v3112 = vadd.f32 %v3110, %v3111
      %v3113 = vrot.slane %v3112, 1
      %v3114 = vadd.f32 %v3112, %v3113
      %v3115 = vmul.f32 %v3114, 0.00390625
      %v3116 = vsub.f32 %v2967, %v3115
      %v3117 = vsub.f32 %v2969, %v3115
      %v3118 = vsub.f32 %v2972, %v3115
      %v3119 = vsub.f32 %v2974, %v3115
      %v3120 = vsub.f32 %v2977, %v3115
      %v3121 = vsub.f32 %v2979, %v3115
      %v3122 = vsub.f32 %v2982, %v3115
      %v3123 = vsub.f32 %v2984, %v3115
      %v3124 = vsub.f32 %v2987, %v3115
      %v3125 = vsub.f32 %v2989, %v3115
      %v3126 = vsub.f32 %v2992, %v3115
      %v3127 = vsub.f32 %v2994, %v3115
      %v3128 = vsub.f32 %v2997, %v3115
      %v3129 = vsub.f32 %v2999, %v3115
      %v3130 = vsub.f32 %v3002, %v3115
      %v3131 = vsub.f32 %v3004, %v3115
      %v3132 = vsub.f32 %v3007, %v3115
      %v3133 = vsub.f32 %v3009, %v3115
      %v3134 = vsub.f32 %v3012, %v3115
      %v3135 = vsub.f32 %v3014, %v3115
      %v3136 = vsub.f32 %v3017, %v3115
      %v3137 = vsub.f32 %v3019, %v3115
      %v3138 = vsub.f32 %v3022, %v3115
      %v3139 = vsub.f32 %v3024, %v3115
      %v3140 = vsub.f32 %v3027, %v3115
      %v3141 = vsub.f32 %v3029, %v3115
      %v3142 = vsub.f32 %v3032, %v3115
      %v3143 = vsub.f32 %v3034, %v3115
      %v3144 = vsub.f32 %v3037, %v3115
      %v3145 = vsub.f32 %v3039, %v3115
      %v3146 = vsub.f32 %v3042, %v3115
      %v3147 = vsub.f32 %v3044, %v3115
      %v3148 = vmul.f32 %v3116, %v3116
      %v3149 = vmul.f32 %v3117, %v3117
      %v3150 = vmul.f32 %v3118, %v3118
      %v3151 = vmul.f32 %v3119, %v3119
      %v3152 = vmul.f32 %v3120, %v3120
      %v3153 = vmul.f32 %v3121, %v3121
      %v3154 = vmul.f32 %v3122, %v3122
      %v3155 = vmul.f32 %v3123, %v3123
      %v3156 = vmul.f32 %v3124, %v3124
      %v3157 = vmul.f32 %v3125, %v3125
      %v3158 = vmul.f32 %v3126, %v3126
      %v3159 = vmul.f32 %v3127, %v3127
      %v3160 = vmul.f32 %v3128, %v3128
      %v3161 = vmul.f32 %v3129, %v3129
      %v3162 = vmul.f32 %v3130, %v3130
      %v3163 = vmul.f32 %v3131, %v3131
      %v3164 = vmul.f32 %v3132, %v3132
      %v3165 = vmul.f32 %v3133, %v3133
      %v3166 = vmul.f32 %v3134, %v3134
      %v3167 = vmul.f32 %v3135, %v3135
      %v3168 = vmul.f32 %v3136, %v3136
      %v3169 = vmul.f32 %v3137, %v3137
      %v3170 = vmul.f32 %v3138, %v3138
      %v3171 = vmul.f32 %v3139, %v3139
      %v3172 = vmul.f32 %v3140, %v3140
      %v3173 = vmul.f32 %v3141, %v3141
      %v3174 = vmul.f32 %v3142, %v3142
      %v3175 = vmul.f32 %v3143, %v3143
      %v3176 = vmul.f32 %v3144, %v3144
      %v3177 = vmul.f32 %v3145, %v3145
      %v3178 = vmul.f32 %v3146, %v3146
      %v3179 = vmul.f32 %v3147, %v3147
      %v3180 = vsel %vm283, %v3148, 0.0
      %v3181 = vsel %vm283, %v3149, 0.0
      %v3182 = vadd.f32 %v3180, %v3181
      %v3183 = vsel %vm283, %v3150, 0.0
      %v3184 = vadd.f32 %v3182, %v3183
      %v3185 = vsel %vm283, %v3151, 0.0
      %v3186 = vadd.f32 %v3184, %v3185
      %v3187 = vsel %vm283, %v3152, 0.0
      %v3188 = vadd.f32 %v3186, %v3187
      %v3189 = vsel %vm283, %v3153, 0.0
      %v3190 = vadd.f32 %v3188, %v3189
      %v3191 = vsel %vm283, %v3154, 0.0
      %v3192 = vadd.f32 %v3190, %v3191
      %v3193 = vsel %vm283, %v3155, 0.0
      %v3194 = vadd.f32 %v3192, %v3193
      %v3195 = vsel %vm283, %v3156, 0.0
      %v3196 = vadd.f32 %v3194, %v3195
      %v3197 = vsel %vm283, %v3157, 0.0
      %v3198 = vadd.f32 %v3196, %v3197
      %v3199 = vsel %vm283, %v3158, 0.0
      %v3200 = vadd.f32 %v3198, %v3199
      %v3201 = vsel %vm283, %v3159, 0.0
      %v3202 = vadd.f32 %v3200, %v3201
      %v3203 = vsel %vm283, %v3160, 0.0
      %v3204 = vadd.f32 %v3202, %v3203
      %v3205 = vsel %vm283, %v3161, 0.0
      %v3206 = vadd.f32 %v3204, %v3205
      %v3207 = vsel %vm283, %v3162, 0.0
      %v3208 = vadd.f32 %v3206, %v3207
      %v3209 = vsel %vm283, %v3163, 0.0
      %v3210 = vadd.f32 %v3208, %v3209
      %v3211 = vsel %vm283, %v3164, 0.0
      %v3212 = vadd.f32 %v3210, %v3211
      %v3213 = vsel %vm283, %v3165, 0.0
      %v3214 = vadd.f32 %v3212, %v3213
      %v3215 = vsel %vm283, %v3166, 0.0
      %v3216 = vadd.f32 %v3214, %v3215
      %v3217 = vsel %vm283, %v3167, 0.0
      %v3218 = vadd.f32 %v3216, %v3217
      %v3219 = vsel %vm283, %v3168, 0.0
      %v3220 = vadd.f32 %v3218, %v3219
      %v3221 = vsel %vm283, %v3169, 0.0
      %v3222 = vadd.f32 %v3220, %v3221
      %v3223 = vsel %vm283, %v3170, 0.0
      %v3224 = vadd.f32 %v3222, %v3223
      %v3225 = vsel %vm283, %v3171, 0.0
      %v3226 = vadd.f32 %v3224, %v3225
      %v3227 = vsel %vm283, %v3172, 0.0
      %v3228 = vadd.f32 %v3226, %v3227
      %v3229 = vsel %vm283, %v3173, 0.0
      %v3230 = vadd.f32 %v3228, %v3229
      %v3231 = vsel %vm283, %v3174, 0.0
      %v3232 = vadd.f32 %v3230, %v3231
      %v3233 = vsel %vm283, %v3175, 0.0
      %v3234 = vadd.f32 %v3232, %v3233
      %v3235 = vsel %vm283, %v3176, 0.0
      %v3236 = vadd.f32 %v3234, %v3235
      %v3237 = vsel %vm283, %v3177, 0.0
      %v3238 = vadd.f32 %v3236, %v3237
      %v3239 = vsel %vm283, %v3178, 0.0
      %v3240 = vadd.f32 %v3238, %v3239
      %v3241 = vsel %vm283, %v3179, 0.0
      %v3242 = vadd.f32 %v3240, %v3241
      %v3243 = vrot.slane %v3242, 4
      %v3244 = vadd.f32 %v3242, %v3243
      %v3245 = vrot.slane %v3244, 2
      %v3246 = vadd.f32 %v3244, %v3245
      %v3247 = vrot.slane %v3246, 1
      %v3248 = vadd.f32 %v3246, %v3247
      %v3249 = vmul.f32 %v3248, 0.00390625
      %v3250 = vld [vmem:[%s2] sm:$0x1]
      %v3251 = vadd.f32 %v3249, 1e-05
      %v3252 = vrsqrt.pop %v3251
      %v3253 = vmul.f32 %v3252, %v3251
      %v3254 = vmul.f32 %v3253, %v3252
      %v3255 = vmul.f32 0.5, %v3254
      %v3256 = vsub.f32 1.5, %v3255
      %v3257 = vmul.f32 %v3252, %v3256
      %vm3258 = vweird.f32 %v3251
      %vm3259 = vweird.f32 %v3252
      %vm3260 = vmor %vm3258, %vm3259
      %v3261 = vsel %vm3260, %v3252, %v3257
      %v3262 = vmul.f32 %v3250, %v3261
      %v3264 = vperm.slane %v3262, 0
      %v3266 = vmul.f32 %v3116, %v3264
      %v3267 = vmul.f32 %v3117, %v3264
      %v3268 = vmul.f32 %v3118, %v3264
      %v3269 = vmul.f32 %v3119, %v3264
      %v3270 = vmul.f32 %v3120, %v3264
      %v3271 = vmul.f32 %v3121, %v3264
      %v3272 = vmul.f32 %v3122, %v3264
      %v3273 = vmul.f32 %v3123, %v3264
      %v3274 = vmul.f32 %v3124, %v3264
      %v3275 = vmul.f32 %v3125, %v3264
      %v3276 = vmul.f32 %v3126, %v3264
      %v3277 = vmul.f32 %v3127, %v3264
      %v3278 = vmul.f32 %v3128, %v3264
      %v3279 = vmul.f32 %v3129, %v3264
      %v3280 = vmul.f32 %v3130, %v3264
      %v3281 = vmul.f32 %v3131, %v3264
      %v3282 = vmul.f32 %v3132, %v3264
      %v3283 = vmul.f32 %v3133, %v3264
      %v3284 = vmul.f32 %v3134, %v3264
      %v3285 = vmul.f32 %v3135, %v3264
      %v3286 = vmul.f32 %v3136, %v3264
      %v3287 = vmul.f32 %v3137, %v3264
      %v3288 = vmul.f32 %v3138, %v3264
      %v3289 = vmul.f32 %v3139, %v3264
      %v3290 = vmul.f32 %v3140, %v3264
      %v3291 = vmul.f32 %v3141, %v3264
      %v3292 = vmul.f32 %v3142, %v3264
      %v3293 = vmul.f32 %v3143, %v3264
      %v3294 = vmul.f32 %v3144, %v3264
      %v3295 = vmul.f32 %v3145, %v3264
      %v3296 = vmul.f32 %v3146, %v3264
      %v3297 = vmul.f32 %v3147, %v3264
      %v3298 = vld [vmem:[%s3] sm:$0x1]
      %v3300 = vperm.slane %v3298, 0
      %v3302 = vadd.f32 %v3266, %v3300
      %v3303 = vadd.f32 %v3267, %v3300
      %v3304 = vadd.f32 %v3268, %v3300
      %v3305 = vadd.f32 %v3269, %v3300
      %v3306 = vadd.f32 %v3270, %v3300
      %v3307 = vadd.f32 %v3271, %v3300
      %v3308 = vadd.f32 %v3272, %v3300
      %v3309 = vadd.f32 %v3273, %v3300
      %v3310 = vadd.f32 %v3274, %v3300
      %v3311 = vadd.f32 %v3275, %v3300
      %v3312 = vadd.f32 %v3276, %v3300
      %v3313 = vadd.f32 %v3277, %v3300
      %v3314 = vadd.f32 %v3278, %v3300
      %v3315 = vadd.f32 %v3279, %v3300
      %v3316 = vadd.f32 %v3280, %v3300
      %v3317 = vadd.f32 %v3281, %v3300
      %v3318 = vadd.f32 %v3282, %v3300
      %v3319 = vadd.f32 %v3283, %v3300
      %v3320 = vadd.f32 %v3284, %v3300
      %v3321 = vadd.f32 %v3285, %v3300
      %v3322 = vadd.f32 %v3286, %v3300
      %v3323 = vadd.f32 %v3287, %v3300
      %v3324 = vadd.f32 %v3288, %v3300
      %v3325 = vadd.f32 %v3289, %v3300
      %v3326 = vadd.f32 %v3290, %v3300
      %v3327 = vadd.f32 %v3291, %v3300
      %v3328 = vadd.f32 %v3292, %v3300
      %v3329 = vadd.f32 %v3293, %v3300
      %v3330 = vadd.f32 %v3294, %v3300
      %v3331 = vadd.f32 %v3295, %v3300
      %v3332 = vadd.f32 %v3296, %v3300
      %v3333 = vadd.f32 %v3297, %v3300
      %vm3334 = vcmp.gt.f32.partialorder %v3302, 0.0
      %vm3335 = vcmp.gt.f32.partialorder %v3303, 0.0
      %vm3336 = vcmp.gt.f32.partialorder %v3304, 0.0
      %vm3337 = vcmp.gt.f32.partialorder %v3305, 0.0
      %vm3338 = vcmp.gt.f32.partialorder %v3306, 0.0
      %vm3339 = vcmp.gt.f32.partialorder %v3307, 0.0
      %vm3340 = vcmp.gt.f32.partialorder %v3308, 0.0
      %vm3341 = vcmp.gt.f32.partialorder %v3309, 0.0
      %vm3342 = vcmp.gt.f32.partialorder %v3310, 0.0
      %vm3343 = vcmp.gt.f32.partialorder %v3311, 0.0
      %vm3344 = vcmp.gt.f32.partialorder %v3312, 0.0
      %vm3345 = vcmp.gt.f32.partialorder %v3313, 0.0
      %vm3346 = vcmp.gt.f32.partialorder %v3314, 0.0
      %vm3347 = vcmp.gt.f32.partialorder %v3315, 0.0
      %vm3348 = vcmp.gt.f32.partialorder %v3316, 0.0
      %vm3349 = vcmp.gt.f32.partialorder %v3317, 0.0
      %vm3350 = vcmp.gt.f32.partialorder %v3318, 0.0
      %vm3351 = vcmp.gt.f32.partialorder %v3319, 0.0
      %vm3352 = vcmp.gt.f32.partialorder %v3320, 0.0
      %vm3353 = vcmp.gt.f32.partialorder %v3321, 0.0
      %vm3354 = vcmp.gt.f32.partialorder %v3322, 0.0
      %vm3355 = vcmp.gt.f32.partialorder %v3323, 0.0
      %vm3356 = vcmp.gt.f32.partialorder %v3324, 0.0
      %vm3357 = vcmp.gt.f32.partialorder %v3325, 0.0
      %vm3358 = vcmp.gt.f32.partialorder %v3326, 0.0
      %vm3359 = vcmp.gt.f32.partialorder %v3327, 0.0
      %vm3360 = vcmp.gt.f32.partialorder %v3328, 0.0
      %vm3361 = vcmp.gt.f32.partialorder %v3329, 0.0
      %vm3362 = vcmp.gt.f32.partialorder %v3330, 0.0
      %vm3363 = vcmp.gt.f32.partialorder %v3331, 0.0
      %vm3364 = vcmp.gt.f32.partialorder %v3332, 0.0
      %vm3365 = vcmp.gt.f32.partialorder %v3333, 0.0
      %v3366 = vmul.f32 %v3302, 0.2
      %v3367 = vmul.f32 %v3303, 0.2
      %v3368 = vmul.f32 %v3304, 0.2
      %v3369 = vmul.f32 %v3305, 0.2
      %v3370 = vmul.f32 %v3306, 0.2
      %v3371 = vmul.f32 %v3307, 0.2
      %v3372 = vmul.f32 %v3308, 0.2
      %v3373 = vmul.f32 %v3309, 0.2
      %v3374 = vmul.f32 %v3310, 0.2
      %v3375 = vmul.f32 %v3311, 0.2
      %v3376 = vmul.f32 %v3312, 0.2
      %v3377 = vmul.f32 %v3313, 0.2
      %v3378 = vmul.f32 %v3314, 0.2
      %v3379 = vmul.f32 %v3315, 0.2
      %v3380 = vmul.f32 %v3316, 0.2
      %v3381 = vmul.f32 %v3317, 0.2
      %v3382 = vmul.f32 %v3318, 0.2
      %v3383 = vmul.f32 %v3319, 0.2
      %v3384 = vmul.f32 %v3320, 0.2
      %v3385 = vmul.f32 %v3321, 0.2
      %v3386 = vmul.f32 %v3322, 0.2
      %v3387 = vmul.f32 %v3323, 0.2
      %v3388 = vmul.f32 %v3324, 0.2
      %v3389 = vmul.f32 %v3325, 0.2
      %v3390 = vmul.f32 %v3326, 0.2
      %v3391 = vmul.f32 %v3327, 0.2
      %v3392 = vmul.f32 %v3328, 0.2
      %v3393 = vmul.f32 %v3329, 0.2
      %v3394 = vmul.f32 %v3330, 0.2
      %v3395 = vmul.f32 %v3331, 0.2
      %v3396 = vmul.f32 %v3332, 0.2
      %v3397 = vmul.f32 %v3333, 0.2
      %v3398 = vsel %vm3334, %v3302, %v3366
      %v3399 = vsel %vm3335, %v3303, %v3367
      %v3400 = vsel %vm3336, %v3304, %v3368
      %v3401 = vsel %vm3337, %v3305, %v3369
      %v3402 = vsel %vm3338, %v3306, %v3370
      %v3403 = vsel %vm3339, %v3307, %v3371
      %v3404 = vsel %vm3340, %v3308, %v3372
      %v3405 = vsel %vm3341, %v3309, %v3373
      %v3406 = vsel %vm3342, %v3310, %v3374
      %v3407 = vsel %vm3343, %v3311, %v3375
      %v3408 = vsel %vm3344, %v3312, %v3376
      %v3409 = vsel %vm3345, %v3313, %v3377
      %v3410 = vsel %vm3346, %v3314, %v3378
      %v3411 = vsel %vm3347, %v3315, %v3379
      %v3412 = vsel %vm3348, %v3316, %v3380
      %v3413 = vsel %vm3349, %v3317, %v3381
      %v3414 = vsel %vm3350, %v3318, %v3382
      %v3415 = vsel %vm3351, %v3319, %v3383
      %v3416 = vsel %vm3352, %v3320, %v3384
      %v3417 = vsel %vm3353, %v3321, %v3385
      %v3418 = vsel %vm3354, %v3322, %v3386
      %v3419 = vsel %vm3355, %v3323, %v3387
      %v3420 = vsel %vm3356, %v3324, %v3388
      %v3421 = vsel %vm3357, %v3325, %v3389
      %v3422 = vsel %vm3358, %v3326, %v3390
      %v3423 = vsel %vm3359, %v3327, %v3391
      %v3424 = vsel %vm3360, %v3328, %v3392
      %v3425 = vsel %vm3361, %v3329, %v3393
      %v3426 = vsel %vm3362, %v3330, %v3394
      %v3427 = vsel %vm3363, %v3331, %v3395
      %v3428 = vsel %vm3364, %v3332, %v3396
      %v3429 = vsel %vm3365, %v3333, %v3397
      %3430 = vst.msk [vmem:[%s292 + $0x1] sm:$0xff] %vm283, %v3398
      %3431 = vst.msk [vmem:[%s292 + $0x9] sm:$0xff] %vm283, %v3399
      %3432 = vst.msk [vmem:[%s292 + $0x19] sm:$0xff] %vm283, %v3400
      %3433 = vst.msk [vmem:[%s292 + $0x21] sm:$0xff] %vm283, %v3401
      %3434 = vst.msk [vmem:[%s292 + $0x31] sm:$0xff] %vm283, %v3402
      %3435 = vst.msk [vmem:[%s292 + $0x39] sm:$0xff] %vm283, %v3403
      %3436 = vst.msk [vmem:[%s292 + $0x49] sm:$0xff] %vm283, %v3404
      %3437 = vst.msk [vmem:[%s292 + $0x51] sm:$0xff] %vm283, %v3405
      %3438 = vst.msk [vmem:[%s292 + $0x61] sm:$0xff] %vm283, %v3406
      %3439 = vst.msk [vmem:[%s292 + $0x69] sm:$0xff] %vm283, %v3407
      %3440 = vst.msk [vmem:[%s292 + $0x79] sm:$0xff] %vm283, %v3408
      %3441 = vst.msk [vmem:[%s292 + $0x81] sm:$0xff] %vm283, %v3409
      %3442 = vst.msk [vmem:[%s292 + $0x91] sm:$0xff] %vm283, %v3410
      %3443 = vst.msk [vmem:[%s292 + $0x99] sm:$0xff] %vm283, %v3411
      %3444 = vst.msk [vmem:[%s292 + $0xa9] sm:$0xff] %vm283, %v3412
      %3445 = vst.msk [vmem:[%s292 + $0xb1] sm:$0xff] %vm283, %v3413
      %3446 = vst.msk [vmem:[%s292 + $0xc1] sm:$0xff] %vm283, %v3414
      %3447 = vst.msk [vmem:[%s292 + $0xc9] sm:$0xff] %vm283, %v3415
      %3448 = vst.msk [vmem:[%s292 + $0xd9] sm:$0xff] %vm283, %v3416
      %3449 = vst.msk [vmem:[%s292 + $0xe1] sm:$0xff] %vm283, %v3417
      %3450 = vst.msk [vmem:[%s292 + $0xf1] sm:$0xff] %vm283, %v3418
      %3451 = vst.msk [vmem:[%s292 + $0xf9] sm:$0xff] %vm283, %v3419
      %3452 = vst.msk [vmem:[%s292 + $0x109] sm:$0xff] %vm283, %v3420
      %3453 = vst.msk [vmem:[%s292 + $0x111] sm:$0xff] %vm283, %v3421
      %3454 = vst.msk [vmem:[%s292 + $0x121] sm:$0xff] %vm283, %v3422
      %3455 = vst.msk [vmem:[%s292 + $0x129] sm:$0xff] %vm283, %v3423
      %3456 = vst.msk [vmem:[%s292 + $0x139] sm:$0xff] %vm283, %v3424
      %3457 = vst.msk [vmem:[%s292 + $0x141] sm:$0xff] %vm283, %v3425
      %3458 = vst.msk [vmem:[%s292 + $0x151] sm:$0xff] %vm283, %v3426
      %3459 = vst.msk [vmem:[%s292 + $0x159] sm:$0xff] %vm283, %v3427
      %3460 = vst.msk [vmem:[%s292 + $0x169] sm:$0xff] %vm283, %v3428
      %3461 = vst.msk [vmem:[%s292 + $0x171] sm:$0xff] %vm283, %v3429
      %v3462 = vld [vmem:[#allocation2] sm:$0xff]
      %v3463 = vld [vmem:[#allocation2 + $0x8] sm:$0xff]
      %v3464 = vld [vmem:[#allocation2 + $0x18] sm:$0xff]
      %v3465 = vld [vmem:[#allocation2 + $0x20] sm:$0xff]
      %v3466 = vld [vmem:[#allocation2 + $0x30] sm:$0xff]
      %v3467 = vld [vmem:[#allocation2 + $0x38] sm:$0xff]
      %v3468 = vld [vmem:[#allocation2 + $0x48] sm:$0xff]
      %v3469 = vld [vmem:[#allocation2 + $0x50] sm:$0xff]
      %v3470 = vld [vmem:[#allocation2 + $0x60] sm:$0xff]
      %v3471 = vld [vmem:[#allocation2 + $0x68] sm:$0xff]
      %v3472 = vld [vmem:[#allocation2 + $0x78] sm:$0xff]
      %v3473 = vld [vmem:[#allocation2 + $0x80] sm:$0xff]
      %v3474 = vld [vmem:[#allocation2 + $0x90] sm:$0xff]
      %v3475 = vld [vmem:[#allocation2 + $0x98] sm:$0xff]
      %v3476 = vld [vmem:[#allocation2 + $0xa8] sm:$0xff]
      %v3477 = vld [vmem:[#allocation2 + $0xb0] sm:$0xff]
      %v3478 = vld [vmem:[#allocation2 + $0xc0] sm:$0xff]
      %v3479 = vld [vmem:[#allocation2 + $0xc8] sm:$0xff]
      %v3480 = vld [vmem:[#allocation2 + $0xd8] sm:$0xff]
      %v3481 = vld [vmem:[#allocation2 + $0xe0] sm:$0xff]
      %v3482 = vld [vmem:[#allocation2 + $0xf0] sm:$0xff]
      %v3483 = vld [vmem:[#allocation2 + $0xf8] sm:$0xff]
      %v3484 = vld [vmem:[#allocation2 + $0x108] sm:$0xff]
      %v3485 = vld [vmem:[#allocation2 + $0x110] sm:$0xff]
      %v3486 = vld [vmem:[#allocation2 + $0x120] sm:$0xff]
      %v3487 = vld [vmem:[#allocation2 + $0x128] sm:$0xff]
      %v3488 = vld [vmem:[#allocation2 + $0x138] sm:$0xff]
      %v3489 = vld [vmem:[#allocation2 + $0x140] sm:$0xff]
      %v3490 = vld [vmem:[#allocation2 + $0x150] sm:$0xff]
      %v3491 = vld [vmem:[#allocation2 + $0x158] sm:$0xff]
      %v3492 = vld [vmem:[#allocation2 + $0x168] sm:$0xff]
      %v3493 = vld [vmem:[#allocation2 + $0x170] sm:$0xff]
      %v3494 = vpack.c.bf16 %v3462, %v3462
      %v3495 = vpack.c.bf16 %v3463, %v3463
      %v3496 = vpack.c.bf16 %v3464, %v3464
      %v3497 = vpack.c.bf16 %v3465, %v3465
      %v3498 = vpack.c.bf16 %v3466, %v3466
      %v3499 = vpack.c.bf16 %v3467, %v3467
      %v3500 = vpack.c.bf16 %v3468, %v3468
      %v3501 = vpack.c.bf16 %v3469, %v3469
      %v3502 = vpack.c.bf16 %v3470, %v3470
      %v3503 = vpack.c.bf16 %v3471, %v3471
      %v3504 = vpack.c.bf16 %v3472, %v3472
      %v3505 = vpack.c.bf16 %v3473, %v3473
      %v3506 = vpack.c.bf16 %v3474, %v3474
      %v3507 = vpack.c.bf16 %v3475, %v3475
      %v3508 = vpack.c.bf16 %v3476, %v3476
      %v3509 = vpack.c.bf16 %v3477, %v3477
      %v3510 = vpack.c.bf16 %v3478, %v3478
      %v3511 = vpack.c.bf16 %v3479, %v3479
      %v3512 = vpack.c.bf16 %v3480, %v3480
      %v3513 = vpack.c.bf16 %v3481, %v3481
      %v3514 = vpack.c.bf16 %v3482, %v3482
      %v3515 = vpack.c.bf16 %v3483, %v3483
      %v3516 = vpack.c.bf16 %v3484, %v3484
      %v3517 = vpack.c.bf16 %v3485, %v3485
      %v3518 = vpack.c.bf16 %v3486, %v3486
      %v3519 = vpack.c.bf16 %v3487, %v3487
      %v3520 = vpack.c.bf16 %v3488, %v3488
      %v3521 = vpack.c.bf16 %v3489, %v3489
      %v3522 = vpack.c.bf16 %v3490, %v3490
      %v3523 = vpack.c.bf16 %v3491, %v3491
      %v3524 = vpack.c.bf16 %v3492, %v3492
      %v3525 = vpack.c.bf16 %v3493, %v3493
      %3526 = vst.msk [vmem:[#allocation3] sm:$0xf] %vm454, %v3494
      %3527 = vst.msk [vmem:[#allocation3 + $0x14] sm:$0xf] %vm454, %v3495
      %3528 = vst.msk [vmem:[#allocation3 + $0x28] sm:$0xf] %vm454, %v3496
      %3529 = vst.msk [vmem:[#allocation3 + $0x3c] sm:$0xf] %vm454, %v3497
      %3530 = vst.msk [vmem:[#allocation3 + $0x50] sm:$0xf] %vm454, %v3498
      %3531 = vst.msk [vmem:[#allocation3 + $0x64] sm:$0xf] %vm454, %v3499
      %3532 = vst.msk [vmem:[#allocation3 + $0x78] sm:$0xf] %vm454, %v3500
      %3533 = vst.msk [vmem:[#allocation3 + $0x8c] sm:$0xf] %vm454, %v3501
      %3534 = vst.msk [vmem:[#allocation3 + $0xa0] sm:$0xf] %vm454, %v3502
      %3535 = vst.msk [vmem:[#allocation3 + $0xb4] sm:$0xf] %vm454, %v3503
      %3536 = vst.msk [vmem:[#allocation3 + $0xc8] sm:$0xf] %vm454, %v3504
      %3537 = vst.msk [vmem:[#allocation3 + $0xdc] sm:$0xf] %vm454, %v3505
      %3538 = vst.msk [vmem:[#allocation3 + $0xf0] sm:$0xf] %vm454, %v3506
      %3539 = vst.msk [vmem:[#allocation3 + $0x104] sm:$0xf] %vm454, %v3507
      %3540 = vst.msk [vmem:[#allocation3 + $0x118] sm:$0xf] %vm454, %v3508
      %3541 = vst.msk [vmem:[#allocation3 + $0x12c] sm:$0xf] %vm454, %v3509
      %3542 = vst.msk [vmem:[#allocation3 + $0x140] sm:$0xf] %vm454, %v3510
      %3543 = vst.msk [vmem:[#allocation3 + $0x154] sm:$0xf] %vm454, %v3511
      %3544 = vst.msk [vmem:[#allocation3 + $0x168] sm:$0xf] %vm454, %v3512
      %3545 = vst.msk [vmem:[#allocation3 + $0x17c] sm:$0xf] %vm454, %v3513
      %3546 = vst.msk [vmem:[#allocation3 + $0x190] sm:$0xf] %vm454, %v3514
      %3547 = vst.msk [vmem:[#allocation3 + $0x1a4] sm:$0xf] %vm454, %v3515
      %3548 = vst.msk [vmem:[#allocation3 + $0x1b8] sm:$0xf] %vm454, %v3516
      %3549 = vst.msk [vmem:[#allocation3 + $0x1cc] sm:$0xf] %vm454, %v3517
      %3550 = vst.msk [vmem:[#allocation3 + $0x1e0] sm:$0xf] %vm454, %v3518
      %3551 = vst.msk [vmem:[#allocation3 + $0x1f4] sm:$0xf] %vm454, %v3519
      %3552 = vst.msk [vmem:[#allocation3 + $0x208] sm:$0xf] %vm454, %v3520
      %3553 = vst.msk [vmem:[#allocation3 + $0x21c] sm:$0xf] %vm454, %v3521
      %3554 = vst.msk [vmem:[#allocation3 + $0x230] sm:$0xf] %vm454, %v3522
      %3555 = vst.msk [vmem:[#allocation3 + $0x244] sm:$0xf] %vm454, %v3523
      %3556 = vst.msk [vmem:[#allocation3 + $0x258] sm:$0xf] %vm454, %v3524
      %3557 = vst.msk [vmem:[#allocation3 + $0x26c] sm:$0xf] %vm454, %v3525
      %v3558 = vld [vmem:[#allocation2 + $0x1] sm:$0xff]
      %v3559 = vld [vmem:[#allocation2 + $0x9] sm:$0xff]
      %v3560 = vld [vmem:[#allocation2 + $0x19] sm:$0xff]
      %v3561 = vld [vmem:[#allocation2 + $0x21] sm:$0xff]
      %v3562 = vld [vmem:[#allocation2 + $0x31] sm:$0xff]
      %v3563 = vld [vmem:[#allocation2 + $0x39] sm:$0xff]
      %v3564 = vld [vmem:[#allocation2 + $0x49] sm:$0xff]
      %v3565 = vld [vmem:[#allocation2 + $0x51] sm:$0xff]
      %v3566 = vld [vmem:[#allocation2 + $0x61] sm:$0xff]
      %v3567 = vld [vmem:[#allocation2 + $0x69] sm:$0xff]
      %v3568 = vld [vmem:[#allocation2 + $0x79] sm:$0xff]
      %v3569 = vld [vmem:[#allocation2 + $0x81] sm:$0xff]
      %v3570 = vld [vmem:[#allocation2 + $0x91] sm:$0xff]
      %v3571 = vld [vmem:[#allocation2 + $0x99] sm:$0xff]
      %v3572 = vld [vmem:[#allocation2 + $0xa9] sm:$0xff]
      %v3573 = vld [vmem:[#allocation2 + $0xb1] sm:$0xff]
      %v3574 = vld [vmem:[#allocation2 + $0xc1] sm:$0xff]
      %v3575 = vld [vmem:[#allocation2 + $0xc9] sm:$0xff]
      %v3576 = vld [vmem:[#allocation2 + $0xd9] sm:$0xff]
      %v3577 = vld [vmem:[#allocation2 + $0xe1] sm:$0xff]
      %v3578 = vld [vmem:[#allocation2 + $0xf1] sm:$0xff]
      %v3579 = vld [vmem:[#allocation2 + $0xf9] sm:$0xff]
      %v3580 = vld [vmem:[#allocation2 + $0x109] sm:$0xff]
      %v3581 = vld [vmem:[#allocation2 + $0x111] sm:$0xff]
      %v3582 = vld [vmem:[#allocation2 + $0x121] sm:$0xff]
      %v3583 = vld [vmem:[#allocation2 + $0x129] sm:$0xff]
      %v3584 = vld [vmem:[#allocation2 + $0x139] sm:$0xff]
      %v3585 = vld [vmem:[#allocation2 + $0x141] sm:$0xff]
      %v3586 = vld [vmem:[#allocation2 + $0x151] sm:$0xff]
      %v3587 = vld [vmem:[#allocation2 + $0x159] sm:$0xff]
      %v3588 = vld [vmem:[#allocation2 + $0x169] sm:$0xff]
      %v3589 = vld [vmem:[#allocation2 + $0x171] sm:$0xff]
      %v3590 = vpack.c.bf16 %v3558, %v3558
      %v3591 = vpack.c.bf16 %v3559, %v3559
      %v3592 = vpack.c.bf16 %v3560, %v3560
      %v3593 = vpack.c.bf16 %v3561, %v3561
      %v3594 = vpack.c.bf16 %v3562, %v3562
      %v3595 = vpack.c.bf16 %v3563, %v3563
      %v3596 = vpack.c.bf16 %v3564, %v3564
      %v3597 = vpack.c.bf16 %v3565, %v3565
      %v3598 = vpack.c.bf16 %v3566, %v3566
      %v3599 = vpack.c.bf16 %v3567, %v3567
      %v3600 = vpack.c.bf16 %v3568, %v3568
      %v3601 = vpack.c.bf16 %v3569, %v3569
      %v3602 = vpack.c.bf16 %v3570, %v3570
      %v3603 = vpack.c.bf16 %v3571, %v3571
      %v3604 = vpack.c.bf16 %v3572, %v3572
      %v3605 = vpack.c.bf16 %v3573, %v3573
      %v3606 = vpack.c.bf16 %v3574, %v3574
      %v3607 = vpack.c.bf16 %v3575, %v3575
      %v3608 = vpack.c.bf16 %v3576, %v3576
      %v3609 = vpack.c.bf16 %v3577, %v3577
      %v3610 = vpack.c.bf16 %v3578, %v3578
      %v3611 = vpack.c.bf16 %v3579, %v3579
      %v3612 = vpack.c.bf16 %v3580, %v3580
      %v3613 = vpack.c.bf16 %v3581, %v3581
      %v3614 = vpack.c.bf16 %v3582, %v3582
      %v3615 = vpack.c.bf16 %v3583, %v3583
      %v3616 = vpack.c.bf16 %v3584, %v3584
      %v3617 = vpack.c.bf16 %v3585, %v3585
      %v3618 = vpack.c.bf16 %v3586, %v3586
      %v3619 = vpack.c.bf16 %v3587, %v3587
      %v3620 = vpack.c.bf16 %v3588, %v3588
      %v3621 = vpack.c.bf16 %v3589, %v3589
      %3654 = vrot.lane.b32.xlu0 %v3590, 64
      %v3655 = vpop.permute.xlu0 %3654
      %3656 = vrot.lane.b32.xlu0 %v3591, 64
      %v3657 = vpop.permute.xlu0 %3656
      %3658 = vrot.lane.b32.xlu0 %v3592, 64
      %v3659 = vpop.permute.xlu0 %3658
      %3660 = vrot.lane.b32.xlu0 %v3593, 64
      %v3661 = vpop.permute.xlu0 %3660
      %3662 = vrot.lane.b32.xlu0 %v3594, 64
      %v3663 = vpop.permute.xlu0 %3662
      %3664 = vrot.lane.b32.xlu0 %v3595, 64
      %v3665 = vpop.permute.xlu0 %3664
      %3666 = vrot.lane.b32.xlu0 %v3596, 64
      %v3667 = vpop.permute.xlu0 %3666
      %3668 = vrot.lane.b32.xlu0 %v3597, 64
      %v3669 = vpop.permute.xlu0 %3668
      %3670 = vrot.lane.b32.xlu0 %v3598, 64
      %v3671 = vpop.permute.xlu0 %3670
      %3672 = vrot.lane.b32.xlu0 %v3599, 64
      %v3673 = vpop.permute.xlu0 %3672
      %3674 = vrot.lane.b32.xlu0 %v3600, 64
      %v3675 = vpop.permute.xlu0 %3674
      %3676 = vrot.lane.b32.xlu0 %v3601, 64
      %v3677 = vpop.permute.xlu0 %3676
      %3678 = vrot.lane.b32.xlu0 %v3602, 64
      %v3679 = vpop.permute.xlu0 %3678
      %3680 = vrot.lane.b32.xlu0 %v3603, 64
      %v3681 = vpop.permute.xlu0 %3680
      %3682 = vrot.lane.b32.xlu0 %v3604, 64
      %v3683 = vpop.permute.xlu0 %3682
      %3684 = vrot.lane.b32.xlu0 %v3605, 64
      %v3685 = vpop.permute.xlu0 %3684
      %3686 = vrot.lane.b32.xlu0 %v3606, 64
      %v3687 = vpop.permute.xlu0 %3686
      %3688 = vrot.lane.b32.xlu0 %v3607, 64
      %v3689 = vpop.permute.xlu0 %3688
      %3690 = vrot.lane.b32.xlu0 %v3608, 64
      %v3691 = vpop.permute.xlu0 %3690
      %3692 = vrot.lane.b32.xlu0 %v3609, 64
      %v3693 = vpop.permute.xlu0 %3692
      %3694 = vrot.lane.b32.xlu0 %v3610, 64
      %v3695 = vpop.permute.xlu0 %3694
      %3696 = vrot.lane.b32.xlu0 %v3611, 64
      %v3697 = vpop.permute.xlu0 %3696
      %3698 = vrot.lane.b32.xlu0 %v3612, 64
      %v3699 = vpop.permute.xlu0 %3698
      %3700 = vrot.lane.b32.xlu0 %v3613, 64
      %v3701 = vpop.permute.xlu0 %3700
      %3702 = vrot.lane.b32.xlu0 %v3614, 64
      %v3703 = vpop.permute.xlu0 %3702
      %3704 = vrot.lane.b32.xlu0 %v3615, 64
      %v3705 = vpop.permute.xlu0 %3704
      %3706 = vrot.lane.b32.xlu0 %v3616, 64
      %v3707 = vpop.permute.xlu0 %3706
      %3708 = vrot.lane.b32.xlu0 %v3617, 64
      %v3709 = vpop.permute.xlu0 %3708
      %3710 = vrot.lane.b32.xlu0 %v3618, 64
      %v3711 = vpop.permute.xlu0 %3710
      %3712 = vrot.lane.b32.xlu0 %v3619, 64
      %v3713 = vpop.permute.xlu0 %3712
      %3714 = vrot.lane.b32.xlu0 %v3620, 64
      %v3715 = vpop.permute.xlu0 %3714
      %3716 = vrot.lane.b32.xlu0 %v3621, 64
      %v3717 = vpop.permute.xlu0 %3716
      %3750 = vst.msk [vmem:[#allocation3] sm:$0xf] %vm679, %v3655
      %3751 = vst.msk [vmem:[#allocation3 + $0x14] sm:$0xf] %vm679, %v3657
      %3752 = vst.msk [vmem:[#allocation3 + $0x28] sm:$0xf] %vm679, %v3659
      %3753 = vst.msk [vmem:[#allocation3 + $0x3c] sm:$0xf] %vm679, %v3661
      %3754 = vst.msk [vmem:[#allocation3 + $0x50] sm:$0xf] %vm679, %v3663
      %3755 = vst.msk [vmem:[#allocation3 + $0x64] sm:$0xf] %vm679, %v3665
      %3756 = vst.msk [vmem:[#allocation3 + $0x78] sm:$0xf] %vm679, %v3667
      %3757 = vst.msk [vmem:[#allocation3 + $0x8c] sm:$0xf] %vm679, %v3669
      %3758 = vst.msk [vmem:[#allocation3 + $0xa0] sm:$0xf] %vm679, %v3671
      %3759 = vst.msk [vmem:[#allocation3 + $0xb4] sm:$0xf] %vm679, %v3673
      %3760 = vst.msk [vmem:[#allocation3 + $0xc8] sm:$0xf] %vm679, %v3675
      %3761 = vst.msk [vmem:[#allocation3 + $0xdc] sm:$0xf] %vm679, %v3677
      %3762 = vst.msk [vmem:[#allocation3 + $0xf0] sm:$0xf] %vm679, %v3679
      %3763 = vst.msk [vmem:[#allocation3 + $0x104] sm:$0xf] %vm679, %v3681
      %3764 = vst.msk [vmem:[#allocation3 + $0x118] sm:$0xf] %vm679, %v3683
      %3765 = vst.msk [vmem:[#allocation3 + $0x12c] sm:$0xf] %vm679, %v3685
      %3766 = vst.msk [vmem:[#allocation3 + $0x140] sm:$0xf] %vm679, %v3687
      %3767 = vst.msk [vmem:[#allocation3 + $0x154] sm:$0xf] %vm679, %v3689
      %3768 = vst.msk [vmem:[#allocation3 + $0x168] sm:$0xf] %vm679, %v3691
      %3769 = vst.msk [vmem:[#allocation3 + $0x17c] sm:$0xf] %vm679, %v3693
      %3770 = vst.msk [vmem:[#allocation3 + $0x190] sm:$0xf] %vm679, %v3695
      %3771 = vst.msk [vmem:[#allocation3 + $0x1a4] sm:$0xf] %vm679, %v3697
      %3772 = vst.msk [vmem:[#allocation3 + $0x1b8] sm:$0xf] %vm679, %v3699
      %3773 = vst.msk [vmem:[#allocation3 + $0x1cc] sm:$0xf] %vm679, %v3701
      %3774 = vst.msk [vmem:[#allocation3 + $0x1e0] sm:$0xf] %vm679, %v3703
      %3775 = vst.msk [vmem:[#allocation3 + $0x1f4] sm:$0xf] %vm679, %v3705
      %3776 = vst.msk [vmem:[#allocation3 + $0x208] sm:$0xf] %vm679, %v3707
      %3777 = vst.msk [vmem:[#allocation3 + $0x21c] sm:$0xf] %vm679, %v3709
      %3778 = vst.msk [vmem:[#allocation3 + $0x230] sm:$0xf] %vm679, %v3711
      %3779 = vst.msk [vmem:[#allocation3 + $0x244] sm:$0xf] %vm679, %v3713
      %3780 = vst.msk [vmem:[#allocation3 + $0x258] sm:$0xf] %vm679, %v3715
      %3781 = vst.msk [vmem:[#allocation3 + $0x26c] sm:$0xf] %vm679, %v3717
      %v3782 = vld [vmem:[#allocation2 + $0x2] sm:$0xff]
      %v3783 = vld [vmem:[#allocation2 + $0xa] sm:$0xff]
      %v3784 = vld [vmem:[#allocation2 + $0x1a] sm:$0xff]
      %v3785 = vld [vmem:[#allocation2 + $0x22] sm:$0xff]
      %v3786 = vld [vmem:[#allocation2 + $0x32] sm:$0xff]
      %v3787 = vld [vmem:[#allocation2 + $0x3a] sm:$0xff]
      %v3788 = vld [vmem:[#allocation2 + $0x4a] sm:$0xff]
      %v3789 = vld [vmem:[#allocation2 + $0x52] sm:$0xff]
      %v3790 = vld [vmem:[#allocation2 + $0x62] sm:$0xff]
      %v3791 = vld [vmem:[#allocation2 + $0x6a] sm:$0xff]
      %v3792 = vld [vmem:[#allocation2 + $0x7a] sm:$0xff]
      %v3793 = vld [vmem:[#allocation2 + $0x82] sm:$0xff]
      %v3794 = vld [vmem:[#allocation2 + $0x92] sm:$0xff]
      %v3795 = vld [vmem:[#allocation2 + $0x9a] sm:$0xff]
      %v3796 = vld [vmem:[#allocation2 + $0xaa] sm:$0xff]
      %v3797 = vld [vmem:[#allocation2 + $0xb2] sm:$0xff]
      %v3798 = vld [vmem:[#allocation2 + $0xc2] sm:$0xff]
      %v3799 = vld [vmem:[#allocation2 + $0xca] sm:$0xff]
      %v3800 = vld [vmem:[#allocation2 + $0xda] sm:$0xff]
      %v3801 = vld [vmem:[#allocation2 + $0xe2] sm:$0xff]
      %v3802 = vld [vmem:[#allocation2 + $0xf2] sm:$0xff]
      %v3803 = vld [vmem:[#allocation2 + $0xfa] sm:$0xff]
      %v3804 = vld [vmem:[#allocation2 + $0x10a] sm:$0xff]
      %v3805 = vld [vmem:[#allocation2 + $0x112] sm:$0xff]
      %v3806 = vld [vmem:[#allocation2 + $0x122] sm:$0xff]
      %v3807 = vld [vmem:[#allocation2 + $0x12a] sm:$0xff]
      %v3808 = vld [vmem:[#allocation2 + $0x13a] sm:$0xff]
      %v3809 = vld [vmem:[#allocation2 + $0x142] sm:$0xff]
      %v3810 = vld [vmem:[#allocation2 + $0x152] sm:$0xff]
      %v3811 = vld [vmem:[#allocation2 + $0x15a] sm:$0xff]
      %v3812 = vld [vmem:[#allocation2 + $0x16a] sm:$0xff]
      %v3813 = vld [vmem:[#allocation2 + $0x172] sm:$0xff]
      %v3814 = vpack.c.bf16 %v3782, %v3782
      %v3815 = vpack.c.bf16 %v3783, %v3783
      %v3816 = vpack.c.bf16 %v3784, %v3784
      %v3817 = vpack.c.bf16 %v3785, %v3785
      %v3818 = vpack.c.bf16 %v3786, %v3786
      %v3819 = vpack.c.bf16 %v3787, %v3787
      %v3820 = vpack.c.bf16 %v3788, %v3788
      %v3821 = vpack.c.bf16 %v3789, %v3789
      %v3822 = vpack.c.bf16 %v3790, %v3790
      %v3823 = vpack.c.bf16 %v3791, %v3791
      %v3824 = vpack.c.bf16 %v3792, %v3792
      %v3825 = vpack.c.bf16 %v3793, %v3793
      %v3826 = vpack.c.bf16 %v3794, %v3794
      %v3827 = vpack.c.bf16 %v3795, %v3795
      %v3828 = vpack.c.bf16 %v3796, %v3796
      %v3829 = vpack.c.bf16 %v3797, %v3797
      %v3830 = vpack.c.bf16 %v3798, %v3798
      %v3831 = vpack.c.bf16 %v3799, %v3799
      %v3832 = vpack.c.bf16 %v3800, %v3800
      %v3833 = vpack.c.bf16 %v3801, %v3801
      %v3834 = vpack.c.bf16 %v3802, %v3802
      %v3835 = vpack.c.bf16 %v3803, %v3803
      %v3836 = vpack.c.bf16 %v3804, %v3804
      %v3837 = vpack.c.bf16 %v3805, %v3805
      %v3838 = vpack.c.bf16 %v3806, %v3806
      %v3839 = vpack.c.bf16 %v3807, %v3807
      %v3840 = vpack.c.bf16 %v3808, %v3808
      %v3841 = vpack.c.bf16 %v3809, %v3809
      %v3842 = vpack.c.bf16 %v3810, %v3810
      %v3843 = vpack.c.bf16 %v3811, %v3811
      %v3844 = vpack.c.bf16 %v3812, %v3812
      %v3845 = vpack.c.bf16 %v3813, %v3813
      %3846 = vst.msk [vmem:[#allocation3 + $0x4] sm:$0xf] %vm454, %v3814
      %3847 = vst.msk [vmem:[#allocation3 + $0x18] sm:$0xf] %vm454, %v3815
      %3848 = vst.msk [vmem:[#allocation3 + $0x2c] sm:$0xf] %vm454, %v3816
      %3849 = vst.msk [vmem:[#allocation3 + $0x40] sm:$0xf] %vm454, %v3817
      %3850 = vst.msk [vmem:[#allocation3 + $0x54] sm:$0xf] %vm454, %v3818
      %3851 = vst.msk [vmem:[#allocation3 + $0x68] sm:$0xf] %vm454, %v3819
      %3852 = vst.msk [vmem:[#allocation3 + $0x7c] sm:$0xf] %vm454, %v3820
      %3853 = vst.msk [vmem:[#allocation3 + $0x90] sm:$0xf] %vm454, %v3821
      %3854 = vst.msk [vmem:[#allocation3 + $0xa4] sm:$0xf] %vm454, %v3822
      %3855 = vst.msk [vmem:[#allocation3 + $0xb8] sm:$0xf] %vm454, %v3823
      %3856 = vst.msk [vmem:[#allocation3 + $0xcc] sm:$0xf] %vm454, %v3824
      %3857 = vst.msk [vmem:[#allocation3 + $0xe0] sm:$0xf] %vm454, %v3825
      %3858 = vst.msk [vmem:[#allocation3 + $0xf4] sm:$0xf] %vm454, %v3826
      %3859 = vst.msk [vmem:[#allocation3 + $0x108] sm:$0xf] %vm454, %v3827
      %3860 = vst.msk [vmem:[#allocation3 + $0x11c] sm:$0xf] %vm454, %v3828
      %3861 = vst.msk [vmem:[#allocation3 + $0x130] sm:$0xf] %vm454, %v3829
      %3862 = vst.msk [vmem:[#allocation3 + $0x144] sm:$0xf] %vm454, %v3830
      %3863 = vst.msk [vmem:[#allocation3 + $0x158] sm:$0xf] %vm454, %v3831
      %3864 = vst.msk [vmem:[#allocation3 + $0x16c] sm:$0xf] %vm454, %v3832
      %3865 = vst.msk [vmem:[#allocation3 + $0x180] sm:$0xf] %vm454, %v3833
      %3866 = vst.msk [vmem:[#allocation3 + $0x194] sm:$0xf] %vm454, %v3834
      %3867 = vst.msk [vmem:[#allocation3 + $0x1a8] sm:$0xf] %vm454, %v3835
      %3868 = vst.msk [vmem:[#allocation3 + $0x1bc] sm:$0xf] %vm454, %v3836
      %3869 = vst.msk [vmem:[#allocation3 + $0x1d0] sm:$0xf] %vm454, %v3837
      %3870 = vst.msk [vmem:[#allocation3 + $0x1e4] sm:$0xf] %vm454, %v3838
      %3871 = vst.msk [vmem:[#allocation3 + $0x1f8] sm:$0xf] %vm454, %v3839
      %3872 = vst.msk [vmem:[#allocation3 + $0x20c] sm:$0xf] %vm454, %v3840
      %3873 = vst.msk [vmem:[#allocation3 + $0x220] sm:$0xf] %vm454, %v3841
      %3874 = vst.msk [vmem:[#allocation3 + $0x234] sm:$0xf] %vm454, %v3842
      %3875 = vst.msk [vmem:[#allocation3 + $0x248] sm:$0xf] %vm454, %v3843
      %3876 = vst.msk [vmem:[#allocation3 + $0x25c] sm:$0xf] %vm454, %v3844
      %3877 = vst.msk [vmem:[#allocation3 + $0x270] sm:$0xf] %vm454, %v3845
      %v3878 = vld [vmem:[%s292] sm:$0xff]
      %v3879 = vld [vmem:[%s292 + $0x8] sm:$0xff]
      %v3880 = vld [vmem:[%s292 + $0x18] sm:$0xff]
      %v3881 = vld [vmem:[%s292 + $0x20] sm:$0xff]
      %v3882 = vld [vmem:[%s292 + $0x30] sm:$0xff]
      %v3883 = vld [vmem:[%s292 + $0x38] sm:$0xff]
      %v3884 = vld [vmem:[%s292 + $0x48] sm:$0xff]
      %v3885 = vld [vmem:[%s292 + $0x50] sm:$0xff]
      %v3886 = vld [vmem:[%s292 + $0x60] sm:$0xff]
      %v3887 = vld [vmem:[%s292 + $0x68] sm:$0xff]
      %v3888 = vld [vmem:[%s292 + $0x78] sm:$0xff]
      %v3889 = vld [vmem:[%s292 + $0x80] sm:$0xff]
      %v3890 = vld [vmem:[%s292 + $0x90] sm:$0xff]
      %v3891 = vld [vmem:[%s292 + $0x98] sm:$0xff]
      %v3892 = vld [vmem:[%s292 + $0xa8] sm:$0xff]
      %v3893 = vld [vmem:[%s292 + $0xb0] sm:$0xff]
      %v3894 = vld [vmem:[%s292 + $0xc0] sm:$0xff]
      %v3895 = vld [vmem:[%s292 + $0xc8] sm:$0xff]
      %v3896 = vld [vmem:[%s292 + $0xd8] sm:$0xff]
      %v3897 = vld [vmem:[%s292 + $0xe0] sm:$0xff]
      %v3898 = vld [vmem:[%s292 + $0xf0] sm:$0xff]
      %v3899 = vld [vmem:[%s292 + $0xf8] sm:$0xff]
      %v3900 = vld [vmem:[%s292 + $0x108] sm:$0xff]
      %v3901 = vld [vmem:[%s292 + $0x110] sm:$0xff]
      %v3902 = vld [vmem:[%s292 + $0x120] sm:$0xff]
      %v3903 = vld [vmem:[%s292 + $0x128] sm:$0xff]
      %v3904 = vld [vmem:[%s292 + $0x138] sm:$0xff]
      %v3905 = vld [vmem:[%s292 + $0x140] sm:$0xff]
      %v3906 = vld [vmem:[%s292 + $0x150] sm:$0xff]
      %v3907 = vld [vmem:[%s292 + $0x158] sm:$0xff]
      %v3908 = vld [vmem:[%s292 + $0x168] sm:$0xff]
      %v3909 = vld [vmem:[%s292 + $0x170] sm:$0xff]
      %v3910 = vpack.c.bf16 %v3878, %v3878
      %v3911 = vpack.c.bf16 %v3879, %v3879
      %v3912 = vpack.c.bf16 %v3880, %v3880
      %v3913 = vpack.c.bf16 %v3881, %v3881
      %v3914 = vpack.c.bf16 %v3882, %v3882
      %v3915 = vpack.c.bf16 %v3883, %v3883
      %v3916 = vpack.c.bf16 %v3884, %v3884
      %v3917 = vpack.c.bf16 %v3885, %v3885
      %v3918 = vpack.c.bf16 %v3886, %v3886
      %v3919 = vpack.c.bf16 %v3887, %v3887
      %v3920 = vpack.c.bf16 %v3888, %v3888
      %v3921 = vpack.c.bf16 %v3889, %v3889
      %v3922 = vpack.c.bf16 %v3890, %v3890
      %v3923 = vpack.c.bf16 %v3891, %v3891
      %v3924 = vpack.c.bf16 %v3892, %v3892
      %v3925 = vpack.c.bf16 %v3893, %v3893
      %v3926 = vpack.c.bf16 %v3894, %v3894
      %v3927 = vpack.c.bf16 %v3895, %v3895
      %v3928 = vpack.c.bf16 %v3896, %v3896
      %v3929 = vpack.c.bf16 %v3897, %v3897
      %v3930 = vpack.c.bf16 %v3898, %v3898
      %v3931 = vpack.c.bf16 %v3899, %v3899
      %v3932 = vpack.c.bf16 %v3900, %v3900
      %v3933 = vpack.c.bf16 %v3901, %v3901
      %v3934 = vpack.c.bf16 %v3902, %v3902
      %v3935 = vpack.c.bf16 %v3903, %v3903
      %v3936 = vpack.c.bf16 %v3904, %v3904
      %v3937 = vpack.c.bf16 %v3905, %v3905
      %v3938 = vpack.c.bf16 %v3906, %v3906
      %v3939 = vpack.c.bf16 %v3907, %v3907
      %v3940 = vpack.c.bf16 %v3908, %v3908
      %v3941 = vpack.c.bf16 %v3909, %v3909
      %3974 = vrot.lane.b32.xlu0 %v3910, 64
      %v3975 = vpop.permute.xlu0 %3974
      %3976 = vrot.lane.b32.xlu0 %v3911, 64
      %v3977 = vpop.permute.xlu0 %3976
      %3978 = vrot.lane.b32.xlu0 %v3912, 64
      %v3979 = vpop.permute.xlu0 %3978
      %3980 = vrot.lane.b32.xlu0 %v3913, 64
      %v3981 = vpop.permute.xlu0 %3980
      %3982 = vrot.lane.b32.xlu0 %v3914, 64
      %v3983 = vpop.permute.xlu0 %3982
      %3984 = vrot.lane.b32.xlu0 %v3915, 64
      %v3985 = vpop.permute.xlu0 %3984
      %3986 = vrot.lane.b32.xlu0 %v3916, 64
      %v3987 = vpop.permute.xlu0 %3986
      %3988 = vrot.lane.b32.xlu0 %v3917, 64
      %v3989 = vpop.permute.xlu0 %3988
      %3990 = vrot.lane.b32.xlu0 %v3918, 64
      %v3991 = vpop.permute.xlu0 %3990
      %3992 = vrot.lane.b32.xlu0 %v3919, 64
      %v3993 = vpop.permute.xlu0 %3992
      %3994 = vrot.lane.b32.xlu0 %v3920, 64
      %v3995 = vpop.permute.xlu0 %3994
      %3996 = vrot.lane.b32.xlu0 %v3921, 64
      %v3997 = vpop.permute.xlu0 %3996
      %3998 = vrot.lane.b32.xlu0 %v3922, 64
      %v3999 = vpop.permute.xlu0 %3998
      %4000 = vrot.lane.b32.xlu0 %v3923, 64
      %v4001 = vpop.permute.xlu0 %4000
      %4002 = vrot.lane.b32.xlu0 %v3924, 64
      %v4003 = vpop.permute.xlu0 %4002
      %4004 = vrot.lane.b32.xlu0 %v3925, 64
      %v4005 = vpop.permute.xlu0 %4004
      %4006 = vrot.lane.b32.xlu0 %v3926, 64
      %v4007 = vpop.permute.xlu0 %4006
      %4008 = vrot.lane.b32.xlu0 %v3927, 64
      %v4009 = vpop.permute.xlu0 %4008
      %4010 = vrot.lane.b32.xlu0 %v3928, 64
      %v4011 = vpop.permute.xlu0 %4010
      %4012 = vrot.lane.b32.xlu0 %v3929, 64
      %v4013 = vpop.permute.xlu0 %4012
      %4014 = vrot.lane.b32.xlu0 %v3930, 64
      %v4015 = vpop.permute.xlu0 %4014
      %4016 = vrot.lane.b32.xlu0 %v3931, 64
      %v4017 = vpop.permute.xlu0 %4016
      %4018 = vrot.lane.b32.xlu0 %v3932, 64
      %v4019 = vpop.permute.xlu0 %4018
      %4020 = vrot.lane.b32.xlu0 %v3933, 64
      %v4021 = vpop.permute.xlu0 %4020
      %4022 = vrot.lane.b32.xlu0 %v3934, 64
      %v4023 = vpop.permute.xlu0 %4022
      %4024 = vrot.lane.b32.xlu0 %v3935, 64
      %v4025 = vpop.permute.xlu0 %4024
      %4026 = vrot.lane.b32.xlu0 %v3936, 64
      %v4027 = vpop.permute.xlu0 %4026
      %4028 = vrot.lane.b32.xlu0 %v3937, 64
      %v4029 = vpop.permute.xlu0 %4028
      %4030 = vrot.lane.b32.xlu0 %v3938, 64
      %v4031 = vpop.permute.xlu0 %4030
      %4032 = vrot.lane.b32.xlu0 %v3939, 64
      %v4033 = vpop.permute.xlu0 %4032
      %4034 = vrot.lane.b32.xlu0 %v3940, 64
      %v4035 = vpop.permute.xlu0 %4034
      %4036 = vrot.lane.b32.xlu0 %v3941, 64
      %v4037 = vpop.permute.xlu0 %4036
      %4070 = vst.msk [vmem:[#allocation3 + $0x4] sm:$0xf] %vm679, %v3975
      %4071 = vst.msk [vmem:[#allocation3 + $0x18] sm:$0xf] %vm679, %v3977
      %4072 = vst.msk [vmem:[#allocation3 + $0x2c] sm:$0xf] %vm679, %v3979
      %4073 = vst.msk [vmem:[#allocation3 + $0x40] sm:$0xf] %vm679, %v3981
      %4074 = vst.msk [vmem:[#allocation3 + $0x54] sm:$0xf] %vm679, %v3983
      %4075 = vst.msk [vmem:[#allocation3 + $0x68] sm:$0xf] %vm679, %v3985
      %4076 = vst.msk [vmem:[#allocation3 + $0x7c] sm:$0xf] %vm679, %v3987
      %4077 = vst.msk [vmem:[#allocation3 + $0x90] sm:$0xf] %vm679, %v3989
      %4078 = vst.msk [vmem:[#allocation3 + $0xa4] sm:$0xf] %vm679, %v3991
      %4079 = vst.msk [vmem:[#allocation3 + $0xb8] sm:$0xf] %vm679, %v3993
      %4080 = vst.msk [vmem:[#allocation3 + $0xcc] sm:$0xf] %vm679, %v3995
      %4081 = vst.msk [vmem:[#allocation3 + $0xe0] sm:$0xf] %vm679, %v3997
      %4082 = vst.msk [vmem:[#allocation3 + $0xf4] sm:$0xf] %vm679, %v3999
      %4083 = vst.msk [vmem:[#allocation3 + $0x108] sm:$0xf] %vm679, %v4001
      %4084 = vst.msk [vmem:[#allocation3 + $0x11c] sm:$0xf] %vm679, %v4003
      %4085 = vst.msk [vmem:[#allocation3 + $0x130] sm:$0xf] %vm679, %v4005
      %4086 = vst.msk [vmem:[#allocation3 + $0x144] sm:$0xf] %vm679, %v4007
      %4087 = vst.msk [vmem:[#allocation3 + $0x158] sm:$0xf] %vm679, %v4009
      %4088 = vst.msk [vmem:[#allocation3 + $0x16c] sm:$0xf] %vm679, %v4011
      %4089 = vst.msk [vmem:[#allocation3 + $0x180] sm:$0xf] %vm679, %v4013
      %4090 = vst.msk [vmem:[#allocation3 + $0x194] sm:$0xf] %vm679, %v4015
      %4091 = vst.msk [vmem:[#allocation3 + $0x1a8] sm:$0xf] %vm679, %v4017
      %4092 = vst.msk [vmem:[#allocation3 + $0x1bc] sm:$0xf] %vm679, %v4019
      %4093 = vst.msk [vmem:[#allocation3 + $0x1d0] sm:$0xf] %vm679, %v4021
      %4094 = vst.msk [vmem:[#allocation3 + $0x1e4] sm:$0xf] %vm679, %v4023
      %4095 = vst.msk [vmem:[#allocation3 + $0x1f8] sm:$0xf] %vm679, %v4025
      %4096 = vst.msk [vmem:[#allocation3 + $0x20c] sm:$0xf] %vm679, %v4027
      %4097 = vst.msk [vmem:[#allocation3 + $0x220] sm:$0xf] %vm679, %v4029
      %4098 = vst.msk [vmem:[#allocation3 + $0x234] sm:$0xf] %vm679, %v4031
      %4099 = vst.msk [vmem:[#allocation3 + $0x248] sm:$0xf] %vm679, %v4033
      %4100 = vst.msk [vmem:[#allocation3 + $0x25c] sm:$0xf] %vm679, %v4035
      %4101 = vst.msk [vmem:[#allocation3 + $0x270] sm:$0xf] %vm679, %v4037
      %v4102 = vld [vmem:[%s292 + $0x1] sm:$0xff]
      %v4103 = vld [vmem:[%s292 + $0x9] sm:$0xff]
      %v4104 = vld [vmem:[%s292 + $0x19] sm:$0xff]
      %v4105 = vld [vmem:[%s292 + $0x21] sm:$0xff]
      %v4106 = vld [vmem:[%s292 + $0x31] sm:$0xff]
      %v4107 = vld [vmem:[%s292 + $0x39] sm:$0xff]
      %v4108 = vld [vmem:[%s292 + $0x49] sm:$0xff]
      %v4109 = vld [vmem:[%s292 + $0x51] sm:$0xff]
      %v4110 = vld [vmem:[%s292 + $0x61] sm:$0xff]
      %v4111 = vld [vmem:[%s292 + $0x69] sm:$0xff]
      %v4112 = vld [vmem:[%s292 + $0x79] sm:$0xff]
      %v4113 = vld [vmem:[%s292 + $0x81] sm:$0xff]
      %v4114 = vld [vmem:[%s292 + $0x91] sm:$0xff]
      %v4115 = vld [vmem:[%s292 + $0x99] sm:$0xff]
      %v4116 = vld [vmem:[%s292 + $0xa9] sm:$0xff]
      %v4117 = vld [vmem:[%s292 + $0xb1] sm:$0xff]
      %v4118 = vld [vmem:[%s292 + $0xc1] sm:$0xff]
      %v4119 = vld [vmem:[%s292 + $0xc9] sm:$0xff]
      %v4120 = vld [vmem:[%s292 + $0xd9] sm:$0xff]
      %v4121 = vld [vmem:[%s292 + $0xe1] sm:$0xff]
      %v4122 = vld [vmem:[%s292 + $0xf1] sm:$0xff]
      %v4123 = vld [vmem:[%s292 + $0xf9] sm:$0xff]
      %v4124 = vld [vmem:[%s292 + $0x109] sm:$0xff]
      %v4125 = vld [vmem:[%s292 + $0x111] sm:$0xff]
      %v4126 = vld [vmem:[%s292 + $0x121] sm:$0xff]
      %v4127 = vld [vmem:[%s292 + $0x129] sm:$0xff]
      %v4128 = vld [vmem:[%s292 + $0x139] sm:$0xff]
      %v4129 = vld [vmem:[%s292 + $0x141] sm:$0xff]
      %v4130 = vld [vmem:[%s292 + $0x151] sm:$0xff]
      %v4131 = vld [vmem:[%s292 + $0x159] sm:$0xff]
      %v4132 = vld [vmem:[%s292 + $0x169] sm:$0xff]
      %v4133 = vld [vmem:[%s292 + $0x171] sm:$0xff]
      %v4134 = vpack.c.bf16 %v4102, %v4102
      %v4135 = vpack.c.bf16 %v4103, %v4103
      %v4136 = vpack.c.bf16 %v4104, %v4104
      %v4137 = vpack.c.bf16 %v4105, %v4105
      %v4138 = vpack.c.bf16 %v4106, %v4106
      %v4139 = vpack.c.bf16 %v4107, %v4107
      %v4140 = vpack.c.bf16 %v4108, %v4108
      %v4141 = vpack.c.bf16 %v4109, %v4109
      %v4142 = vpack.c.bf16 %v4110, %v4110
      %v4143 = vpack.c.bf16 %v4111, %v4111
      %v4144 = vpack.c.bf16 %v4112, %v4112
      %v4145 = vpack.c.bf16 %v4113, %v4113
      %v4146 = vpack.c.bf16 %v4114, %v4114
      %v4147 = vpack.c.bf16 %v4115, %v4115
      %v4148 = vpack.c.bf16 %v4116, %v4116
      %v4149 = vpack.c.bf16 %v4117, %v4117
      %v4150 = vpack.c.bf16 %v4118, %v4118
      %v4151 = vpack.c.bf16 %v4119, %v4119
      %v4152 = vpack.c.bf16 %v4120, %v4120
      %v4153 = vpack.c.bf16 %v4121, %v4121
      %v4154 = vpack.c.bf16 %v4122, %v4122
      %v4155 = vpack.c.bf16 %v4123, %v4123
      %v4156 = vpack.c.bf16 %v4124, %v4124
      %v4157 = vpack.c.bf16 %v4125, %v4125
      %v4158 = vpack.c.bf16 %v4126, %v4126
      %v4159 = vpack.c.bf16 %v4127, %v4127
      %v4160 = vpack.c.bf16 %v4128, %v4128
      %v4161 = vpack.c.bf16 %v4129, %v4129
      %v4162 = vpack.c.bf16 %v4130, %v4130
      %v4163 = vpack.c.bf16 %v4131, %v4131
      %v4164 = vpack.c.bf16 %v4132, %v4132
      %v4165 = vpack.c.bf16 %v4133, %v4133
      %4166 = vst.msk [vmem:[#allocation3 + $0x8] sm:$0xf] %vm454, %v4134
      %4167 = vst.msk [vmem:[#allocation3 + $0x1c] sm:$0xf] %vm454, %v4135
      %4168 = vst.msk [vmem:[#allocation3 + $0x30] sm:$0xf] %vm454, %v4136
      %4169 = vst.msk [vmem:[#allocation3 + $0x44] sm:$0xf] %vm454, %v4137
      %4170 = vst.msk [vmem:[#allocation3 + $0x58] sm:$0xf] %vm454, %v4138
      %4171 = vst.msk [vmem:[#allocation3 + $0x6c] sm:$0xf] %vm454, %v4139
      %4172 = vst.msk [vmem:[#allocation3 + $0x80] sm:$0xf] %vm454, %v4140
      %4173 = vst.msk [vmem:[#allocation3 + $0x94] sm:$0xf] %vm454, %v4141
      %4174 = vst.msk [vmem:[#allocation3 + $0xa8] sm:$0xf] %vm454, %v4142
      %4175 = vst.msk [vmem:[#allocation3 + $0xbc] sm:$0xf] %vm454, %v4143
      %4176 = vst.msk [vmem:[#allocation3 + $0xd0] sm:$0xf] %vm454, %v4144
      %4177 = vst.msk [vmem:[#allocation3 + $0xe4] sm:$0xf] %vm454, %v4145
      %4178 = vst.msk [vmem:[#allocation3 + $0xf8] sm:$0xf] %vm454, %v4146
      %4179 = vst.msk [vmem:[#allocation3 + $0x10c] sm:$0xf] %vm454, %v4147
      %4180 = vst.msk [vmem:[#allocation3 + $0x120] sm:$0xf] %vm454, %v4148
      %4181 = vst.msk [vmem:[#allocation3 + $0x134] sm:$0xf] %vm454, %v4149
      %4182 = vst.msk [vmem:[#allocation3 + $0x148] sm:$0xf] %vm454, %v4150
      %4183 = vst.msk [vmem:[#allocation3 + $0x15c] sm:$0xf] %vm454, %v4151
      %4184 = vst.msk [vmem:[#allocation3 + $0x170] sm:$0xf] %vm454, %v4152
      %4185 = vst.msk [vmem:[#allocation3 + $0x184] sm:$0xf] %vm454, %v4153
      %4186 = vst.msk [vmem:[#allocation3 + $0x198] sm:$0xf] %vm454, %v4154
      %4187 = vst.msk [vmem:[#allocation3 + $0x1ac] sm:$0xf] %vm454, %v4155
      %4188 = vst.msk [vmem:[#allocation3 + $0x1c0] sm:$0xf] %vm454, %v4156
      %4189 = vst.msk [vmem:[#allocation3 + $0x1d4] sm:$0xf] %vm454, %v4157
      %4190 = vst.msk [vmem:[#allocation3 + $0x1e8] sm:$0xf] %vm454, %v4158
      %4191 = vst.msk [vmem:[#allocation3 + $0x1fc] sm:$0xf] %vm454, %v4159
      %4192 = vst.msk [vmem:[#allocation3 + $0x210] sm:$0xf] %vm454, %v4160
      %4193 = vst.msk [vmem:[#allocation3 + $0x224] sm:$0xf] %vm454, %v4161
      %4194 = vst.msk [vmem:[#allocation3 + $0x238] sm:$0xf] %vm454, %v4162
      %4195 = vst.msk [vmem:[#allocation3 + $0x24c] sm:$0xf] %vm454, %v4163
      %4196 = vst.msk [vmem:[#allocation3 + $0x260] sm:$0xf] %vm454, %v4164
      %4197 = vst.msk [vmem:[#allocation3 + $0x274] sm:$0xf] %vm454, %v4165
      %v4198 = vld [vmem:[%s292 + $0x2] sm:$0xff]
      %v4199 = vld [vmem:[%s292 + $0xa] sm:$0xff]
      %v4200 = vld [vmem:[%s292 + $0x1a] sm:$0xff]
      %v4201 = vld [vmem:[%s292 + $0x22] sm:$0xff]
      %v4202 = vld [vmem:[%s292 + $0x32] sm:$0xff]
      %v4203 = vld [vmem:[%s292 + $0x3a] sm:$0xff]
      %v4204 = vld [vmem:[%s292 + $0x4a] sm:$0xff]
      %v4205 = vld [vmem:[%s292 + $0x52] sm:$0xff]
      %v4206 = vld [vmem:[%s292 + $0x62] sm:$0xff]
      %v4207 = vld [vmem:[%s292 + $0x6a] sm:$0xff]
      %v4208 = vld [vmem:[%s292 + $0x7a] sm:$0xff]
      %v4209 = vld [vmem:[%s292 + $0x82] sm:$0xff]
      %v4210 = vld [vmem:[%s292 + $0x92] sm:$0xff]
      %v4211 = vld [vmem:[%s292 + $0x9a] sm:$0xff]
      %v4212 = vld [vmem:[%s292 + $0xaa] sm:$0xff]
      %v4213 = vld [vmem:[%s292 + $0xb2] sm:$0xff]
      %v4214 = vld [vmem:[%s292 + $0xc2] sm:$0xff]
      %v4215 = vld [vmem:[%s292 + $0xca] sm:$0xff]
      %v4216 = vld [vmem:[%s292 + $0xda] sm:$0xff]
      %v4217 = vld [vmem:[%s292 + $0xe2] sm:$0xff]
      %v4218 = vld [vmem:[%s292 + $0xf2] sm:$0xff]
      %v4219 = vld [vmem:[%s292 + $0xfa] sm:$0xff]
      %v4220 = vld [vmem:[%s292 + $0x10a] sm:$0xff]
      %v4221 = vld [vmem:[%s292 + $0x112] sm:$0xff]
      %v4222 = vld [vmem:[%s292 + $0x122] sm:$0xff]
      %v4223 = vld [vmem:[%s292 + $0x12a] sm:$0xff]
      %v4224 = vld [vmem:[%s292 + $0x13a] sm:$0xff]
      %v4225 = vld [vmem:[%s292 + $0x142] sm:$0xff]
      %v4226 = vld [vmem:[%s292 + $0x152] sm:$0xff]
      %v4227 = vld [vmem:[%s292 + $0x15a] sm:$0xff]
      %v4228 = vld [vmem:[%s292 + $0x16a] sm:$0xff]
      %v4229 = vld [vmem:[%s292 + $0x172] sm:$0xff]
      %v4230 = vpack.c.bf16 %v4198, %v4198
      %v4231 = vpack.c.bf16 %v4199, %v4199
      %v4232 = vpack.c.bf16 %v4200, %v4200
      %v4233 = vpack.c.bf16 %v4201, %v4201
      %v4234 = vpack.c.bf16 %v4202, %v4202
      %v4235 = vpack.c.bf16 %v4203, %v4203
      %v4236 = vpack.c.bf16 %v4204, %v4204
      %v4237 = vpack.c.bf16 %v4205, %v4205
      %v4238 = vpack.c.bf16 %v4206, %v4206
      %v4239 = vpack.c.bf16 %v4207, %v4207
      %v4240 = vpack.c.bf16 %v4208, %v4208
      %v4241 = vpack.c.bf16 %v4209, %v4209
      %v4242 = vpack.c.bf16 %v4210, %v4210
      %v4243 = vpack.c.bf16 %v4211, %v4211
      %v4244 = vpack.c.bf16 %v4212, %v4212
      %v4245 = vpack.c.bf16 %v4213, %v4213
      %v4246 = vpack.c.bf16 %v4214, %v4214
      %v4247 = vpack.c.bf16 %v4215, %v4215
      %v4248 = vpack.c.bf16 %v4216, %v4216
      %v4249 = vpack.c.bf16 %v4217, %v4217
      %v4250 = vpack.c.bf16 %v4218, %v4218
      %v4251 = vpack.c.bf16 %v4219, %v4219
      %v4252 = vpack.c.bf16 %v4220, %v4220
      %v4253 = vpack.c.bf16 %v4221, %v4221
      %v4254 = vpack.c.bf16 %v4222, %v4222
      %v4255 = vpack.c.bf16 %v4223, %v4223
      %v4256 = vpack.c.bf16 %v4224, %v4224
      %v4257 = vpack.c.bf16 %v4225, %v4225
      %v4258 = vpack.c.bf16 %v4226, %v4226
      %v4259 = vpack.c.bf16 %v4227, %v4227
      %v4260 = vpack.c.bf16 %v4228, %v4228
      %v4261 = vpack.c.bf16 %v4229, %v4229
      %4294 = vrot.lane.b32.xlu0 %v4230, 64
      %v4295 = vpop.permute.xlu0 %4294
      %4296 = vrot.lane.b32.xlu0 %v4231, 64
      %v4297 = vpop.permute.xlu0 %4296
      %4298 = vrot.lane.b32.xlu0 %v4232, 64
      %v4299 = vpop.permute.xlu0 %4298
      %4300 = vrot.lane.b32.xlu0 %v4233, 64
      %v4301 = vpop.permute.xlu0 %4300
      %4302 = vrot.lane.b32.xlu0 %v4234, 64
      %v4303 = vpop.permute.xlu0 %4302
      %4304 = vrot.lane.b32.xlu0 %v4235, 64
      %v4305 = vpop.permute.xlu0 %4304
      %4306 = vrot.lane.b32.xlu0 %v4236, 64
      %v4307 = vpop.permute.xlu0 %4306
      %4308 = vrot.lane.b32.xlu0 %v4237, 64
      %v4309 = vpop.permute.xlu0 %4308
      %4310 = vrot.lane.b32.xlu0 %v4238, 64
      %v4311 = vpop.permute.xlu0 %4310
      %4312 = vrot.lane.b32.xlu0 %v4239, 64
      %v4313 = vpop.permute.xlu0 %4312
      %4314 = vrot.lane.b32.xlu0 %v4240, 64
      %v4315 = vpop.permute.xlu0 %4314
      %4316 = vrot.lane.b32.xlu0 %v4241, 64
      %v4317 = vpop.permute.xlu0 %4316
      %4318 = vrot.lane.b32.xlu0 %v4242, 64
      %v4319 = vpop.permute.xlu0 %4318
      %4320 = vrot.lane.b32.xlu0 %v4243, 64
      %v4321 = vpop.permute.xlu0 %4320
      %4322 = vrot.lane.b32.xlu0 %v4244, 64
      %v4323 = vpop.permute.xlu0 %4322
      %4324 = vrot.lane.b32.xlu0 %v4245, 64
      %v4325 = vpop.permute.xlu0 %4324
      %4326 = vrot.lane.b32.xlu0 %v4246, 64
      %v4327 = vpop.permute.xlu0 %4326
      %4328 = vrot.lane.b32.xlu0 %v4247, 64
      %v4329 = vpop.permute.xlu0 %4328
      %4330 = vrot.lane.b32.xlu0 %v4248, 64
      %v4331 = vpop.permute.xlu0 %4330
      %4332 = vrot.lane.b32.xlu0 %v4249, 64
      %v4333 = vpop.permute.xlu0 %4332
      %4334 = vrot.lane.b32.xlu0 %v4250, 64
      %v4335 = vpop.permute.xlu0 %4334
      %4336 = vrot.lane.b32.xlu0 %v4251, 64
      %v4337 = vpop.permute.xlu0 %4336
      %4338 = vrot.lane.b32.xlu0 %v4252, 64
      %v4339 = vpop.permute.xlu0 %4338
      %4340 = vrot.lane.b32.xlu0 %v4253, 64
      %v4341 = vpop.permute.xlu0 %4340
      %4342 = vrot.lane.b32.xlu0 %v4254, 64
      %v4343 = vpop.permute.xlu0 %4342
      %4344 = vrot.lane.b32.xlu0 %v4255, 64
      %v4345 = vpop.permute.xlu0 %4344
      %4346 = vrot.lane.b32.xlu0 %v4256, 64
      %v4347 = vpop.permute.xlu0 %4346
      %4348 = vrot.lane.b32.xlu0 %v4257, 64
      %v4349 = vpop.permute.xlu0 %4348
      %4350 = vrot.lane.b32.xlu0 %v4258, 64
      %v4351 = vpop.permute.xlu0 %4350
      %4352 = vrot.lane.b32.xlu0 %v4259, 64
      %v4353 = vpop.permute.xlu0 %4352
      %4354 = vrot.lane.b32.xlu0 %v4260, 64
      %v4355 = vpop.permute.xlu0 %4354
      %4356 = vrot.lane.b32.xlu0 %v4261, 64
      %v4357 = vpop.permute.xlu0 %4356
      %4390 = vst.msk [vmem:[#allocation3 + $0x8] sm:$0xf] %vm679, %v4295
      %4391 = vst.msk [vmem:[#allocation3 + $0x1c] sm:$0xf] %vm679, %v4297
      %4392 = vst.msk [vmem:[#allocation3 + $0x30] sm:$0xf] %vm679, %v4299
      %4393 = vst.msk [vmem:[#allocation3 + $0x44] sm:$0xf] %vm679, %v4301
      %4394 = vst.msk [vmem:[#allocation3 + $0x58] sm:$0xf] %vm679, %v4303
      %4395 = vst.msk [vmem:[#allocation3 + $0x6c] sm:$0xf] %vm679, %v4305
      %4396 = vst.msk [vmem:[#allocation3 + $0x80] sm:$0xf] %vm679, %v4307
      %4397 = vst.msk [vmem:[#allocation3 + $0x94] sm:$0xf] %vm679, %v4309
      %4398 = vst.msk [vmem:[#allocation3 + $0xa8] sm:$0xf] %vm679, %v4311
      %4399 = vst.msk [vmem:[#allocation3 + $0xbc] sm:$0xf] %vm679, %v4313
      %4400 = vst.msk [vmem:[#allocation3 + $0xd0] sm:$0xf] %vm679, %v4315
      %4401 = vst.msk [vmem:[#allocation3 + $0xe4] sm:$0xf] %vm679, %v4317
      %4402 = vst.msk [vmem:[#allocation3 + $0xf8] sm:$0xf] %vm679, %v4319
      %4403 = vst.msk [vmem:[#allocation3 + $0x10c] sm:$0xf] %vm679, %v4321
      %4404 = vst.msk [vmem:[#allocation3 + $0x120] sm:$0xf] %vm679, %v4323
      %4405 = vst.msk [vmem:[#allocation3 + $0x134] sm:$0xf] %vm679, %v4325
      %4406 = vst.msk [vmem:[#allocation3 + $0x148] sm:$0xf] %vm679, %v4327
      %4407 = vst.msk [vmem:[#allocation3 + $0x15c] sm:$0xf] %vm679, %v4329
      %4408 = vst.msk [vmem:[#allocation3 + $0x170] sm:$0xf] %vm679, %v4331
      %4409 = vst.msk [vmem:[#allocation3 + $0x184] sm:$0xf] %vm679, %v4333
      %4410 = vst.msk [vmem:[#allocation3 + $0x198] sm:$0xf] %vm679, %v4335
      %4411 = vst.msk [vmem:[#allocation3 + $0x1ac] sm:$0xf] %vm679, %v4337
      %4412 = vst.msk [vmem:[#allocation3 + $0x1c0] sm:$0xf] %vm679, %v4339
      %4413 = vst.msk [vmem:[#allocation3 + $0x1d4] sm:$0xf] %vm679, %v4341
      %4414 = vst.msk [vmem:[#allocation3 + $0x1e8] sm:$0xf] %vm679, %v4343
      %4415 = vst.msk [vmem:[#allocation3 + $0x1fc] sm:$0xf] %vm679, %v4345
      %4416 = vst.msk [vmem:[#allocation3 + $0x210] sm:$0xf] %vm679, %v4347
      %4417 = vst.msk [vmem:[#allocation3 + $0x224] sm:$0xf] %vm679, %v4349
      %4418 = vst.msk [vmem:[#allocation3 + $0x238] sm:$0xf] %vm679, %v4351
      %4419 = vst.msk [vmem:[#allocation3 + $0x24c] sm:$0xf] %vm679, %v4353
      %4420 = vst.msk [vmem:[#allocation3 + $0x260] sm:$0xf] %vm679, %v4355
      %4421 = vst.msk [vmem:[#allocation3 + $0x274] sm:$0xf] %vm679, %v4357
      %v4422 = vld [vmem:[%s1352] sm:$0xff]
      %v4423 = vld [vmem:[%s1352 + $0x8] sm:$0xff]
      %v4424 = vld [vmem:[%s1352 + $0x18] sm:$0xff]
      %v4425 = vld [vmem:[%s1352 + $0x20] sm:$0xff]
      %v4426 = vld [vmem:[%s1352 + $0x30] sm:$0xff]
      %v4427 = vld [vmem:[%s1352 + $0x38] sm:$0xff]
      %v4428 = vld [vmem:[%s1352 + $0x48] sm:$0xff]
      %v4429 = vld [vmem:[%s1352 + $0x50] sm:$0xff]
      %v4430 = vld [vmem:[%s1352 + $0x60] sm:$0xff]
      %v4431 = vld [vmem:[%s1352 + $0x68] sm:$0xff]
      %v4432 = vld [vmem:[%s1352 + $0x78] sm:$0xff]
      %v4433 = vld [vmem:[%s1352 + $0x80] sm:$0xff]
      %v4434 = vld [vmem:[%s1352 + $0x90] sm:$0xff]
      %v4435 = vld [vmem:[%s1352 + $0x98] sm:$0xff]
      %v4436 = vld [vmem:[%s1352 + $0xa8] sm:$0xff]
      %v4437 = vld [vmem:[%s1352 + $0xb0] sm:$0xff]
      %v4438 = vld [vmem:[%s1352 + $0xc0] sm:$0xff]
      %v4439 = vld [vmem:[%s1352 + $0xc8] sm:$0xff]
      %v4440 = vld [vmem:[%s1352 + $0xd8] sm:$0xff]
      %v4441 = vld [vmem:[%s1352 + $0xe0] sm:$0xff]
      %v4442 = vld [vmem:[%s1352 + $0xf0] sm:$0xff]
      %v4443 = vld [vmem:[%s1352 + $0xf8] sm:$0xff]
      %v4444 = vld [vmem:[%s1352 + $0x108] sm:$0xff]
      %v4445 = vld [vmem:[%s1352 + $0x110] sm:$0xff]
      %v4446 = vld [vmem:[%s1352 + $0x120] sm:$0xff]
      %v4447 = vld [vmem:[%s1352 + $0x128] sm:$0xff]
      %v4448 = vld [vmem:[%s1352 + $0x138] sm:$0xff]
      %v4449 = vld [vmem:[%s1352 + $0x140] sm:$0xff]
      %v4450 = vld [vmem:[%s1352 + $0x150] sm:$0xff]
      %v4451 = vld [vmem:[%s1352 + $0x158] sm:$0xff]
      %v4452 = vld [vmem:[%s1352 + $0x168] sm:$0xff]
      %v4453 = vld [vmem:[%s1352 + $0x170] sm:$0xff]
      %v4454 = vpack.c.bf16 %v4422, %v4422
      %v4455 = vpack.c.bf16 %v4423, %v4423
      %v4456 = vpack.c.bf16 %v4424, %v4424
      %v4457 = vpack.c.bf16 %v4425, %v4425
      %v4458 = vpack.c.bf16 %v4426, %v4426
      %v4459 = vpack.c.bf16 %v4427, %v4427
      %v4460 = vpack.c.bf16 %v4428, %v4428
      %v4461 = vpack.c.bf16 %v4429, %v4429
      %v4462 = vpack.c.bf16 %v4430, %v4430
      %v4463 = vpack.c.bf16 %v4431, %v4431
      %v4464 = vpack.c.bf16 %v4432, %v4432
      %v4465 = vpack.c.bf16 %v4433, %v4433
      %v4466 = vpack.c.bf16 %v4434, %v4434
      %v4467 = vpack.c.bf16 %v4435, %v4435
      %v4468 = vpack.c.bf16 %v4436, %v4436
      %v4469 = vpack.c.bf16 %v4437, %v4437
      %v4470 = vpack.c.bf16 %v4438, %v4438
      %v4471 = vpack.c.bf16 %v4439, %v4439
      %v4472 = vpack.c.bf16 %v4440, %v4440
      %v4473 = vpack.c.bf16 %v4441, %v4441
      %v4474 = vpack.c.bf16 %v4442, %v4442
      %v4475 = vpack.c.bf16 %v4443, %v4443
      %v4476 = vpack.c.bf16 %v4444, %v4444
      %v4477 = vpack.c.bf16 %v4445, %v4445
      %v4478 = vpack.c.bf16 %v4446, %v4446
      %v4479 = vpack.c.bf16 %v4447, %v4447
      %v4480 = vpack.c.bf16 %v4448, %v4448
      %v4481 = vpack.c.bf16 %v4449, %v4449
      %v4482 = vpack.c.bf16 %v4450, %v4450
      %v4483 = vpack.c.bf16 %v4451, %v4451
      %v4484 = vpack.c.bf16 %v4452, %v4452
      %v4485 = vpack.c.bf16 %v4453, %v4453
      %4486 = vst.msk [vmem:[#allocation3 + $0xc] sm:$0xf] %vm454, %v4454
      %4487 = vst.msk [vmem:[#allocation3 + $0x20] sm:$0xf] %vm454, %v4455
      %4488 = vst.msk [vmem:[#allocation3 + $0x34] sm:$0xf] %vm454, %v4456
      %4489 = vst.msk [vmem:[#allocation3 + $0x48] sm:$0xf] %vm454, %v4457
      %4490 = vst.msk [vmem:[#allocation3 + $0x5c] sm:$0xf] %vm454, %v4458
      %4491 = vst.msk [vmem:[#allocation3 + $0x70] sm:$0xf] %vm454, %v4459
      %4492 = vst.msk [vmem:[#allocation3 + $0x84] sm:$0xf] %vm454, %v4460
      %4493 = vst.msk [vmem:[#allocation3 + $0x98] sm:$0xf] %vm454, %v4461
      %4494 = vst.msk [vmem:[#allocation3 + $0xac] sm:$0xf] %vm454, %v4462
      %4495 = vst.msk [vmem:[#allocation3 + $0xc0] sm:$0xf] %vm454, %v4463
      %4496 = vst.msk [vmem:[#allocation3 + $0xd4] sm:$0xf] %vm454, %v4464
      %4497 = vst.msk [vmem:[#allocation3 + $0xe8] sm:$0xf] %vm454, %v4465
      %4498 = vst.msk [vmem:[#allocation3 + $0xfc] sm:$0xf] %vm454, %v4466
      %4499 = vst.msk [vmem:[#allocation3 + $0x110] sm:$0xf] %vm454, %v4467
      %4500 = vst.msk [vmem:[#allocation3 + $0x124] sm:$0xf] %vm454, %v4468
      %4501 = vst.msk [vmem:[#allocation3 + $0x138] sm:$0xf] %vm454, %v4469
      %4502 = vst.msk [vmem:[#allocation3 + $0x14c] sm:$0xf] %vm454, %v4470
      %4503 = vst.msk [vmem:[#allocation3 + $0x160] sm:$0xf] %vm454, %v4471
      %4504 = vst.msk [vmem:[#allocation3 + $0x174] sm:$0xf] %vm454, %v4472
      %4505 = vst.msk [vmem:[#allocation3 + $0x188] sm:$0xf] %vm454, %v4473
      %4506 = vst.msk [vmem:[#allocation3 + $0x19c] sm:$0xf] %vm454, %v4474
      %4507 = vst.msk [vmem:[#allocation3 + $0x1b0] sm:$0xf] %vm454, %v4475
      %4508 = vst.msk [vmem:[#allocation3 + $0x1c4] sm:$0xf] %vm454, %v4476
      %4509 = vst.msk [vmem:[#allocation3 + $0x1d8] sm:$0xf] %vm454, %v4477
      %4510 = vst.msk [vmem:[#allocation3 + $0x1ec] sm:$0xf] %vm454, %v4478
      %4511 = vst.msk [vmem:[#allocation3 + $0x200] sm:$0xf] %vm454, %v4479
      %4512 = vst.msk [vmem:[#allocation3 + $0x214] sm:$0xf] %vm454, %v4480
      %4513 = vst.msk [vmem:[#allocation3 + $0x228] sm:$0xf] %vm454, %v4481
      %4514 = vst.msk [vmem:[#allocation3 + $0x23c] sm:$0xf] %vm454, %v4482
      %4515 = vst.msk [vmem:[#allocation3 + $0x250] sm:$0xf] %vm454, %v4483
      %4516 = vst.msk [vmem:[#allocation3 + $0x264] sm:$0xf] %vm454, %v4484
      %4517 = vst.msk [vmem:[#allocation3 + $0x278] sm:$0xf] %vm454, %v4485
      %v4518 = vld [vmem:[%s1352 + $0x1] sm:$0xff]
      %v4519 = vld [vmem:[%s1352 + $0x9] sm:$0xff]
      %v4520 = vld [vmem:[%s1352 + $0x19] sm:$0xff]
      %v4521 = vld [vmem:[%s1352 + $0x21] sm:$0xff]
      %v4522 = vld [vmem:[%s1352 + $0x31] sm:$0xff]
      %v4523 = vld [vmem:[%s1352 + $0x39] sm:$0xff]
      %v4524 = vld [vmem:[%s1352 + $0x49] sm:$0xff]
      %v4525 = vld [vmem:[%s1352 + $0x51] sm:$0xff]
      %v4526 = vld [vmem:[%s1352 + $0x61] sm:$0xff]
      %v4527 = vld [vmem:[%s1352 + $0x69] sm:$0xff]
      %v4528 = vld [vmem:[%s1352 + $0x79] sm:$0xff]
      %v4529 = vld [vmem:[%s1352 + $0x81] sm:$0xff]
      %v4530 = vld [vmem:[%s1352 + $0x91] sm:$0xff]
      %v4531 = vld [vmem:[%s1352 + $0x99] sm:$0xff]
      %v4532 = vld [vmem:[%s1352 + $0xa9] sm:$0xff]
      %v4533 = vld [vmem:[%s1352 + $0xb1] sm:$0xff]
      %v4534 = vld [vmem:[%s1352 + $0xc1] sm:$0xff]
      %v4535 = vld [vmem:[%s1352 + $0xc9] sm:$0xff]
      %v4536 = vld [vmem:[%s1352 + $0xd9] sm:$0xff]
      %v4537 = vld [vmem:[%s1352 + $0xe1] sm:$0xff]
      %v4538 = vld [vmem:[%s1352 + $0xf1] sm:$0xff]
      %v4539 = vld [vmem:[%s1352 + $0xf9] sm:$0xff]
      %v4540 = vld [vmem:[%s1352 + $0x109] sm:$0xff]
      %v4541 = vld [vmem:[%s1352 + $0x111] sm:$0xff]
      %v4542 = vld [vmem:[%s1352 + $0x121] sm:$0xff]
      %v4543 = vld [vmem:[%s1352 + $0x129] sm:$0xff]
      %v4544 = vld [vmem:[%s1352 + $0x139] sm:$0xff]
      %v4545 = vld [vmem:[%s1352 + $0x141] sm:$0xff]
      %v4546 = vld [vmem:[%s1352 + $0x151] sm:$0xff]
      %v4547 = vld [vmem:[%s1352 + $0x159] sm:$0xff]
      %v4548 = vld [vmem:[%s1352 + $0x169] sm:$0xff]
      %v4549 = vld [vmem:[%s1352 + $0x171] sm:$0xff]
      %v4550 = vpack.c.bf16 %v4518, %v4518
      %v4551 = vpack.c.bf16 %v4519, %v4519
      %v4552 = vpack.c.bf16 %v4520, %v4520
      %v4553 = vpack.c.bf16 %v4521, %v4521
      %v4554 = vpack.c.bf16 %v4522, %v4522
      %v4555 = vpack.c.bf16 %v4523, %v4523
      %v4556 = vpack.c.bf16 %v4524, %v4524
      %v4557 = vpack.c.bf16 %v4525, %v4525
      %v4558 = vpack.c.bf16 %v4526, %v4526
      %v4559 = vpack.c.bf16 %v4527, %v4527
      %v4560 = vpack.c.bf16 %v4528, %v4528
      %v4561 = vpack.c.bf16 %v4529, %v4529
      %v4562 = vpack.c.bf16 %v4530, %v4530
      %v4563 = vpack.c.bf16 %v4531, %v4531
      %v4564 = vpack.c.bf16 %v4532, %v4532
      %v4565 = vpack.c.bf16 %v4533, %v4533
      %v4566 = vpack.c.bf16 %v4534, %v4534
      %v4567 = vpack.c.bf16 %v4535, %v4535
      %v4568 = vpack.c.bf16 %v4536, %v4536
      %v4569 = vpack.c.bf16 %v4537, %v4537
      %v4570 = vpack.c.bf16 %v4538, %v4538
      %v4571 = vpack.c.bf16 %v4539, %v4539
      %v4572 = vpack.c.bf16 %v4540, %v4540
      %v4573 = vpack.c.bf16 %v4541, %v4541
      %v4574 = vpack.c.bf16 %v4542, %v4542
      %v4575 = vpack.c.bf16 %v4543, %v4543
      %v4576 = vpack.c.bf16 %v4544, %v4544
      %v4577 = vpack.c.bf16 %v4545, %v4545
      %v4578 = vpack.c.bf16 %v4546, %v4546
      %v4579 = vpack.c.bf16 %v4547, %v4547
      %v4580 = vpack.c.bf16 %v4548, %v4548
      %v4581 = vpack.c.bf16 %v4549, %v4549
      %4614 = vrot.lane.b32.xlu0 %v4550, 64
      %v4615 = vpop.permute.xlu0 %4614
      %4616 = vrot.lane.b32.xlu0 %v4551, 64
      %v4617 = vpop.permute.xlu0 %4616
      %4618 = vrot.lane.b32.xlu0 %v4552, 64
      %v4619 = vpop.permute.xlu0 %4618
      %4620 = vrot.lane.b32.xlu0 %v4553, 64
      %v4621 = vpop.permute.xlu0 %4620
      %4622 = vrot.lane.b32.xlu0 %v4554, 64
      %v4623 = vpop.permute.xlu0 %4622
      %4624 = vrot.lane.b32.xlu0 %v4555, 64
      %v4625 = vpop.permute.xlu0 %4624
      %4626 = vrot.lane.b32.xlu0 %v4556, 64
      %v4627 = vpop.permute.xlu0 %4626
      %4628 = vrot.lane.b32.xlu0 %v4557, 64
      %v4629 = vpop.permute.xlu0 %4628
      %4630 = vrot.lane.b32.xlu0 %v4558, 64
      %v4631 = vpop.permute.xlu0 %4630
      %4632 = vrot.lane.b32.xlu0 %v4559, 64
      %v4633 = vpop.permute.xlu0 %4632
      %4634 = vrot.lane.b32.xlu0 %v4560, 64
      %v4635 = vpop.permute.xlu0 %4634
      %4636 = vrot.lane.b32.xlu0 %v4561, 64
      %v4637 = vpop.permute.xlu0 %4636
      %4638 = vrot.lane.b32.xlu0 %v4562, 64
      %v4639 = vpop.permute.xlu0 %4638
      %4640 = vrot.lane.b32.xlu0 %v4563, 64
      %v4641 = vpop.permute.xlu0 %4640
      %4642 = vrot.lane.b32.xlu0 %v4564, 64
      %v4643 = vpop.permute.xlu0 %4642
      %4644 = vrot.lane.b32.xlu0 %v4565, 64
      %v4645 = vpop.permute.xlu0 %4644
      %4646 = vrot.lane.b32.xlu0 %v4566, 64
      %v4647 = vpop.permute.xlu0 %4646
      %4648 = vrot.lane.b32.xlu0 %v4567, 64
      %v4649 = vpop.permute.xlu0 %4648
      %4650 = vrot.lane.b32.xlu0 %v4568, 64
      %v4651 = vpop.permute.xlu0 %4650
      %4652 = vrot.lane.b32.xlu0 %v4569, 64
      %v4653 = vpop.permute.xlu0 %4652
      %4654 = vrot.lane.b32.xlu0 %v4570, 64
      %v4655 = vpop.permute.xlu0 %4654
      %4656 = vrot.lane.b32.xlu0 %v4571, 64
      %v4657 = vpop.permute.xlu0 %4656
      %4658 = vrot.lane.b32.xlu0 %v4572, 64
      %v4659 = vpop.permute.xlu0 %4658
      %4660 = vrot.lane.b32.xlu0 %v4573, 64
      %v4661 = vpop.permute.xlu0 %4660
      %4662 = vrot.lane.b32.xlu0 %v4574, 64
      %v4663 = vpop.permute.xlu0 %4662
      %4664 = vrot.lane.b32.xlu0 %v4575, 64
      %v4665 = vpop.permute.xlu0 %4664
      %4666 = vrot.lane.b32.xlu0 %v4576, 64
      %v4667 = vpop.permute.xlu0 %4666
      %4668 = vrot.lane.b32.xlu0 %v4577, 64
      %v4669 = vpop.permute.xlu0 %4668
      %4670 = vrot.lane.b32.xlu0 %v4578, 64
      %v4671 = vpop.permute.xlu0 %4670
      %4672 = vrot.lane.b32.xlu0 %v4579, 64
      %v4673 = vpop.permute.xlu0 %4672
      %4674 = vrot.lane.b32.xlu0 %v4580, 64
      %v4675 = vpop.permute.xlu0 %4674
      %4676 = vrot.lane.b32.xlu0 %v4581, 64
      %v4677 = vpop.permute.xlu0 %4676
      %4710 = vst.msk [vmem:[#allocation3 + $0xc] sm:$0xf] %vm679, %v4615
      %4711 = vst.msk [vmem:[#allocation3 + $0x20] sm:$0xf] %vm679, %v4617
      %4712 = vst.msk [vmem:[#allocation3 + $0x34] sm:$0xf] %vm679, %v4619
      %4713 = vst.msk [vmem:[#allocation3 + $0x48] sm:$0xf] %vm679, %v4621
      %4714 = vst.msk [vmem:[#allocation3 + $0x5c] sm:$0xf] %vm679, %v4623
      %4715 = vst.msk [vmem:[#allocation3 + $0x70] sm:$0xf] %vm679, %v4625
      %4716 = vst.msk [vmem:[#allocation3 + $0x84] sm:$0xf] %vm679, %v4627
      %4717 = vst.msk [vmem:[#allocation3 + $0x98] sm:$0xf] %vm679, %v4629
      %4718 = vst.msk [vmem:[#allocation3 + $0xac] sm:$0xf] %vm679, %v4631
      %4719 = vst.msk [vmem:[#allocation3 + $0xc0] sm:$0xf] %vm679, %v4633
      %4720 = vst.msk [vmem:[#allocation3 + $0xd4] sm:$0xf] %vm679, %v4635
      %4721 = vst.msk [vmem:[#allocation3 + $0xe8] sm:$0xf] %vm679, %v4637
      %4722 = vst.msk [vmem:[#allocation3 + $0xfc] sm:$0xf] %vm679, %v4639
      %4723 = vst.msk [vmem:[#allocation3 + $0x110] sm:$0xf] %vm679, %v4641
      %4724 = vst.msk [vmem:[#allocation3 + $0x124] sm:$0xf] %vm679, %v4643
      %4725 = vst.msk [vmem:[#allocation3 + $0x138] sm:$0xf] %vm679, %v4645
      %4726 = vst.msk [vmem:[#allocation3 + $0x14c] sm:$0xf] %vm679, %v4647
      %4727 = vst.msk [vmem:[#allocation3 + $0x160] sm:$0xf] %vm679, %v4649
      %4728 = vst.msk [vmem:[#allocation3 + $0x174] sm:$0xf] %vm679, %v4651
      %4729 = vst.msk [vmem:[#allocation3 + $0x188] sm:$0xf] %vm679, %v4653
      %4730 = vst.msk [vmem:[#allocation3 + $0x19c] sm:$0xf] %vm679, %v4655
      %4731 = vst.msk [vmem:[#allocation3 + $0x1b0] sm:$0xf] %vm679, %v4657
      %4732 = vst.msk [vmem:[#allocation3 + $0x1c4] sm:$0xf] %vm679, %v4659
      %4733 = vst.msk [vmem:[#allocation3 + $0x1d8] sm:$0xf] %vm679, %v4661
      %4734 = vst.msk [vmem:[#allocation3 + $0x1ec] sm:$0xf] %vm679, %v4663
      %4735 = vst.msk [vmem:[#allocation3 + $0x200] sm:$0xf] %vm679, %v4665
      %4736 = vst.msk [vmem:[#allocation3 + $0x214] sm:$0xf] %vm679, %v4667
      %4737 = vst.msk [vmem:[#allocation3 + $0x228] sm:$0xf] %vm679, %v4669
      %4738 = vst.msk [vmem:[#allocation3 + $0x23c] sm:$0xf] %vm679, %v4671
      %4739 = vst.msk [vmem:[#allocation3 + $0x250] sm:$0xf] %vm679, %v4673
      %4740 = vst.msk [vmem:[#allocation3 + $0x264] sm:$0xf] %vm679, %v4675
      %4741 = vst.msk [vmem:[#allocation3 + $0x278] sm:$0xf] %vm679, %v4677
      %v4742 = vld [vmem:[%s1352 + $0x2] sm:$0xff]
      %v4743 = vld [vmem:[%s1352 + $0xa] sm:$0xff]
      %v4744 = vld [vmem:[%s1352 + $0x1a] sm:$0xff]
      %v4745 = vld [vmem:[%s1352 + $0x22] sm:$0xff]
      %v4746 = vld [vmem:[%s1352 + $0x32] sm:$0xff]
      %v4747 = vld [vmem:[%s1352 + $0x3a] sm:$0xff]
      %v4748 = vld [vmem:[%s1352 + $0x4a] sm:$0xff]
      %v4749 = vld [vmem:[%s1352 + $0x52] sm:$0xff]
      %v4750 = vld [vmem:[%s1352 + $0x62] sm:$0xff]
      %v4751 = vld [vmem:[%s1352 + $0x6a] sm:$0xff]
      %v4752 = vld [vmem:[%s1352 + $0x7a] sm:$0xff]
      %v4753 = vld [vmem:[%s1352 + $0x82] sm:$0xff]
      %v4754 = vld [vmem:[%s1352 + $0x92] sm:$0xff]
      %v4755 = vld [vmem:[%s1352 + $0x9a] sm:$0xff]
      %v4756 = vld [vmem:[%s1352 + $0xaa] sm:$0xff]
      %v4757 = vld [vmem:[%s1352 + $0xb2] sm:$0xff]
      %v4758 = vld [vmem:[%s1352 + $0xc2] sm:$0xff]
      %v4759 = vld [vmem:[%s1352 + $0xca] sm:$0xff]
      %v4760 = vld [vmem:[%s1352 + $0xda] sm:$0xff]
      %v4761 = vld [vmem:[%s1352 + $0xe2] sm:$0xff]
      %v4762 = vld [vmem:[%s1352 + $0xf2] sm:$0xff]
      %v4763 = vld [vmem:[%s1352 + $0xfa] sm:$0xff]
      %v4764 = vld [vmem:[%s1352 + $0x10a] sm:$0xff]
      %v4765 = vld [vmem:[%s1352 + $0x112] sm:$0xff]
      %v4766 = vld [vmem:[%s1352 + $0x122] sm:$0xff]
      %v4767 = vld [vmem:[%s1352 + $0x12a] sm:$0xff]
      %v4768 = vld [vmem:[%s1352 + $0x13a] sm:$0xff]
      %v4769 = vld [vmem:[%s1352 + $0x142] sm:$0xff]
      %v4770 = vld [vmem:[%s1352 + $0x152] sm:$0xff]
      %v4771 = vld [vmem:[%s1352 + $0x15a] sm:$0xff]
      %v4772 = vld [vmem:[%s1352 + $0x16a] sm:$0xff]
      %v4773 = vld [vmem:[%s1352 + $0x172] sm:$0xff]
      %v4774 = vpack.c.bf16 %v4742, %v4742
      %v4775 = vpack.c.bf16 %v4743, %v4743
      %v4776 = vpack.c.bf16 %v4744, %v4744
      %v4777 = vpack.c.bf16 %v4745, %v4745
      %v4778 = vpack.c.bf16 %v4746, %v4746
      %v4779 = vpack.c.bf16 %v4747, %v4747
      %v4780 = vpack.c.bf16 %v4748, %v4748
      %v4781 = vpack.c.bf16 %v4749, %v4749
      %v4782 = vpack.c.bf16 %v4750, %v4750
      %v4783 = vpack.c.bf16 %v4751, %v4751
      %v4784 = vpack.c.bf16 %v4752, %v4752
      %v4785 = vpack.c.bf16 %v4753, %v4753
      %v4786 = vpack.c.bf16 %v4754, %v4754
      %v4787 = vpack.c.bf16 %v4755, %v4755
      %v4788 = vpack.c.bf16 %v4756, %v4756
      %v4789 = vpack.c.bf16 %v4757, %v4757
      %v4790 = vpack.c.bf16 %v4758, %v4758
      %v4791 = vpack.c.bf16 %v4759, %v4759
      %v4792 = vpack.c.bf16 %v4760, %v4760
      %v4793 = vpack.c.bf16 %v4761, %v4761
      %v4794 = vpack.c.bf16 %v4762, %v4762
      %v4795 = vpack.c.bf16 %v4763, %v4763
      %v4796 = vpack.c.bf16 %v4764, %v4764
      %v4797 = vpack.c.bf16 %v4765, %v4765
      %v4798 = vpack.c.bf16 %v4766, %v4766
      %v4799 = vpack.c.bf16 %v4767, %v4767
      %v4800 = vpack.c.bf16 %v4768, %v4768
      %v4801 = vpack.c.bf16 %v4769, %v4769
      %v4802 = vpack.c.bf16 %v4770, %v4770
      %v4803 = vpack.c.bf16 %v4771, %v4771
      %v4804 = vpack.c.bf16 %v4772, %v4772
      %v4805 = vpack.c.bf16 %v4773, %v4773
      %4806 = vst.msk [vmem:[#allocation3 + $0x10] sm:$0xf] %vm454, %v4774
      %4807 = vst.msk [vmem:[#allocation3 + $0x24] sm:$0xf] %vm454, %v4775
      %4808 = vst.msk [vmem:[#allocation3 + $0x38] sm:$0xf] %vm454, %v4776
      %4809 = vst.msk [vmem:[#allocation3 + $0x4c] sm:$0xf] %vm454, %v4777
      %4810 = vst.msk [vmem:[#allocation3 + $0x60] sm:$0xf] %vm454, %v4778
      %4811 = vst.msk [vmem:[#allocation3 + $0x74] sm:$0xf] %vm454, %v4779
      %4812 = vst.msk [vmem:[#allocation3 + $0x88] sm:$0xf] %vm454, %v4780
      %4813 = vst.msk [vmem:[#allocation3 + $0x9c] sm:$0xf] %vm454, %v4781
      %4814 = vst.msk [vmem:[#allocation3 + $0xb0] sm:$0xf] %vm454, %v4782
      %4815 = vst.msk [vmem:[#allocation3 + $0xc4] sm:$0xf] %vm454, %v4783
      %4816 = vst.msk [vmem:[#allocation3 + $0xd8] sm:$0xf] %vm454, %v4784
      %4817 = vst.msk [vmem:[#allocation3 + $0xec] sm:$0xf] %vm454, %v4785
      %4818 = vst.msk [vmem:[#allocation3 + $0x100] sm:$0xf] %vm454, %v4786
      %4819 = vst.msk [vmem:[#allocation3 + $0x114] sm:$0xf] %vm454, %v4787
      %4820 = vst.msk [vmem:[#allocation3 + $0x128] sm:$0xf] %vm454, %v4788
      %4821 = vst.msk [vmem:[#allocation3 + $0x13c] sm:$0xf] %vm454, %v4789
      %4822 = vst.msk [vmem:[#allocation3 + $0x150] sm:$0xf] %vm454, %v4790
      %4823 = vst.msk [vmem:[#allocation3 + $0x164] sm:$0xf] %vm454, %v4791
      %4824 = vst.msk [vmem:[#allocation3 + $0x178] sm:$0xf] %vm454, %v4792
      %4825 = vst.msk [vmem:[#allocation3 + $0x18c] sm:$0xf] %vm454, %v4793
      %4826 = vst.msk [vmem:[#allocation3 + $0x1a0] sm:$0xf] %vm454, %v4794
      %4827 = vst.msk [vmem:[#allocation3 + $0x1b4] sm:$0xf] %vm454, %v4795
      %4828 = vst.msk [vmem:[#allocation3 + $0x1c8] sm:$0xf] %vm454, %v4796
      %4829 = vst.msk [vmem:[#allocation3 + $0x1dc] sm:$0xf] %vm454, %v4797
      %4830 = vst.msk [vmem:[#allocation3 + $0x1f0] sm:$0xf] %vm454, %v4798
      %4831 = vst.msk [vmem:[#allocation3 + $0x204] sm:$0xf] %vm454, %v4799
      %4832 = vst.msk [vmem:[#allocation3 + $0x218] sm:$0xf] %vm454, %v4800
      %4833 = vst.msk [vmem:[#allocation3 + $0x22c] sm:$0xf] %vm454, %v4801
      %4834 = vst.msk [vmem:[#allocation3 + $0x240] sm:$0xf] %vm454, %v4802
      %4835 = vst.msk [vmem:[#allocation3 + $0x254] sm:$0xf] %vm454, %v4803
      %4836 = vst.msk [vmem:[#allocation3 + $0x268] sm:$0xf] %vm454, %v4804
      %4837 = vst.msk [vmem:[#allocation3 + $0x27c] sm:$0xf] %vm454, %v4805
      %v4838 = vld [vmem:[#allocation3] sm:$0xff]
      %v4839 = vld [vmem:[#allocation3 + $0x8] sm:$0xff]
      %v4840 = vld [vmem:[#allocation3 + $0x10] sm:$0xf]
      %v4841 = vld [vmem:[#allocation3 + $0x14] sm:$0xff]
      %v4842 = vld [vmem:[#allocation3 + $0x1c] sm:$0xff]
      %v4843 = vld [vmem:[#allocation3 + $0x24] sm:$0xf]
      %v4844 = vld [vmem:[#allocation3 + $0x28] sm:$0xff]
      %v4845 = vld [vmem:[#allocation3 + $0x30] sm:$0xff]
      %v4846 = vld [vmem:[#allocation3 + $0x38] sm:$0xf]
      %v4847 = vld [vmem:[#allocation3 + $0x3c] sm:$0xff]
      %v4848 = vld [vmem:[#allocation3 + $0x44] sm:$0xff]
      %v4849 = vld [vmem:[#allocation3 + $0x4c] sm:$0xf]
      %v4850 = vld [vmem:[#allocation3 + $0x50] sm:$0xff]
      %v4851 = vld [vmem:[#allocation3 + $0x58] sm:$0xff]
      %v4852 = vld [vmem:[#allocation3 + $0x60] sm:$0xf]
      %v4853 = vld [vmem:[#allocation3 + $0x64] sm:$0xff]
      %v4854 = vld [vmem:[#allocation3 + $0x6c] sm:$0xff]
      %v4855 = vld [vmem:[#allocation3 + $0x74] sm:$0xf]
      %v4856 = vld [vmem:[#allocation3 + $0x78] sm:$0xff]
      %v4857 = vld [vmem:[#allocation3 + $0x80] sm:$0xff]
      %v4858 = vld [vmem:[#allocation3 + $0x88] sm:$0xf]
      %v4859 = vld [vmem:[#allocation3 + $0x8c] sm:$0xff]
      %v4860 = vld [vmem:[#allocation3 + $0x94] sm:$0xff]
      %v4861 = vld [vmem:[#allocation3 + $0x9c] sm:$0xf]
      %v4862 = vld [vmem:[#allocation3 + $0xa0] sm:$0xff]
      %v4863 = vld [vmem:[#allocation3 + $0xa8] sm:$0xff]
      %v4864 = vld [vmem:[#allocation3 + $0xb0] sm:$0xf]
      %v4865 = vld [vmem:[#allocation3 + $0xb4] sm:$0xff]
      %v4866 = vld [vmem:[#allocation3 + $0xbc] sm:$0xff]
      %v4867 = vld [vmem:[#allocation3 + $0xc4] sm:$0xf]
      %v4868 = vld [vmem:[#allocation3 + $0xc8] sm:$0xff]
      %v4869 = vld [vmem:[#allocation3 + $0xd0] sm:$0xff]
      %v4870 = vld [vmem:[#allocation3 + $0xd8] sm:$0xf]
      %v4871 = vld [vmem:[#allocation3 + $0xdc] sm:$0xff]
      %v4872 = vld [vmem:[#allocation3 + $0xe4] sm:$0xff]
      %v4873 = vld [vmem:[#allocation3 + $0xec] sm:$0xf]
      %v4874 = vld [vmem:[#allocation3 + $0xf0] sm:$0xff]
      %v4875 = vld [vmem:[#allocation3 + $0xf8] sm:$0xff]
      %v4876 = vld [vmem:[#allocation3 + $0x100] sm:$0xf]
      %v4877 = vld [vmem:[#allocation3 + $0x104] sm:$0xff]
      %v4878 = vld [vmem:[#allocation3 + $0x10c] sm:$0xff]
      %v4879 = vld [vmem:[#allocation3 + $0x114] sm:$0xf]
      %v4880 = vld [vmem:[#allocation3 + $0x118] sm:$0xff]
      %v4881 = vld [vmem:[#allocation3 + $0x120] sm:$0xff]
      %v4882 = vld [vmem:[#allocation3 + $0x128] sm:$0xf]
      %v4883 = vld [vmem:[#allocation3 + $0x12c] sm:$0xff]
      %v4884 = vld [vmem:[#allocation3 + $0x134] sm:$0xff]
      %v4885 = vld [vmem:[#allocation3 + $0x13c] sm:$0xf]
      %v4886 = vld [vmem:[#allocation3 + $0x140] sm:$0xff]
      %v4887 = vld [vmem:[#allocation3 + $0x148] sm:$0xff]
      %v4888 = vld [vmem:[#allocation3 + $0x150] sm:$0xf]
      %v4889 = vld [vmem:[#allocation3 + $0x154] sm:$0xff]
      %v4890 = vld [vmem:[#allocation3 + $0x15c] sm:$0xff]
      %v4891 = vld [vmem:[#allocation3 + $0x164] sm:$0xf]
      %v4892 = vld [vmem:[#allocation3 + $0x168] sm:$0xff]
      %v4893 = vld [vmem:[#allocation3 + $0x170] sm:$0xff]
      %v4894 = vld [vmem:[#allocation3 + $0x178] sm:$0xf]
      %v4895 = vld [vmem:[#allocation3 + $0x17c] sm:$0xff]
      %v4896 = vld [vmem:[#allocation3 + $0x184] sm:$0xff]
      %v4897 = vld [vmem:[#allocation3 + $0x18c] sm:$0xf]
      %v4898 = vld [vmem:[#allocation3 + $0x190] sm:$0xff]
      %v4899 = vld [vmem:[#allocation3 + $0x198] sm:$0xff]
      %v4900 = vld [vmem:[#allocation3 + $0x1a0] sm:$0xf]
      %v4901 = vld [vmem:[#allocation3 + $0x1a4] sm:$0xff]
      %v4902 = vld [vmem:[#allocation3 + $0x1ac] sm:$0xff]
      %v4903 = vld [vmem:[#allocation3 + $0x1b4] sm:$0xf]
      %v4904 = vld [vmem:[#allocation3 + $0x1b8] sm:$0xff]
      %v4905 = vld [vmem:[#allocation3 + $0x1c0] sm:$0xff]
      %v4906 = vld [vmem:[#allocation3 + $0x1c8] sm:$0xf]
      %v4907 = vld [vmem:[#allocation3 + $0x1cc] sm:$0xff]
      %v4908 = vld [vmem:[#allocation3 + $0x1d4] sm:$0xff]
      %v4909 = vld [vmem:[#allocation3 + $0x1dc] sm:$0xf]
      %v4910 = vld [vmem:[#allocation3 + $0x1e0] sm:$0xff]
      %v4911 = vld [vmem:[#allocation3 + $0x1e8] sm:$0xff]
      %v4912 = vld [vmem:[#allocation3 + $0x1f0] sm:$0xf]
      %v4913 = vld [vmem:[#allocation3 + $0x1f4] sm:$0xff]
      %v4914 = vld [vmem:[#allocation3 + $0x1fc] sm:$0xff]
      %v4915 = vld [vmem:[#allocation3 + $0x204] sm:$0xf]
      %v4916 = vld [vmem:[#allocation3 + $0x208] sm:$0xff]
      %v4917 = vld [vmem:[#allocation3 + $0x210] sm:$0xff]
      %v4918 = vld [vmem:[#allocation3 + $0x218] sm:$0xf]
      %v4919 = vld [vmem:[#allocation3 + $0x21c] sm:$0xff]
      %v4920 = vld [vmem:[#allocation3 + $0x224] sm:$0xff]
      %v4921 = vld [vmem:[#allocation3 + $0x22c] sm:$0xf]
      %v4922 = vld [vmem:[#allocation3 + $0x230] sm:$0xff]
      %v4923 = vld [vmem:[#allocation3 + $0x238] sm:$0xff]
      %v4924 = vld [vmem:[#allocation3 + $0x240] sm:$0xf]
      %v4925 = vld [vmem:[#allocation3 + $0x244] sm:$0xff]
      %v4926 = vld [vmem:[#allocation3 + $0x24c] sm:$0xff]
      %v4927 = vld [vmem:[#allocation3 + $0x254] sm:$0xf]
      %v4928 = vld [vmem:[#allocation3 + $0x258] sm:$0xff]
      %v4929 = vld [vmem:[#allocation3 + $0x260] sm:$0xff]
      %v4930 = vld [vmem:[#allocation3 + $0x268] sm:$0xf]
      %v4931 = vld [vmem:[#allocation3 + $0x26c] sm:$0xff]
      %v4932 = vld [vmem:[#allocation3 + $0x274] sm:$0xff]
      %v4933 = vld [vmem:[#allocation3 + $0x27c] sm:$0xf]
      %v4934 = vld [vmem:[%s4] sm:$0xf]
      %v4935 = vld [vmem:[%s4 + $0x4] sm:$0xf]
      %v4936 = vld [vmem:[%s4 + $0x8] sm:$0xf]
      %v4937 = vld [vmem:[%s4 + $0xc] sm:$0xf]
      %v4938 = vld [vmem:[%s4 + $0x10] sm:$0xf]
      %v4939 = vld [vmem:[%s4 + $0x14] sm:$0xf]
      %v4940 = vld [vmem:[%s4 + $0x18] sm:$0xf]
      %v4941 = vld [vmem:[%s4 + $0x1c] sm:$0xf]
      %v4942 = vld [vmem:[%s4 + $0x20] sm:$0xf]
      %v4943 = vld [vmem:[%s4 + $0x24] sm:$0xf]
      %v4944 = vld [vmem:[%s4 + $0x28] sm:$0xf]
      %v4945 = vld [vmem:[%s4 + $0x2c] sm:$0xf]
      %v4946 = vld [vmem:[%s4 + $0x30] sm:$0xf]
      %v4947 = vld [vmem:[%s4 + $0x34] sm:$0xf]
      %v4948 = vld [vmem:[%s4 + $0x38] sm:$0xf]
      %v4949 = vld [vmem:[%s4 + $0x3c] sm:$0xf]
      %v4950 = vld [vmem:[%s4 + $0x40] sm:$0xf]
      %v4951 = vld [vmem:[%s4 + $0x44] sm:$0xf]
      %v4952 = vld [vmem:[%s4 + $0x48] sm:$0xf]
      %v4953 = vld [vmem:[%s4 + $0x4c] sm:$0xf]
      %v4954 = vld [vmem:[%s4 + $0x50] sm:$0xf]
      %v4955 = vld [vmem:[%s4 + $0x54] sm:$0xf]
      %v4956 = vld [vmem:[%s4 + $0x58] sm:$0xf]
      %v4957 = vld [vmem:[%s4 + $0x5c] sm:$0xf]
      %v4958 = vld [vmem:[%s4 + $0x60] sm:$0xf]
      %v4959 = vld [vmem:[%s4 + $0x64] sm:$0xf]
      %v4960 = vld [vmem:[%s4 + $0x68] sm:$0xf]
      %v4961 = vld [vmem:[%s4 + $0x6c] sm:$0xf]
      %v4962 = vld [vmem:[%s4 + $0x70] sm:$0xf]
      %v4963 = vld [vmem:[%s4 + $0x74] sm:$0xf]
      %v4964 = vld [vmem:[%s4 + $0x78] sm:$0xf]
      %v4965 = vld [vmem:[%s4 + $0x7c] sm:$0xf]
      %v4966 = vld [vmem:[%s4 + $0x80] sm:$0xf]
      %v4967 = vld [vmem:[%s4 + $0x84] sm:$0xf]
      %v4968 = vld [vmem:[%s4 + $0x88] sm:$0xf]
      %v4969 = vld [vmem:[%s4 + $0x8c] sm:$0xf]
      %v4970 = vld [vmem:[%s4 + $0x90] sm:$0xf]
      %v4971 = vld [vmem:[%s4 + $0x94] sm:$0xf]
      %v4972 = vld [vmem:[%s4 + $0x98] sm:$0xf]
      %v4973 = vld [vmem:[%s4 + $0x9c] sm:$0xf]
      %v4974 = vld [vmem:[%s4 + $0xa0] sm:$0xf]
      %v4975 = vld [vmem:[%s4 + $0xa4] sm:$0xf]
      %v4976 = vld [vmem:[%s4 + $0xa8] sm:$0xf]
      %v4977 = vld [vmem:[%s4 + $0xac] sm:$0xf]
      %v4978 = vld [vmem:[%s4 + $0xb0] sm:$0xf]
      %v4979 = vld [vmem:[%s4 + $0xb4] sm:$0xf]
      %v4980 = vld [vmem:[%s4 + $0xb8] sm:$0xf]
      %v4981 = vld [vmem:[%s4 + $0xbc] sm:$0xf]
      %v4982 = vld [vmem:[%s4 + $0xc0] sm:$0xf]
      %v4983 = vld [vmem:[%s4 + $0xc4] sm:$0xf]
      %v4984 = vld [vmem:[%s4 + $0xc8] sm:$0xf]
      %v4985 = vld [vmem:[%s4 + $0xcc] sm:$0xf]
      %v4986 = vld [vmem:[%s4 + $0xd0] sm:$0xf]
      %v4987 = vld [vmem:[%s4 + $0xd4] sm:$0xf]
      %v4988 = vld [vmem:[%s4 + $0xd8] sm:$0xf]
      %v4989 = vld [vmem:[%s4 + $0xdc] sm:$0xf]
      %v4990 = vld [vmem:[%s4 + $0xe0] sm:$0xf]
      %v4991 = vld [vmem:[%s4 + $0xe4] sm:$0xf]
      %v4992 = vld [vmem:[%s4 + $0xe8] sm:$0xf]
      %v4993 = vld [vmem:[%s4 + $0xec] sm:$0xf]
      %v4994 = vld [vmem:[%s4 + $0xf0] sm:$0xf]
      %v4995 = vld [vmem:[%s4 + $0xf4] sm:$0xf]
      %v4996 = vld [vmem:[%s4 + $0xf8] sm:$0xf]
      %v4997 = vld [vmem:[%s4 + $0xfc] sm:$0xf]
      %v4998 = vld [vmem:[%s4 + $0x100] sm:$0xf]
      %v4999 = vld [vmem:[%s4 + $0x104] sm:$0xf]
      %v5000 = vld [vmem:[%s4 + $0x108] sm:$0xf]
      %v5001 = vld [vmem:[%s4 + $0x10c] sm:$0xf]
      %v5002 = vld [vmem:[%s4 + $0x110] sm:$0xf]
      %v5003 = vld [vmem:[%s4 + $0x114] sm:$0xf]
      %v5004 = vld [vmem:[%s4 + $0x118] sm:$0xf]
      %v5005 = vld [vmem:[%s4 + $0x11c] sm:$0xf]
      %v5102 = vunpack.c.l.b16 %v4838
      %v5103 = vunpack.c.h.b16 %v4838
      %v5104 = vunpack.c.l.b16 %v4839
      %v5105 = vunpack.c.h.b16 %v4839
      %v5106 = vunpack.c.l.b16 %v4840
      %v5107 = vunpack.c.l.b16 %v4841
      %v5108 = vunpack.c.h.b16 %v4841
      %v5109 = vunpack.c.l.b16 %v4842
      %v5110 = vunpack.c.h.b16 %v4842
      %v5111 = vunpack.c.l.b16 %v4843
      %v5112 = vunpack.c.l.b16 %v4844
      %v5113 = vunpack.c.h.b16 %v4844
      %v5114 = vunpack.c.l.b16 %v4845
      %v5115 = vunpack.c.h.b16 %v4845
      %v5116 = vunpack.c.l.b16 %v4846
      %v5117 = vunpack.c.l.b16 %v4847
      %v5118 = vunpack.c.h.b16 %v4847
      %v5119 = vunpack.c.l.b16 %v4848
      %v5120 = vunpack.c.h.b16 %v4848
      %v5121 = vunpack.c.l.b16 %v4849
      %v5122 = vunpack.c.l.b16 %v4850
      %v5123 = vunpack.c.h.b16 %v4850
      %v5124 = vunpack.c.l.b16 %v4851
      %v5125 = vunpack.c.h.b16 %v4851
      %v5126 = vunpack.c.l.b16 %v4852
      %v5127 = vunpack.c.l.b16 %v4853
      %v5128 = vunpack.c.h.b16 %v4853
      %v5129 = vunpack.c.l.b16 %v4854
      %v5130 = vunpack.c.h.b16 %v4854
      %v5131 = vunpack.c.l.b16 %v4855
      %v5132 = vunpack.c.l.b16 %v4856
      %v5133 = vunpack.c.h.b16 %v4856
      %v5134 = vunpack.c.l.b16 %v4857
      %v5135 = vunpack.c.h.b16 %v4857
      %v5136 = vunpack.c.l.b16 %v4858
      %v5137 = vunpack.c.l.b16 %v4859
      %v5138 = vunpack.c.h.b16 %v4859
      %v5139 = vunpack.c.l.b16 %v4860
      %v5140 = vunpack.c.h.b16 %v4860
      %v5141 = vunpack.c.l.b16 %v4861
      %v5142 = vunpack.c.l.b16 %v4862
      %v5143 = vunpack.c.h.b16 %v4862
      %v5144 = vunpack.c.l.b16 %v4863
      %v5145 = vunpack.c.h.b16 %v4863
      %v5146 = vunpack.c.l.b16 %v4864
      %v5147 = vunpack.c.l.b16 %v4865
      %v5148 = vunpack.c.h.b16 %v4865
      %v5149 = vunpack.c.l.b16 %v4866
      %v5150 = vunpack.c.h.b16 %v4866
      %v5151 = vunpack.c.l.b16 %v4867
      %v5152 = vunpack.c.l.b16 %v4868
      %v5153 = vunpack.c.h.b16 %v4868
      %v5154 = vunpack.c.l.b16 %v4869
      %v5155 = vunpack.c.h.b16 %v4869
      %v5156 = vunpack.c.l.b16 %v4870
      %v5157 = vunpack.c.l.b16 %v4871
      %v5158 = vunpack.c.h.b16 %v4871
      %v5159 = vunpack.c.l.b16 %v4872
      %v5160 = vunpack.c.h.b16 %v4872
      %v5161 = vunpack.c.l.b16 %v4873
      %v5162 = vunpack.c.l.b16 %v4874
      %v5163 = vunpack.c.h.b16 %v4874
      %v5164 = vunpack.c.l.b16 %v4875
      %v5165 = vunpack.c.h.b16 %v4875
      %v5166 = vunpack.c.l.b16 %v4876
      %v5167 = vunpack.c.l.b16 %v4877
      %v5168 = vunpack.c.h.b16 %v4877
      %v5169 = vunpack.c.l.b16 %v4878
      %v5170 = vunpack.c.h.b16 %v4878
      %v5171 = vunpack.c.l.b16 %v4879
      %v5172 = vunpack.c.l.b16 %v4880
      %v5173 = vunpack.c.h.b16 %v4880
      %v5174 = vunpack.c.l.b16 %v4881
      %v5175 = vunpack.c.h.b16 %v4881
      %v5176 = vunpack.c.l.b16 %v4882
      %v5177 = vunpack.c.l.b16 %v4883
      %v5178 = vunpack.c.h.b16 %v4883
      %v5179 = vunpack.c.l.b16 %v4884
      %v5180 = vunpack.c.h.b16 %v4884
      %v5181 = vunpack.c.l.b16 %v4885
      %v5182 = vunpack.c.l.b16 %v4886
      %v5183 = vunpack.c.h.b16 %v4886
      %v5184 = vunpack.c.l.b16 %v4887
      %v5185 = vunpack.c.h.b16 %v4887
      %v5186 = vunpack.c.l.b16 %v4888
      %v5187 = vunpack.c.l.b16 %v4889
      %v5188 = vunpack.c.h.b16 %v4889
      %v5189 = vunpack.c.l.b16 %v4890
      %v5190 = vunpack.c.h.b16 %v4890
      %v5191 = vunpack.c.l.b16 %v4891
      %v5192 = vunpack.c.l.b16 %v4892
      %v5193 = vunpack.c.h.b16 %v4892
      %v5194 = vunpack.c.l.b16 %v4893
      %v5195 = vunpack.c.h.b16 %v4893
      %v5196 = vunpack.c.l.b16 %v4894
      %v5197 = vunpack.c.l.b16 %v4895
      %v5198 = vunpack.c.h.b16 %v4895
      %v5199 = vunpack.c.l.b16 %v4896
      %v5200 = vunpack.c.h.b16 %v4896
      %v5201 = vunpack.c.l.b16 %v4897
      %v5202 = vunpack.c.l.b16 %v4898
      %v5203 = vunpack.c.h.b16 %v4898
      %v5204 = vunpack.c.l.b16 %v4899
      %v5205 = vunpack.c.h.b16 %v4899
      %v5206 = vunpack.c.l.b16 %v4900
      %v5207 = vunpack.c.l.b16 %v4901
      %v5208 = vunpack.c.h.b16 %v4901
      %v5209 = vunpack.c.l.b16 %v4902
      %v5210 = vunpack.c.h.b16 %v4902
      %v5211 = vunpack.c.l.b16 %v4903
      %v5212 = vunpack.c.l.b16 %v4904
      %v5213 = vunpack.c.h.b16 %v4904
      %v5214 = vunpack.c.l.b16 %v4905
      %v5215 = vunpack.c.h.b16 %v4905
      %v5216 = vunpack.c.l.b16 %v4906
      %v5217 = vunpack.c.l.b16 %v4907
      %v5218 = vunpack.c.h.b16 %v4907
      %v5219 = vunpack.c.l.b16 %v4908
      %v5220 = vunpack.c.h.b16 %v4908
      %v5221 = vunpack.c.l.b16 %v4909
      %v5222 = vunpack.c.l.b16 %v4910
      %v5223 = vunpack.c.h.b16 %v4910
      %v5224 = vunpack.c.l.b16 %v4911
      %v5225 = vunpack.c.h.b16 %v4911
      %v5226 = vunpack.c.l.b16 %v4912
      %v5227 = vunpack.c.l.b16 %v4913
      %v5228 = vunpack.c.h.b16 %v4913
      %v5229 = vunpack.c.l.b16 %v4914
      %v5230 = vunpack.c.h.b16 %v4914
      %v5231 = vunpack.c.l.b16 %v4915
      %v5232 = vunpack.c.l.b16 %v4916
      %v5233 = vunpack.c.h.b16 %v4916
      %v5234 = vunpack.c.l.b16 %v4917
      %v5235 = vunpack.c.h.b16 %v4917
      %v5236 = vunpack.c.l.b16 %v4918
      %v5237 = vunpack.c.l.b16 %v4919
      %v5238 = vunpack.c.h.b16 %v4919
      %v5239 = vunpack.c.l.b16 %v4920
      %v5240 = vunpack.c.h.b16 %v4920
      %v5241 = vunpack.c.l.b16 %v4921
      %v5242 = vunpack.c.l.b16 %v4922
      %v5243 = vunpack.c.h.b16 %v4922
      %v5244 = vunpack.c.l.b16 %v4923
      %v5245 = vunpack.c.h.b16 %v4923
      %v5246 = vunpack.c.l.b16 %v4924
      %v5247 = vunpack.c.l.b16 %v4925
      %v5248 = vunpack.c.h.b16 %v4925
      %v5249 = vunpack.c.l.b16 %v4926
      %v5250 = vunpack.c.h.b16 %v4926
      %v5251 = vunpack.c.l.b16 %v4927
      %v5252 = vunpack.c.l.b16 %v4928
      %v5253 = vunpack.c.h.b16 %v4928
      %v5254 = vunpack.c.l.b16 %v4929
      %v5255 = vunpack.c.h.b16 %v4929
      %v5256 = vunpack.c.l.b16 %v4930
      %v5257 = vunpack.c.l.b16 %v4931
      %v5258 = vunpack.c.h.b16 %v4931
      %v5259 = vunpack.c.l.b16 %v4932
      %v5260 = vunpack.c.h.b16 %v4932
      %v5261 = vunpack.c.l.b16 %v4933
      %v5262 = vpack.c.b16 %v5107, %v5102
      %v5263 = vpack.c.b16 %v5108, %v5103
      %v5264 = vpack.c.b16 %v5109, %v5104
      %v5265 = vpack.c.b16 %v5110, %v5105
      %v5266 = vpack.c.b16 %v5111, %v5106
      %v5267 = vpack.c.b16 %v5117, %v5112
      %v5268 = vpack.c.b16 %v5118, %v5113
      %v5269 = vpack.c.b16 %v5119, %v5114
      %v5270 = vpack.c.b16 %v5120, %v5115
      %v5271 = vpack.c.b16 %v5121, %v5116
      %v5272 = vpack.c.b16 %v5127, %v5122
      %v5273 = vpack.c.b16 %v5128, %v5123
      %v5274 = vpack.c.b16 %v5129, %v5124
      %v5275 = vpack.c.b16 %v5130, %v5125
      %v5276 = vpack.c.b16 %v5131, %v5126
      %v5277 = vpack.c.b16 %v5137, %v5132
      %v5278 = vpack.c.b16 %v5138, %v5133
      %v5279 = vpack.c.b16 %v5139, %v5134
      %v5280 = vpack.c.b16 %v5140, %v5135
      %v5281 = vpack.c.b16 %v5141, %v5136
      %v5282 = vpack.c.b16 %v5147, %v5142
      %v5283 = vpack.c.b16 %v5148, %v5143
      %v5284 = vpack.c.b16 %v5149, %v5144
      %v5285 = vpack.c.b16 %v5150, %v5145
      %v5286 = vpack.c.b16 %v5151, %v5146
      %v5287 = vpack.c.b16 %v5157, %v5152
      %v5288 = vpack.c.b16 %v5158, %v5153
      %v5289 = vpack.c.b16 %v5159, %v5154
      %v5290 = vpack.c.b16 %v5160, %v5155
      %v5291 = vpack.c.b16 %v5161, %v5156
      %v5292 = vpack.c.b16 %v5167, %v5162
      %v5293 = vpack.c.b16 %v5168, %v5163
      %v5294 = vpack.c.b16 %v5169, %v5164
      %v5295 = vpack.c.b16 %v5170, %v5165
      %v5296 = vpack.c.b16 %v5171, %v5166
      %v5297 = vpack.c.b16 %v5177, %v5172
      %v5298 = vpack.c.b16 %v5178, %v5173
      %v5299 = vpack.c.b16 %v5179, %v5174
      %v5300 = vpack.c.b16 %v5180, %v5175
      %v5301 = vpack.c.b16 %v5181, %v5176
      %v5302 = vpack.c.b16 %v5187, %v5182
      %v5303 = vpack.c.b16 %v5188, %v5183
      %v5304 = vpack.c.b16 %v5189, %v5184
      %v5305 = vpack.c.b16 %v5190, %v5185
      %v5306 = vpack.c.b16 %v5191, %v5186
      %v5307 = vpack.c.b16 %v5197, %v5192
      %v5308 = vpack.c.b16 %v5198, %v5193
      %v5309 = vpack.c.b16 %v5199, %v5194
      %v5310 = vpack.c.b16 %v5200, %v5195
      %v5311 = vpack.c.b16 %v5201, %v5196
      %v5312 = vpack.c.b16 %v5207, %v5202
      %v5313 = vpack.c.b16 %v5208, %v5203
      %v5314 = vpack.c.b16 %v5209, %v5204
      %v5315 = vpack.c.b16 %v5210, %v5205
      %v5316 = vpack.c.b16 %v5211, %v5206
      %v5317 = vpack.c.b16 %v5217, %v5212
      %v5318 = vpack.c.b16 %v5218, %v5213
      %v5319 = vpack.c.b16 %v5219, %v5214
      %v5320 = vpack.c.b16 %v5220, %v5215
      %v5321 = vpack.c.b16 %v5221, %v5216
      %v5322 = vpack.c.b16 %v5227, %v5222
      %v5323 = vpack.c.b16 %v5228, %v5223
      %v5324 = vpack.c.b16 %v5229, %v5224
      %v5325 = vpack.c.b16 %v5230, %v5225
      %v5326 = vpack.c.b16 %v5231, %v5226
      %v5327 = vpack.c.b16 %v5237, %v5232
      %v5328 = vpack.c.b16 %v5238, %v5233
      %v5329 = vpack.c.b16 %v5239, %v5234
      %v5330 = vpack.c.b16 %v5240, %v5235
      %v5331 = vpack.c.b16 %v5241, %v5236
      %v5332 = vpack.c.b16 %v5247, %v5242
      %v5333 = vpack.c.b16 %v5248, %v5243
      %v5334 = vpack.c.b16 %v5249, %v5244
      %v5335 = vpack.c.b16 %v5250, %v5245
      %v5336 = vpack.c.b16 %v5251, %v5246
      %v5337 = vpack.c.b16 %v5257, %v5252
      %v5338 = vpack.c.b16 %v5258, %v5253
      %v5339 = vpack.c.b16 %v5259, %v5254
      %v5340 = vpack.c.b16 %v5260, %v5255
      %v5341 = vpack.c.b16 %v5261, %v5256
      %v5478 = vunpack.c.l.b16 %v4934
      %v5479 = vunpack.c.l.b16 %v4935
      %v5480 = vunpack.c.l.b16 %v4936
      %v5481 = vunpack.c.l.b16 %v4937
      %v5482 = vunpack.c.l.b16 %v4938
      %v5483 = vunpack.c.l.b16 %v4939
      %v5484 = vunpack.c.l.b16 %v4940
      %v5485 = vunpack.c.l.b16 %v4941
      %v5486 = vunpack.c.l.b16 %v4942
      %v5487 = vunpack.c.l.b16 %v4943
      %v5488 = vunpack.c.l.b16 %v4944
      %v5489 = vunpack.c.l.b16 %v4945
      %v5490 = vunpack.c.l.b16 %v4946
      %v5491 = vunpack.c.l.b16 %v4947
      %v5492 = vunpack.c.l.b16 %v4948
      %v5493 = vunpack.c.l.b16 %v4949
      %v5494 = vunpack.c.l.b16 %v4950
      %v5495 = vunpack.c.l.b16 %v4951
      %v5496 = vunpack.c.l.b16 %v4952
      %v5497 = vunpack.c.l.b16 %v4953
      %v5498 = vunpack.c.l.b16 %v4954
      %v5499 = vunpack.c.l.b16 %v4955
      %v5500 = vunpack.c.l.b16 %v4956
      %v5501 = vunpack.c.l.b16 %v4957
      %v5502 = vunpack.c.l.b16 %v4958
      %v5503 = vunpack.c.l.b16 %v4959
      %v5504 = vunpack.c.l.b16 %v4960
      %v5505 = vunpack.c.l.b16 %v4961
      %v5506 = vunpack.c.l.b16 %v4962
      %v5507 = vunpack.c.l.b16 %v4963
      %v5508 = vunpack.c.l.b16 %v4964
      %v5509 = vunpack.c.l.b16 %v4965
      %v5510 = vunpack.c.l.b16 %v4966
      %v5511 = vunpack.c.l.b16 %v4967
      %v5512 = vunpack.c.l.b16 %v4968
      %v5513 = vunpack.c.l.b16 %v4969
      %v5514 = vunpack.c.l.b16 %v4970
      %v5515 = vunpack.c.l.b16 %v4971
      %v5516 = vunpack.c.l.b16 %v4972
      %v5517 = vunpack.c.l.b16 %v4973
      %v5518 = vunpack.c.l.b16 %v4974
      %v5519 = vunpack.c.l.b16 %v4975
      %v5520 = vunpack.c.l.b16 %v4976
      %v5521 = vunpack.c.l.b16 %v4977
      %v5522 = vunpack.c.l.b16 %v4978
      %v5523 = vunpack.c.l.b16 %v4979
      %v5524 = vunpack.c.l.b16 %v4980
      %v5525 = vunpack.c.l.b16 %v4981
      %v5526 = vunpack.c.l.b16 %v4982
      %v5527 = vunpack.c.l.b16 %v4983
      %v5528 = vunpack.c.l.b16 %v4984
      %v5529 = vunpack.c.l.b16 %v4985
      %v5530 = vunpack.c.l.b16 %v4986
      %v5531 = vunpack.c.l.b16 %v4987
      %v5532 = vunpack.c.l.b16 %v4988
      %v5533 = vunpack.c.l.b16 %v4989
      %v5534 = vunpack.c.l.b16 %v4990
      %v5535 = vunpack.c.l.b16 %v4991
      %v5536 = vunpack.c.l.b16 %v4992
      %v5537 = vunpack.c.l.b16 %v4993
      %v5538 = vunpack.c.l.b16 %v4994
      %v5539 = vunpack.c.l.b16 %v4995
      %v5540 = vunpack.c.l.b16 %v4996
      %v5541 = vunpack.c.l.b16 %v4997
      %v5542 = vunpack.c.l.b16 %v4998
      %v5543 = vunpack.c.l.b16 %v4999
      %v5544 = vunpack.c.l.b16 %v5000
      %v5545 = vunpack.c.l.b16 %v5001
      %v5546 = vunpack.c.l.b16 %v5002
      %v5547 = vunpack.c.l.b16 %v5003
      %v5548 = vunpack.c.l.b16 %v5004
      %v5549 = vunpack.c.l.b16 %v5005
      %v5550 = vpack.c.b16 %v5479, %v5478
      %v5551 = vpack.c.b16 %v5481, %v5480
      %v5552 = vpack.c.b16 %v5483, %v5482
      %v5553 = vpack.c.b16 %v5485, %v5484
      %v5554 = vpack.c.b16 %v5487, %v5486
      %v5555 = vpack.c.b16 %v5489, %v5488
      %v5556 = vpack.c.b16 %v5491, %v5490
      %v5557 = vpack.c.b16 %v5493, %v5492
      %v5558 = vpack.c.b16 %v5495, %v5494
      %v5559 = vpack.c.b16 %v5497, %v5496
      %v5560 = vpack.c.b16 %v5499, %v5498
      %v5561 = vpack.c.b16 %v5501, %v5500
      %v5562 = vpack.c.b16 %v5503, %v5502
      %v5563 = vpack.c.b16 %v5505, %v5504
      %v5564 = vpack.c.b16 %v5507, %v5506
      %v5565 = vpack.c.b16 %v5509, %v5508
      %v5566 = vpack.c.b16 %v5511, %v5510
      %v5567 = vpack.c.b16 %v5513, %v5512
      %v5568 = vpack.c.b16 %v5515, %v5514
      %v5569 = vpack.c.b16 %v5517, %v5516
      %v5570 = vpack.c.b16 %v5519, %v5518
      %v5571 = vpack.c.b16 %v5521, %v5520
      %v5572 = vpack.c.b16 %v5523, %v5522
      %v5573 = vpack.c.b16 %v5525, %v5524
      %v5574 = vpack.c.b16 %v5527, %v5526
      %v5575 = vpack.c.b16 %v5529, %v5528
      %v5576 = vpack.c.b16 %v5531, %v5530
      %v5577 = vpack.c.b16 %v5533, %v5532
      %v5578 = vpack.c.b16 %v5535, %v5534
      %v5579 = vpack.c.b16 %v5537, %v5536
      %v5580 = vpack.c.b16 %v5539, %v5538
      %v5581 = vpack.c.b16 %v5541, %v5540
      %v5582 = vpack.c.b16 %v5543, %v5542
      %v5583 = vpack.c.b16 %v5545, %v5544
      %v5584 = vpack.c.b16 %v5547, %v5546
      %v5585 = vpack.c.b16 %v5549, %v5548
      %v5623 = vsel %vm283, %v5266, 0
      %v5626 = vsel %vm283, %v5271, 0
      %v5629 = vsel %vm283, %v5276, 0
      %v5632 = vsel %vm283, %v5281, 0
      %v5635 = vsel %vm283, %v5286, 0
      %v5638 = vsel %vm283, %v5291, 0
      %v5641 = vsel %vm283, %v5296, 0
      %v5644 = vsel %vm283, %v5301, 0
      %v5647 = vsel %vm283, %v5306, 0
      %v5650 = vsel %vm283, %v5311, 0
      %v5653 = vsel %vm283, %v5316, 0
      %v5656 = vsel %vm283, %v5321, 0
      %v5659 = vsel %vm283, %v5326, 0
      %v5662 = vsel %vm283, %v5331, 0
      %v5665 = vsel %vm283, %v5336, 0
      %v5668 = vsel %vm283, %v5341, 0
      %5670 = vmatpush.bf16.msra.mxu0 %v5557
      %5671 = vmatpush.bf16.msra.mxu0 %v5556
      %5672 = vmatpush.bf16.msra.mxu0 %v5555
      %5673 = vmatpush.bf16.msra.mxu0 %v5554
      %5674 = vmatpush.bf16.msra.mxu0 %v5553
      %5675 = vmatpush.bf16.msra.mxu0 %v5552
      %5676 = vmatpush.bf16.msra.mxu0 %v5551
      %5677 = vmatpush.bf16.msra.mxu0 %v5550
      %5678 = vmatmul.bf16.gmra.mxu0 %v5262
      %v5679 = vpop.f32.mrf.mxu0
      %v5680 = vadd.f32 0.0, %v5679
      %v5681 = vpop.f32.mrf.mxu0
      %v5682 = vadd.f32 0.0, %v5681
      %5683 = vmatmul.bf16.gmra.mxu0 %v5267
      %v5684 = vpop.f32.mrf.mxu0
      %v5685 = vadd.f32 0.0, %v5684
      %v5686 = vpop.f32.mrf.mxu0
      %v5687 = vadd.f32 0.0, %v5686
      %5688 = vmatmul.bf16.gmra.mxu0 %v5272
      %v5689 = vpop.f32.mrf.mxu0
      %v5690 = vadd.f32 0.0, %v5689
      %v5691 = vpop.f32.mrf.mxu0
      %v5692 = vadd.f32 0.0, %v5691
      %5693 = vmatmul.bf16.gmra.mxu0 %v5277
      %v5694 = vpop.f32.mrf.mxu0
      %v5695 = vadd.f32 0.0, %v5694
      %v5696 = vpop.f32.mrf.mxu0
      %v5697 = vadd.f32 0.0, %v5696
      %5698 = vmatmul.bf16.gmra.mxu0 %v5282
      %v5699 = vpop.f32.mrf.mxu0
      %v5700 = vadd.f32 0.0, %v5699
      %v5701 = vpop.f32.mrf.mxu0
      %v5702 = vadd.f32 0.0, %v5701
      %5703 = vmatmul.bf16.gmra.mxu0 %v5287
      %v5704 = vpop.f32.mrf.mxu0
      %v5705 = vadd.f32 0.0, %v5704
      %v5706 = vpop.f32.mrf.mxu0
      %v5707 = vadd.f32 0.0, %v5706
      %5708 = vmatmul.bf16.gmra.mxu0 %v5292
      %v5709 = vpop.f32.mrf.mxu0
      %v5710 = vadd.f32 0.0, %v5709
      %v5711 = vpop.f32.mrf.mxu0
      %v5712 = vadd.f32 0.0, %v5711
      %5713 = vmatmul.bf16.gmra.mxu0 %v5297
      %v5714 = vpop.f32.mrf.mxu0
      %v5715 = vadd.f32 0.0, %v5714
      %v5716 = vpop.f32.mrf.mxu0
      %v5717 = vadd.f32 0.0, %v5716
      %5718 = vmatmul.bf16.gmra.mxu0 %v5302
      %v5719 = vpop.f32.mrf.mxu0
      %v5720 = vadd.f32 0.0, %v5719
      %v5721 = vpop.f32.mrf.mxu0
      %v5722 = vadd.f32 0.0, %v5721
      %5723 = vmatmul.bf16.gmra.mxu0 %v5307
      %v5724 = vpop.f32.mrf.mxu0
      %v5725 = vadd.f32 0.0, %v5724
      %v5726 = vpop.f32.mrf.mxu0
      %v5727 = vadd.f32 0.0, %v5726
      %5728 = vmatmul.bf16.gmra.mxu0 %v5312
      %v5729 = vpop.f32.mrf.mxu0
      %v5730 = vadd.f32 0.0, %v5729
      %v5731 = vpop.f32.mrf.mxu0
      %v5732 = vadd.f32 0.0, %v5731
      %5733 = vmatmul.bf16.gmra.mxu0 %v5317
      %v5734 = vpop.f32.mrf.mxu0
      %v5735 = vadd.f32 0.0, %v5734
      %v5736 = vpop.f32.mrf.mxu0
      %v5737 = vadd.f32 0.0, %v5736
      %5738 = vmatmul.bf16.gmra.mxu0 %v5322
      %v5739 = vpop.f32.mrf.mxu0
      %v5740 = vadd.f32 0.0, %v5739
      %v5741 = vpop.f32.mrf.mxu0
      %v5742 = vadd.f32 0.0, %v5741
      %5743 = vmatmul.bf16.gmra.mxu0 %v5327
      %v5744 = vpop.f32.mrf.mxu0
      %v5745 = vadd.f32 0.0, %v5744
      %v5746 = vpop.f32.mrf.mxu0
      %v5747 = vadd.f32 0.0, %v5746
      %5748 = vmatmul.bf16.gmra.mxu0 %v5332
      %v5749 = vpop.f32.mrf.mxu0
      %v5750 = vadd.f32 0.0, %v5749
      %v5751 = vpop.f32.mrf.mxu0
      %v5752 = vadd.f32 0.0, %v5751
      %5753 = vmatmul.bf16.gmra.mxu0 %v5337
      %v5754 = vpop.f32.mrf.mxu0
      %v5755 = vadd.f32 0.0, %v5754
      %v5756 = vpop.f32.mrf.mxu0
      %v5757 = vadd.f32 0.0, %v5756
      %5758 = vdwg.mxu0
      %5759 = vmatpush.bf16.msra.mxu0 %v5565
      %5760 = vmatpush.bf16.msra.mxu0 %v5564
      %5761 = vmatpush.bf16.msra.mxu0 %v5563
      %5762 = vmatpush.bf16.msra.mxu0 %v5562
      %5763 = vmatpush.bf16.msra.mxu0 %v5561
      %5764 = vmatpush.bf16.msra.mxu0 %v5560
      %5765 = vmatpush.bf16.msra.mxu0 %v5559
      %5766 = vmatpush.bf16.msra.mxu0 %v5558
      %5767 = vmatmul.bf16.gmra.mxu0 %v5263
      %v5768 = vpop.f32.mrf.mxu0
      %v5769 = vadd.f32 %v5680, %v5768
      %v5770 = vpop.f32.mrf.mxu0
      %v5771 = vadd.f32 %v5682, %v5770
      %5772 = vmatmul.bf16.gmra.mxu0 %v5268
      %v5773 = vpop.f32.mrf.mxu0
      %v5774 = vadd.f32 %v5685, %v5773
      %v5775 = vpop.f32.mrf.mxu0
      %v5776 = vadd.f32 %v5687, %v5775
      %5777 = vmatmul.bf16.gmra.mxu0 %v5273
      %v5778 = vpop.f32.mrf.mxu0
      %v5779 = vadd.f32 %v5690, %v5778
      %v5780 = vpop.f32.mrf.mxu0
      %v5781 = vadd.f32 %v5692, %v5780
      %5782 = vmatmul.bf16.gmra.mxu0 %v5278
      %v5783 = vpop.f32.mrf.mxu0
      %v5784 = vadd.f32 %v5695, %v5783
      %v5785 = vpop.f32.mrf.mxu0
      %v5786 = vadd.f32 %v5697, %v5785
      %5787 = vmatmul.bf16.gmra.mxu0 %v5283
      %v5788 = vpop.f32.mrf.mxu0
      %v5789 = vadd.f32 %v5700, %v5788
      %v5790 = vpop.f32.mrf.mxu0
      %v5791 = vadd.f32 %v5702, %v5790
      %5792 = vmatmul.bf16.gmra.mxu0 %v5288
      %v5793 = vpop.f32.mrf.mxu0
      %v5794 = vadd.f32 %v5705, %v5793
      %v5795 = vpop.f32.mrf.mxu0
      %v5796 = vadd.f32 %v5707, %v5795
      %5797 = vmatmul.bf16.gmra.mxu0 %v5293
      %v5798 = vpop.f32.mrf.mxu0
      %v5799 = vadd.f32 %v5710, %v5798
      %v5800 = vpop.f32.mrf.mxu0
      %v5801 = vadd.f32 %v5712, %v5800
      %5802 = vmatmul.bf16.gmra.mxu0 %v5298
      %v5803 = vpop.f32.mrf.mxu0
      %v5804 = vadd.f32 %v5715, %v5803
      %v5805 = vpop.f32.mrf.mxu0
      %v5806 = vadd.f32 %v5717, %v5805
      %5807 = vmatmul.bf16.gmra.mxu0 %v5303
      %v5808 = vpop.f32.mrf.mxu0
      %v5809 = vadd.f32 %v5720, %v5808
      %v5810 = vpop.f32.mrf.mxu0
      %v5811 = vadd.f32 %v5722, %v5810
      %5812 = vmatmul.bf16.gmra.mxu0 %v5308
      %v5813 = vpop.f32.mrf.mxu0
      %v5814 = vadd.f32 %v5725, %v5813
      %v5815 = vpop.f32.mrf.mxu0
      %v5816 = vadd.f32 %v5727, %v5815
      %5817 = vmatmul.bf16.gmra.mxu0 %v5313
      %v5818 = vpop.f32.mrf.mxu0
      %v5819 = vadd.f32 %v5730, %v5818
      %v5820 = vpop.f32.mrf.mxu0
      %v5821 = vadd.f32 %v5732, %v5820
      %5822 = vmatmul.bf16.gmra.mxu0 %v5318
      %v5823 = vpop.f32.mrf.mxu0
      %v5824 = vadd.f32 %v5735, %v5823
      %v5825 = vpop.f32.mrf.mxu0
      %v5826 = vadd.f32 %v5737, %v5825
      %5827 = vmatmul.bf16.gmra.mxu0 %v5323
      %v5828 = vpop.f32.mrf.mxu0
      %v5829 = vadd.f32 %v5740, %v5828
      %v5830 = vpop.f32.mrf.mxu0
      %v5831 = vadd.f32 %v5742, %v5830
      %5832 = vmatmul.bf16.gmra.mxu0 %v5328
      %v5833 = vpop.f32.mrf.mxu0
      %v5834 = vadd.f32 %v5745, %v5833
      %v5835 = vpop.f32.mrf.mxu0
      %v5836 = vadd.f32 %v5747, %v5835
      %5837 = vmatmul.bf16.gmra.mxu0 %v5333
      %v5838 = vpop.f32.mrf.mxu0
      %v5839 = vadd.f32 %v5750, %v5838
      %v5840 = vpop.f32.mrf.mxu0
      %v5841 = vadd.f32 %v5752, %v5840
      %5842 = vmatmul.bf16.gmra.mxu0 %v5338
      %v5843 = vpop.f32.mrf.mxu0
      %v5844 = vadd.f32 %v5755, %v5843
      %v5845 = vpop.f32.mrf.mxu0
      %v5846 = vadd.f32 %v5757, %v5845
      %5847 = vdwg.mxu0
      %5848 = vmatpush.bf16.msra.mxu0 %v5573
      %5849 = vmatpush.bf16.msra.mxu0 %v5572
      %5850 = vmatpush.bf16.msra.mxu0 %v5571
      %5851 = vmatpush.bf16.msra.mxu0 %v5570
      %5852 = vmatpush.bf16.msra.mxu0 %v5569
      %5853 = vmatpush.bf16.msra.mxu0 %v5568
      %5854 = vmatpush.bf16.msra.mxu0 %v5567
      %5855 = vmatpush.bf16.msra.mxu0 %v5566
      %5856 = vmatmul.bf16.gmra.mxu0 %v5264
      %v5857 = vpop.f32.mrf.mxu0
      %v5858 = vadd.f32 %v5769, %v5857
      %v5859 = vpop.f32.mrf.mxu0
      %v5860 = vadd.f32 %v5771, %v5859
      %5861 = vmatmul.bf16.gmra.mxu0 %v5269
      %v5862 = vpop.f32.mrf.mxu0
      %v5863 = vadd.f32 %v5774, %v5862
      %v5864 = vpop.f32.mrf.mxu0
      %v5865 = vadd.f32 %v5776, %v5864
      %5866 = vmatmul.bf16.gmra.mxu0 %v5274
      %v5867 = vpop.f32.mrf.mxu0
      %v5868 = vadd.f32 %v5779, %v5867
      %v5869 = vpop.f32.mrf.mxu0
      %v5870 = vadd.f32 %v5781, %v5869
      %5871 = vmatmul.bf16.gmra.mxu0 %v5279
      %v5872 = vpop.f32.mrf.mxu0
      %v5873 = vadd.f32 %v5784, %v5872
      %v5874 = vpop.f32.mrf.mxu0
      %v5875 = vadd.f32 %v5786, %v5874
      %5876 = vmatmul.bf16.gmra.mxu0 %v5284
      %v5877 = vpop.f32.mrf.mxu0
      %v5878 = vadd.f32 %v5789, %v5877
      %v5879 = vpop.f32.mrf.mxu0
      %v5880 = vadd.f32 %v5791, %v5879
      %5881 = vmatmul.bf16.gmra.mxu0 %v5289
      %v5882 = vpop.f32.mrf.mxu0
      %v5883 = vadd.f32 %v5794, %v5882
      %v5884 = vpop.f32.mrf.mxu0
      %v5885 = vadd.f32 %v5796, %v5884
      %5886 = vmatmul.bf16.gmra.mxu0 %v5294
      %v5887 = vpop.f32.mrf.mxu0
      %v5888 = vadd.f32 %v5799, %v5887
      %v5889 = vpop.f32.mrf.mxu0
      %v5890 = vadd.f32 %v5801, %v5889
      %5891 = vmatmul.bf16.gmra.mxu0 %v5299
      %v5892 = vpop.f32.mrf.mxu0
      %v5893 = vadd.f32 %v5804, %v5892
      %v5894 = vpop.f32.mrf.mxu0
      %v5895 = vadd.f32 %v5806, %v5894
      %5896 = vmatmul.bf16.gmra.mxu0 %v5304
      %v5897 = vpop.f32.mrf.mxu0
      %v5898 = vadd.f32 %v5809, %v5897
      %v5899 = vpop.f32.mrf.mxu0
      %v5900 = vadd.f32 %v5811, %v5899
      %5901 = vmatmul.bf16.gmra.mxu0 %v5309
      %v5902 = vpop.f32.mrf.mxu0
      %v5903 = vadd.f32 %v5814, %v5902
      %v5904 = vpop.f32.mrf.mxu0
      %v5905 = vadd.f32 %v5816, %v5904
      %5906 = vmatmul.bf16.gmra.mxu0 %v5314
      %v5907 = vpop.f32.mrf.mxu0
      %v5908 = vadd.f32 %v5819, %v5907
      %v5909 = vpop.f32.mrf.mxu0
      %v5910 = vadd.f32 %v5821, %v5909
      %5911 = vmatmul.bf16.gmra.mxu0 %v5319
      %v5912 = vpop.f32.mrf.mxu0
      %v5913 = vadd.f32 %v5824, %v5912
      %v5914 = vpop.f32.mrf.mxu0
      %v5915 = vadd.f32 %v5826, %v5914
      %5916 = vmatmul.bf16.gmra.mxu0 %v5324
      %v5917 = vpop.f32.mrf.mxu0
      %v5918 = vadd.f32 %v5829, %v5917
      %v5919 = vpop.f32.mrf.mxu0
      %v5920 = vadd.f32 %v5831, %v5919
      %5921 = vmatmul.bf16.gmra.mxu0 %v5329
      %v5922 = vpop.f32.mrf.mxu0
      %v5923 = vadd.f32 %v5834, %v5922
      %v5924 = vpop.f32.mrf.mxu0
      %v5925 = vadd.f32 %v5836, %v5924
      %5926 = vmatmul.bf16.gmra.mxu0 %v5334
      %v5927 = vpop.f32.mrf.mxu0
      %v5928 = vadd.f32 %v5839, %v5927
      %v5929 = vpop.f32.mrf.mxu0
      %v5930 = vadd.f32 %v5841, %v5929
      %5931 = vmatmul.bf16.gmra.mxu0 %v5339
      %v5932 = vpop.f32.mrf.mxu0
      %v5933 = vadd.f32 %v5844, %v5932
      %v5934 = vpop.f32.mrf.mxu0
      %v5935 = vadd.f32 %v5846, %v5934
      %5936 = vdwg.mxu0
      %5937 = vmatpush.bf16.msra.mxu0 %v5581
      %5938 = vmatpush.bf16.msra.mxu0 %v5580
      %5939 = vmatpush.bf16.msra.mxu0 %v5579
      %5940 = vmatpush.bf16.msra.mxu0 %v5578
      %5941 = vmatpush.bf16.msra.mxu0 %v5577
      %5942 = vmatpush.bf16.msra.mxu0 %v5576
      %5943 = vmatpush.bf16.msra.mxu0 %v5575
      %5944 = vmatpush.bf16.msra.mxu0 %v5574
      %5945 = vmatmul.bf16.gmra.mxu0 %v5265
      %v5946 = vpop.f32.mrf.mxu0
      %v5947 = vadd.f32 %v5858, %v5946
      %v5948 = vpop.f32.mrf.mxu0
      %v5949 = vadd.f32 %v5860, %v5948
      %5950 = vmatmul.bf16.gmra.mxu0 %v5270
      %v5951 = vpop.f32.mrf.mxu0
      %v5952 = vadd.f32 %v5863, %v5951
      %v5953 = vpop.f32.mrf.mxu0
      %v5954 = vadd.f32 %v5865, %v5953
      %5955 = vmatmul.bf16.gmra.mxu0 %v5275
      %v5956 = vpop.f32.mrf.mxu0
      %v5957 = vadd.f32 %v5868, %v5956
      %v5958 = vpop.f32.mrf.mxu0
      %v5959 = vadd.f32 %v5870, %v5958
      %5960 = vmatmul.bf16.gmra.mxu0 %v5280
      %v5961 = vpop.f32.mrf.mxu0
      %v5962 = vadd.f32 %v5873, %v5961
      %v5963 = vpop.f32.mrf.mxu0
      %v5964 = vadd.f32 %v5875, %v5963
      %5965 = vmatmul.bf16.gmra.mxu0 %v5285
      %v5966 = vpop.f32.mrf.mxu0
      %v5967 = vadd.f32 %v5878, %v5966
      %v5968 = vpop.f32.mrf.mxu0
      %v5969 = vadd.f32 %v5880, %v5968
      %5970 = vmatmul.bf16.gmra.mxu0 %v5290
      %v5971 = vpop.f32.mrf.mxu0
      %v5972 = vadd.f32 %v5883, %v5971
      %v5973 = vpop.f32.mrf.mxu0
      %v5974 = vadd.f32 %v5885, %v5973
      %5975 = vmatmul.bf16.gmra.mxu0 %v5295
      %v5976 = vpop.f32.mrf.mxu0
      %v5977 = vadd.f32 %v5888, %v5976
      %v5978 = vpop.f32.mrf.mxu0
      %v5979 = vadd.f32 %v5890, %v5978
      %5980 = vmatmul.bf16.gmra.mxu0 %v5300
      %v5981 = vpop.f32.mrf.mxu0
      %v5982 = vadd.f32 %v5893, %v5981
      %v5983 = vpop.f32.mrf.mxu0
      %v5984 = vadd.f32 %v5895, %v5983
      %5985 = vmatmul.bf16.gmra.mxu0 %v5305
      %v5986 = vpop.f32.mrf.mxu0
      %v5987 = vadd.f32 %v5898, %v5986
      %v5988 = vpop.f32.mrf.mxu0
      %v5989 = vadd.f32 %v5900, %v5988
      %5990 = vmatmul.bf16.gmra.mxu0 %v5310
      %v5991 = vpop.f32.mrf.mxu0
      %v5992 = vadd.f32 %v5903, %v5991
      %v5993 = vpop.f32.mrf.mxu0
      %v5994 = vadd.f32 %v5905, %v5993
      %5995 = vmatmul.bf16.gmra.mxu0 %v5315
      %v5996 = vpop.f32.mrf.mxu0
      %v5997 = vadd.f32 %v5908, %v5996
      %v5998 = vpop.f32.mrf.mxu0
      %v5999 = vadd.f32 %v5910, %v5998
      %6000 = vmatmul.bf16.gmra.mxu0 %v5320
      %v6001 = vpop.f32.mrf.mxu0
      %v6002 = vadd.f32 %v5913, %v6001
      %v6003 = vpop.f32.mrf.mxu0
      %v6004 = vadd.f32 %v5915, %v6003
      %6005 = vmatmul.bf16.gmra.mxu0 %v5325
      %v6006 = vpop.f32.mrf.mxu0
      %v6007 = vadd.f32 %v5918, %v6006
      %v6008 = vpop.f32.mrf.mxu0
      %v6009 = vadd.f32 %v5920, %v6008
      %6010 = vmatmul.bf16.gmra.mxu0 %v5330
      %v6011 = vpop.f32.mrf.mxu0
      %v6012 = vadd.f32 %v5923, %v6011
      %v6013 = vpop.f32.mrf.mxu0
      %v6014 = vadd.f32 %v5925, %v6013
      %6015 = vmatmul.bf16.gmra.mxu0 %v5335
      %v6016 = vpop.f32.mrf.mxu0
      %v6017 = vadd.f32 %v5928, %v6016
      %v6018 = vpop.f32.mrf.mxu0
      %v6019 = vadd.f32 %v5930, %v6018
      %6020 = vmatmul.bf16.gmra.mxu0 %v5340
      %v6021 = vpop.f32.mrf.mxu0
      %v6022 = vadd.f32 %v5933, %v6021
      %v6023 = vpop.f32.mrf.mxu0
      %v6024 = vadd.f32 %v5935, %v6023
      %6025 = vdwg.mxu0
      %6026 = vmatpush.bf16.msra.mxu0 0
      %6027 = vmatpush.bf16.msra.mxu0 0
      %6028 = vmatpush.bf16.msra.mxu0 0
      %6029 = vmatpush.bf16.msra.mxu0 0
      %6030 = vmatpush.bf16.msra.mxu0 %v5585
      %6031 = vmatpush.bf16.msra.mxu0 %v5584
      %6032 = vmatpush.bf16.msra.mxu0 %v5583
      %6033 = vmatpush.bf16.msra.mxu0 %v5582
      %6034 = vmatmul.bf16.gmra.mxu0 %v5623
      %v6035 = vpop.f32.mrf.mxu0
      %v6036 = vadd.f32 %v5947, %v6035
      %v6037 = vpop.f32.mrf.mxu0
      %v6038 = vadd.f32 %v5949, %v6037
      %6039 = vmatmul.bf16.gmra.mxu0 %v5626
      %v6040 = vpop.f32.mrf.mxu0
      %v6041 = vadd.f32 %v5952, %v6040
      %v6042 = vpop.f32.mrf.mxu0
      %v6043 = vadd.f32 %v5954, %v6042
      %6044 = vmatmul.bf16.gmra.mxu0 %v5629
      %v6045 = vpop.f32.mrf.mxu0
      %v6046 = vadd.f32 %v5957, %v6045
      %v6047 = vpop.f32.mrf.mxu0
      %v6048 = vadd.f32 %v5959, %v6047
      %6049 = vmatmul.bf16.gmra.mxu0 %v5632
      %v6050 = vpop.f32.mrf.mxu0
      %v6051 = vadd.f32 %v5962, %v6050
      %v6052 = vpop.f32.mrf.mxu0
      %v6053 = vadd.f32 %v5964, %v6052
      %6054 = vmatmul.bf16.gmra.mxu0 %v5635
      %v6055 = vpop.f32.mrf.mxu0
      %v6056 = vadd.f32 %v5967, %v6055
      %v6057 = vpop.f32.mrf.mxu0
      %v6058 = vadd.f32 %v5969, %v6057
      %6059 = vmatmul.bf16.gmra.mxu0 %v5638
      %v6060 = vpop.f32.mrf.mxu0
      %v6061 = vadd.f32 %v5972, %v6060
      %v6062 = vpop.f32.mrf.mxu0
      %v6063 = vadd.f32 %v5974, %v6062
      %6064 = vmatmul.bf16.gmra.mxu0 %v5641
      %v6065 = vpop.f32.mrf.mxu0
      %v6066 = vadd.f32 %v5977, %v6065
      %v6067 = vpop.f32.mrf.mxu0
      %v6068 = vadd.f32 %v5979, %v6067
      %6069 = vmatmul.bf16.gmra.mxu0 %v5644
      %v6070 = vpop.f32.mrf.mxu0
      %v6071 = vadd.f32 %v5982, %v6070
      %v6072 = vpop.f32.mrf.mxu0
      %v6073 = vadd.f32 %v5984, %v6072
      %6074 = vmatmul.bf16.gmra.mxu0 %v5647
      %v6075 = vpop.f32.mrf.mxu0
      %v6076 = vadd.f32 %v5987, %v6075
      %v6077 = vpop.f32.mrf.mxu0
      %v6078 = vadd.f32 %v5989, %v6077
      %6079 = vmatmul.bf16.gmra.mxu0 %v5650
      %v6080 = vpop.f32.mrf.mxu0
      %v6081 = vadd.f32 %v5992, %v6080
      %v6082 = vpop.f32.mrf.mxu0
      %v6083 = vadd.f32 %v5994, %v6082
      %6084 = vmatmul.bf16.gmra.mxu0 %v5653
      %v6085 = vpop.f32.mrf.mxu0
      %v6086 = vadd.f32 %v5997, %v6085
      %v6087 = vpop.f32.mrf.mxu0
      %v6088 = vadd.f32 %v5999, %v6087
      %6089 = vmatmul.bf16.gmra.mxu0 %v5656
      %v6090 = vpop.f32.mrf.mxu0
      %v6091 = vadd.f32 %v6002, %v6090
      %v6092 = vpop.f32.mrf.mxu0
      %v6093 = vadd.f32 %v6004, %v6092
      %6094 = vmatmul.bf16.gmra.mxu0 %v5659
      %v6095 = vpop.f32.mrf.mxu0
      %v6096 = vadd.f32 %v6007, %v6095
      %v6097 = vpop.f32.mrf.mxu0
      %v6098 = vadd.f32 %v6009, %v6097
      %6099 = vmatmul.bf16.gmra.mxu0 %v5662
      %v6100 = vpop.f32.mrf.mxu0
      %v6101 = vadd.f32 %v6012, %v6100
      %v6102 = vpop.f32.mrf.mxu0
      %v6103 = vadd.f32 %v6014, %v6102
      %6104 = vmatmul.bf16.gmra.mxu0 %v5665
      %v6105 = vpop.f32.mrf.mxu0
      %v6106 = vadd.f32 %v6017, %v6105
      %v6107 = vpop.f32.mrf.mxu0
      %v6108 = vadd.f32 %v6019, %v6107
      %6109 = vmatmul.bf16.gmra.mxu0 %v5668
      %v6110 = vpop.f32.mrf.mxu0
      %v6111 = vadd.f32 %v6022, %v6110
      %v6112 = vpop.f32.mrf.mxu0
      %v6113 = vadd.f32 %v6024, %v6112
      %6114 = vdwg.mxu0
      %v6115 = vsel %vm283, %v6036, 0.0
      %v6116 = vsel %vm283, %v6038, 0.0
      %v6117 = vadd.f32 %v6115, %v6116
      %v6118 = vsel %vm283, %v6041, 0.0
      %v6119 = vadd.f32 %v6117, %v6118
      %v6120 = vsel %vm283, %v6043, 0.0
      %v6121 = vadd.f32 %v6119, %v6120
      %v6122 = vsel %vm283, %v6046, 0.0
      %v6123 = vadd.f32 %v6121, %v6122
      %v6124 = vsel %vm283, %v6048, 0.0
      %v6125 = vadd.f32 %v6123, %v6124
      %v6126 = vsel %vm283, %v6051, 0.0
      %v6127 = vadd.f32 %v6125, %v6126
      %v6128 = vsel %vm283, %v6053, 0.0
      %v6129 = vadd.f32 %v6127, %v6128
      %v6130 = vsel %vm283, %v6056, 0.0
      %v6131 = vadd.f32 %v6129, %v6130
      %v6132 = vsel %vm283, %v6058, 0.0
      %v6133 = vadd.f32 %v6131, %v6132
      %v6134 = vsel %vm283, %v6061, 0.0
      %v6135 = vadd.f32 %v6133, %v6134
      %v6136 = vsel %vm283, %v6063, 0.0
      %v6137 = vadd.f32 %v6135, %v6136
      %v6138 = vsel %vm283, %v6066, 0.0
      %v6139 = vadd.f32 %v6137, %v6138
      %v6140 = vsel %vm283, %v6068, 0.0
      %v6141 = vadd.f32 %v6139, %v6140
      %v6142 = vsel %vm283, %v6071, 0.0
      %v6143 = vadd.f32 %v6141, %v6142
      %v6144 = vsel %vm283, %v6073, 0.0
      %v6145 = vadd.f32 %v6143, %v6144
      %v6146 = vsel %vm283, %v6076, 0.0
      %v6147 = vadd.f32 %v6145, %v6146
      %v6148 = vsel %vm283, %v6078, 0.0
      %v6149 = vadd.f32 %v6147, %v6148
      %v6150 = vsel %vm283, %v6081, 0.0
      %v6151 = vadd.f32 %v6149, %v6150
      %v6152 = vsel %vm283, %v6083, 0.0
      %v6153 = vadd.f32 %v6151, %v6152
      %v6154 = vsel %vm283, %v6086, 0.0
      %v6155 = vadd.f32 %v6153, %v6154
      %v6156 = vsel %vm283, %v6088, 0.0
      %v6157 = vadd.f32 %v6155, %v6156
      %v6158 = vsel %vm283, %v6091, 0.0
      %v6159 = vadd.f32 %v6157, %v6158
      %v6160 = vsel %vm283, %v6093, 0.0
      %v6161 = vadd.f32 %v6159, %v6160
      %v6162 = vsel %vm283, %v6096, 0.0
      %v6163 = vadd.f32 %v6161, %v6162
      %v6164 = vsel %vm283, %v6098, 0.0
      %v6165 = vadd.f32 %v6163, %v6164
      %v6166 = vsel %vm283, %v6101, 0.0
      %v6167 = vadd.f32 %v6165, %v6166
      %v6168 = vsel %vm283, %v6103, 0.0
      %v6169 = vadd.f32 %v6167, %v6168
      %v6170 = vsel %vm283, %v6106, 0.0
      %v6171 = vadd.f32 %v6169, %v6170
      %v6172 = vsel %vm283, %v6108, 0.0
      %v6173 = vadd.f32 %v6171, %v6172
      %v6174 = vsel %vm283, %v6111, 0.0
      %v6175 = vadd.f32 %v6173, %v6174
      %v6176 = vsel %vm283, %v6113, 0.0
      %v6177 = vadd.f32 %v6175, %v6176
      %v6178 = vrot.slane %v6177, 4
      %v6179 = vadd.f32 %v6177, %v6178
      %v6180 = vrot.slane %v6179, 2
      %v6181 = vadd.f32 %v6179, %v6180
      %v6182 = vrot.slane %v6181, 1
      %v6183 = vadd.f32 %v6181, %v6182
      %v6184 = vmul.f32 %v6183, 0.00390625
      %v6185 = vsub.f32 %v6036, %v6184
      %v6186 = vsub.f32 %v6038, %v6184
      %v6187 = vsub.f32 %v6041, %v6184
      %v6188 = vsub.f32 %v6043, %v6184
      %v6189 = vsub.f32 %v6046, %v6184
      %v6190 = vsub.f32 %v6048, %v6184
      %v6191 = vsub.f32 %v6051, %v6184
      %v6192 = vsub.f32 %v6053, %v6184
      %v6193 = vsub.f32 %v6056, %v6184
      %v6194 = vsub.f32 %v6058, %v6184
      %v6195 = vsub.f32 %v6061, %v6184
      %v6196 = vsub.f32 %v6063, %v6184
      %v6197 = vsub.f32 %v6066, %v6184
      %v6198 = vsub.f32 %v6068, %v6184
      %v6199 = vsub.f32 %v6071, %v6184
      %v6200 = vsub.f32 %v6073, %v6184
      %v6201 = vsub.f32 %v6076, %v6184
      %v6202 = vsub.f32 %v6078, %v6184
      %v6203 = vsub.f32 %v6081, %v6184
      %v6204 = vsub.f32 %v6083, %v6184
      %v6205 = vsub.f32 %v6086, %v6184
      %v6206 = vsub.f32 %v6088, %v6184
      %v6207 = vsub.f32 %v6091, %v6184
      %v6208 = vsub.f32 %v6093, %v6184
      %v6209 = vsub.f32 %v6096, %v6184
      %v6210 = vsub.f32 %v6098, %v6184
      %v6211 = vsub.f32 %v6101, %v6184
      %v6212 = vsub.f32 %v6103, %v6184
      %v6213 = vsub.f32 %v6106, %v6184
      %v6214 = vsub.f32 %v6108, %v6184
      %v6215 = vsub.f32 %v6111, %v6184
      %v6216 = vsub.f32 %v6113, %v6184
      %v6217 = vmul.f32 %v6185, %v6185
      %v6218 = vmul.f32 %v6186, %v6186
      %v6219 = vmul.f32 %v6187, %v6187
      %v6220 = vmul.f32 %v6188, %v6188
      %v6221 = vmul.f32 %v6189, %v6189
      %v6222 = vmul.f32 %v6190, %v6190
      %v6223 = vmul.f32 %v6191, %v6191
      %v6224 = vmul.f32 %v6192, %v6192
      %v6225 = vmul.f32 %v6193, %v6193
      %v6226 = vmul.f32 %v6194, %v6194
      %v6227 = vmul.f32 %v6195, %v6195
      %v6228 = vmul.f32 %v6196, %v6196
      %v6229 = vmul.f32 %v6197, %v6197
      %v6230 = vmul.f32 %v6198, %v6198
      %v6231 = vmul.f32 %v6199, %v6199
      %v6232 = vmul.f32 %v6200, %v6200
      %v6233 = vmul.f32 %v6201, %v6201
      %v6234 = vmul.f32 %v6202, %v6202
      %v6235 = vmul.f32 %v6203, %v6203
      %v6236 = vmul.f32 %v6204, %v6204
      %v6237 = vmul.f32 %v6205, %v6205
      %v6238 = vmul.f32 %v6206, %v6206
      %v6239 = vmul.f32 %v6207, %v6207
      %v6240 = vmul.f32 %v6208, %v6208
      %v6241 = vmul.f32 %v6209, %v6209
      %v6242 = vmul.f32 %v6210, %v6210
      %v6243 = vmul.f32 %v6211, %v6211
      %v6244 = vmul.f32 %v6212, %v6212
      %v6245 = vmul.f32 %v6213, %v6213
      %v6246 = vmul.f32 %v6214, %v6214
      %v6247 = vmul.f32 %v6215, %v6215
      %v6248 = vmul.f32 %v6216, %v6216
      %v6249 = vsel %vm283, %v6217, 0.0
      %v6250 = vsel %vm283, %v6218, 0.0
      %v6251 = vadd.f32 %v6249, %v6250
      %v6252 = vsel %vm283, %v6219, 0.0
      %v6253 = vadd.f32 %v6251, %v6252
      %v6254 = vsel %vm283, %v6220, 0.0
      %v6255 = vadd.f32 %v6253, %v6254
      %v6256 = vsel %vm283, %v6221, 0.0
      %v6257 = vadd.f32 %v6255, %v6256
      %v6258 = vsel %vm283, %v6222, 0.0
      %v6259 = vadd.f32 %v6257, %v6258
      %v6260 = vsel %vm283, %v6223, 0.0
      %v6261 = vadd.f32 %v6259, %v6260
      %v6262 = vsel %vm283, %v6224, 0.0
      %v6263 = vadd.f32 %v6261, %v6262
      %v6264 = vsel %vm283, %v6225, 0.0
      %v6265 = vadd.f32 %v6263, %v6264
      %v6266 = vsel %vm283, %v6226, 0.0
      %v6267 = vadd.f32 %v6265, %v6266
      %v6268 = vsel %vm283, %v6227, 0.0
      %v6269 = vadd.f32 %v6267, %v6268
      %v6270 = vsel %vm283, %v6228, 0.0
      %v6271 = vadd.f32 %v6269, %v6270
      %v6272 = vsel %vm283, %v6229, 0.0
      %v6273 = vadd.f32 %v6271, %v6272
      %v6274 = vsel %vm283, %v6230, 0.0
      %v6275 = vadd.f32 %v6273, %v6274
      %v6276 = vsel %vm283, %v6231, 0.0
      %v6277 = vadd.f32 %v6275, %v6276
      %v6278 = vsel %vm283, %v6232, 0.0
      %v6279 = vadd.f32 %v6277, %v6278
      %v6280 = vsel %vm283, %v6233, 0.0
      %v6281 = vadd.f32 %v6279, %v6280
      %v6282 = vsel %vm283, %v6234, 0.0
      %v6283 = vadd.f32 %v6281, %v6282
      %v6284 = vsel %vm283, %v6235, 0.0
      %v6285 = vadd.f32 %v6283, %v6284
      %v6286 = vsel %vm283, %v6236, 0.0
      %v6287 = vadd.f32 %v6285, %v6286
      %v6288 = vsel %vm283, %v6237, 0.0
      %v6289 = vadd.f32 %v6287, %v6288
      %v6290 = vsel %vm283, %v6238, 0.0
      %v6291 = vadd.f32 %v6289, %v6290
      %v6292 = vsel %vm283, %v6239, 0.0
      %v6293 = vadd.f32 %v6291, %v6292
      %v6294 = vsel %vm283, %v6240, 0.0
      %v6295 = vadd.f32 %v6293, %v6294
      %v6296 = vsel %vm283, %v6241, 0.0
      %v6297 = vadd.f32 %v6295, %v6296
      %v6298 = vsel %vm283, %v6242, 0.0
      %v6299 = vadd.f32 %v6297, %v6298
      %v6300 = vsel %vm283, %v6243, 0.0
      %v6301 = vadd.f32 %v6299, %v6300
      %v6302 = vsel %vm283, %v6244, 0.0
      %v6303 = vadd.f32 %v6301, %v6302
      %v6304 = vsel %vm283, %v6245, 0.0
      %v6305 = vadd.f32 %v6303, %v6304
      %v6306 = vsel %vm283, %v6246, 0.0
      %v6307 = vadd.f32 %v6305, %v6306
      %v6308 = vsel %vm283, %v6247, 0.0
      %v6309 = vadd.f32 %v6307, %v6308
      %v6310 = vsel %vm283, %v6248, 0.0
      %v6311 = vadd.f32 %v6309, %v6310
      %v6312 = vrot.slane %v6311, 4
      %v6313 = vadd.f32 %v6311, %v6312
      %v6314 = vrot.slane %v6313, 2
      %v6315 = vadd.f32 %v6313, %v6314
      %v6316 = vrot.slane %v6315, 1
      %v6317 = vadd.f32 %v6315, %v6316
      %v6318 = vmul.f32 %v6317, 0.00390625
      %v6319 = vld [vmem:[%s5] sm:$0x1]
      %v6320 = vadd.f32 %v6318, 1e-05
      %v6321 = vrsqrt.pop %v6320
      %v6322 = vmul.f32 %v6321, %v6320
      %v6323 = vmul.f32 %v6322, %v6321
      %v6324 = vmul.f32 0.5, %v6323
      %v6325 = vsub.f32 1.5, %v6324
      %v6326 = vmul.f32 %v6321, %v6325
      %vm6327 = vweird.f32 %v6320
      %vm6328 = vweird.f32 %v6321
      %vm6329 = vmor %vm6327, %vm6328
      %v6330 = vsel %vm6329, %v6321, %v6326
      %v6331 = vmul.f32 %v6319, %v6330
      %v6333 = vperm.slane %v6331, 0
      %v6335 = vmul.f32 %v6185, %v6333
      %v6336 = vmul.f32 %v6186, %v6333
      %v6337 = vmul.f32 %v6187, %v6333
      %v6338 = vmul.f32 %v6188, %v6333
      %v6339 = vmul.f32 %v6189, %v6333
      %v6340 = vmul.f32 %v6190, %v6333
      %v6341 = vmul.f32 %v6191, %v6333
      %v6342 = vmul.f32 %v6192, %v6333
      %v6343 = vmul.f32 %v6193, %v6333
      %v6344 = vmul.f32 %v6194, %v6333
      %v6345 = vmul.f32 %v6195, %v6333
      %v6346 = vmul.f32 %v6196, %v6333
      %v6347 = vmul.f32 %v6197, %v6333
      %v6348 = vmul.f32 %v6198, %v6333
      %v6349 = vmul.f32 %v6199, %v6333
      %v6350 = vmul.f32 %v6200, %v6333
      %v6351 = vmul.f32 %v6201, %v6333
      %v6352 = vmul.f32 %v6202, %v6333
      %v6353 = vmul.f32 %v6203, %v6333
      %v6354 = vmul.f32 %v6204, %v6333
      %v6355 = vmul.f32 %v6205, %v6333
      %v6356 = vmul.f32 %v6206, %v6333
      %v6357 = vmul.f32 %v6207, %v6333
      %v6358 = vmul.f32 %v6208, %v6333
      %v6359 = vmul.f32 %v6209, %v6333
      %v6360 = vmul.f32 %v6210, %v6333
      %v6361 = vmul.f32 %v6211, %v6333
      %v6362 = vmul.f32 %v6212, %v6333
      %v6363 = vmul.f32 %v6213, %v6333
      %v6364 = vmul.f32 %v6214, %v6333
      %v6365 = vmul.f32 %v6215, %v6333
      %v6366 = vmul.f32 %v6216, %v6333
      %v6367 = vld [vmem:[%s6] sm:$0x1]
      %v6369 = vperm.slane %v6367, 0
      %v6371 = vadd.f32 %v6335, %v6369
      %v6372 = vadd.f32 %v6336, %v6369
      %v6373 = vadd.f32 %v6337, %v6369
      %v6374 = vadd.f32 %v6338, %v6369
      %v6375 = vadd.f32 %v6339, %v6369
      %v6376 = vadd.f32 %v6340, %v6369
      %v6377 = vadd.f32 %v6341, %v6369
      %v6378 = vadd.f32 %v6342, %v6369
      %v6379 = vadd.f32 %v6343, %v6369
      %v6380 = vadd.f32 %v6344, %v6369
      %v6381 = vadd.f32 %v6345, %v6369
      %v6382 = vadd.f32 %v6346, %v6369
      %v6383 = vadd.f32 %v6347, %v6369
      %v6384 = vadd.f32 %v6348, %v6369
      %v6385 = vadd.f32 %v6349, %v6369
      %v6386 = vadd.f32 %v6350, %v6369
      %v6387 = vadd.f32 %v6351, %v6369
      %v6388 = vadd.f32 %v6352, %v6369
      %v6389 = vadd.f32 %v6353, %v6369
      %v6390 = vadd.f32 %v6354, %v6369
      %v6391 = vadd.f32 %v6355, %v6369
      %v6392 = vadd.f32 %v6356, %v6369
      %v6393 = vadd.f32 %v6357, %v6369
      %v6394 = vadd.f32 %v6358, %v6369
      %v6395 = vadd.f32 %v6359, %v6369
      %v6396 = vadd.f32 %v6360, %v6369
      %v6397 = vadd.f32 %v6361, %v6369
      %v6398 = vadd.f32 %v6362, %v6369
      %v6399 = vadd.f32 %v6363, %v6369
      %v6400 = vadd.f32 %v6364, %v6369
      %v6401 = vadd.f32 %v6365, %v6369
      %v6402 = vadd.f32 %v6366, %v6369
      %v6403 = vadd.f32 %v6371, %v326
      %v6404 = vadd.f32 %v6372, %v327
      %v6405 = vadd.f32 %v6373, %v328
      %v6406 = vadd.f32 %v6374, %v329
      %v6407 = vadd.f32 %v6375, %v330
      %v6408 = vadd.f32 %v6376, %v331
      %v6409 = vadd.f32 %v6377, %v332
      %v6410 = vadd.f32 %v6378, %v333
      %v6411 = vadd.f32 %v6379, %v334
      %v6412 = vadd.f32 %v6380, %v335
      %v6413 = vadd.f32 %v6381, %v336
      %v6414 = vadd.f32 %v6382, %v337
      %v6415 = vadd.f32 %v6383, %v338
      %v6416 = vadd.f32 %v6384, %v339
      %v6417 = vadd.f32 %v6385, %v340
      %v6418 = vadd.f32 %v6386, %v341
      %v6419 = vadd.f32 %v6387, %v342
      %v6420 = vadd.f32 %v6388, %v343
      %v6421 = vadd.f32 %v6389, %v344
      %v6422 = vadd.f32 %v6390, %v345
      %v6423 = vadd.f32 %v6391, %v346
      %v6424 = vadd.f32 %v6392, %v347
      %v6425 = vadd.f32 %v6393, %v348
      %v6426 = vadd.f32 %v6394, %v349
      %v6427 = vadd.f32 %v6395, %v350
      %v6428 = vadd.f32 %v6396, %v351
      %v6429 = vadd.f32 %v6397, %v352
      %v6430 = vadd.f32 %v6398, %v353
      %v6431 = vadd.f32 %v6399, %v354
      %v6432 = vadd.f32 %v6400, %v355
      %v6433 = vadd.f32 %v6401, %v356
      %v6434 = vadd.f32 %v6402, %v357
      %6435 = vst.msk [vmem:[%s280] sm:$0xff] %vm283, %v6403
      %6436 = vst.msk [vmem:[%s280 + $0x8] sm:$0xff] %vm283, %v6404
      %6437 = vst.msk [vmem:[%s280 + $0x10] sm:$0xff] %vm283, %v6405
      %6438 = vst.msk [vmem:[%s280 + $0x18] sm:$0xff] %vm283, %v6406
      %6439 = vst.msk [vmem:[%s280 + $0x20] sm:$0xff] %vm283, %v6407
      %6440 = vst.msk [vmem:[%s280 + $0x28] sm:$0xff] %vm283, %v6408
      %6441 = vst.msk [vmem:[%s280 + $0x30] sm:$0xff] %vm283, %v6409
      %6442 = vst.msk [vmem:[%s280 + $0x38] sm:$0xff] %vm283, %v6410
      %6443 = vst.msk [vmem:[%s280 + $0x40] sm:$0xff] %vm283, %v6411
      %6444 = vst.msk [vmem:[%s280 + $0x48] sm:$0xff] %vm283, %v6412
      %6445 = vst.msk [vmem:[%s280 + $0x50] sm:$0xff] %vm283, %v6413
      %6446 = vst.msk [vmem:[%s280 + $0x58] sm:$0xff] %vm283, %v6414
      %6447 = vst.msk [vmem:[%s280 + $0x60] sm:$0xff] %vm283, %v6415
      %6448 = vst.msk [vmem:[%s280 + $0x68] sm:$0xff] %vm283, %v6416
      %6449 = vst.msk [vmem:[%s280 + $0x70] sm:$0xff] %vm283, %v6417
      %6450 = vst.msk [vmem:[%s280 + $0x78] sm:$0xff] %vm283, %v6418
      %6451 = vst.msk [vmem:[%s280 + $0x80] sm:$0xff] %vm283, %v6419
      %6452 = vst.msk [vmem:[%s280 + $0x88] sm:$0xff] %vm283, %v6420
      %6453 = vst.msk [vmem:[%s280 + $0x90] sm:$0xff] %vm283, %v6421
      %6454 = vst.msk [vmem:[%s280 + $0x98] sm:$0xff] %vm283, %v6422
      %6455 = vst.msk [vmem:[%s280 + $0xa0] sm:$0xff] %vm283, %v6423
      %6456 = vst.msk [vmem:[%s280 + $0xa8] sm:$0xff] %vm283, %v6424
      %6457 = vst.msk [vmem:[%s280 + $0xb0] sm:$0xff] %vm283, %v6425
      %6458 = vst.msk [vmem:[%s280 + $0xb8] sm:$0xff] %vm283, %v6426
      %6459 = vst.msk [vmem:[%s280 + $0xc0] sm:$0xff] %vm283, %v6427
      %6460 = vst.msk [vmem:[%s280 + $0xc8] sm:$0xff] %vm283, %v6428
      %6461 = vst.msk [vmem:[%s280 + $0xd0] sm:$0xff] %vm283, %v6429
      %6462 = vst.msk [vmem:[%s280 + $0xd8] sm:$0xff] %vm283, %v6430
      %6463 = vst.msk [vmem:[%s280 + $0xe0] sm:$0xff] %vm283, %v6431
      %6464 = vst.msk [vmem:[%s280 + $0xe8] sm:$0xff] %vm283, %v6432
      %6465 = vst.msk [vmem:[%s280 + $0xf0] sm:$0xff] %vm283, %v6433
      %6466 = vst.msk [vmem:[%s280 + $0xf8] sm:$0xff] %vm283, %v6434
      %s6467 = smul.u32 32, %s18
      %p6468 = scmp.lt.s32.totalorder %s6467, 63
      %s6469 = scalar_select %p6468, %s6467, 63
      %s6470 = smul.addr %s6469, 8
      %s6471 = scalar_lea.vmem %s7, %s6470
      // Predicated region
      $region49: #{tpu_custom_call.1} parent=47 // pred_check
        %p6472 = pneg %p188
      $region50: #{tpu_custom_call.1} parent=47 // pred_check_branch
        %6474 = sbr.rel (%p6472) target = $region52
      $region51: #{tpu_custom_call.1} parent=47 // pred_region
        %s6475 = smul.u32 32, %s18
      $region52: #{tpu_custom_call.1} parent=47 // pred_fallthru
        _
    $region48: #{tpu_custom_call.1} parent=5 // pred_fallthru
      _
    %p6476 = scmp.le.s32.totalorder 2, %s13
    // Predicated region
    $region53: #{tpu_custom_call.1} parent=5 // pred_check
      %p6477 = pneg %p6476
    $region54: #{tpu_custom_call.1} parent=5 // pred_check_branch
      %6479 = sbr.rel (%p6477) target = $region56
    $region55: #{tpu_custom_call.1} parent=5 // pred_region
      %s6480 = ssub.s32 %s13, 2
      // Predicated region
      $region57: #{tpu_custom_call.1} parent=55 // pred_check
        %p6481 = pneg %p194
      $region58: #{tpu_custom_call.1} parent=55 // pred_check_branch
        %6483 = sbr.rel (%p6481) target = $region60
      $region59: #{tpu_custom_call.1} parent=55 // pred_region
        %s6484 = smul.u32 32, %s19
        %p6485 = scmp.lt.s32.totalorder %s6484, 63
        %s6486 = scalar_select %p6485, %s6484, 63
        %s6487 = smul.addr %s6486, 8
        %s6488 = scalar_lea.vmem %s7, %s6487
      $region60: #{tpu_custom_call.1} parent=55 // pred_fallthru
        _
    $region56: #{tpu_custom_call.1} parent=5 // pred_fallthru
      _
  $region6: #{tpu_custom_call.1} parent=0 // loop_footer
    %s17 = sadd.s32 1, %s13
  $region7: #{tpu_custom_call.1} parent=0 // loop_footer_branch
    %12 = sbr.rel target = $region3
  $region8: #{tpu_custom_call.1} parent=0 // loop_exit
    _

</llo_original>
